<compile_context>
chip_gen: v6e
topology: v6e:2x2x1
jax: 0.10.0
libtpu: 0.0.40
codegen_flags: <defaults>
</compile_context>

<pallas_src>
import functools
import math

import jax
import jax.numpy as jnp
from jax.experimental import pallas as pl
from jax.experimental.pallas import tpu as pltpu


# ----------------------------- Pallas kernel ---------------------------------

def _ln(z, g, b, eps):
    mu = jnp.mean(z, axis=-1, keepdims=True)
    var = jnp.mean((z - mu) ** 2, axis=-1, keepdims=True)
    return (z - mu) * jax.lax.rsqrt(var + eps) * g + b


def _encoder_kernel(x_ref, qkv_ref, rest_ref, o_ref, *,
                    num_heads, set_size, block_batch, add_ln, pre_ln, eps,
                    residuals, d_ins, d_outs, d_ln1s, max_din, max_dout, precise):
    """Fused forward of all SAB blocks for a (block_batch, set_size) slab of sets."""
    nh = num_heads
    N = set_size
    Bt = block_batch
    M = Bt * N
    mxu = jnp.float32 if precise else jnp.bfloat16     # matmul operand dtype

    dk = qkv_ref.shape[-1] // (3 * nh)                  # == dv for every SAB in this encoder
    dv = dk
    vrow = nh * dv + max_dout                           # first row of the packed vectors

    x = x_ref[0].astype(jnp.float32)                    # (M, D_in), resident across blocks

    for blk, has_res in enumerate(residuals):           # static unroll over the 4 SABs
        d_in, d_out, d_ln1 = d_ins[blk], d_outs[blk], d_ln1s[blk]
        scale = 1.0 / math.sqrt(dk)

        qkv_slab = qkv_ref[blk]                         # (max_din + 1, 3*nh*dk)
        rest = rest_ref[blk]                            # (nh*dv + max_dout + 6, W)
        wqkv = qkv_slab[:d_in, :]                       # (d_in, 3*nh*dk)
        bqkv = qkv_slab[max_din:max_din + 1, :]         # (1, 3*nh*dk)
        wo = rest[:nh * dv, :d_out]                     # (nh*dv, d_out)
        wff = rest[nh * dv:nh * dv + d_out, :d_out]     # (d_out, d_out)
        bo = rest[vrow + 0:vrow + 1, :d_out]
        bff = rest[vrow + 1:vrow + 2, :d_out]
        g1 = rest[vrow + 2:vrow + 3, :d_ln1]
        b1 = rest[vrow + 3:vrow + 4, :d_ln1]
        g2 = rest[vrow + 4:vrow + 5, :d_out]
        b2 = rest[vrow + 5:vrow + 6, :d_out]

        h = _ln(x, g1, b1, eps) if (add_ln and pre_ln) else x

        # ---- one packed, lane-dense QKV projection: (M, d_in) @ (d_in, 3*nh*dk) ----
        qkv = jnp.dot(h.astype(mxu), wqkv.astype(mxu),
                      preferred_element_type=jnp.float32) + bqkv       # (M, 3*nh*dk) f32

        # head split via static 8-lane slices; fold (head, set) into one batch axis
        def split_heads(off, d):
            cols = [qkv[:, off + hd * d: off + (hd + 1) * d] for hd in range(nh)]
            return jnp.stack(cols, axis=0).reshape(nh * Bt, N, d)      # (nh*Bt, N, d)

        q = split_heads(0, dk)
        k = split_heads(nh * dk, dk)
        v = split_heads(2 * nh * dk, dv)

        s = jnp.einsum("bqd,bkd->bqk", q.astype(mxu), k.astype(mxu),
                       preferred_element_type=jnp.float32) * scale     # (nh*Bt, N, N)
        s = s - jnp.max(s, axis=-1, keepdims=True)
        p = jnp.exp(s)
        denom = jnp.sum(p, axis=-1, keepdims=True)
        p = (p / denom) if precise else (p * pl.reciprocal(denom, approx=True))
        o = jnp.einsum("bqk,bkd->bqd", p.astype(mxu), v.astype(mxu),
                       preferred_element_type=jnp.float32)             # (nh*Bt, N, dv)

        # ---- single output projection: head->lane repack, then (M, nh*dv) @ (nh*dv, d_out) --
        o = o.reshape(nh, M, dv)
        o_cat = jnp.concatenate([o[hd] for hd in range(nh)], axis=-1)  # (M, nh*dv)
        att = jnp.dot(o_cat.astype(mxu), wo.astype(mxu),
                      preferred_element_type=jnp.float32) + bo         # (M, d_out)

        z = x + att if has_res else att
        if add_ln and not pre_ln:
            z = _ln(z, g1, b1, eps)
        f = _ln(z, g2, b2, eps) if (add_ln and pre_ln) else z
        ff = jnp.maximum(jnp.dot(f.astype(mxu), wff.astype(mxu),
                                 preferred_element_type=jnp.float32) + bff, 0.0)
        z = z + ff
        if add_ln and not pre_ln:
            z = _ln(z, g2, b2, eps)

        x = z                                                          # stays in VMEM/vregs

    o_ref[0] = x.astype(o_ref.dtype)


# ----------------------------- wrapper ----------------------------------------

def _pack_encoder_params(all_params, num_heads):
    """Pack the 4 blocks x 14 PyTorch-Linear-layout arrays into TWO f32 slabs."""
    nh = num_heads
    n_blocks = len(all_params)
    d_ins, d_outs, d_ln1s = [], [], []
    for p in all_params:
        wq, bq, wk, bk, wv, bv, wo, bo, wff, bff, g1, b1, g2, b2 = p
        assert wq.shape[1] == wk.shape[1] == wv.shape[1] == all_params[0][0].shape[1]
        d_ins.append(wq.shape[0])
        d_outs.append(wo.shape[1])
        d_ln1s.append(g1.shape[1])
    qkv_w = 3 * all_params[0][0].shape[1]            # 3 * nh * dk (same for all blocks)
    dv = all_params[0][4].shape[1] // nh             # dim_hidden // nh
    max_din, max_dout = max(d_ins), max(d_outs)
    W = max(max(d_outs), max(d_ln1s))
    vrow = nh * dv + max_dout
    R = vrow + 6

    qkv_all = jnp.zeros((n_blocks, max_din + 1, qkv_w), jnp.float32)
    rest_all = jnp.zeros((n_blocks, R, W), jnp.float32)
    for i, p in enumerate(all_params):
        wq, bq, wk, bk, wv, bv, wo, bo, wff, bff, g1, b1, g2, b2 = p
        d_in, d_out, d_ln1 = d_ins[i], d_outs[i], d_ln1s[i]
        qkv_all = qkv_all.at[i, :d_in, :].set(jnp.concatenate([wq, wk, wv], axis=1))
        qkv_all = qkv_all.at[i, max_din, :].set(jnp.concatenate([bq, bk, bv], axis=1)[0])
        rest_all = rest_all.at[i, :nh * dv, :d_out].set(wo)
        rest_all = rest_all.at[i, nh * dv:nh * dv + d_out, :d_out].set(wff)
        rest_all = rest_all.at[i, vrow + 0, :d_out].set(bo[0])
        rest_all = rest_all.at[i, vrow + 1, :d_out].set(bff[0])
        rest_all = rest_all.at[i, vrow + 2, :d_ln1].set(g1[0])
        rest_all = rest_all.at[i, vrow + 3, :d_ln1].set(b1[0])
        rest_all = rest_all.at[i, vrow + 4, :d_out].set(g2[0])
        rest_all = rest_all.at[i, vrow + 5, :d_out].set(b2[0])
    meta = dict(d_ins=tuple(d_ins), d_outs=tuple(d_outs), d_ln1s=tuple(d_ln1s),
                max_din=max_din, max_dout=max_dout)
    return qkv_all, rest_all, meta


def _pick_block_batch(batch, set_size, num_heads, target_rows=512,
                      max_score_bytes=8 << 20):
    """Smallest divisor of `batch` whose M = Bt*N reaches `target_rows` (maximizes grid length
    for megacore sharding), preferring M that is a multiple of the MXU row count, while keeping
    the nh*Bt*N^2 f32 attention-score slab under `max_score_bytes`."""
    divs = [d for d in range(1, batch + 1) if batch % d == 0]
    ok = [d for d in divs if num_heads * d * set_size * set_size * 4 <= max_score_bytes]
    if not ok:
        ok = divs[:1]
    for rnd in (256, 128, 1):                        # 256 rows on v6e/v7x MXU, 128 on v5e
        for d in ok:
            rows = d * set_size
            if rows >= target_rows and rows % rnd == 0:
                return d
    return ok[-1]


def set_transformer_encoder(xs, all_params, *, num_heads, add_ln, pre_ln,
                            eps=1e-5, block_batch=None, precise=False):
    B, N, D_in = xs.shape
    if block_batch is None:
        block_batch = _pick_block_batch(B, N, num_heads)
    assert B % block_batch == 0
    G = B // block_batch
    M = block_batch * N

    qkv_all, rest_all, meta = _pack_encoder_params(all_params, num_heads)
    D_out = meta["d_outs"][-1]

    kernel = functools.partial(
        _encoder_kernel, num_heads=num_heads, set_size=N, block_batch=block_batch,
        add_ln=add_ln, pre_ln=pre_ln, eps=eps,
        residuals=(False,) + (True,) * (len(all_params) - 1),   # sab1 has no residual
        precise=precise, **meta)

    out = pl.pallas_call(
        kernel,
        out_shape=jax.ShapeDtypeStruct((G, M, D_out), xs.dtype),
        grid=(G,),
        in_specs=[
            pl.BlockSpec((1, M, D_in), lambda g: (g, 0, 0)),
            pl.BlockSpec(qkv_all.shape, lambda g: (0, 0, 0)),
            pl.BlockSpec(rest_all.shape, lambda g: (0, 0, 0)),
        ],
        out_specs=pl.BlockSpec((1, M, D_out), lambda g: (g, 0, 0)),
        compiler_params=pltpu.CompilerParams(
            dimension_semantics=("parallel",),
            # scoped VMEM default (16 MiB v5e / 32 MiB v6e+v7x) is far below physical;
            # raise it so a larger block_batch does not trip the scoped limit first.
            vmem_limit_bytes=48 * 1024 * 1024),
    )(xs.reshape(G, M, D_in), qkv_all, rest_all)
    return out.reshape(B, N, D_out)


# --------------------------- parameter init ----------------------------------

def init_sab_params(key, d_in, d_head, num_heads, d_out, pre_ln):
    dk = dv = d_head
    keys = jax.random.split(key, 5)

    def lin(k, fan_in, fan_out):
        bound = 1.0 / math.sqrt(fan_in)
        kw, kb = jax.random.split(k)
        w = jax.random.uniform(kw, (fan_in, fan_out), jnp.float32, -bound, bound)
        b = jax.random.uniform(kb, (1, fan_out), jnp.float32, -bound, bound)
        return w, b

    wq, bq = lin(keys[0], d_in, num_heads * dk)
    wk, bk = lin(keys[1], d_in, num_heads * dk)
    wv, bv = lin(keys[2], d_in, num_heads * dv)
    wo, bo = lin(keys[3], num_heads * dv, d_out)
    wff, bff = lin(keys[4], d_out, d_out)
    ln1_dim = d_in if pre_ln else d_out
    g1 = jnp.ones((1, ln1_dim), jnp.float32)
    b1 = jnp.zeros((1, ln1_dim), jnp.float32)
    g2 = jnp.ones((1, d_out), jnp.float32)
    b2 = jnp.zeros((1, d_out), jnp.float32)
    return (wq, bq, wk, bk, wv, bv, wo, bo, wff, bff, g1, b1, g2, b2)


def init_encoder_params(key, num_heads, dim_elements, dim_hidden, dim_out, pre_ln):
    d_head = dim_hidden // num_heads
    k1, k2, k3, k4 = jax.random.split(key, 4)
    return [
        init_sab_params(k1, dim_elements, d_head, num_heads, dim_hidden, pre_ln),  # sab1
        init_sab_params(k2, dim_hidden, d_head, num_heads, dim_hidden, pre_ln),    # sab2
        init_sab_params(k3, dim_hidden, d_head, num_heads, dim_hidden, pre_ln),    # sab3
        init_sab_params(k4, dim_hidden, d_head, num_heads, dim_out, pre_ln),       # sab4
    ]


# --------------------------- pure-JAX reference -------------------------------

def _ref_sab(x, params, num_heads, add_residual, add_ln, pre_ln, eps=1e-5):
    (wq, bq, wk, bk, wv, bv, wo, bo, wff, bff, g1, b1, g2, b2) = params
    dk = wq.shape[1] // num_heads
    dv = wv.shape[1] // num_heads
    B, N, _ = x.shape

    def ln(z, g, b):
        mu = z.mean(-1, keepdims=True)
        var = ((z - mu) ** 2).mean(-1, keepdims=True)
        return (z - mu) / jnp.sqrt(var + eps) * g + b

    h = ln(x, g1, b1) if (add_ln and pre_ln) else x
    q = (h @ wq + bq).reshape(B, N, num_heads, dk).transpose(0, 2, 1, 3)
    k = (h @ wk + bk).reshape(B, N, num_heads, dk).transpose(0, 2, 1, 3)
    v = (h @ wv + bv).reshape(B, N, num_heads, dv).transpose(0, 2, 1, 3)
    s = jnp.einsum('bhqd,bhkd->bhqk', q, k) / math.sqrt(dk)
    p = jax.nn.softmax(s, axis=-1)
    o = jnp.einsum('bhqk,bhkd->bhqd', p, v).transpose(0, 2, 1, 3).reshape(B, N, -1)
    att = o @ wo + bo
    z = x + att if add_residual else att
    if add_ln and not pre_ln:
        z = ln(z, g1, b1)
    f = ln(z, g2, b2) if (add_ln and pre_ln) else z
    z = z + jax.nn.relu(f @ wff + bff)
    if add_ln and not pre_ln:
        z = ln(z, g2, b2)
    return z


def _ref_encoder(xs, all_params, num_heads, add_ln, pre_ln):
    z = _ref_sab(xs, all_params[0], num_heads, False, add_ln, pre_ln)
    for p in all_params[1:]:
        z = _ref_sab(z, p, num_heads, True, add_ln, pre_ln)
    return z


# --------------------------------- main ---------------------------------------

if __name__ == "__main__":
    num_heads = 4
    dim_elements = 4
    dim_hidden = 32
    dim_out = 32
    add_layer_norm = True
    pre_ln = True

    B, N = 2, 8  # batch of 2 sets, 8 elements each

    key = jax.random.PRNGKey(0)
    kx, kp = jax.random.split(key)
    xs = jax.random.normal(kx, (B, N, dim_elements), jnp.float32)
    params = init_encoder_params(kp, num_heads, dim_elements, dim_hidden, dim_out, pre_ln)

    ref = jax.block_until_ready(
        _ref_encoder(xs, params, num_heads, add_layer_norm, pre_ln))

    # Parity path: f32 MXU operands + exact softmax reciprocal.
    out_precise = jax.block_until_ready(
        set_transformer_encoder(xs, params, num_heads=num_heads, add_ln=add_layer_norm,
                                pre_ln=pre_ln, precise=True))
    assert out_precise.shape == (B, N, dim_out)
    assert bool(jnp.all(jnp.isfinite(out_precise)))
    err_p = float(jnp.max(jnp.abs(out_precise - ref)))
    assert err_p < 2e-3, f"precise-path max abs err = {err_p}"

    # Fast (default) path: bf16 MXU operands + approx softmax reciprocal.
    out_fast = jax.block_until_ready(
        set_transformer_encoder(xs, params, num_heads=num_heads, add_ln=add_layer_norm,
                                pre_ln=pre_ln))
    assert out_fast.shape == (B, N, dim_out)
    assert bool(jnp.all(jnp.isfinite(out_fast)))
    err_f = float(jnp.max(jnp.abs(out_fast - ref)))
    tol_f = 6e-2 * float(jnp.max(jnp.abs(ref))) + 5e-2   # bf16 matmul operand rounding
    assert err_f < tol_f, f"fast-path max abs err = {err_f} (tol {tol_f})"

    print("KERNEL_OK")
</pallas_src>

<mosaic_0001>
module attributes {stable_mosaic.version = 11 : i64} {
  func.func @_encoder_kernel(%arg0: i32, %arg1: memref<1x16x4xf32, #tpu.memory_space<vmem>>, %arg2: memref<4x33x96xf32, #tpu.memory_space<vmem>>, %arg3: memref<4x70x32xf32, #tpu.memory_space<vmem>>, %arg4: memref<1x16x32xf32, #tpu.memory_space<vmem>>) attributes {dimension_semantics = [#tpu.dimension_semantics<parallel>], iteration_bounds = array<i64: 1>, scalar_prefetch = 0 : i64, scratch_operands = 0 : i64, tpu.core_type = #tpu.core_type<tc>, window_params = [{transform_indices = @transform_0, window_bounds = array<i64: 1, 16, 4>}, {pipeline_mode = #tpu.pipeline_mode<synchronous>, transform_indices = @transform_1, window_bounds = array<i64: 4, 33, 96>}, {pipeline_mode = #tpu.pipeline_mode<synchronous>, transform_indices = @transform_2, window_bounds = array<i64: 4, 70, 32>}, {transform_indices = @transform_3, window_bounds = array<i64: 1, 16, 32>}]} {
    %c0 = arith.constant 0 : index
    %c0_0 = arith.constant 0 : index
    %c0_1 = arith.constant 0 : index
    %0 = vector.load %arg1[%c0, %c0_0, %c0_1] : memref<1x16x4xf32, #tpu.memory_space<vmem>>, vector<1x16x4xf32>
    %1 = vector.shape_cast %0 : vector<1x16x4xf32> to vector<16x4xf32>
    %c0_2 = arith.constant 0 : index
    %c0_3 = arith.constant 0 : index
    %c0_4 = arith.constant 0 : index
    %2 = vector.load %arg2[%c0_2, %c0_3, %c0_4] : memref<4x33x96xf32, #tpu.memory_space<vmem>>, vector<1x33x96xf32>
    %3 = vector.shape_cast %2 : vector<1x33x96xf32> to vector<33x96xf32>
    %c0_5 = arith.constant 0 : index
    %c0_6 = arith.constant 0 : index
    %c0_7 = arith.constant 0 : index
    %4 = vector.load %arg3[%c0_5, %c0_6, %c0_7] : memref<4x70x32xf32, #tpu.memory_space<vmem>>, vector<1x70x32xf32>
    %5 = vector.shape_cast %4 : vector<1x70x32xf32> to vector<70x32xf32>
    %6 = vector.extract_strided_slice %3 {offsets = [0, 0], sizes = [4, 96], strides = [1, 1]} : vector<33x96xf32> to vector<4x96xf32>
    %7 = vector.extract_strided_slice %3 {offsets = [32, 0], sizes = [1, 96], strides = [1, 1]} : vector<33x96xf32> to vector<1x96xf32>
    %8 = vector.extract_strided_slice %5 {offsets = [0, 0], sizes = [32, 32], strides = [1, 1]} : vector<70x32xf32> to vector<32x32xf32>
    %9 = vector.extract_strided_slice %5 {offsets = [32, 0], sizes = [32, 32], strides = [1, 1]} : vector<70x32xf32> to vector<32x32xf32>
    %10 = vector.extract_strided_slice %5 {offsets = [64, 0], sizes = [1, 32], strides = [1, 1]} : vector<70x32xf32> to vector<1x32xf32>
    %11 = vector.extract_strided_slice %5 {offsets = [65, 0], sizes = [1, 32], strides = [1, 1]} : vector<70x32xf32> to vector<1x32xf32>
    %12 = vector.extract_strided_slice %5 {offsets = [66, 0], sizes = [1, 4], strides = [1, 1]} : vector<70x32xf32> to vector<1x4xf32>
    %13 = vector.extract_strided_slice %5 {offsets = [67, 0], sizes = [1, 4], strides = [1, 1]} : vector<70x32xf32> to vector<1x4xf32>
    %14 = vector.extract_strided_slice %5 {offsets = [68, 0], sizes = [1, 32], strides = [1, 1]} : vector<70x32xf32> to vector<1x32xf32>
    %15 = vector.extract_strided_slice %5 {offsets = [69, 0], sizes = [1, 32], strides = [1, 1]} : vector<70x32xf32> to vector<1x32xf32>
    %cst = arith.constant dense<0.000000e+00> : vector<16xf32>
    %16 = vector.multi_reduction <add>, %1, %cst [1] : vector<16x4xf32> to vector<16xf32>
    %17 = vector.shape_cast %16 : vector<16xf32> to vector<16x1xf32>
    %cst_8 = arith.constant 4.000000e+00 : f32
    %18 = vector.broadcast %cst_8 : f32 to vector<16x1xf32>
    %19 = arith.divf %17, %18 : vector<16x1xf32>
    %20 = vector.broadcast %19 : vector<16x1xf32> to vector<16x4xf32>
    %21 = arith.subf %1, %20 : vector<16x4xf32>
    %22 = arith.mulf %21, %21 : vector<16x4xf32>
    %cst_9 = arith.constant dense<0.000000e+00> : vector<16xf32>
    %23 = vector.multi_reduction <add>, %22, %cst_9 [1] : vector<16x4xf32> to vector<16xf32>
    %24 = vector.shape_cast %23 : vector<16xf32> to vector<16x1xf32>
    %cst_10 = arith.constant 4.000000e+00 : f32
    %25 = vector.broadcast %cst_10 : f32 to vector<16x1xf32>
    %26 = arith.divf %24, %25 : vector<16x1xf32>
    %27 = vector.broadcast %19 : vector<16x1xf32> to vector<16x4xf32>
    %28 = arith.subf %1, %27 : vector<16x4xf32>
    %cst_11 = arith.constant 9.99999974E-6 : f32
    %29 = vector.broadcast %cst_11 : f32 to vector<16x1xf32>
    %30 = arith.addf %26, %29 : vector<16x1xf32>
    %31 = math.rsqrt %30 : vector<16x1xf32>
    %32 = vector.broadcast %31 : vector<16x1xf32> to vector<16x4xf32>
    %33 = arith.mulf %28, %32 : vector<16x4xf32>
    %34 = vector.broadcast %12 : vector<1x4xf32> to vector<16x4xf32>
    %35 = arith.mulf %33, %34 : vector<16x4xf32>
    %36 = vector.broadcast %13 : vector<1x4xf32> to vector<16x4xf32>
    %37 = arith.addf %35, %36 : vector<16x4xf32>
    %cst_12 = arith.constant dense<0.000000e+00> : vector<16x96xf32>
    %38 = tpu.matmul %37, %6, %cst_12 {dimension_numbers = #tpu.dot_dimension_numbers<[1], [0], [0], [1], [0, 0, 1, 1], [], []>} : vector<16x4xf32>, vector<4x96xf32>, vector<16x96xf32> -> vector<16x96xf32>
    %39 = vector.broadcast %7 : vector<1x96xf32> to vector<16x96xf32>
    %40 = arith.addf %38, %39 : vector<16x96xf32>
    %41 = vector.extract_strided_slice %40 {offsets = [0, 0], sizes = [16, 8], strides = [1, 1]} : vector<16x96xf32> to vector<16x8xf32>
    %42 = vector.extract_strided_slice %40 {offsets = [0, 8], sizes = [16, 8], strides = [1, 1]} : vector<16x96xf32> to vector<16x8xf32>
    %43 = vector.extract_strided_slice %40 {offsets = [0, 16], sizes = [16, 8], strides = [1, 1]} : vector<16x96xf32> to vector<16x8xf32>
    %44 = vector.extract_strided_slice %40 {offsets = [0, 24], sizes = [16, 8], strides = [1, 1]} : vector<16x96xf32> to vector<16x8xf32>
    %45 = vector.shape_cast %41 : vector<16x8xf32> to vector<1x16x8xf32>
    %46 = vector.shape_cast %42 : vector<16x8xf32> to vector<1x16x8xf32>
    %47 = vector.shape_cast %43 : vector<16x8xf32> to vector<1x16x8xf32>
    %48 = vector.shape_cast %44 : vector<16x8xf32> to vector<1x16x8xf32>
    %49 = tpu.concatenate %45, %46, %47, %48 in 0 : vector<1x16x8xf32>, vector<1x16x8xf32>, vector<1x16x8xf32>, vector<1x16x8xf32> -> vector<4x16x8xf32>
    %50 = vector.shape_cast %49 : vector<4x16x8xf32> to vector<8x8x8xf32>
    %51 = vector.extract_strided_slice %40 {offsets = [0, 32], sizes = [16, 8], strides = [1, 1]} : vector<16x96xf32> to vector<16x8xf32>
    %52 = vector.extract_strided_slice %40 {offsets = [0, 40], sizes = [16, 8], strides = [1, 1]} : vector<16x96xf32> to vector<16x8xf32>
    %53 = vector.extract_strided_slice %40 {offsets = [0, 48], sizes = [16, 8], strides = [1, 1]} : vector<16x96xf32> to vector<16x8xf32>
    %54 = vector.extract_strided_slice %40 {offsets = [0, 56], sizes = [16, 8], strides = [1, 1]} : vector<16x96xf32> to vector<16x8xf32>
    %55 = vector.shape_cast %51 : vector<16x8xf32> to vector<1x16x8xf32>
    %56 = vector.shape_cast %52 : vector<16x8xf32> to vector<1x16x8xf32>
    %57 = vector.shape_cast %53 : vector<16x8xf32> to vector<1x16x8xf32>
    %58 = vector.shape_cast %54 : vector<16x8xf32> to vector<1x16x8xf32>
    %59 = tpu.concatenate %55, %56, %57, %58 in 0 : vector<1x16x8xf32>, vector<1x16x8xf32>, vector<1x16x8xf32>, vector<1x16x8xf32> -> vector<4x16x8xf32>
    %60 = vector.shape_cast %59 : vector<4x16x8xf32> to vector<8x8x8xf32>
    %61 = vector.extract_strided_slice %40 {offsets = [0, 64], sizes = [16, 8], strides = [1, 1]} : vector<16x96xf32> to vector<16x8xf32>
    %62 = vector.extract_strided_slice %40 {offsets = [0, 72], sizes = [16, 8], strides = [1, 1]} : vector<16x96xf32> to vector<16x8xf32>
    %63 = vector.extract_strided_slice %40 {offsets = [0, 80], sizes = [16, 8], strides = [1, 1]} : vector<16x96xf32> to vector<16x8xf32>
    %64 = vector.extract_strided_slice %40 {offsets = [0, 88], sizes = [16, 8], strides = [1, 1]} : vector<16x96xf32> to vector<16x8xf32>
    %65 = vector.shape_cast %61 : vector<16x8xf32> to vector<1x16x8xf32>
    %66 = vector.shape_cast %62 : vector<16x8xf32> to vector<1x16x8xf32>
    %67 = vector.shape_cast %63 : vector<16x8xf32> to vector<1x16x8xf32>
    %68 = vector.shape_cast %64 : vector<16x8xf32> to vector<1x16x8xf32>
    %69 = tpu.concatenate %65, %66, %67, %68 in 0 : vector<1x16x8xf32>, vector<1x16x8xf32>, vector<1x16x8xf32>, vector<1x16x8xf32> -> vector<4x16x8xf32>
    %70 = vector.shape_cast %69 : vector<4x16x8xf32> to vector<8x8x8xf32>
    "tpu.trace_start"() <{level = 10 : i32, message = "bqd,bkd->bqk"}> : () -> ()
    %cst_13 = arith.constant dense<0.000000e+00> : vector<8x8x8xf32>
    %71 = tpu.matmul %50, %60, %cst_13 {dimension_numbers = #tpu.dot_dimension_numbers<[2], [2], [1], [1], [0, 0, 0, 1, 1, 1], [0], [0]>} : vector<8x8x8xf32>, vector<8x8x8xf32>, vector<8x8x8xf32> -> vector<8x8x8xf32>
    "tpu.trace_stop"() : () -> ()
    %cst_14 = arith.constant 0.353553385 : f32
    %72 = vector.broadcast %cst_14 : f32 to vector<8x8x8xf32>
    %73 = arith.mulf %71, %72 : vector<8x8x8xf32>
    %cst_15 = arith.constant dense<0xFF800000> : vector<8x8xf32>
    %74 = vector.multi_reduction <maximumf>, %73, %cst_15 [2] : vector<8x8x8xf32> to vector<8x8xf32>
    %75 = vector.shape_cast %74 : vector<8x8xf32> to vector<8x8x1xf32>
    %76 = vector.broadcast %75 : vector<8x8x1xf32> to vector<8x8x8xf32>
    %77 = arith.subf %73, %76 : vector<8x8x8xf32>
    %78 = math.exp %77 : vector<8x8x8xf32>
    %cst_16 = arith.constant dense<0.000000e+00> : vector<8x8xf32>
    %79 = vector.multi_reduction <add>, %78, %cst_16 [2] : vector<8x8x8xf32> to vector<8x8xf32>
    %80 = vector.shape_cast %79 : vector<8x8xf32> to vector<8x8x1xf32>
    %81 = vector.broadcast %80 : vector<8x8x1xf32> to vector<8x8x8xf32>
    %82 = arith.divf %78, %81 : vector<8x8x8xf32>
    "tpu.trace_start"() <{level = 10 : i32, message = "bqk,bkd->bqd"}> : () -> ()
    %cst_17 = arith.constant dense<0.000000e+00> : vector<8x8x8xf32>
    %83 = tpu.matmul %82, %70, %cst_17 {dimension_numbers = #tpu.dot_dimension_numbers<[2], [1], [1], [2], [0, 0, 0, 1, 1, 2], [0], [0]>} : vector<8x8x8xf32>, vector<8x8x8xf32>, vector<8x8x8xf32> -> vector<8x8x8xf32>
    "tpu.trace_stop"() : () -> ()
    %84 = vector.shape_cast %83 : vector<8x8x8xf32> to vector<4x16x8xf32>
    %85 = vector.extract_strided_slice %84 {offsets = [0, 0, 0], sizes = [1, 16, 8], strides = [1, 1, 1]} : vector<4x16x8xf32> to vector<1x16x8xf32>
    %86 = vector.shape_cast %85 : vector<1x16x8xf32> to vector<16x8xf32>
    %87 = vector.extract_strided_slice %84 {offsets = [1, 0, 0], sizes = [1, 16, 8], strides = [1, 1, 1]} : vector<4x16x8xf32> to vector<1x16x8xf32>
    %88 = vector.shape_cast %87 : vector<1x16x8xf32> to vector<16x8xf32>
    %89 = vector.extract_strided_slice %84 {offsets = [2, 0, 0], sizes = [1, 16, 8], strides = [1, 1, 1]} : vector<4x16x8xf32> to vector<1x16x8xf32>
    %90 = vector.shape_cast %89 : vector<1x16x8xf32> to vector<16x8xf32>
    %91 = vector.extract_strided_slice %84 {offsets = [3, 0, 0], sizes = [1, 16, 8], strides = [1, 1, 1]} : vector<4x16x8xf32> to vector<1x16x8xf32>
    %92 = vector.shape_cast %91 : vector<1x16x8xf32> to vector<16x8xf32>
    %93 = tpu.concatenate %86, %88, %90, %92 in 1 : vector<16x8xf32>, vector<16x8xf32>, vector<16x8xf32>, vector<16x8xf32> -> vector<16x32xf32>
    %cst_18 = arith.constant dense<0.000000e+00> : vector<16x32xf32>
    %94 = tpu.matmul %93, %8, %cst_18 {dimension_numbers = #tpu.dot_dimension_numbers<[1], [0], [0], [1], [0, 0, 1, 1], [], []>} : vector<16x32xf32>, vector<32x32xf32>, vector<16x32xf32> -> vector<16x32xf32>
    %95 = vector.broadcast %10 : vector<1x32xf32> to vector<16x32xf32>
    %96 = arith.addf %94, %95 : vector<16x32xf32>
    %cst_19 = arith.constant dense<0.000000e+00> : vector<16xf32>
    %97 = vector.multi_reduction <add>, %96, %cst_19 [1] : vector<16x32xf32> to vector<16xf32>
    %98 = vector.shape_cast %97 : vector<16xf32> to vector<16x1xf32>
    %cst_20 = arith.constant 3.200000e+01 : f32
    %99 = vector.broadcast %cst_20 : f32 to vector<16x1xf32>
    %100 = arith.divf %98, %99 : vector<16x1xf32>
    %101 = vector.broadcast %100 : vector<16x1xf32> to vector<16x32xf32>
    %102 = arith.subf %96, %101 : vector<16x32xf32>
    %103 = arith.mulf %102, %102 : vector<16x32xf32>
    %cst_21 = arith.constant dense<0.000000e+00> : vector<16xf32>
    %104 = vector.multi_reduction <add>, %103, %cst_21 [1] : vector<16x32xf32> to vector<16xf32>
    %105 = vector.shape_cast %104 : vector<16xf32> to vector<16x1xf32>
    %cst_22 = arith.constant 3.200000e+01 : f32
    %106 = vector.broadcast %cst_22 : f32 to vector<16x1xf32>
    %107 = arith.divf %105, %106 : vector<16x1xf32>
    %108 = vector.broadcast %100 : vector<16x1xf32> to vector<16x32xf32>
    %109 = arith.subf %96, %108 : vector<16x32xf32>
    %cst_23 = arith.constant 9.99999974E-6 : f32
    %110 = vector.broadcast %cst_23 : f32 to vector<16x1xf32>
    %111 = arith.addf %107, %110 : vector<16x1xf32>
    %112 = math.rsqrt %111 : vector<16x1xf32>
    %113 = vector.broadcast %112 : vector<16x1xf32> to vector<16x32xf32>
    %114 = arith.mulf %109, %113 : vector<16x32xf32>
    %115 = vector.broadcast %14 : vector<1x32xf32> to vector<16x32xf32>
    %116 = arith.mulf %114, %115 : vector<16x32xf32>
    %117 = vector.broadcast %15 : vector<1x32xf32> to vector<16x32xf32>
    %118 = arith.addf %116, %117 : vector<16x32xf32>
    %cst_24 = arith.constant dense<0.000000e+00> : vector<16x32xf32>
    %119 = tpu.matmul %118, %9, %cst_24 {dimension_numbers = #tpu.dot_dimension_numbers<[1], [0], [0], [1], [0, 0, 1, 1], [], []>} : vector<16x32xf32>, vector<32x32xf32>, vector<16x32xf32> -> vector<16x32xf32>
    %120 = vector.broadcast %11 : vector<1x32xf32> to vector<16x32xf32>
    %121 = arith.addf %119, %120 : vector<16x32xf32>
    %cst_25 = arith.constant 0.000000e+00 : f32
    %122 = vector.broadcast %cst_25 : f32 to vector<16x32xf32>
    %123 = arith.maximumf %121, %122 : vector<16x32xf32>
    %124 = arith.addf %96, %123 : vector<16x32xf32>
    %c1 = arith.constant 1 : index
    %c0_26 = arith.constant 0 : index
    %c0_27 = arith.constant 0 : index
    %125 = vector.load %arg2[%c1, %c0_26, %c0_27] : memref<4x33x96xf32, #tpu.memory_space<vmem>>, vector<1x33x96xf32>
    %126 = vector.shape_cast %125 : vector<1x33x96xf32> to vector<33x96xf32>
    %c1_28 = arith.constant 1 : index
    %c0_29 = arith.constant 0 : index
    %c0_30 = arith.constant 0 : index
    %127 = vector.load %arg3[%c1_28, %c0_29, %c0_30] : memref<4x70x32xf32, #tpu.memory_space<vmem>>, vector<1x70x32xf32>
    %128 = vector.shape_cast %127 : vector<1x70x32xf32> to vector<70x32xf32>
    %129 = vector.extract_strided_slice %126 {offsets = [0, 0], sizes = [32, 96], strides = [1, 1]} : vector<33x96xf32> to vector<32x96xf32>
    %130 = vector.extract_strided_slice %126 {offsets = [32, 0], sizes = [1, 96], strides = [1, 1]} : vector<33x96xf32> to vector<1x96xf32>
    %131 = vector.extract_strided_slice %128 {offsets = [0, 0], sizes = [32, 32], strides = [1, 1]} : vector<70x32xf32> to vector<32x32xf32>
    %132 = vector.extract_strided_slice %128 {offsets = [32, 0], sizes = [32, 32], strides = [1, 1]} : vector<70x32xf32> to vector<32x32xf32>
    %133 = vector.extract_strided_slice %128 {offsets = [64, 0], sizes = [1, 32], strides = [1, 1]} : vector<70x32xf32> to vector<1x32xf32>
    %134 = vector.extract_strided_slice %128 {offsets = [65, 0], sizes = [1, 32], strides = [1, 1]} : vector<70x32xf32> to vector<1x32xf32>
    %135 = vector.extract_strided_slice %128 {offsets = [66, 0], sizes = [1, 32], strides = [1, 1]} : vector<70x32xf32> to vector<1x32xf32>
    %136 = vector.extract_strided_slice %128 {offsets = [67, 0], sizes = [1, 32], strides = [1, 1]} : vector<70x32xf32> to vector<1x32xf32>
    %137 = vector.extract_strided_slice %128 {offsets = [68, 0], sizes = [1, 32], strides = [1, 1]} : vector<70x32xf32> to vector<1x32xf32>
    %138 = vector.extract_strided_slice %128 {offsets = [69, 0], sizes = [1, 32], strides = [1, 1]} : vector<70x32xf32> to vector<1x32xf32>
    %cst_31 = arith.constant dense<0.000000e+00> : vector<16xf32>
    %139 = vector.multi_reduction <add>, %124, %cst_31 [1] : vector<16x32xf32> to vector<16xf32>
    %140 = vector.shape_cast %139 : vector<16xf32> to vector<16x1xf32>
    %cst_32 = arith.constant 3.200000e+01 : f32
    %141 = vector.broadcast %cst_32 : f32 to vector<16x1xf32>
    %142 = arith.divf %140, %141 : vector<16x1xf32>
    %143 = vector.broadcast %142 : vector<16x1xf32> to vector<16x32xf32>
    %144 = arith.subf %124, %143 : vector<16x32xf32>
    %145 = arith.mulf %144, %144 : vector<16x32xf32>
    %cst_33 = arith.constant dense<0.000000e+00> : vector<16xf32>
    %146 = vector.multi_reduction <add>, %145, %cst_33 [1] : vector<16x32xf32> to vector<16xf32>
    %147 = vector.shape_cast %146 : vector<16xf32> to vector<16x1xf32>
    %cst_34 = arith.constant 3.200000e+01 : f32
    %148 = vector.broadcast %cst_34 : f32 to vector<16x1xf32>
    %149 = arith.divf %147, %148 : vector<16x1xf32>
    %150 = vector.broadcast %142 : vector<16x1xf32> to vector<16x32xf32>
    %151 = arith.subf %124, %150 : vector<16x32xf32>
    %cst_35 = arith.constant 9.99999974E-6 : f32
    %152 = vector.broadcast %cst_35 : f32 to vector<16x1xf32>
    %153 = arith.addf %149, %152 : vector<16x1xf32>
    %154 = math.rsqrt %153 : vector<16x1xf32>
    %155 = vector.broadcast %154 : vector<16x1xf32> to vector<16x32xf32>
    %156 = arith.mulf %151, %155 : vector<16x32xf32>
    %157 = vector.broadcast %135 : vector<1x32xf32> to vector<16x32xf32>
    %158 = arith.mulf %156, %157 : vector<16x32xf32>
    %159 = vector.broadcast %136 : vector<1x32xf32> to vector<16x32xf32>
    %160 = arith.addf %158, %159 : vector<16x32xf32>
    %cst_36 = arith.constant dense<0.000000e+00> : vector<16x96xf32>
    %161 = tpu.matmul %160, %129, %cst_36 {dimension_numbers = #tpu.dot_dimension_numbers<[1], [0], [0], [1], [0, 0, 1, 1], [], []>} : vector<16x32xf32>, vector<32x96xf32>, vector<16x96xf32> -> vector<16x96xf32>
    %162 = vector.broadcast %130 : vector<1x96xf32> to vector<16x96xf32>
    %163 = arith.addf %161, %162 : vector<16x96xf32>
    %164 = vector.extract_strided_slice %163 {offsets = [0, 0], sizes = [16, 8], strides = [1, 1]} : vector<16x96xf32> to vector<16x8xf32>
    %165 = vector.extract_strided_slice %163 {offsets = [0, 8], sizes = [16, 8], strides = [1, 1]} : vector<16x96xf32> to vector<16x8xf32>
    %166 = vector.extract_strided_slice %163 {offsets = [0, 16], sizes = [16, 8], strides = [1, 1]} : vector<16x96xf32> to vector<16x8xf32>
    %167 = vector.extract_strided_slice %163 {offsets = [0, 24], sizes = [16, 8], strides = [1, 1]} : vector<16x96xf32> to vector<16x8xf32>
    %168 = vector.shape_cast %164 : vector<16x8xf32> to vector<1x16x8xf32>
    %169 = vector.shape_cast %165 : vector<16x8xf32> to vector<1x16x8xf32>
    %170 = vector.shape_cast %166 : vector<16x8xf32> to vector<1x16x8xf32>
    %171 = vector.shape_cast %167 : vector<16x8xf32> to vector<1x16x8xf32>
    %172 = tpu.concatenate %168, %169, %170, %171 in 0 : vector<1x16x8xf32>, vector<1x16x8xf32>, vector<1x16x8xf32>, vector<1x16x8xf32> -> vector<4x16x8xf32>
    %173 = vector.shape_cast %172 : vector<4x16x8xf32> to vector<8x8x8xf32>
    %174 = vector.extract_strided_slice %163 {offsets = [0, 32], sizes = [16, 8], strides = [1, 1]} : vector<16x96xf32> to vector<16x8xf32>
    %175 = vector.extract_strided_slice %163 {offsets = [0, 40], sizes = [16, 8], strides = [1, 1]} : vector<16x96xf32> to vector<16x8xf32>
    %176 = vector.extract_strided_slice %163 {offsets = [0, 48], sizes = [16, 8], strides = [1, 1]} : vector<16x96xf32> to vector<16x8xf32>
    %177 = vector.extract_strided_slice %163 {offsets = [0, 56], sizes = [16, 8], strides = [1, 1]} : vector<16x96xf32> to vector<16x8xf32>
    %178 = vector.shape_cast %174 : vector<16x8xf32> to vector<1x16x8xf32>
    %179 = vector.shape_cast %175 : vector<16x8xf32> to vector<1x16x8xf32>
    %180 = vector.shape_cast %176 : vector<16x8xf32> to vector<1x16x8xf32>
    %181 = vector.shape_cast %177 : vector<16x8xf32> to vector<1x16x8xf32>
    %182 = tpu.concatenate %178, %179, %180, %181 in 0 : vector<1x16x8xf32>, vector<1x16x8xf32>, vector<1x16x8xf32>, vector<1x16x8xf32> -> vector<4x16x8xf32>
    %183 = vector.shape_cast %182 : vector<4x16x8xf32> to vector<8x8x8xf32>
    %184 = vector.extract_strided_slice %163 {offsets = [0, 64], sizes = [16, 8], strides = [1, 1]} : vector<16x96xf32> to vector<16x8xf32>
    %185 = vector.extract_strided_slice %163 {offsets = [0, 72], sizes = [16, 8], strides = [1, 1]} : vector<16x96xf32> to vector<16x8xf32>
    %186 = vector.extract_strided_slice %163 {offsets = [0, 80], sizes = [16, 8], strides = [1, 1]} : vector<16x96xf32> to vector<16x8xf32>
    %187 = vector.extract_strided_slice %163 {offsets = [0, 88], sizes = [16, 8], strides = [1, 1]} : vector<16x96xf32> to vector<16x8xf32>
    %188 = vector.shape_cast %184 : vector<16x8xf32> to vector<1x16x8xf32>
    %189 = vector.shape_cast %185 : vector<16x8xf32> to vector<1x16x8xf32>
    %190 = vector.shape_cast %186 : vector<16x8xf32> to vector<1x16x8xf32>
    %191 = vector.shape_cast %187 : vector<16x8xf32> to vector<1x16x8xf32>
    %192 = tpu.concatenate %188, %189, %190, %191 in 0 : vector<1x16x8xf32>, vector<1x16x8xf32>, vector<1x16x8xf32>, vector<1x16x8xf32> -> vector<4x16x8xf32>
    %193 = vector.shape_cast %192 : vector<4x16x8xf32> to vector<8x8x8xf32>
    "tpu.trace_start"() <{level = 10 : i32, message = "bqd,bkd->bqk"}> : () -> ()
    %cst_37 = arith.constant dense<0.000000e+00> : vector<8x8x8xf32>
    %194 = tpu.matmul %173, %183, %cst_37 {dimension_numbers = #tpu.dot_dimension_numbers<[2], [2], [1], [1], [0, 0, 0, 1, 1, 1], [0], [0]>} : vector<8x8x8xf32>, vector<8x8x8xf32>, vector<8x8x8xf32> -> vector<8x8x8xf32>
    "tpu.trace_stop"() : () -> ()
    %cst_38 = arith.constant 0.353553385 : f32
    %195 = vector.broadcast %cst_38 : f32 to vector<8x8x8xf32>
    %196 = arith.mulf %194, %195 : vector<8x8x8xf32>
    %cst_39 = arith.constant dense<0xFF800000> : vector<8x8xf32>
    %197 = vector.multi_reduction <maximumf>, %196, %cst_39 [2] : vector<8x8x8xf32> to vector<8x8xf32>
    %198 = vector.shape_cast %197 : vector<8x8xf32> to vector<8x8x1xf32>
    %199 = vector.broadcast %198 : vector<8x8x1xf32> to vector<8x8x8xf32>
    %200 = arith.subf %196, %199 : vector<8x8x8xf32>
    %201 = math.exp %200 : vector<8x8x8xf32>
    %cst_40 = arith.constant dense<0.000000e+00> : vector<8x8xf32>
    %202 = vector.multi_reduction <add>, %201, %cst_40 [2] : vector<8x8x8xf32> to vector<8x8xf32>
    %203 = vector.shape_cast %202 : vector<8x8xf32> to vector<8x8x1xf32>
    %204 = vector.broadcast %203 : vector<8x8x1xf32> to vector<8x8x8xf32>
    %205 = arith.divf %201, %204 : vector<8x8x8xf32>
    "tpu.trace_start"() <{level = 10 : i32, message = "bqk,bkd->bqd"}> : () -> ()
    %cst_41 = arith.constant dense<0.000000e+00> : vector<8x8x8xf32>
    %206 = tpu.matmul %205, %193, %cst_41 {dimension_numbers = #tpu.dot_dimension_numbers<[2], [1], [1], [2], [0, 0, 0, 1, 1, 2], [0], [0]>} : vector<8x8x8xf32>, vector<8x8x8xf32>, vector<8x8x8xf32> -> vector<8x8x8xf32>
    "tpu.trace_stop"() : () -> ()
    %207 = vector.shape_cast %206 : vector<8x8x8xf32> to vector<4x16x8xf32>
    %208 = vector.extract_strided_slice %207 {offsets = [0, 0, 0], sizes = [1, 16, 8], strides = [1, 1, 1]} : vector<4x16x8xf32> to vector<1x16x8xf32>
    %209 = vector.shape_cast %208 : vector<1x16x8xf32> to vector<16x8xf32>
    %210 = vector.extract_strided_slice %207 {offsets = [1, 0, 0], sizes = [1, 16, 8], strides = [1, 1, 1]} : vector<4x16x8xf32> to vector<1x16x8xf32>
    %211 = vector.shape_cast %210 : vector<1x16x8xf32> to vector<16x8xf32>
    %212 = vector.extract_strided_slice %207 {offsets = [2, 0, 0], sizes = [1, 16, 8], strides = [1, 1, 1]} : vector<4x16x8xf32> to vector<1x16x8xf32>
    %213 = vector.shape_cast %212 : vector<1x16x8xf32> to vector<16x8xf32>
    %214 = vector.extract_strided_slice %207 {offsets = [3, 0, 0], sizes = [1, 16, 8], strides = [1, 1, 1]} : vector<4x16x8xf32> to vector<1x16x8xf32>
    %215 = vector.shape_cast %214 : vector<1x16x8xf32> to vector<16x8xf32>
    %216 = tpu.concatenate %209, %211, %213, %215 in 1 : vector<16x8xf32>, vector<16x8xf32>, vector<16x8xf32>, vector<16x8xf32> -> vector<16x32xf32>
    %cst_42 = arith.constant dense<0.000000e+00> : vector<16x32xf32>
    %217 = tpu.matmul %216, %131, %cst_42 {dimension_numbers = #tpu.dot_dimension_numbers<[1], [0], [0], [1], [0, 0, 1, 1], [], []>} : vector<16x32xf32>, vector<32x32xf32>, vector<16x32xf32> -> vector<16x32xf32>
    %218 = vector.broadcast %133 : vector<1x32xf32> to vector<16x32xf32>
    %219 = arith.addf %217, %218 : vector<16x32xf32>
    %220 = arith.addf %124, %219 : vector<16x32xf32>
    %cst_43 = arith.constant dense<0.000000e+00> : vector<16xf32>
    %221 = vector.multi_reduction <add>, %220, %cst_43 [1] : vector<16x32xf32> to vector<16xf32>
    %222 = vector.shape_cast %221 : vector<16xf32> to vector<16x1xf32>
    %cst_44 = arith.constant 3.200000e+01 : f32
    %223 = vector.broadcast %cst_44 : f32 to vector<16x1xf32>
    %224 = arith.divf %222, %223 : vector<16x1xf32>
    %225 = vector.broadcast %224 : vector<16x1xf32> to vector<16x32xf32>
    %226 = arith.subf %220, %225 : vector<16x32xf32>
    %227 = arith.mulf %226, %226 : vector<16x32xf32>
    %cst_45 = arith.constant dense<0.000000e+00> : vector<16xf32>
    %228 = vector.multi_reduction <add>, %227, %cst_45 [1] : vector<16x32xf32> to vector<16xf32>
    %229 = vector.shape_cast %228 : vector<16xf32> to vector<16x1xf32>
    %cst_46 = arith.constant 3.200000e+01 : f32
    %230 = vector.broadcast %cst_46 : f32 to vector<16x1xf32>
    %231 = arith.divf %229, %230 : vector<16x1xf32>
    %232 = vector.broadcast %224 : vector<16x1xf32> to vector<16x32xf32>
    %233 = arith.subf %220, %232 : vector<16x32xf32>
    %cst_47 = arith.constant 9.99999974E-6 : f32
    %234 = vector.broadcast %cst_47 : f32 to vector<16x1xf32>
    %235 = arith.addf %231, %234 : vector<16x1xf32>
    %236 = math.rsqrt %235 : vector<16x1xf32>
    %237 = vector.broadcast %236 : vector<16x1xf32> to vector<16x32xf32>
    %238 = arith.mulf %233, %237 : vector<16x32xf32>
    %239 = vector.broadcast %137 : vector<1x32xf32> to vector<16x32xf32>
    %240 = arith.mulf %238, %239 : vector<16x32xf32>
    %241 = vector.broadcast %138 : vector<1x32xf32> to vector<16x32xf32>
    %242 = arith.addf %240, %241 : vector<16x32xf32>
    %cst_48 = arith.constant dense<0.000000e+00> : vector<16x32xf32>
    %243 = tpu.matmul %242, %132, %cst_48 {dimension_numbers = #tpu.dot_dimension_numbers<[1], [0], [0], [1], [0, 0, 1, 1], [], []>} : vector<16x32xf32>, vector<32x32xf32>, vector<16x32xf32> -> vector<16x32xf32>
    %244 = vector.broadcast %134 : vector<1x32xf32> to vector<16x32xf32>
    %245 = arith.addf %243, %244 : vector<16x32xf32>
    %cst_49 = arith.constant 0.000000e+00 : f32
    %246 = vector.broadcast %cst_49 : f32 to vector<16x32xf32>
    %247 = arith.maximumf %245, %246 : vector<16x32xf32>
    %248 = arith.addf %220, %247 : vector<16x32xf32>
    %c2 = arith.constant 2 : index
    %c0_50 = arith.constant 0 : index
    %c0_51 = arith.constant 0 : index
    %249 = vector.load %arg2[%c2, %c0_50, %c0_51] : memref<4x33x96xf32, #tpu.memory_space<vmem>>, vector<1x33x96xf32>
    %250 = vector.shape_cast %249 : vector<1x33x96xf32> to vector<33x96xf32>
    %c2_52 = arith.constant 2 : index
    %c0_53 = arith.constant 0 : index
    %c0_54 = arith.constant 0 : index
    %251 = vector.load %arg3[%c2_52, %c0_53, %c0_54] : memref<4x70x32xf32, #tpu.memory_space<vmem>>, vector<1x70x32xf32>
    %252 = vector.shape_cast %251 : vector<1x70x32xf32> to vector<70x32xf32>
    %253 = vector.extract_strided_slice %250 {offsets = [0, 0], sizes = [32, 96], strides = [1, 1]} : vector<33x96xf32> to vector<32x96xf32>
    %254 = vector.extract_strided_slice %250 {offsets = [32, 0], sizes = [1, 96], strides = [1, 1]} : vector<33x96xf32> to vector<1x96xf32>
    %255 = vector.extract_strided_slice %252 {offsets = [0, 0], sizes = [32, 32], strides = [1, 1]} : vector<70x32xf32> to vector<32x32xf32>
    %256 = vector.extract_strided_slice %252 {offsets = [32, 0], sizes = [32, 32], strides = [1, 1]} : vector<70x32xf32> to vector<32x32xf32>
    %257 = vector.extract_strided_slice %252 {offsets = [64, 0], sizes = [1, 32], strides = [1, 1]} : vector<70x32xf32> to vector<1x32xf32>
    %258 = vector.extract_strided_slice %252 {offsets = [65, 0], sizes = [1, 32], strides = [1, 1]} : vector<70x32xf32> to vector<1x32xf32>
    %259 = vector.extract_strided_slice %252 {offsets = [66, 0], sizes = [1, 32], strides = [1, 1]} : vector<70x32xf32> to vector<1x32xf32>
    %260 = vector.extract_strided_slice %252 {offsets = [67, 0], sizes = [1, 32], strides = [1, 1]} : vector<70x32xf32> to vector<1x32xf32>
    %261 = vector.extract_strided_slice %252 {offsets = [68, 0], sizes = [1, 32], strides = [1, 1]} : vector<70x32xf32> to vector<1x32xf32>
    %262 = vector.extract_strided_slice %252 {offsets = [69, 0], sizes = [1, 32], strides = [1, 1]} : vector<70x32xf32> to vector<1x32xf32>
    %cst_55 = arith.constant dense<0.000000e+00> : vector<16xf32>
    %263 = vector.multi_reduction <add>, %248, %cst_55 [1] : vector<16x32xf32> to vector<16xf32>
    %264 = vector.shape_cast %263 : vector<16xf32> to vector<16x1xf32>
    %cst_56 = arith.constant 3.200000e+01 : f32
    %265 = vector.broadcast %cst_56 : f32 to vector<16x1xf32>
    %266 = arith.divf %264, %265 : vector<16x1xf32>
    %267 = vector.broadcast %266 : vector<16x1xf32> to vector<16x32xf32>
    %268 = arith.subf %248, %267 : vector<16x32xf32>
    %269 = arith.mulf %268, %268 : vector<16x32xf32>
    %cst_57 = arith.constant dense<0.000000e+00> : vector<16xf32>
    %270 = vector.multi_reduction <add>, %269, %cst_57 [1] : vector<16x32xf32> to vector<16xf32>
    %271 = vector.shape_cast %270 : vector<16xf32> to vector<16x1xf32>
    %cst_58 = arith.constant 3.200000e+01 : f32
    %272 = vector.broadcast %cst_58 : f32 to vector<16x1xf32>
    %273 = arith.divf %271, %272 : vector<16x1xf32>
    %274 = vector.broadcast %266 : vector<16x1xf32> to vector<16x32xf32>
    %275 = arith.subf %248, %274 : vector<16x32xf32>
    %cst_59 = arith.constant 9.99999974E-6 : f32
    %276 = vector.broadcast %cst_59 : f32 to vector<16x1xf32>
    %277 = arith.addf %273, %276 : vector<16x1xf32>
    %278 = math.rsqrt %277 : vector<16x1xf32>
    %279 = vector.broadcast %278 : vector<16x1xf32> to vector<16x32xf32>
    %280 = arith.mulf %275, %279 : vector<16x32xf32>
    %281 = vector.broadcast %259 : vector<1x32xf32> to vector<16x32xf32>
    %282 = arith.mulf %280, %281 : vector<16x32xf32>
    %283 = vector.broadcast %260 : vector<1x32xf32> to vector<16x32xf32>
    %284 = arith.addf %282, %283 : vector<16x32xf32>
    %cst_60 = arith.constant dense<0.000000e+00> : vector<16x96xf32>
    %285 = tpu.matmul %284, %253, %cst_60 {dimension_numbers = #tpu.dot_dimension_numbers<[1], [0], [0], [1], [0, 0, 1, 1], [], []>} : vector<16x32xf32>, vector<32x96xf32>, vector<16x96xf32> -> vector<16x96xf32>
    %286 = vector.broadcast %254 : vector<1x96xf32> to vector<16x96xf32>
    %287 = arith.addf %285, %286 : vector<16x96xf32>
    %288 = vector.extract_strided_slice %287 {offsets = [0, 0], sizes = [16, 8], strides = [1, 1]} : vector<16x96xf32> to vector<16x8xf32>
    %289 = vector.extract_strided_slice %287 {offsets = [0, 8], sizes = [16, 8], strides = [1, 1]} : vector<16x96xf32> to vector<16x8xf32>
    %290 = vector.extract_strided_slice %287 {offsets = [0, 16], sizes = [16, 8], strides = [1, 1]} : vector<16x96xf32> to vector<16x8xf32>
    %291 = vector.extract_strided_slice %287 {offsets = [0, 24], sizes = [16, 8], strides = [1, 1]} : vector<16x96xf32> to vector<16x8xf32>
    %292 = vector.shape_cast %288 : vector<16x8xf32> to vector<1x16x8xf32>
    %293 = vector.shape_cast %289 : vector<16x8xf32> to vector<1x16x8xf32>
    %294 = vector.shape_cast %290 : vector<16x8xf32> to vector<1x16x8xf32>
    %295 = vector.shape_cast %291 : vector<16x8xf32> to vector<1x16x8xf32>
    %296 = tpu.concatenate %292, %293, %294, %295 in 0 : vector<1x16x8xf32>, vector<1x16x8xf32>, vector<1x16x8xf32>, vector<1x16x8xf32> -> vector<4x16x8xf32>
    %297 = vector.shape_cast %296 : vector<4x16x8xf32> to vector<8x8x8xf32>
    %298 = vector.extract_strided_slice %287 {offsets = [0, 32], sizes = [16, 8], strides = [1, 1]} : vector<16x96xf32> to vector<16x8xf32>
    %299 = vector.extract_strided_slice %287 {offsets = [0, 40], sizes = [16, 8], strides = [1, 1]} : vector<16x96xf32> to vector<16x8xf32>
    %300 = vector.extract_strided_slice %287 {offsets = [0, 48], sizes = [16, 8], strides = [1, 1]} : vector<16x96xf32> to vector<16x8xf32>
    %301 = vector.extract_strided_slice %287 {offsets = [0, 56], sizes = [16, 8], strides = [1, 1]} : vector<16x96xf32> to vector<16x8xf32>
    %302 = vector.shape_cast %298 : vector<16x8xf32> to vector<1x16x8xf32>
    %303 = vector.shape_cast %299 : vector<16x8xf32> to vector<1x16x8xf32>
    %304 = vector.shape_cast %300 : vector<16x8xf32> to vector<1x16x8xf32>
    %305 = vector.shape_cast %301 : vector<16x8xf32> to vector<1x16x8xf32>
    %306 = tpu.concatenate %302, %303, %304, %305 in 0 : vector<1x16x8xf32>, vector<1x16x8xf32>, vector<1x16x8xf32>, vector<1x16x8xf32> -> vector<4x16x8xf32>
    %307 = vector.shape_cast %306 : vector<4x16x8xf32> to vector<8x8x8xf32>
    %308 = vector.extract_strided_slice %287 {offsets = [0, 64], sizes = [16, 8], strides = [1, 1]} : vector<16x96xf32> to vector<16x8xf32>
    %309 = vector.extract_strided_slice %287 {offsets = [0, 72], sizes = [16, 8], strides = [1, 1]} : vector<16x96xf32> to vector<16x8xf32>
    %310 = vector.extract_strided_slice %287 {offsets = [0, 80], sizes = [16, 8], strides = [1, 1]} : vector<16x96xf32> to vector<16x8xf32>
    %311 = vector.extract_strided_slice %287 {offsets = [0, 88], sizes = [16, 8], strides = [1, 1]} : vector<16x96xf32> to vector<16x8xf32>
    %312 = vector.shape_cast %308 : vector<16x8xf32> to vector<1x16x8xf32>
    %313 = vector.shape_cast %309 : vector<16x8xf32> to vector<1x16x8xf32>
    %314 = vector.shape_cast %310 : vector<16x8xf32> to vector<1x16x8xf32>
    %315 = vector.shape_cast %311 : vector<16x8xf32> to vector<1x16x8xf32>
    %316 = tpu.concatenate %312, %313, %314, %315 in 0 : vector<1x16x8xf32>, vector<1x16x8xf32>, vector<1x16x8xf32>, vector<1x16x8xf32> -> vector<4x16x8xf32>
    %317 = vector.shape_cast %316 : vector<4x16x8xf32> to vector<8x8x8xf32>
    "tpu.trace_start"() <{level = 10 : i32, message = "bqd,bkd->bqk"}> : () -> ()
    %cst_61 = arith.constant dense<0.000000e+00> : vector<8x8x8xf32>
    %318 = tpu.matmul %297, %307, %cst_61 {dimension_numbers = #tpu.dot_dimension_numbers<[2], [2], [1], [1], [0, 0, 0, 1, 1, 1], [0], [0]>} : vector<8x8x8xf32>, vector<8x8x8xf32>, vector<8x8x8xf32> -> vector<8x8x8xf32>
    "tpu.trace_stop"() : () -> ()
    %cst_62 = arith.constant 0.353553385 : f32
    %319 = vector.broadcast %cst_62 : f32 to vector<8x8x8xf32>
    %320 = arith.mulf %318, %319 : vector<8x8x8xf32>
    %cst_63 = arith.constant dense<0xFF800000> : vector<8x8xf32>
    %321 = vector.multi_reduction <maximumf>, %320, %cst_63 [2] : vector<8x8x8xf32> to vector<8x8xf32>
    %322 = vector.shape_cast %321 : vector<8x8xf32> to vector<8x8x1xf32>
    %323 = vector.broadcast %322 : vector<8x8x1xf32> to vector<8x8x8xf32>
    %324 = arith.subf %320, %323 : vector<8x8x8xf32>
    %325 = math.exp %324 : vector<8x8x8xf32>
    %cst_64 = arith.constant dense<0.000000e+00> : vector<8x8xf32>
    %326 = vector.multi_reduction <add>, %325, %cst_64 [2] : vector<8x8x8xf32> to vector<8x8xf32>
    %327 = vector.shape_cast %326 : vector<8x8xf32> to vector<8x8x1xf32>
    %328 = vector.broadcast %327 : vector<8x8x1xf32> to vector<8x8x8xf32>
    %329 = arith.divf %325, %328 : vector<8x8x8xf32>
    "tpu.trace_start"() <{level = 10 : i32, message = "bqk,bkd->bqd"}> : () -> ()
    %cst_65 = arith.constant dense<0.000000e+00> : vector<8x8x8xf32>
    %330 = tpu.matmul %329, %317, %cst_65 {dimension_numbers = #tpu.dot_dimension_numbers<[2], [1], [1], [2], [0, 0, 0, 1, 1, 2], [0], [0]>} : vector<8x8x8xf32>, vector<8x8x8xf32>, vector<8x8x8xf32> -> vector<8x8x8xf32>
    "tpu.trace_stop"() : () -> ()
    %331 = vector.shape_cast %330 : vector<8x8x8xf32> to vector<4x16x8xf32>
    %332 = vector.extract_strided_slice %331 {offsets = [0, 0, 0], sizes = [1, 16, 8], strides = [1, 1, 1]} : vector<4x16x8xf32> to vector<1x16x8xf32>
    %333 = vector.shape_cast %332 : vector<1x16x8xf32> to vector<16x8xf32>
    %334 = vector.extract_strided_slice %331 {offsets = [1, 0, 0], sizes = [1, 16, 8], strides = [1, 1, 1]} : vector<4x16x8xf32> to vector<1x16x8xf32>
    %335 = vector.shape_cast %334 : vector<1x16x8xf32> to vector<16x8xf32>
    %336 = vector.extract_strided_slice %331 {offsets = [2, 0, 0], sizes = [1, 16, 8], strides = [1, 1, 1]} : vector<4x16x8xf32> to vector<1x16x8xf32>
    %337 = vector.shape_cast %336 : vector<1x16x8xf32> to vector<16x8xf32>
    %338 = vector.extract_strided_slice %331 {offsets = [3, 0, 0], sizes = [1, 16, 8], strides = [1, 1, 1]} : vector<4x16x8xf32> to vector<1x16x8xf32>
    %339 = vector.shape_cast %338 : vector<1x16x8xf32> to vector<16x8xf32>
    %340 = tpu.concatenate %333, %335, %337, %339 in 1 : vector<16x8xf32>, vector<16x8xf32>, vector<16x8xf32>, vector<16x8xf32> -> vector<16x32xf32>
    %cst_66 = arith.constant dense<0.000000e+00> : vector<16x32xf32>
    %341 = tpu.matmul %340, %255, %cst_66 {dimension_numbers = #tpu.dot_dimension_numbers<[1], [0], [0], [1], [0, 0, 1, 1], [], []>} : vector<16x32xf32>, vector<32x32xf32>, vector<16x32xf32> -> vector<16x32xf32>
    %342 = vector.broadcast %257 : vector<1x32xf32> to vector<16x32xf32>
    %343 = arith.addf %341, %342 : vector<16x32xf32>
    %344 = arith.addf %248, %343 : vector<16x32xf32>
    %cst_67 = arith.constant dense<0.000000e+00> : vector<16xf32>
    %345 = vector.multi_reduction <add>, %344, %cst_67 [1] : vector<16x32xf32> to vector<16xf32>
    %346 = vector.shape_cast %345 : vector<16xf32> to vector<16x1xf32>
    %cst_68 = arith.constant 3.200000e+01 : f32
    %347 = vector.broadcast %cst_68 : f32 to vector<16x1xf32>
    %348 = arith.divf %346, %347 : vector<16x1xf32>
    %349 = vector.broadcast %348 : vector<16x1xf32> to vector<16x32xf32>
    %350 = arith.subf %344, %349 : vector<16x32xf32>
    %351 = arith.mulf %350, %350 : vector<16x32xf32>
    %cst_69 = arith.constant dense<0.000000e+00> : vector<16xf32>
    %352 = vector.multi_reduction <add>, %351, %cst_69 [1] : vector<16x32xf32> to vector<16xf32>
    %353 = vector.shape_cast %352 : vector<16xf32> to vector<16x1xf32>
    %cst_70 = arith.constant 3.200000e+01 : f32
    %354 = vector.broadcast %cst_70 : f32 to vector<16x1xf32>
    %355 = arith.divf %353, %354 : vector<16x1xf32>
    %356 = vector.broadcast %348 : vector<16x1xf32> to vector<16x32xf32>
    %357 = arith.subf %344, %356 : vector<16x32xf32>
    %cst_71 = arith.constant 9.99999974E-6 : f32
    %358 = vector.broadcast %cst_71 : f32 to vector<16x1xf32>
    %359 = arith.addf %355, %358 : vector<16x1xf32>
    %360 = math.rsqrt %359 : vector<16x1xf32>
    %361 = vector.broadcast %360 : vector<16x1xf32> to vector<16x32xf32>
    %362 = arith.mulf %357, %361 : vector<16x32xf32>
    %363 = vector.broadcast %261 : vector<1x32xf32> to vector<16x32xf32>
    %364 = arith.mulf %362, %363 : vector<16x32xf32>
    %365 = vector.broadcast %262 : vector<1x32xf32> to vector<16x32xf32>
    %366 = arith.addf %364, %365 : vector<16x32xf32>
    %cst_72 = arith.constant dense<0.000000e+00> : vector<16x32xf32>
    %367 = tpu.matmul %366, %256, %cst_72 {dimension_numbers = #tpu.dot_dimension_numbers<[1], [0], [0], [1], [0, 0, 1, 1], [], []>} : vector<16x32xf32>, vector<32x32xf32>, vector<16x32xf32> -> vector<16x32xf32>
    %368 = vector.broadcast %258 : vector<1x32xf32> to vector<16x32xf32>
    %369 = arith.addf %367, %368 : vector<16x32xf32>
    %cst_73 = arith.constant 0.000000e+00 : f32
    %370 = vector.broadcast %cst_73 : f32 to vector<16x32xf32>
    %371 = arith.maximumf %369, %370 : vector<16x32xf32>
    %372 = arith.addf %344, %371 : vector<16x32xf32>
    %c3 = arith.constant 3 : index
    %c0_74 = arith.constant 0 : index
    %c0_75 = arith.constant 0 : index
    %373 = vector.load %arg2[%c3, %c0_74, %c0_75] : memref<4x33x96xf32, #tpu.memory_space<vmem>>, vector<1x33x96xf32>
    %374 = vector.shape_cast %373 : vector<1x33x96xf32> to vector<33x96xf32>
    %c3_76 = arith.constant 3 : index
    %c0_77 = arith.constant 0 : index
    %c0_78 = arith.constant 0 : index
    %375 = vector.load %arg3[%c3_76, %c0_77, %c0_78] : memref<4x70x32xf32, #tpu.memory_space<vmem>>, vector<1x70x32xf32>
    %376 = vector.shape_cast %375 : vector<1x70x32xf32> to vector<70x32xf32>
    %377 = vector.extract_strided_slice %374 {offsets = [0, 0], sizes = [32, 96], strides = [1, 1]} : vector<33x96xf32> to vector<32x96xf32>
    %378 = vector.extract_strided_slice %374 {offsets = [32, 0], sizes = [1, 96], strides = [1, 1]} : vector<33x96xf32> to vector<1x96xf32>
    %379 = vector.extract_strided_slice %376 {offsets = [0, 0], sizes = [32, 32], strides = [1, 1]} : vector<70x32xf32> to vector<32x32xf32>
    %380 = vector.extract_strided_slice %376 {offsets = [32, 0], sizes = [32, 32], strides = [1, 1]} : vector<70x32xf32> to vector<32x32xf32>
    %381 = vector.extract_strided_slice %376 {offsets = [64, 0], sizes = [1, 32], strides = [1, 1]} : vector<70x32xf32> to vector<1x32xf32>
    %382 = vector.extract_strided_slice %376 {offsets = [65, 0], sizes = [1, 32], strides = [1, 1]} : vector<70x32xf32> to vector<1x32xf32>
    %383 = vector.extract_strided_slice %376 {offsets = [66, 0], sizes = [1, 32], strides = [1, 1]} : vector<70x32xf32> to vector<1x32xf32>
    %384 = vector.extract_strided_slice %376 {offsets = [67, 0], sizes = [1, 32], strides = [1, 1]} : vector<70x32xf32> to vector<1x32xf32>
    %385 = vector.extract_strided_slice %376 {offsets = [68, 0], sizes = [1, 32], strides = [1, 1]} : vector<70x32xf32> to vector<1x32xf32>
    %386 = vector.extract_strided_slice %376 {offsets = [69, 0], sizes = [1, 32], strides = [1, 1]} : vector<70x32xf32> to vector<1x32xf32>
    %cst_79 = arith.constant dense<0.000000e+00> : vector<16xf32>
    %387 = vector.multi_reduction <add>, %372, %cst_79 [1] : vector<16x32xf32> to vector<16xf32>
    %388 = vector.shape_cast %387 : vector<16xf32> to vector<16x1xf32>
    %cst_80 = arith.constant 3.200000e+01 : f32
    %389 = vector.broadcast %cst_80 : f32 to vector<16x1xf32>
    %390 = arith.divf %388, %389 : vector<16x1xf32>
    %391 = vector.broadcast %390 : vector<16x1xf32> to vector<16x32xf32>
    %392 = arith.subf %372, %391 : vector<16x32xf32>
    %393 = arith.mulf %392, %392 : vector<16x32xf32>
    %cst_81 = arith.constant dense<0.000000e+00> : vector<16xf32>
    %394 = vector.multi_reduction <add>, %393, %cst_81 [1] : vector<16x32xf32> to vector<16xf32>
    %395 = vector.shape_cast %394 : vector<16xf32> to vector<16x1xf32>
    %cst_82 = arith.constant 3.200000e+01 : f32
    %396 = vector.broadcast %cst_82 : f32 to vector<16x1xf32>
    %397 = arith.divf %395, %396 : vector<16x1xf32>
    %398 = vector.broadcast %390 : vector<16x1xf32> to vector<16x32xf32>
    %399 = arith.subf %372, %398 : vector<16x32xf32>
    %cst_83 = arith.constant 9.99999974E-6 : f32
    %400 = vector.broadcast %cst_83 : f32 to vector<16x1xf32>
    %401 = arith.addf %397, %400 : vector<16x1xf32>
    %402 = math.rsqrt %401 : vector<16x1xf32>
    %403 = vector.broadcast %402 : vector<16x1xf32> to vector<16x32xf32>
    %404 = arith.mulf %399, %403 : vector<16x32xf32>
    %405 = vector.broadcast %383 : vector<1x32xf32> to vector<16x32xf32>
    %406 = arith.mulf %404, %405 : vector<16x32xf32>
    %407 = vector.broadcast %384 : vector<1x32xf32> to vector<16x32xf32>
    %408 = arith.addf %406, %407 : vector<16x32xf32>
    %cst_84 = arith.constant dense<0.000000e+00> : vector<16x96xf32>
    %409 = tpu.matmul %408, %377, %cst_84 {dimension_numbers = #tpu.dot_dimension_numbers<[1], [0], [0], [1], [0, 0, 1, 1], [], []>} : vector<16x32xf32>, vector<32x96xf32>, vector<16x96xf32> -> vector<16x96xf32>
    %410 = vector.broadcast %378 : vector<1x96xf32> to vector<16x96xf32>
    %411 = arith.addf %409, %410 : vector<16x96xf32>
    %412 = vector.extract_strided_slice %411 {offsets = [0, 0], sizes = [16, 8], strides = [1, 1]} : vector<16x96xf32> to vector<16x8xf32>
    %413 = vector.extract_strided_slice %411 {offsets = [0, 8], sizes = [16, 8], strides = [1, 1]} : vector<16x96xf32> to vector<16x8xf32>
    %414 = vector.extract_strided_slice %411 {offsets = [0, 16], sizes = [16, 8], strides = [1, 1]} : vector<16x96xf32> to vector<16x8xf32>
    %415 = vector.extract_strided_slice %411 {offsets = [0, 24], sizes = [16, 8], strides = [1, 1]} : vector<16x96xf32> to vector<16x8xf32>
    %416 = vector.shape_cast %412 : vector<16x8xf32> to vector<1x16x8xf32>
    %417 = vector.shape_cast %413 : vector<16x8xf32> to vector<1x16x8xf32>
    %418 = vector.shape_cast %414 : vector<16x8xf32> to vector<1x16x8xf32>
    %419 = vector.shape_cast %415 : vector<16x8xf32> to vector<1x16x8xf32>
    %420 = tpu.concatenate %416, %417, %418, %419 in 0 : vector<1x16x8xf32>, vector<1x16x8xf32>, vector<1x16x8xf32>, vector<1x16x8xf32> -> vector<4x16x8xf32>
    %421 = vector.shape_cast %420 : vector<4x16x8xf32> to vector<8x8x8xf32>
    %422 = vector.extract_strided_slice %411 {offsets = [0, 32], sizes = [16, 8], strides = [1, 1]} : vector<16x96xf32> to vector<16x8xf32>
    %423 = vector.extract_strided_slice %411 {offsets = [0, 40], sizes = [16, 8], strides = [1, 1]} : vector<16x96xf32> to vector<16x8xf32>
    %424 = vector.extract_strided_slice %411 {offsets = [0, 48], sizes = [16, 8], strides = [1, 1]} : vector<16x96xf32> to vector<16x8xf32>
    %425 = vector.extract_strided_slice %411 {offsets = [0, 56], sizes = [16, 8], strides = [1, 1]} : vector<16x96xf32> to vector<16x8xf32>
    %426 = vector.shape_cast %422 : vector<16x8xf32> to vector<1x16x8xf32>
    %427 = vector.shape_cast %423 : vector<16x8xf32> to vector<1x16x8xf32>
    %428 = vector.shape_cast %424 : vector<16x8xf32> to vector<1x16x8xf32>
    %429 = vector.shape_cast %425 : vector<16x8xf32> to vector<1x16x8xf32>
    %430 = tpu.concatenate %426, %427, %428, %429 in 0 : vector<1x16x8xf32>, vector<1x16x8xf32>, vector<1x16x8xf32>, vector<1x16x8xf32> -> vector<4x16x8xf32>
    %431 = vector.shape_cast %430 : vector<4x16x8xf32> to vector<8x8x8xf32>
    %432 = vector.extract_strided_slice %411 {offsets = [0, 64], sizes = [16, 8], strides = [1, 1]} : vector<16x96xf32> to vector<16x8xf32>
    %433 = vector.extract_strided_slice %411 {offsets = [0, 72], sizes = [16, 8], strides = [1, 1]} : vector<16x96xf32> to vector<16x8xf32>
    %434 = vector.extract_strided_slice %411 {offsets = [0, 80], sizes = [16, 8], strides = [1, 1]} : vector<16x96xf32> to vector<16x8xf32>
    %435 = vector.extract_strided_slice %411 {offsets = [0, 88], sizes = [16, 8], strides = [1, 1]} : vector<16x96xf32> to vector<16x8xf32>
    %436 = vector.shape_cast %432 : vector<16x8xf32> to vector<1x16x8xf32>
    %437 = vector.shape_cast %433 : vector<16x8xf32> to vector<1x16x8xf32>
    %438 = vector.shape_cast %434 : vector<16x8xf32> to vector<1x16x8xf32>
    %439 = vector.shape_cast %435 : vector<16x8xf32> to vector<1x16x8xf32>
    %440 = tpu.concatenate %436, %437, %438, %439 in 0 : vector<1x16x8xf32>, vector<1x16x8xf32>, vector<1x16x8xf32>, vector<1x16x8xf32> -> vector<4x16x8xf32>
    %441 = vector.shape_cast %440 : vector<4x16x8xf32> to vector<8x8x8xf32>
    "tpu.trace_start"() <{level = 10 : i32, message = "bqd,bkd->bqk"}> : () -> ()
    %cst_85 = arith.constant dense<0.000000e+00> : vector<8x8x8xf32>
    %442 = tpu.matmul %421, %431, %cst_85 {dimension_numbers = #tpu.dot_dimension_numbers<[2], [2], [1], [1], [0, 0, 0, 1, 1, 1], [0], [0]>} : vector<8x8x8xf32>, vector<8x8x8xf32>, vector<8x8x8xf32> -> vector<8x8x8xf32>
    "tpu.trace_stop"() : () -> ()
    %cst_86 = arith.constant 0.353553385 : f32
    %443 = vector.broadcast %cst_86 : f32 to vector<8x8x8xf32>
    %444 = arith.mulf %442, %443 : vector<8x8x8xf32>
    %cst_87 = arith.constant dense<0xFF800000> : vector<8x8xf32>
    %445 = vector.multi_reduction <maximumf>, %444, %cst_87 [2] : vector<8x8x8xf32> to vector<8x8xf32>
    %446 = vector.shape_cast %445 : vector<8x8xf32> to vector<8x8x1xf32>
    %447 = vector.broadcast %446 : vector<8x8x1xf32> to vector<8x8x8xf32>
    %448 = arith.subf %444, %447 : vector<8x8x8xf32>
    %449 = math.exp %448 : vector<8x8x8xf32>
    %cst_88 = arith.constant dense<0.000000e+00> : vector<8x8xf32>
    %450 = vector.multi_reduction <add>, %449, %cst_88 [2] : vector<8x8x8xf32> to vector<8x8xf32>
    %451 = vector.shape_cast %450 : vector<8x8xf32> to vector<8x8x1xf32>
    %452 = vector.broadcast %451 : vector<8x8x1xf32> to vector<8x8x8xf32>
    %453 = arith.divf %449, %452 : vector<8x8x8xf32>
    "tpu.trace_start"() <{level = 10 : i32, message = "bqk,bkd->bqd"}> : () -> ()
    %cst_89 = arith.constant dense<0.000000e+00> : vector<8x8x8xf32>
    %454 = tpu.matmul %453, %441, %cst_89 {dimension_numbers = #tpu.dot_dimension_numbers<[2], [1], [1], [2], [0, 0, 0, 1, 1, 2], [0], [0]>} : vector<8x8x8xf32>, vector<8x8x8xf32>, vector<8x8x8xf32> -> vector<8x8x8xf32>
    "tpu.trace_stop"() : () -> ()
    %455 = vector.shape_cast %454 : vector<8x8x8xf32> to vector<4x16x8xf32>
    %456 = vector.extract_strided_slice %455 {offsets = [0, 0, 0], sizes = [1, 16, 8], strides = [1, 1, 1]} : vector<4x16x8xf32> to vector<1x16x8xf32>
    %457 = vector.shape_cast %456 : vector<1x16x8xf32> to vector<16x8xf32>
    %458 = vector.extract_strided_slice %455 {offsets = [1, 0, 0], sizes = [1, 16, 8], strides = [1, 1, 1]} : vector<4x16x8xf32> to vector<1x16x8xf32>
    %459 = vector.shape_cast %458 : vector<1x16x8xf32> to vector<16x8xf32>
    %460 = vector.extract_strided_slice %455 {offsets = [2, 0, 0], sizes = [1, 16, 8], strides = [1, 1, 1]} : vector<4x16x8xf32> to vector<1x16x8xf32>
    %461 = vector.shape_cast %460 : vector<1x16x8xf32> to vector<16x8xf32>
    %462 = vector.extract_strided_slice %455 {offsets = [3, 0, 0], sizes = [1, 16, 8], strides = [1, 1, 1]} : vector<4x16x8xf32> to vector<1x16x8xf32>
    %463 = vector.shape_cast %462 : vector<1x16x8xf32> to vector<16x8xf32>
    %464 = tpu.concatenate %457, %459, %461, %463 in 1 : vector<16x8xf32>, vector<16x8xf32>, vector<16x8xf32>, vector<16x8xf32> -> vector<16x32xf32>
    %cst_90 = arith.constant dense<0.000000e+00> : vector<16x32xf32>
    %465 = tpu.matmul %464, %379, %cst_90 {dimension_numbers = #tpu.dot_dimension_numbers<[1], [0], [0], [1], [0, 0, 1, 1], [], []>} : vector<16x32xf32>, vector<32x32xf32>, vector<16x32xf32> -> vector<16x32xf32>
    %466 = vector.broadcast %381 : vector<1x32xf32> to vector<16x32xf32>
    %467 = arith.addf %465, %466 : vector<16x32xf32>
    %468 = arith.addf %372, %467 : vector<16x32xf32>
    %cst_91 = arith.constant dense<0.000000e+00> : vector<16xf32>
    %469 = vector.multi_reduction <add>, %468, %cst_91 [1] : vector<16x32xf32> to vector<16xf32>
    %470 = vector.shape_cast %469 : vector<16xf32> to vector<16x1xf32>
    %cst_92 = arith.constant 3.200000e+01 : f32
    %471 = vector.broadcast %cst_92 : f32 to vector<16x1xf32>
    %472 = arith.divf %470, %471 : vector<16x1xf32>
    %473 = vector.broadcast %472 : vector<16x1xf32> to vector<16x32xf32>
    %474 = arith.subf %468, %473 : vector<16x32xf32>
    %475 = arith.mulf %474, %474 : vector<16x32xf32>
    %cst_93 = arith.constant dense<0.000000e+00> : vector<16xf32>
    %476 = vector.multi_reduction <add>, %475, %cst_93 [1] : vector<16x32xf32> to vector<16xf32>
    %477 = vector.shape_cast %476 : vector<16xf32> to vector<16x1xf32>
    %cst_94 = arith.constant 3.200000e+01 : f32
    %478 = vector.broadcast %cst_94 : f32 to vector<16x1xf32>
    %479 = arith.divf %477, %478 : vector<16x1xf32>
    %480 = vector.broadcast %472 : vector<16x1xf32> to vector<16x32xf32>
    %481 = arith.subf %468, %480 : vector<16x32xf32>
    %cst_95 = arith.constant 9.99999974E-6 : f32
    %482 = vector.broadcast %cst_95 : f32 to vector<16x1xf32>
    %483 = arith.addf %479, %482 : vector<16x1xf32>
    %484 = math.rsqrt %483 : vector<16x1xf32>
    %485 = vector.broadcast %484 : vector<16x1xf32> to vector<16x32xf32>
    %486 = arith.mulf %481, %485 : vector<16x32xf32>
    %487 = vector.broadcast %385 : vector<1x32xf32> to vector<16x32xf32>
    %488 = arith.mulf %486, %487 : vector<16x32xf32>
    %489 = vector.broadcast %386 : vector<1x32xf32> to vector<16x32xf32>
    %490 = arith.addf %488, %489 : vector<16x32xf32>
    %cst_96 = arith.constant dense<0.000000e+00> : vector<16x32xf32>
    %491 = tpu.matmul %490, %380, %cst_96 {dimension_numbers = #tpu.dot_dimension_numbers<[1], [0], [0], [1], [0, 0, 1, 1], [], []>} : vector<16x32xf32>, vector<32x32xf32>, vector<16x32xf32> -> vector<16x32xf32>
    %492 = vector.broadcast %382 : vector<1x32xf32> to vector<16x32xf32>
    %493 = arith.addf %491, %492 : vector<16x32xf32>
    %cst_97 = arith.constant 0.000000e+00 : f32
    %494 = vector.broadcast %cst_97 : f32 to vector<16x32xf32>
    %495 = arith.maximumf %493, %494 : vector<16x32xf32>
    %496 = arith.addf %468, %495 : vector<16x32xf32>
    %c0_98 = arith.constant 0 : index
    %c0_99 = arith.constant 0 : index
    %c0_100 = arith.constant 0 : index
    %497 = vector.load %arg4[%c0_98, %c0_99, %c0_100] : memref<1x16x32xf32, #tpu.memory_space<vmem>>, vector<1x16x32xf32>
    %498 = vector.shape_cast %497 : vector<1x16x32xf32> to vector<16x32xf32>
    %499 = vector.shape_cast %496 : vector<16x32xf32> to vector<1x16x32xf32>
    tpu.vector_store %arg4[%c0_98, %c0_99, %c0_100], %499 {strides = array<i32>} : memref<1x16x32xf32, #tpu.memory_space<vmem>>, vector<1x16x32xf32>,
    return
  }
  func.func @transform_0(%arg0: i32) -> (i32, i32, i32) {
    %c0_i32 = arith.constant 0 : i32
    %c0_i32_0 = arith.constant 0 : i32
    %c0_i32_1 = arith.constant 0 : i32
    return %arg0, %c0_i32, %c0_i32_0 : i32, i32, i32
  }
  func.func @transform_1(%arg0: i32) -> (i32, i32, i32) {
    %c0_i32 = arith.constant 0 : i32
    %c0_i32_0 = arith.constant 0 : i32
    %c0_i32_1 = arith.constant 0 : i32
    %c0_i32_2 = arith.constant 0 : i32
    return %c0_i32, %c0_i32_0, %c0_i32_1 : i32, i32, i32
  }
  func.func @transform_2(%arg0: i32) -> (i32, i32, i32) {
    %c0_i32 = arith.constant 0 : i32
    %c0_i32_0 = arith.constant 0 : i32
    %c0_i32_1 = arith.constant 0 : i32
    %c0_i32_2 = arith.constant 0 : i32
    return %c0_i32, %c0_i32_0, %c0_i32_1 : i32, i32, i32
  }
  func.func @transform_3(%arg0: i32) -> (i32, i32, i32) {
    %c0_i32 = arith.constant 0 : i32
    %c0_i32_0 = arith.constant 0 : i32
    %c0_i32_1 = arith.constant 0 : i32
    return %arg0, %c0_i32, %c0_i32_0 : i32, i32, i32
  }
}

</mosaic_0001>

<llo_original>
// kernel: tpu_custom_call.1
$region0: #{tpu_custom_call.1}
  #allocation0 [shape = 'u32[]', space=smem, size = 0x4, offset = 0x4, fixed_abs, tag = 'smem constant byte address 0x4 - core index']
  #allocation1 [shape = 'u32[144,128]{1,0:T(1,128)}', space=vmem, size = 0x12000, scoped, tag = 'internal scratch']
  %s0 = inlined_call_operand.vmem [shape: f32[1,16,4], index: 0, kind: input, shape index: {}]
  %s1 = inlined_call_operand.vmem [shape: f32[4,33,96], index: 1, kind: input, shape index: {}]
  %s2 = inlined_call_operand.vmem [shape: f32[4,70,32], index: 2, kind: input, shape index: {}]
  %s3 = inlined_call_operand.hbm [shape: f32[1,16,32], index: 3, kind: output, shape index: {}]
  %s4 = sld [smem:[#allocation0]]
  $region22: #{tpu_custom_call.1} parent=0
    _
  %s6 = ssub.s32 1, %s4
  %s7 = scalar_select 0, %s6, %s4
  $region1: #{tpu_custom_call.1} parent=0
    #allocation2 [shape = 'u8[8192]{0}', space=vmem, size = 0x2000, scoped, tag = 'output window, operand 0, single buffered']
    #allocation3 [shape = 's32[1]{0}', space=sflag, size = 0x4, scoped, tag = 'scoped memory for tpu_custom_call.1']
    %8 = vsyncpa [#allocation3], 0
    // Predicated region
    $region2: #{tpu_custom_call.1} parent=1 // pred_check
      _
    $region3: #{tpu_custom_call.1} parent=1 // pred_check_branch
      %10 = sbr.rel (0) target = $region5
    $region4: #{tpu_custom_call.1} parent=1 // pred_region
      _
    $region5: #{tpu_custom_call.1} parent=1 // pred_fallthru
      _
    // Predicated region
    $region6: #{tpu_custom_call.1} parent=1 // pred_check
      _
    $region7: #{tpu_custom_call.1} parent=1 // pred_check_branch
      %12 = sbr.rel (0) target = $region9
    $region8: #{tpu_custom_call.1} parent=1 // pred_region
      _
    $region9: #{tpu_custom_call.1} parent=1 // pred_fallthru
      _
    // Predicated region
    $region10: #{tpu_custom_call.1} parent=1 // pred_check
      _
    $region11: #{tpu_custom_call.1} parent=1 // pred_check_branch
      %14 = sbr.rel (0) target = $region13
    $region12: #{tpu_custom_call.1} parent=1 // pred_region
      _
    $region13: #{tpu_custom_call.1} parent=1 // pred_fallthru
      _
    %v15 = vld [vmem:[%s0] sm:$0xff]
    %v16 = vld [vmem:[%s0 + $0x8] sm:$0xff]
    %v17 = vld [vmem:[%s1] sm:$0xff]
    %v18 = vld [vmem:[%s1 + $0x20] sm:$0x1]
    %v19 = vld [vmem:[%s2] sm:$0xff]
    %v20 = vld [vmem:[%s2 + $0x8] sm:$0xff]
    %v21 = vld [vmem:[%s2 + $0x10] sm:$0xff]
    %v22 = vld [vmem:[%s2 + $0x18] sm:$0xff]
    %v23 = vld [vmem:[%s2 + $0x20] sm:$0xff]
    %v24 = vld [vmem:[%s2 + $0x28] sm:$0xff]
    %v25 = vld [vmem:[%s2 + $0x30] sm:$0xff]
    %v26 = vld [vmem:[%s2 + $0x38] sm:$0xff]
    %v27 = vld [vmem:[%s2 + $0x40] sm:$0x3f]
    %vm28 = vcmask 31744
    %v29 = vsel %vm28, %v15, 0.0
    %30 = vadd.xlane.f32.xlu0 %v29
    %v31 = vpop.xlane.xlu0 %30
    %v32 = vsel %vm28, %v16, 0.0
    %33 = vadd.xlane.f32.xlu0 %v32
    %v34 = vpop.xlane.xlu0 %33
    %v35 = vrcp.pop 4.0
    %v36 = vmul.f32 %v31, %v35
    %v37 = vmul.f32 %v34, %v35
    %v38 = vsub.f32 %v15, %v36
    %v39 = vsub.f32 %v16, %v37
    %v40 = vmul.f32 %v38, %v38
    %v41 = vmul.f32 %v39, %v39
    %v42 = vsel %vm28, %v40, 0.0
    %43 = vadd.xlane.f32.xlu0 %v42
    %v44 = vpop.xlane.xlu0 %43
    %v45 = vsel %vm28, %v41, 0.0
    %46 = vadd.xlane.f32.xlu0 %v45
    %v47 = vpop.xlane.xlu0 %46
    %v48 = vmul.f32 %v44, %v35
    %v49 = vmul.f32 %v47, %v35
    %v50 = vadd.f32 %v48, 1e-05
    %v51 = vadd.f32 %v49, 1e-05
    %v52 = vrsqrt.pop %v50
    %v53 = vrsqrt.pop %v51
    %v54 = vmul.f32 %v38, %v52
    %v55 = vmul.f32 %v39, %v53
    %v56 = vlaneseq
    %v57 = vshrl.u32 %v56, 7
    %v58 = vsub.s32 2, %v57
    %v59 = vrot.slane %v27, %v58
    %v60 = vmul.f32 %v54, %v59
    %v61 = vmul.f32 %v55, %v59
    %v62 = vlaneseq
    %v63 = vshrl.u32 %v62, 7
    %v64 = vsub.s32 3, %v63
    %v65 = vrot.slane %v27, %v64
    %v66 = vadd.f32 %v60, %v65
    %v67 = vadd.f32 %v61, %v65
    %v68 = vlaneseq
    %v69 = vshrl.u32 %v68, 7
    %v70 = vsub.s32 0, %v69
    %v71 = vrot.slane %v18, %v70
    %v73 = vsel %vm28, %v66, 0
    %v76 = vsel %vm28, %v67, 0
    %vm78 = vcmask 1043456
    %v80 = vsel %vm78, %v17, 0
    %82 = vmatprep.subr.mxu0 0.0
    %83 = vmatpush1.msra.mxu0 0.0
    %84 = vmatprep.subr.mxu0 0.0
    %85 = vmatpush1.msra.mxu0 0.0
    %86 = vmatprep.subr.mxu0 0.0
    %87 = vmatpush1.msra.mxu0 0.0
    %88 = vmatprep.subr.mxu0 0.0
    %89 = vmatpush1.msra.mxu0 0.0
    %90 = vmatprep.subr.mxu0 0.0
    %91 = vmatpush1.msra.mxu0 0.0
    %92 = vmatprep.subr.mxu0 0.0
    %93 = vmatpush1.msra.mxu0 0.0
    %94 = vmatprep.subr.mxu0 0.0
    %95 = vmatpush1.msra.mxu0 0.0
    %96 = vmatprep.subr.mxu0 0.0
    %97 = vmatpush1.msra.mxu0 0.0
    %98 = vmatprep.subr.mxu0 0.0
    %99 = vmatpush1.msra.mxu0 0.0
    %100 = vmatprep.subr.mxu0 0.0
    %101 = vmatpush1.msra.mxu0 0.0
    %102 = vmatprep.subr.mxu0 0.0
    %103 = vmatpush1.msra.mxu0 0.0
    %104 = vmatprep.subr.mxu0 0.0
    %105 = vmatpush1.msra.mxu0 0.0
    %106 = vmatprep.subr.mxu0 0.0
    %107 = vmatpush1.msra.mxu0 0.0
    %108 = vmatprep.subr.mxu0 0.0
    %109 = vmatpush1.msra.mxu0 0.0
    %110 = vmatprep.subr.mxu0 0.0
    %111 = vmatpush1.msra.mxu0 0.0
    %112 = vmatprep.subr.mxu0 0.0
    %113 = vmatpush1.msra.mxu0 %v80
    %114 = vmatprep.subr.mxu0 0.0
    %115 = vmatpush2.msra.mxu0 0.0
    %116 = vmatprep.subr.mxu0 0.0
    %117 = vmatpush2.msra.mxu0 0.0
    %118 = vmatprep.subr.mxu0 0.0
    %119 = vmatpush2.msra.mxu0 0.0
    %120 = vmatprep.subr.mxu0 0.0
    %121 = vmatpush2.msra.mxu0 0.0
    %122 = vmatprep.subr.mxu0 0.0
    %123 = vmatpush2.msra.mxu0 0.0
    %124 = vmatprep.subr.mxu0 0.0
    %125 = vmatpush2.msra.mxu0 0.0
    %126 = vmatprep.subr.mxu0 0.0
    %127 = vmatpush2.msra.mxu0 0.0
    %128 = vmatprep.subr.mxu0 0.0
    %129 = vmatpush2.msra.mxu0 0.0
    %130 = vmatprep.subr.mxu0 0.0
    %131 = vmatpush2.msra.mxu0 0.0
    %132 = vmatprep.subr.mxu0 0.0
    %133 = vmatpush2.msra.mxu0 0.0
    %134 = vmatprep.subr.mxu0 0.0
    %135 = vmatpush2.msra.mxu0 0.0
    %136 = vmatprep.subr.mxu0 0.0
    %137 = vmatpush2.msra.mxu0 0.0
    %138 = vmatprep.subr.mxu0 0.0
    %139 = vmatpush2.msra.mxu0 0.0
    %140 = vmatprep.subr.mxu0 0.0
    %141 = vmatpush2.msra.mxu0 0.0
    %142 = vmatprep.subr.mxu0 0.0
    %143 = vmatpush2.msra.mxu0 0.0
    %144 = vmatprep.subr.mxu0 0.0
    %145 = vmatpush2.msra.mxu0 0.0
    %146 = vmatprep.mubr.f32.mxu0 0.0
    %147 = vmatmul.mubr.f32.gmra.mxu0 %v73
    %v148 = vpop.f32.mrf.mxu0
    %v149 = vadd.f32 %v71, %v148
    %v150 = vpop.f32.mrf.mxu0
    %151 = vmatprep.mubr.f32.mxu0 0.0
    %152 = vmatmul.mubr.f32.gmra.mxu0 %v76
    %v153 = vpop.f32.mrf.mxu0
    %v154 = vadd.f32 %v71, %v153
    %v155 = vpop.f32.mrf.mxu0
    %156 = vdwg.mxu0
    %159 = vrot.lane.b32.xlu0 %v149, 120
    %v160 = vpop.permute.xlu0 %159
    %161 = vrot.lane.b32.xlu0 %v154, 120
    %v162 = vpop.permute.xlu0 %161
    %163 = vrot.lane.b32.xlu0 %v149, 112
    %v164 = vpop.permute.xlu0 %163
    %165 = vrot.lane.b32.xlu0 %v154, 112
    %v166 = vpop.permute.xlu0 %165
    %167 = vrot.lane.b32.xlu0 %v149, 104
    %v168 = vpop.permute.xlu0 %167
    %169 = vrot.lane.b32.xlu0 %v154, 104
    %v170 = vpop.permute.xlu0 %169
    %171 = vrot.lane.b32.xlu0 %v149, 96
    %v172 = vpop.permute.xlu0 %171
    %vm173 = vcmask 64512
    %v174 = vsel %vm173, %v149, 0
    %v176 = vsel %vm173, %v172, 0
    %178 = vmatprep.subr.mxu0 0.0
    %179 = vmatpush1.xpose.msra.mxu0 0.0
    %180 = vmatprep.subr.mxu0 0.0
    %181 = vmatpush1.xpose.msra.mxu0 0.0
    %182 = vmatprep.subr.mxu0 0.0
    %183 = vmatpush1.xpose.msra.mxu0 0.0
    %184 = vmatprep.subr.mxu0 0.0
    %185 = vmatpush1.xpose.msra.mxu0 0.0
    %186 = vmatprep.subr.mxu0 0.0
    %187 = vmatpush1.xpose.msra.mxu0 0.0
    %188 = vmatprep.subr.mxu0 0.0
    %189 = vmatpush1.xpose.msra.mxu0 0.0
    %190 = vmatprep.subr.mxu0 0.0
    %191 = vmatpush1.xpose.msra.mxu0 0.0
    %192 = vmatprep.subr.mxu0 0.0
    %193 = vmatpush1.xpose.msra.mxu0 0.0
    %194 = vmatprep.subr.mxu0 0.0
    %195 = vmatpush1.xpose.msra.mxu0 0.0
    %196 = vmatprep.subr.mxu0 0.0
    %197 = vmatpush1.xpose.msra.mxu0 0.0
    %198 = vmatprep.subr.mxu0 0.0
    %199 = vmatpush1.xpose.msra.mxu0 0.0
    %200 = vmatprep.subr.mxu0 0.0
    %201 = vmatpush1.xpose.msra.mxu0 0.0
    %202 = vmatprep.subr.mxu0 0.0
    %203 = vmatpush1.xpose.msra.mxu0 0.0
    %204 = vmatprep.subr.mxu0 0.0
    %205 = vmatpush1.xpose.msra.mxu0 0.0
    %206 = vmatprep.subr.mxu0 0.0
    %207 = vmatpush1.xpose.msra.mxu0 0.0
    %208 = vmatprep.subr.mxu0 0.0
    %209 = vmatpush1.xpose.msra.mxu0 %v176
    %210 = vmatprep.subr.mxu0 0.0
    %211 = vmatpush2.xpose.msra.mxu0 0.0
    %212 = vmatprep.subr.mxu0 0.0
    %213 = vmatpush2.xpose.msra.mxu0 0.0
    %214 = vmatprep.subr.mxu0 0.0
    %215 = vmatpush2.xpose.msra.mxu0 0.0
    %216 = vmatprep.subr.mxu0 0.0
    %217 = vmatpush2.xpose.msra.mxu0 0.0
    %218 = vmatprep.subr.mxu0 0.0
    %219 = vmatpush2.xpose.msra.mxu0 0.0
    %220 = vmatprep.subr.mxu0 0.0
    %221 = vmatpush2.xpose.msra.mxu0 0.0
    %222 = vmatprep.subr.mxu0 0.0
    %223 = vmatpush2.xpose.msra.mxu0 0.0
    %224 = vmatprep.subr.mxu0 0.0
    %225 = vmatpush2.xpose.msra.mxu0 0.0
    %226 = vmatprep.subr.mxu0 0.0
    %227 = vmatpush2.xpose.msra.mxu0 0.0
    %228 = vmatprep.subr.mxu0 0.0
    %229 = vmatpush2.xpose.msra.mxu0 0.0
    %230 = vmatprep.subr.mxu0 0.0
    %231 = vmatpush2.xpose.msra.mxu0 0.0
    %232 = vmatprep.subr.mxu0 0.0
    %233 = vmatpush2.xpose.msra.mxu0 0.0
    %234 = vmatprep.subr.mxu0 0.0
    %235 = vmatpush2.xpose.msra.mxu0 0.0
    %236 = vmatprep.subr.mxu0 0.0
    %237 = vmatpush2.xpose.msra.mxu0 0.0
    %238 = vmatprep.subr.mxu0 0.0
    %239 = vmatpush2.xpose.msra.mxu0 0.0
    %240 = vmatprep.subr.mxu0 0.0
    %241 = vmatpush2.xpose.msra.mxu0 0.0
    %242 = vmatprep.mubr.f32.mxu0 0.0
    %243 = vmatmul.mubr.f32.gmra.mxu0 %v174
    %v244 = vpop.f32.mrf.mxu0
    %v245 = vadd.f32 0.0, %v244
    %v246 = vpop.f32.mrf.mxu0
    %247 = vdwg.mxu0
    %248 = vrot.lane.b32.xlu0 %v154, 96
    %v249 = vpop.permute.xlu0 %248
    %v250 = vsel %vm173, %v154, 0
    %v252 = vsel %vm173, %v249, 0
    %254 = vmatprep.subr.mxu0 0.0
    %255 = vmatpush1.xpose.msra.mxu0 0.0
    %256 = vmatprep.subr.mxu0 0.0
    %257 = vmatpush1.xpose.msra.mxu0 0.0
    %258 = vmatprep.subr.mxu0 0.0
    %259 = vmatpush1.xpose.msra.mxu0 0.0
    %260 = vmatprep.subr.mxu0 0.0
    %261 = vmatpush1.xpose.msra.mxu0 0.0
    %262 = vmatprep.subr.mxu0 0.0
    %263 = vmatpush1.xpose.msra.mxu0 0.0
    %264 = vmatprep.subr.mxu0 0.0
    %265 = vmatpush1.xpose.msra.mxu0 0.0
    %266 = vmatprep.subr.mxu0 0.0
    %267 = vmatpush1.xpose.msra.mxu0 0.0
    %268 = vmatprep.subr.mxu0 0.0
    %269 = vmatpush1.xpose.msra.mxu0 0.0
    %270 = vmatprep.subr.mxu0 0.0
    %271 = vmatpush1.xpose.msra.mxu0 0.0
    %272 = vmatprep.subr.mxu0 0.0
    %273 = vmatpush1.xpose.msra.mxu0 0.0
    %274 = vmatprep.subr.mxu0 0.0
    %275 = vmatpush1.xpose.msra.mxu0 0.0
    %276 = vmatprep.subr.mxu0 0.0
    %277 = vmatpush1.xpose.msra.mxu0 0.0
    %278 = vmatprep.subr.mxu0 0.0
    %279 = vmatpush1.xpose.msra.mxu0 0.0
    %280 = vmatprep.subr.mxu0 0.0
    %281 = vmatpush1.xpose.msra.mxu0 0.0
    %282 = vmatprep.subr.mxu0 0.0
    %283 = vmatpush1.xpose.msra.mxu0 0.0
    %284 = vmatprep.subr.mxu0 0.0
    %285 = vmatpush1.xpose.msra.mxu0 %v252
    %286 = vmatprep.subr.mxu0 0.0
    %287 = vmatpush2.xpose.msra.mxu0 0.0
    %288 = vmatprep.subr.mxu0 0.0
    %289 = vmatpush2.xpose.msra.mxu0 0.0
    %290 = vmatprep.subr.mxu0 0.0
    %291 = vmatpush2.xpose.msra.mxu0 0.0
    %292 = vmatprep.subr.mxu0 0.0
    %293 = vmatpush2.xpose.msra.mxu0 0.0
    %294 = vmatprep.subr.mxu0 0.0
    %295 = vmatpush2.xpose.msra.mxu0 0.0
    %296 = vmatprep.subr.mxu0 0.0
    %297 = vmatpush2.xpose.msra.mxu0 0.0
    %298 = vmatprep.subr.mxu0 0.0
    %299 = vmatpush2.xpose.msra.mxu0 0.0
    %300 = vmatprep.subr.mxu0 0.0
    %301 = vmatpush2.xpose.msra.mxu0 0.0
    %302 = vmatprep.subr.mxu0 0.0
    %303 = vmatpush2.xpose.msra.mxu0 0.0
    %304 = vmatprep.subr.mxu0 0.0
    %305 = vmatpush2.xpose.msra.mxu0 0.0
    %306 = vmatprep.subr.mxu0 0.0
    %307 = vmatpush2.xpose.msra.mxu0 0.0
    %308 = vmatprep.subr.mxu0 0.0
    %309 = vmatpush2.xpose.msra.mxu0 0.0
    %310 = vmatprep.subr.mxu0 0.0
    %311 = vmatpush2.xpose.msra.mxu0 0.0
    %312 = vmatprep.subr.mxu0 0.0
    %313 = vmatpush2.xpose.msra.mxu0 0.0
    %314 = vmatprep.subr.mxu0 0.0
    %315 = vmatpush2.xpose.msra.mxu0 0.0
    %316 = vmatprep.subr.mxu0 0.0
    %317 = vmatpush2.xpose.msra.mxu0 0.0
    %318 = vmatprep.mubr.f32.mxu0 0.0
    %319 = vmatmul.mubr.f32.gmra.mxu0 %v250
    %v320 = vpop.f32.mrf.mxu0
    %v321 = vadd.f32 0.0, %v320
    %v322 = vpop.f32.mrf.mxu0
    %323 = vdwg.mxu0
    %324 = vrot.lane.b32.xlu0 %v160, 96
    %v325 = vpop.permute.xlu0 %324
    %v326 = vsel %vm173, %v160, 0
    %v328 = vsel %vm173, %v325, 0
    %330 = vmatprep.subr.mxu0 0.0
    %331 = vmatpush1.xpose.msra.mxu0 0.0
    %332 = vmatprep.subr.mxu0 0.0
    %333 = vmatpush1.xpose.msra.mxu0 0.0
    %334 = vmatprep.subr.mxu0 0.0
    %335 = vmatpush1.xpose.msra.mxu0 0.0
    %336 = vmatprep.subr.mxu0 0.0
    %337 = vmatpush1.xpose.msra.mxu0 0.0
    %338 = vmatprep.subr.mxu0 0.0
    %339 = vmatpush1.xpose.msra.mxu0 0.0
    %340 = vmatprep.subr.mxu0 0.0
    %341 = vmatpush1.xpose.msra.mxu0 0.0
    %342 = vmatprep.subr.mxu0 0.0
    %343 = vmatpush1.xpose.msra.mxu0 0.0
    %344 = vmatprep.subr.mxu0 0.0
    %345 = vmatpush1.xpose.msra.mxu0 0.0
    %346 = vmatprep.subr.mxu0 0.0
    %347 = vmatpush1.xpose.msra.mxu0 0.0
    %348 = vmatprep.subr.mxu0 0.0
    %349 = vmatpush1.xpose.msra.mxu0 0.0
    %350 = vmatprep.subr.mxu0 0.0
    %351 = vmatpush1.xpose.msra.mxu0 0.0
    %352 = vmatprep.subr.mxu0 0.0
    %353 = vmatpush1.xpose.msra.mxu0 0.0
    %354 = vmatprep.subr.mxu0 0.0
    %355 = vmatpush1.xpose.msra.mxu0 0.0
    %356 = vmatprep.subr.mxu0 0.0
    %357 = vmatpush1.xpose.msra.mxu0 0.0
    %358 = vmatprep.subr.mxu0 0.0
    %359 = vmatpush1.xpose.msra.mxu0 0.0
    %360 = vmatprep.subr.mxu0 0.0
    %361 = vmatpush1.xpose.msra.mxu0 %v328
    %362 = vmatprep.subr.mxu0 0.0
    %363 = vmatpush2.xpose.msra.mxu0 0.0
    %364 = vmatprep.subr.mxu0 0.0
    %365 = vmatpush2.xpose.msra.mxu0 0.0
    %366 = vmatprep.subr.mxu0 0.0
    %367 = vmatpush2.xpose.msra.mxu0 0.0
    %368 = vmatprep.subr.mxu0 0.0
    %369 = vmatpush2.xpose.msra.mxu0 0.0
    %370 = vmatprep.subr.mxu0 0.0
    %371 = vmatpush2.xpose.msra.mxu0 0.0
    %372 = vmatprep.subr.mxu0 0.0
    %373 = vmatpush2.xpose.msra.mxu0 0.0
    %374 = vmatprep.subr.mxu0 0.0
    %375 = vmatpush2.xpose.msra.mxu0 0.0
    %376 = vmatprep.subr.mxu0 0.0
    %377 = vmatpush2.xpose.msra.mxu0 0.0
    %378 = vmatprep.subr.mxu0 0.0
    %379 = vmatpush2.xpose.msra.mxu0 0.0
    %380 = vmatprep.subr.mxu0 0.0
    %381 = vmatpush2.xpose.msra.mxu0 0.0
    %382 = vmatprep.subr.mxu0 0.0
    %383 = vmatpush2.xpose.msra.mxu0 0.0
    %384 = vmatprep.subr.mxu0 0.0
    %385 = vmatpush2.xpose.msra.mxu0 0.0
    %386 = vmatprep.subr.mxu0 0.0
    %387 = vmatpush2.xpose.msra.mxu0 0.0
    %388 = vmatprep.subr.mxu0 0.0
    %389 = vmatpush2.xpose.msra.mxu0 0.0
    %390 = vmatprep.subr.mxu0 0.0
    %391 = vmatpush2.xpose.msra.mxu0 0.0
    %392 = vmatprep.subr.mxu0 0.0
    %393 = vmatpush2.xpose.msra.mxu0 0.0
    %394 = vmatprep.mubr.f32.mxu0 0.0
    %395 = vmatmul.mubr.f32.gmra.mxu0 %v326
    %v396 = vpop.f32.mrf.mxu0
    %v397 = vadd.f32 0.0, %v396
    %v398 = vpop.f32.mrf.mxu0
    %399 = vdwg.mxu0
    %400 = vrot.lane.b32.xlu0 %v162, 96
    %v401 = vpop.permute.xlu0 %400
    %v402 = vsel %vm173, %v162, 0
    %v404 = vsel %vm173, %v401, 0
    %406 = vmatprep.subr.mxu0 0.0
    %407 = vmatpush1.xpose.msra.mxu0 0.0
    %408 = vmatprep.subr.mxu0 0.0
    %409 = vmatpush1.xpose.msra.mxu0 0.0
    %410 = vmatprep.subr.mxu0 0.0
    %411 = vmatpush1.xpose.msra.mxu0 0.0
    %412 = vmatprep.subr.mxu0 0.0
    %413 = vmatpush1.xpose.msra.mxu0 0.0
    %414 = vmatprep.subr.mxu0 0.0
    %415 = vmatpush1.xpose.msra.mxu0 0.0
    %416 = vmatprep.subr.mxu0 0.0
    %417 = vmatpush1.xpose.msra.mxu0 0.0
    %418 = vmatprep.subr.mxu0 0.0
    %419 = vmatpush1.xpose.msra.mxu0 0.0
    %420 = vmatprep.subr.mxu0 0.0
    %421 = vmatpush1.xpose.msra.mxu0 0.0
    %422 = vmatprep.subr.mxu0 0.0
    %423 = vmatpush1.xpose.msra.mxu0 0.0
    %424 = vmatprep.subr.mxu0 0.0
    %425 = vmatpush1.xpose.msra.mxu0 0.0
    %426 = vmatprep.subr.mxu0 0.0
    %427 = vmatpush1.xpose.msra.mxu0 0.0
    %428 = vmatprep.subr.mxu0 0.0
    %429 = vmatpush1.xpose.msra.mxu0 0.0
    %430 = vmatprep.subr.mxu0 0.0
    %431 = vmatpush1.xpose.msra.mxu0 0.0
    %432 = vmatprep.subr.mxu0 0.0
    %433 = vmatpush1.xpose.msra.mxu0 0.0
    %434 = vmatprep.subr.mxu0 0.0
    %435 = vmatpush1.xpose.msra.mxu0 0.0
    %436 = vmatprep.subr.mxu0 0.0
    %437 = vmatpush1.xpose.msra.mxu0 %v404
    %438 = vmatprep.subr.mxu0 0.0
    %439 = vmatpush2.xpose.msra.mxu0 0.0
    %440 = vmatprep.subr.mxu0 0.0
    %441 = vmatpush2.xpose.msra.mxu0 0.0
    %442 = vmatprep.subr.mxu0 0.0
    %443 = vmatpush2.xpose.msra.mxu0 0.0
    %444 = vmatprep.subr.mxu0 0.0
    %445 = vmatpush2.xpose.msra.mxu0 0.0
    %446 = vmatprep.subr.mxu0 0.0
    %447 = vmatpush2.xpose.msra.mxu0 0.0
    %448 = vmatprep.subr.mxu0 0.0
    %449 = vmatpush2.xpose.msra.mxu0 0.0
    %450 = vmatprep.subr.mxu0 0.0
    %451 = vmatpush2.xpose.msra.mxu0 0.0
    %452 = vmatprep.subr.mxu0 0.0
    %453 = vmatpush2.xpose.msra.mxu0 0.0
    %454 = vmatprep.subr.mxu0 0.0
    %455 = vmatpush2.xpose.msra.mxu0 0.0
    %456 = vmatprep.subr.mxu0 0.0
    %457 = vmatpush2.xpose.msra.mxu0 0.0
    %458 = vmatprep.subr.mxu0 0.0
    %459 = vmatpush2.xpose.msra.mxu0 0.0
    %460 = vmatprep.subr.mxu0 0.0
    %461 = vmatpush2.xpose.msra.mxu0 0.0
    %462 = vmatprep.subr.mxu0 0.0
    %463 = vmatpush2.xpose.msra.mxu0 0.0
    %464 = vmatprep.subr.mxu0 0.0
    %465 = vmatpush2.xpose.msra.mxu0 0.0
    %466 = vmatprep.subr.mxu0 0.0
    %467 = vmatpush2.xpose.msra.mxu0 0.0
    %468 = vmatprep.subr.mxu0 0.0
    %469 = vmatpush2.xpose.msra.mxu0 0.0
    %470 = vmatprep.mubr.f32.mxu0 0.0
    %471 = vmatmul.mubr.f32.gmra.mxu0 %v402
    %v472 = vpop.f32.mrf.mxu0
    %v473 = vadd.f32 0.0, %v472
    %v474 = vpop.f32.mrf.mxu0
    %475 = vdwg.mxu0
    %476 = vrot.lane.b32.xlu0 %v164, 96
    %v477 = vpop.permute.xlu0 %476
    %v478 = vsel %vm173, %v164, 0
    %v480 = vsel %vm173, %v477, 0
    %482 = vmatprep.subr.mxu0 0.0
    %483 = vmatpush1.xpose.msra.mxu0 0.0
    %484 = vmatprep.subr.mxu0 0.0
    %485 = vmatpush1.xpose.msra.mxu0 0.0
    %486 = vmatprep.subr.mxu0 0.0
    %487 = vmatpush1.xpose.msra.mxu0 0.0
    %488 = vmatprep.subr.mxu0 0.0
    %489 = vmatpush1.xpose.msra.mxu0 0.0
    %490 = vmatprep.subr.mxu0 0.0
    %491 = vmatpush1.xpose.msra.mxu0 0.0
    %492 = vmatprep.subr.mxu0 0.0
    %493 = vmatpush1.xpose.msra.mxu0 0.0
    %494 = vmatprep.subr.mxu0 0.0
    %495 = vmatpush1.xpose.msra.mxu0 0.0
    %496 = vmatprep.subr.mxu0 0.0
    %497 = vmatpush1.xpose.msra.mxu0 0.0
    %498 = vmatprep.subr.mxu0 0.0
    %499 = vmatpush1.xpose.msra.mxu0 0.0
    %500 = vmatprep.subr.mxu0 0.0
    %501 = vmatpush1.xpose.msra.mxu0 0.0
    %502 = vmatprep.subr.mxu0 0.0
    %503 = vmatpush1.xpose.msra.mxu0 0.0
    %504 = vmatprep.subr.mxu0 0.0
    %505 = vmatpush1.xpose.msra.mxu0 0.0
    %506 = vmatprep.subr.mxu0 0.0
    %507 = vmatpush1.xpose.msra.mxu0 0.0
    %508 = vmatprep.subr.mxu0 0.0
    %509 = vmatpush1.xpose.msra.mxu0 0.0
    %510 = vmatprep.subr.mxu0 0.0
    %511 = vmatpush1.xpose.msra.mxu0 0.0
    %512 = vmatprep.subr.mxu0 0.0
    %513 = vmatpush1.xpose.msra.mxu0 %v480
    %514 = vmatprep.subr.mxu0 0.0
    %515 = vmatpush2.xpose.msra.mxu0 0.0
    %516 = vmatprep.subr.mxu0 0.0
    %517 = vmatpush2.xpose.msra.mxu0 0.0
    %518 = vmatprep.subr.mxu0 0.0
    %519 = vmatpush2.xpose.msra.mxu0 0.0
    %520 = vmatprep.subr.mxu0 0.0
    %521 = vmatpush2.xpose.msra.mxu0 0.0
    %522 = vmatprep.subr.mxu0 0.0
    %523 = vmatpush2.xpose.msra.mxu0 0.0
    %524 = vmatprep.subr.mxu0 0.0
    %525 = vmatpush2.xpose.msra.mxu0 0.0
    %526 = vmatprep.subr.mxu0 0.0
    %527 = vmatpush2.xpose.msra.mxu0 0.0
    %528 = vmatprep.subr.mxu0 0.0
    %529 = vmatpush2.xpose.msra.mxu0 0.0
    %530 = vmatprep.subr.mxu0 0.0
    %531 = vmatpush2.xpose.msra.mxu0 0.0
    %532 = vmatprep.subr.mxu0 0.0
    %533 = vmatpush2.xpose.msra.mxu0 0.0
    %534 = vmatprep.subr.mxu0 0.0
    %535 = vmatpush2.xpose.msra.mxu0 0.0
    %536 = vmatprep.subr.mxu0 0.0
    %537 = vmatpush2.xpose.msra.mxu0 0.0
    %538 = vmatprep.subr.mxu0 0.0
    %539 = vmatpush2.xpose.msra.mxu0 0.0
    %540 = vmatprep.subr.mxu0 0.0
    %541 = vmatpush2.xpose.msra.mxu0 0.0
    %542 = vmatprep.subr.mxu0 0.0
    %543 = vmatpush2.xpose.msra.mxu0 0.0
    %544 = vmatprep.subr.mxu0 0.0
    %545 = vmatpush2.xpose.msra.mxu0 0.0
    %546 = vmatprep.mubr.f32.mxu0 0.0
    %547 = vmatmul.mubr.f32.gmra.mxu0 %v478
    %v548 = vpop.f32.mrf.mxu0
    %v549 = vadd.f32 0.0, %v548
    %v550 = vpop.f32.mrf.mxu0
    %551 = vdwg.mxu0
    %552 = vrot.lane.b32.xlu0 %v166, 96
    %v553 = vpop.permute.xlu0 %552
    %v554 = vsel %vm173, %v166, 0
    %v556 = vsel %vm173, %v553, 0
    %558 = vmatprep.subr.mxu0 0.0
    %559 = vmatpush1.xpose.msra.mxu0 0.0
    %560 = vmatprep.subr.mxu0 0.0
    %561 = vmatpush1.xpose.msra.mxu0 0.0
    %562 = vmatprep.subr.mxu0 0.0
    %563 = vmatpush1.xpose.msra.mxu0 0.0
    %564 = vmatprep.subr.mxu0 0.0
    %565 = vmatpush1.xpose.msra.mxu0 0.0
    %566 = vmatprep.subr.mxu0 0.0
    %567 = vmatpush1.xpose.msra.mxu0 0.0
    %568 = vmatprep.subr.mxu0 0.0
    %569 = vmatpush1.xpose.msra.mxu0 0.0
    %570 = vmatprep.subr.mxu0 0.0
    %571 = vmatpush1.xpose.msra.mxu0 0.0
    %572 = vmatprep.subr.mxu0 0.0
    %573 = vmatpush1.xpose.msra.mxu0 0.0
    %574 = vmatprep.subr.mxu0 0.0
    %575 = vmatpush1.xpose.msra.mxu0 0.0
    %576 = vmatprep.subr.mxu0 0.0
    %577 = vmatpush1.xpose.msra.mxu0 0.0
    %578 = vmatprep.subr.mxu0 0.0
    %579 = vmatpush1.xpose.msra.mxu0 0.0
    %580 = vmatprep.subr.mxu0 0.0
    %581 = vmatpush1.xpose.msra.mxu0 0.0
    %582 = vmatprep.subr.mxu0 0.0
    %583 = vmatpush1.xpose.msra.mxu0 0.0
    %584 = vmatprep.subr.mxu0 0.0
    %585 = vmatpush1.xpose.msra.mxu0 0.0
    %586 = vmatprep.subr.mxu0 0.0
    %587 = vmatpush1.xpose.msra.mxu0 0.0
    %588 = vmatprep.subr.mxu0 0.0
    %589 = vmatpush1.xpose.msra.mxu0 %v556
    %590 = vmatprep.subr.mxu0 0.0
    %591 = vmatpush2.xpose.msra.mxu0 0.0
    %592 = vmatprep.subr.mxu0 0.0
    %593 = vmatpush2.xpose.msra.mxu0 0.0
    %594 = vmatprep.subr.mxu0 0.0
    %595 = vmatpush2.xpose.msra.mxu0 0.0
    %596 = vmatprep.subr.mxu0 0.0
    %597 = vmatpush2.xpose.msra.mxu0 0.0
    %598 = vmatprep.subr.mxu0 0.0
    %599 = vmatpush2.xpose.msra.mxu0 0.0
    %600 = vmatprep.subr.mxu0 0.0
    %601 = vmatpush2.xpose.msra.mxu0 0.0
    %602 = vmatprep.subr.mxu0 0.0
    %603 = vmatpush2.xpose.msra.mxu0 0.0
    %604 = vmatprep.subr.mxu0 0.0
    %605 = vmatpush2.xpose.msra.mxu0 0.0
    %606 = vmatprep.subr.mxu0 0.0
    %607 = vmatpush2.xpose.msra.mxu0 0.0
    %608 = vmatprep.subr.mxu0 0.0
    %609 = vmatpush2.xpose.msra.mxu0 0.0
    %610 = vmatprep.subr.mxu0 0.0
    %611 = vmatpush2.xpose.msra.mxu0 0.0
    %612 = vmatprep.subr.mxu0 0.0
    %613 = vmatpush2.xpose.msra.mxu0 0.0
    %614 = vmatprep.subr.mxu0 0.0
    %615 = vmatpush2.xpose.msra.mxu0 0.0
    %616 = vmatprep.subr.mxu0 0.0
    %617 = vmatpush2.xpose.msra.mxu0 0.0
    %618 = vmatprep.subr.mxu0 0.0
    %619 = vmatpush2.xpose.msra.mxu0 0.0
    %620 = vmatprep.subr.mxu0 0.0
    %621 = vmatpush2.xpose.msra.mxu0 0.0
    %622 = vmatprep.mubr.f32.mxu0 0.0
    %623 = vmatmul.mubr.f32.gmra.mxu0 %v554
    %v624 = vpop.f32.mrf.mxu0
    %v625 = vadd.f32 0.0, %v624
    %v626 = vpop.f32.mrf.mxu0
    %627 = vdwg.mxu0
    %628 = vrot.lane.b32.xlu0 %v168, 96
    %v629 = vpop.permute.xlu0 %628
    %v630 = vsel %vm173, %v168, 0
    %v632 = vsel %vm173, %v629, 0
    %634 = vmatprep.subr.mxu0 0.0
    %635 = vmatpush1.xpose.msra.mxu0 0.0
    %636 = vmatprep.subr.mxu0 0.0
    %637 = vmatpush1.xpose.msra.mxu0 0.0
    %638 = vmatprep.subr.mxu0 0.0
    %639 = vmatpush1.xpose.msra.mxu0 0.0
    %640 = vmatprep.subr.mxu0 0.0
    %641 = vmatpush1.xpose.msra.mxu0 0.0
    %642 = vmatprep.subr.mxu0 0.0
    %643 = vmatpush1.xpose.msra.mxu0 0.0
    %644 = vmatprep.subr.mxu0 0.0
    %645 = vmatpush1.xpose.msra.mxu0 0.0
    %646 = vmatprep.subr.mxu0 0.0
    %647 = vmatpush1.xpose.msra.mxu0 0.0
    %648 = vmatprep.subr.mxu0 0.0
    %649 = vmatpush1.xpose.msra.mxu0 0.0
    %650 = vmatprep.subr.mxu0 0.0
    %651 = vmatpush1.xpose.msra.mxu0 0.0
    %652 = vmatprep.subr.mxu0 0.0
    %653 = vmatpush1.xpose.msra.mxu0 0.0
    %654 = vmatprep.subr.mxu0 0.0
    %655 = vmatpush1.xpose.msra.mxu0 0.0
    %656 = vmatprep.subr.mxu0 0.0
    %657 = vmatpush1.xpose.msra.mxu0 0.0
    %658 = vmatprep.subr.mxu0 0.0
    %659 = vmatpush1.xpose.msra.mxu0 0.0
    %660 = vmatprep.subr.mxu0 0.0
    %661 = vmatpush1.xpose.msra.mxu0 0.0
    %662 = vmatprep.subr.mxu0 0.0
    %663 = vmatpush1.xpose.msra.mxu0 0.0
    %664 = vmatprep.subr.mxu0 0.0
    %665 = vmatpush1.xpose.msra.mxu0 %v632
    %666 = vmatprep.subr.mxu0 0.0
    %667 = vmatpush2.xpose.msra.mxu0 0.0
    %668 = vmatprep.subr.mxu0 0.0
    %669 = vmatpush2.xpose.msra.mxu0 0.0
    %670 = vmatprep.subr.mxu0 0.0
    %671 = vmatpush2.xpose.msra.mxu0 0.0
    %672 = vmatprep.subr.mxu0 0.0
    %673 = vmatpush2.xpose.msra.mxu0 0.0
    %674 = vmatprep.subr.mxu0 0.0
    %675 = vmatpush2.xpose.msra.mxu0 0.0
    %676 = vmatprep.subr.mxu0 0.0
    %677 = vmatpush2.xpose.msra.mxu0 0.0
    %678 = vmatprep.subr.mxu0 0.0
    %679 = vmatpush2.xpose.msra.mxu0 0.0
    %680 = vmatprep.subr.mxu0 0.0
    %681 = vmatpush2.xpose.msra.mxu0 0.0
    %682 = vmatprep.subr.mxu0 0.0
    %683 = vmatpush2.xpose.msra.mxu0 0.0
    %684 = vmatprep.subr.mxu0 0.0
    %685 = vmatpush2.xpose.msra.mxu0 0.0
    %686 = vmatprep.subr.mxu0 0.0
    %687 = vmatpush2.xpose.msra.mxu0 0.0
    %688 = vmatprep.subr.mxu0 0.0
    %689 = vmatpush2.xpose.msra.mxu0 0.0
    %690 = vmatprep.subr.mxu0 0.0
    %691 = vmatpush2.xpose.msra.mxu0 0.0
    %692 = vmatprep.subr.mxu0 0.0
    %693 = vmatpush2.xpose.msra.mxu0 0.0
    %694 = vmatprep.subr.mxu0 0.0
    %695 = vmatpush2.xpose.msra.mxu0 0.0
    %696 = vmatprep.subr.mxu0 0.0
    %697 = vmatpush2.xpose.msra.mxu0 0.0
    %698 = vmatprep.mubr.f32.mxu0 0.0
    %699 = vmatmul.mubr.f32.gmra.mxu0 %v630
    %v700 = vpop.f32.mrf.mxu0
    %v701 = vadd.f32 0.0, %v700
    %v702 = vpop.f32.mrf.mxu0
    %703 = vdwg.mxu0
    %704 = vrot.lane.b32.xlu0 %v170, 96
    %v705 = vpop.permute.xlu0 %704
    %v706 = vsel %vm173, %v170, 0
    %v708 = vsel %vm173, %v705, 0
    %710 = vmatprep.subr.mxu0 0.0
    %711 = vmatpush1.xpose.msra.mxu0 0.0
    %712 = vmatprep.subr.mxu0 0.0
    %713 = vmatpush1.xpose.msra.mxu0 0.0
    %714 = vmatprep.subr.mxu0 0.0
    %715 = vmatpush1.xpose.msra.mxu0 0.0
    %716 = vmatprep.subr.mxu0 0.0
    %717 = vmatpush1.xpose.msra.mxu0 0.0
    %718 = vmatprep.subr.mxu0 0.0
    %719 = vmatpush1.xpose.msra.mxu0 0.0
    %720 = vmatprep.subr.mxu0 0.0
    %721 = vmatpush1.xpose.msra.mxu0 0.0
    %722 = vmatprep.subr.mxu0 0.0
    %723 = vmatpush1.xpose.msra.mxu0 0.0
    %724 = vmatprep.subr.mxu0 0.0
    %725 = vmatpush1.xpose.msra.mxu0 0.0
    %726 = vmatprep.subr.mxu0 0.0
    %727 = vmatpush1.xpose.msra.mxu0 0.0
    %728 = vmatprep.subr.mxu0 0.0
    %729 = vmatpush1.xpose.msra.mxu0 0.0
    %730 = vmatprep.subr.mxu0 0.0
    %731 = vmatpush1.xpose.msra.mxu0 0.0
    %732 = vmatprep.subr.mxu0 0.0
    %733 = vmatpush1.xpose.msra.mxu0 0.0
    %734 = vmatprep.subr.mxu0 0.0
    %735 = vmatpush1.xpose.msra.mxu0 0.0
    %736 = vmatprep.subr.mxu0 0.0
    %737 = vmatpush1.xpose.msra.mxu0 0.0
    %738 = vmatprep.subr.mxu0 0.0
    %739 = vmatpush1.xpose.msra.mxu0 0.0
    %740 = vmatprep.subr.mxu0 0.0
    %741 = vmatpush1.xpose.msra.mxu0 %v708
    %742 = vmatprep.subr.mxu0 0.0
    %743 = vmatpush2.xpose.msra.mxu0 0.0
    %744 = vmatprep.subr.mxu0 0.0
    %745 = vmatpush2.xpose.msra.mxu0 0.0
    %746 = vmatprep.subr.mxu0 0.0
    %747 = vmatpush2.xpose.msra.mxu0 0.0
    %748 = vmatprep.subr.mxu0 0.0
    %749 = vmatpush2.xpose.msra.mxu0 0.0
    %750 = vmatprep.subr.mxu0 0.0
    %751 = vmatpush2.xpose.msra.mxu0 0.0
    %752 = vmatprep.subr.mxu0 0.0
    %753 = vmatpush2.xpose.msra.mxu0 0.0
    %754 = vmatprep.subr.mxu0 0.0
    %755 = vmatpush2.xpose.msra.mxu0 0.0
    %756 = vmatprep.subr.mxu0 0.0
    %757 = vmatpush2.xpose.msra.mxu0 0.0
    %758 = vmatprep.subr.mxu0 0.0
    %759 = vmatpush2.xpose.msra.mxu0 0.0
    %760 = vmatprep.subr.mxu0 0.0
    %761 = vmatpush2.xpose.msra.mxu0 0.0
    %762 = vmatprep.subr.mxu0 0.0
    %763 = vmatpush2.xpose.msra.mxu0 0.0
    %764 = vmatprep.subr.mxu0 0.0
    %765 = vmatpush2.xpose.msra.mxu0 0.0
    %766 = vmatprep.subr.mxu0 0.0
    %767 = vmatpush2.xpose.msra.mxu0 0.0
    %768 = vmatprep.subr.mxu0 0.0
    %769 = vmatpush2.xpose.msra.mxu0 0.0
    %770 = vmatprep.subr.mxu0 0.0
    %771 = vmatpush2.xpose.msra.mxu0 0.0
    %772 = vmatprep.subr.mxu0 0.0
    %773 = vmatpush2.xpose.msra.mxu0 0.0
    %774 = vmatprep.mubr.f32.mxu0 0.0
    %775 = vmatmul.mubr.f32.gmra.mxu0 %v706
    %v776 = vpop.f32.mrf.mxu0
    %v777 = vadd.f32 0.0, %v776
    %v778 = vpop.f32.mrf.mxu0
    %779 = vdwg.mxu0
    %v780 = vmul.f32 %v245, 0.35355338
    %v781 = vmul.f32 %v321, 0.35355338
    %v782 = vmul.f32 %v397, 0.35355338
    %v783 = vmul.f32 %v473, 0.35355338
    %v784 = vmul.f32 %v549, 0.35355338
    %v785 = vmul.f32 %v625, 0.35355338
    %v786 = vmul.f32 %v701, 0.35355338
    %v787 = vmul.f32 %v777, 0.35355338
    %v788 = vsel %vm173, %v780, -inf
    %789 = vmax.xlane.f32.xlu0 %v788
    %v790 = vpop.xlane.xlu0 %789
    %v791 = vsel %vm173, %v781, -inf
    %792 = vmax.xlane.f32.xlu0 %v791
    %v793 = vpop.xlane.xlu0 %792
    %v794 = vsel %vm173, %v782, -inf
    %795 = vmax.xlane.f32.xlu0 %v794
    %v796 = vpop.xlane.xlu0 %795
    %v797 = vsel %vm173, %v783, -inf
    %798 = vmax.xlane.f32.xlu0 %v797
    %v799 = vpop.xlane.xlu0 %798
    %v800 = vsel %vm173, %v784, -inf
    %801 = vmax.xlane.f32.xlu0 %v800
    %v802 = vpop.xlane.xlu0 %801
    %v803 = vsel %vm173, %v785, -inf
    %804 = vmax.xlane.f32.xlu0 %v803
    %v805 = vpop.xlane.xlu0 %804
    %v806 = vsel %vm173, %v786, -inf
    %807 = vmax.xlane.f32.xlu0 %v806
    %v808 = vpop.xlane.xlu0 %807
    %v809 = vsel %vm173, %v787, -inf
    %810 = vmax.xlane.f32.xlu0 %v809
    %v811 = vpop.xlane.xlu0 %810
    %v812 = vsub.f32 %v780, %v790
    %v813 = vsub.f32 %v781, %v793
    %v814 = vsub.f32 %v782, %v796
    %v815 = vsub.f32 %v783, %v799
    %v816 = vsub.f32 %v784, %v802
    %v817 = vsub.f32 %v785, %v805
    %v818 = vsub.f32 %v786, %v808
    %v819 = vsub.f32 %v787, %v811
    %v820 = vmul.f32 %v812, 1.442695
    %v821 = vpow.pop %v820
    %v822 = vmul.f32 %v813, 1.442695
    %v823 = vpow.pop %v822
    %v824 = vmul.f32 %v814, 1.442695
    %v825 = vpow.pop %v824
    %v826 = vmul.f32 %v815, 1.442695
    %v827 = vpow.pop %v826
    %v828 = vmul.f32 %v816, 1.442695
    %v829 = vpow.pop %v828
    %v830 = vmul.f32 %v817, 1.442695
    %v831 = vpow.pop %v830
    %v832 = vmul.f32 %v818, 1.442695
    %v833 = vpow.pop %v832
    %v834 = vmul.f32 %v819, 1.442695
    %v835 = vpow.pop %v834
    %v836 = vsel %vm173, %v821, 0.0
    %837 = vadd.xlane.f32.xlu0 %v836
    %v838 = vpop.xlane.xlu0 %837
    %v839 = vsel %vm173, %v823, 0.0
    %840 = vadd.xlane.f32.xlu0 %v839
    %v841 = vpop.xlane.xlu0 %840
    %v842 = vsel %vm173, %v825, 0.0
    %843 = vadd.xlane.f32.xlu0 %v842
    %v844 = vpop.xlane.xlu0 %843
    %v845 = vsel %vm173, %v827, 0.0
    %846 = vadd.xlane.f32.xlu0 %v845
    %v847 = vpop.xlane.xlu0 %846
    %v848 = vsel %vm173, %v829, 0.0
    %849 = vadd.xlane.f32.xlu0 %v848
    %v850 = vpop.xlane.xlu0 %849
    %v851 = vsel %vm173, %v831, 0.0
    %852 = vadd.xlane.f32.xlu0 %v851
    %v853 = vpop.xlane.xlu0 %852
    %v854 = vsel %vm173, %v833, 0.0
    %855 = vadd.xlane.f32.xlu0 %v854
    %v856 = vpop.xlane.xlu0 %855
    %v857 = vsel %vm173, %v835, 0.0
    %858 = vadd.xlane.f32.xlu0 %v857
    %v859 = vpop.xlane.xlu0 %858
    %v860 = vrcp.pop %v838
    %v861 = vmul.f32 %v821, %v860
    %v862 = vrcp.pop %v841
    %v863 = vmul.f32 %v823, %v862
    %v864 = vrcp.pop %v844
    %v865 = vmul.f32 %v825, %v864
    %v866 = vrcp.pop %v847
    %v867 = vmul.f32 %v827, %v866
    %v868 = vrcp.pop %v850
    %v869 = vmul.f32 %v829, %v868
    %v870 = vrcp.pop %v853
    %v871 = vmul.f32 %v831, %v870
    %v872 = vrcp.pop %v856
    %v873 = vmul.f32 %v833, %v872
    %v874 = vrcp.pop %v859
    %v875 = vmul.f32 %v835, %v874
    %876 = vrot.lane.b32.xlu0 %v149, 64
    %v877 = vpop.permute.xlu0 %876
    %v880 = vsel %vm173, %v861, 0
    %882 = vmatprep.subr.mxu0 0.0
    %883 = vmatpush1.msra.mxu0 0.0
    %884 = vmatprep.subr.mxu0 0.0
    %885 = vmatpush1.msra.mxu0 0.0
    %886 = vmatprep.subr.mxu0 0.0
    %887 = vmatpush1.msra.mxu0 0.0
    %888 = vmatprep.subr.mxu0 0.0
    %889 = vmatpush1.msra.mxu0 0.0
    %890 = vmatprep.subr.mxu0 0.0
    %891 = vmatpush1.msra.mxu0 0.0
    %892 = vmatprep.subr.mxu0 0.0
    %893 = vmatpush1.msra.mxu0 0.0
    %894 = vmatprep.subr.mxu0 0.0
    %895 = vmatpush1.msra.mxu0 0.0
    %896 = vmatprep.subr.mxu0 0.0
    %897 = vmatpush1.msra.mxu0 0.0
    %898 = vmatprep.subr.mxu0 0.0
    %899 = vmatpush1.msra.mxu0 0.0
    %900 = vmatprep.subr.mxu0 0.0
    %901 = vmatpush1.msra.mxu0 0.0
    %902 = vmatprep.subr.mxu0 0.0
    %903 = vmatpush1.msra.mxu0 0.0
    %904 = vmatprep.subr.mxu0 0.0
    %905 = vmatpush1.msra.mxu0 0.0
    %906 = vmatprep.subr.mxu0 0.0
    %907 = vmatpush1.msra.mxu0 0.0
    %908 = vmatprep.subr.mxu0 0.0
    %909 = vmatpush1.msra.mxu0 0.0
    %910 = vmatprep.subr.mxu0 0.0
    %911 = vmatpush1.msra.mxu0 0.0
    %912 = vmatprep.subr.mxu0 0.0
    %913 = vmatpush1.msra.mxu0 %v877
    %914 = vmatprep.subr.mxu0 0.0
    %915 = vmatpush2.msra.mxu0 0.0
    %916 = vmatprep.subr.mxu0 0.0
    %917 = vmatpush2.msra.mxu0 0.0
    %918 = vmatprep.subr.mxu0 0.0
    %919 = vmatpush2.msra.mxu0 0.0
    %920 = vmatprep.subr.mxu0 0.0
    %921 = vmatpush2.msra.mxu0 0.0
    %922 = vmatprep.subr.mxu0 0.0
    %923 = vmatpush2.msra.mxu0 0.0
    %924 = vmatprep.subr.mxu0 0.0
    %925 = vmatpush2.msra.mxu0 0.0
    %926 = vmatprep.subr.mxu0 0.0
    %927 = vmatpush2.msra.mxu0 0.0
    %928 = vmatprep.subr.mxu0 0.0
    %929 = vmatpush2.msra.mxu0 0.0
    %930 = vmatprep.subr.mxu0 0.0
    %931 = vmatpush2.msra.mxu0 0.0
    %932 = vmatprep.subr.mxu0 0.0
    %933 = vmatpush2.msra.mxu0 0.0
    %934 = vmatprep.subr.mxu0 0.0
    %935 = vmatpush2.msra.mxu0 0.0
    %936 = vmatprep.subr.mxu0 0.0
    %937 = vmatpush2.msra.mxu0 0.0
    %938 = vmatprep.subr.mxu0 0.0
    %939 = vmatpush2.msra.mxu0 0.0
    %940 = vmatprep.subr.mxu0 0.0
    %941 = vmatpush2.msra.mxu0 0.0
    %942 = vmatprep.subr.mxu0 0.0
    %943 = vmatpush2.msra.mxu0 0.0
    %944 = vmatprep.subr.mxu0 0.0
    %945 = vmatpush2.msra.mxu0 0.0
    %946 = vmatprep.mubr.f32.mxu0 0.0
    %947 = vmatmul.mubr.f32.gmra.mxu0 %v880
    %v948 = vpop.f32.mrf.mxu0
    %v949 = vadd.f32 0.0, %v948
    %v950 = vpop.f32.mrf.mxu0
    %951 = vdwg.mxu0
    %952 = vrot.lane.b32.xlu0 %v154, 64
    %v953 = vpop.permute.xlu0 %952
    %v956 = vsel %vm173, %v863, 0
    %958 = vmatprep.subr.mxu0 0.0
    %959 = vmatpush1.msra.mxu0 0.0
    %960 = vmatprep.subr.mxu0 0.0
    %961 = vmatpush1.msra.mxu0 0.0
    %962 = vmatprep.subr.mxu0 0.0
    %963 = vmatpush1.msra.mxu0 0.0
    %964 = vmatprep.subr.mxu0 0.0
    %965 = vmatpush1.msra.mxu0 0.0
    %966 = vmatprep.subr.mxu0 0.0
    %967 = vmatpush1.msra.mxu0 0.0
    %968 = vmatprep.subr.mxu0 0.0
    %969 = vmatpush1.msra.mxu0 0.0
    %970 = vmatprep.subr.mxu0 0.0
    %971 = vmatpush1.msra.mxu0 0.0
    %972 = vmatprep.subr.mxu0 0.0
    %973 = vmatpush1.msra.mxu0 0.0
    %974 = vmatprep.subr.mxu0 0.0
    %975 = vmatpush1.msra.mxu0 0.0
    %976 = vmatprep.subr.mxu0 0.0
    %977 = vmatpush1.msra.mxu0 0.0
    %978 = vmatprep.subr.mxu0 0.0
    %979 = vmatpush1.msra.mxu0 0.0
    %980 = vmatprep.subr.mxu0 0.0
    %981 = vmatpush1.msra.mxu0 0.0
    %982 = vmatprep.subr.mxu0 0.0
    %983 = vmatpush1.msra.mxu0 0.0
    %984 = vmatprep.subr.mxu0 0.0
    %985 = vmatpush1.msra.mxu0 0.0
    %986 = vmatprep.subr.mxu0 0.0
    %987 = vmatpush1.msra.mxu0 0.0
    %988 = vmatprep.subr.mxu0 0.0
    %989 = vmatpush1.msra.mxu0 %v953
    %990 = vmatprep.subr.mxu0 0.0
    %991 = vmatpush2.msra.mxu0 0.0
    %992 = vmatprep.subr.mxu0 0.0
    %993 = vmatpush2.msra.mxu0 0.0
    %994 = vmatprep.subr.mxu0 0.0
    %995 = vmatpush2.msra.mxu0 0.0
    %996 = vmatprep.subr.mxu0 0.0
    %997 = vmatpush2.msra.mxu0 0.0
    %998 = vmatprep.subr.mxu0 0.0
    %999 = vmatpush2.msra.mxu0 0.0
    %1000 = vmatprep.subr.mxu0 0.0
    %1001 = vmatpush2.msra.mxu0 0.0
    %1002 = vmatprep.subr.mxu0 0.0
    %1003 = vmatpush2.msra.mxu0 0.0
    %1004 = vmatprep.subr.mxu0 0.0
    %1005 = vmatpush2.msra.mxu0 0.0
    %1006 = vmatprep.subr.mxu0 0.0
    %1007 = vmatpush2.msra.mxu0 0.0
    %1008 = vmatprep.subr.mxu0 0.0
    %1009 = vmatpush2.msra.mxu0 0.0
    %1010 = vmatprep.subr.mxu0 0.0
    %1011 = vmatpush2.msra.mxu0 0.0
    %1012 = vmatprep.subr.mxu0 0.0
    %1013 = vmatpush2.msra.mxu0 0.0
    %1014 = vmatprep.subr.mxu0 0.0
    %1015 = vmatpush2.msra.mxu0 0.0
    %1016 = vmatprep.subr.mxu0 0.0
    %1017 = vmatpush2.msra.mxu0 0.0
    %1018 = vmatprep.subr.mxu0 0.0
    %1019 = vmatpush2.msra.mxu0 0.0
    %1020 = vmatprep.subr.mxu0 0.0
    %1021 = vmatpush2.msra.mxu0 0.0
    %1022 = vmatprep.mubr.f32.mxu0 0.0
    %1023 = vmatmul.mubr.f32.gmra.mxu0 %v956
    %v1024 = vpop.f32.mrf.mxu0
    %v1025 = vadd.f32 0.0, %v1024
    %v1026 = vpop.f32.mrf.mxu0
    %1027 = vdwg.mxu0
    %1028 = vrot.lane.b32.xlu0 %v160, 64
    %v1029 = vpop.permute.xlu0 %1028
    %v1032 = vsel %vm173, %v865, 0
    %1034 = vmatprep.subr.mxu0 0.0
    %1035 = vmatpush1.msra.mxu0 0.0
    %1036 = vmatprep.subr.mxu0 0.0
    %1037 = vmatpush1.msra.mxu0 0.0
    %1038 = vmatprep.subr.mxu0 0.0
    %1039 = vmatpush1.msra.mxu0 0.0
    %1040 = vmatprep.subr.mxu0 0.0
    %1041 = vmatpush1.msra.mxu0 0.0
    %1042 = vmatprep.subr.mxu0 0.0
    %1043 = vmatpush1.msra.mxu0 0.0
    %1044 = vmatprep.subr.mxu0 0.0
    %1045 = vmatpush1.msra.mxu0 0.0
    %1046 = vmatprep.subr.mxu0 0.0
    %1047 = vmatpush1.msra.mxu0 0.0
    %1048 = vmatprep.subr.mxu0 0.0
    %1049 = vmatpush1.msra.mxu0 0.0
    %1050 = vmatprep.subr.mxu0 0.0
    %1051 = vmatpush1.msra.mxu0 0.0
    %1052 = vmatprep.subr.mxu0 0.0
    %1053 = vmatpush1.msra.mxu0 0.0
    %1054 = vmatprep.subr.mxu0 0.0
    %1055 = vmatpush1.msra.mxu0 0.0
    %1056 = vmatprep.subr.mxu0 0.0
    %1057 = vmatpush1.msra.mxu0 0.0
    %1058 = vmatprep.subr.mxu0 0.0
    %1059 = vmatpush1.msra.mxu0 0.0
    %1060 = vmatprep.subr.mxu0 0.0
    %1061 = vmatpush1.msra.mxu0 0.0
    %1062 = vmatprep.subr.mxu0 0.0
    %1063 = vmatpush1.msra.mxu0 0.0
    %1064 = vmatprep.subr.mxu0 0.0
    %1065 = vmatpush1.msra.mxu0 %v1029
    %1066 = vmatprep.subr.mxu0 0.0
    %1067 = vmatpush2.msra.mxu0 0.0
    %1068 = vmatprep.subr.mxu0 0.0
    %1069 = vmatpush2.msra.mxu0 0.0
    %1070 = vmatprep.subr.mxu0 0.0
    %1071 = vmatpush2.msra.mxu0 0.0
    %1072 = vmatprep.subr.mxu0 0.0
    %1073 = vmatpush2.msra.mxu0 0.0
    %1074 = vmatprep.subr.mxu0 0.0
    %1075 = vmatpush2.msra.mxu0 0.0
    %1076 = vmatprep.subr.mxu0 0.0
    %1077 = vmatpush2.msra.mxu0 0.0
    %1078 = vmatprep.subr.mxu0 0.0
    %1079 = vmatpush2.msra.mxu0 0.0
    %1080 = vmatprep.subr.mxu0 0.0
    %1081 = vmatpush2.msra.mxu0 0.0
    %1082 = vmatprep.subr.mxu0 0.0
    %1083 = vmatpush2.msra.mxu0 0.0
    %1084 = vmatprep.subr.mxu0 0.0
    %1085 = vmatpush2.msra.mxu0 0.0
    %1086 = vmatprep.subr.mxu0 0.0
    %1087 = vmatpush2.msra.mxu0 0.0
    %1088 = vmatprep.subr.mxu0 0.0
    %1089 = vmatpush2.msra.mxu0 0.0
    %1090 = vmatprep.subr.mxu0 0.0
    %1091 = vmatpush2.msra.mxu0 0.0
    %1092 = vmatprep.subr.mxu0 0.0
    %1093 = vmatpush2.msra.mxu0 0.0
    %1094 = vmatprep.subr.mxu0 0.0
    %1095 = vmatpush2.msra.mxu0 0.0
    %1096 = vmatprep.subr.mxu0 0.0
    %1097 = vmatpush2.msra.mxu0 0.0
    %1098 = vmatprep.mubr.f32.mxu0 0.0
    %1099 = vmatmul.mubr.f32.gmra.mxu0 %v1032
    %v1100 = vpop.f32.mrf.mxu0
    %v1101 = vadd.f32 0.0, %v1100
    %v1102 = vpop.f32.mrf.mxu0
    %1103 = vdwg.mxu0
    %1104 = vrot.lane.b32.xlu0 %v162, 64
    %v1105 = vpop.permute.xlu0 %1104
    %v1108 = vsel %vm173, %v867, 0
    %1110 = vmatprep.subr.mxu0 0.0
    %1111 = vmatpush1.msra.mxu0 0.0
    %1112 = vmatprep.subr.mxu0 0.0
    %1113 = vmatpush1.msra.mxu0 0.0
    %1114 = vmatprep.subr.mxu0 0.0
    %1115 = vmatpush1.msra.mxu0 0.0
    %1116 = vmatprep.subr.mxu0 0.0
    %1117 = vmatpush1.msra.mxu0 0.0
    %1118 = vmatprep.subr.mxu0 0.0
    %1119 = vmatpush1.msra.mxu0 0.0
    %1120 = vmatprep.subr.mxu0 0.0
    %1121 = vmatpush1.msra.mxu0 0.0
    %1122 = vmatprep.subr.mxu0 0.0
    %1123 = vmatpush1.msra.mxu0 0.0
    %1124 = vmatprep.subr.mxu0 0.0
    %1125 = vmatpush1.msra.mxu0 0.0
    %1126 = vmatprep.subr.mxu0 0.0
    %1127 = vmatpush1.msra.mxu0 0.0
    %1128 = vmatprep.subr.mxu0 0.0
    %1129 = vmatpush1.msra.mxu0 0.0
    %1130 = vmatprep.subr.mxu0 0.0
    %1131 = vmatpush1.msra.mxu0 0.0
    %1132 = vmatprep.subr.mxu0 0.0
    %1133 = vmatpush1.msra.mxu0 0.0
    %1134 = vmatprep.subr.mxu0 0.0
    %1135 = vmatpush1.msra.mxu0 0.0
    %1136 = vmatprep.subr.mxu0 0.0
    %1137 = vmatpush1.msra.mxu0 0.0
    %1138 = vmatprep.subr.mxu0 0.0
    %1139 = vmatpush1.msra.mxu0 0.0
    %1140 = vmatprep.subr.mxu0 0.0
    %1141 = vmatpush1.msra.mxu0 %v1105
    %1142 = vmatprep.subr.mxu0 0.0
    %1143 = vmatpush2.msra.mxu0 0.0
    %1144 = vmatprep.subr.mxu0 0.0
    %1145 = vmatpush2.msra.mxu0 0.0
    %1146 = vmatprep.subr.mxu0 0.0
    %1147 = vmatpush2.msra.mxu0 0.0
    %1148 = vmatprep.subr.mxu0 0.0
    %1149 = vmatpush2.msra.mxu0 0.0
    %1150 = vmatprep.subr.mxu0 0.0
    %1151 = vmatpush2.msra.mxu0 0.0
    %1152 = vmatprep.subr.mxu0 0.0
    %1153 = vmatpush2.msra.mxu0 0.0
    %1154 = vmatprep.subr.mxu0 0.0
    %1155 = vmatpush2.msra.mxu0 0.0
    %1156 = vmatprep.subr.mxu0 0.0
    %1157 = vmatpush2.msra.mxu0 0.0
    %1158 = vmatprep.subr.mxu0 0.0
    %1159 = vmatpush2.msra.mxu0 0.0
    %1160 = vmatprep.subr.mxu0 0.0
    %1161 = vmatpush2.msra.mxu0 0.0
    %1162 = vmatprep.subr.mxu0 0.0
    %1163 = vmatpush2.msra.mxu0 0.0
    %1164 = vmatprep.subr.mxu0 0.0
    %1165 = vmatpush2.msra.mxu0 0.0
    %1166 = vmatprep.subr.mxu0 0.0
    %1167 = vmatpush2.msra.mxu0 0.0
    %1168 = vmatprep.subr.mxu0 0.0
    %1169 = vmatpush2.msra.mxu0 0.0
    %1170 = vmatprep.subr.mxu0 0.0
    %1171 = vmatpush2.msra.mxu0 0.0
    %1172 = vmatprep.subr.mxu0 0.0
    %1173 = vmatpush2.msra.mxu0 0.0
    %1174 = vmatprep.mubr.f32.mxu0 0.0
    %1175 = vmatmul.mubr.f32.gmra.mxu0 %v1108
    %v1176 = vpop.f32.mrf.mxu0
    %v1177 = vadd.f32 0.0, %v1176
    %v1178 = vpop.f32.mrf.mxu0
    %1179 = vdwg.mxu0
    %1180 = vrot.lane.b32.xlu0 %v164, 64
    %v1181 = vpop.permute.xlu0 %1180
    %v1184 = vsel %vm173, %v869, 0
    %1186 = vmatprep.subr.mxu0 0.0
    %1187 = vmatpush1.msra.mxu0 0.0
    %1188 = vmatprep.subr.mxu0 0.0
    %1189 = vmatpush1.msra.mxu0 0.0
    %1190 = vmatprep.subr.mxu0 0.0
    %1191 = vmatpush1.msra.mxu0 0.0
    %1192 = vmatprep.subr.mxu0 0.0
    %1193 = vmatpush1.msra.mxu0 0.0
    %1194 = vmatprep.subr.mxu0 0.0
    %1195 = vmatpush1.msra.mxu0 0.0
    %1196 = vmatprep.subr.mxu0 0.0
    %1197 = vmatpush1.msra.mxu0 0.0
    %1198 = vmatprep.subr.mxu0 0.0
    %1199 = vmatpush1.msra.mxu0 0.0
    %1200 = vmatprep.subr.mxu0 0.0
    %1201 = vmatpush1.msra.mxu0 0.0
    %1202 = vmatprep.subr.mxu0 0.0
    %1203 = vmatpush1.msra.mxu0 0.0
    %1204 = vmatprep.subr.mxu0 0.0
    %1205 = vmatpush1.msra.mxu0 0.0
    %1206 = vmatprep.subr.mxu0 0.0
    %1207 = vmatpush1.msra.mxu0 0.0
    %1208 = vmatprep.subr.mxu0 0.0
    %1209 = vmatpush1.msra.mxu0 0.0
    %1210 = vmatprep.subr.mxu0 0.0
    %1211 = vmatpush1.msra.mxu0 0.0
    %1212 = vmatprep.subr.mxu0 0.0
    %1213 = vmatpush1.msra.mxu0 0.0
    %1214 = vmatprep.subr.mxu0 0.0
    %1215 = vmatpush1.msra.mxu0 0.0
    %1216 = vmatprep.subr.mxu0 0.0
    %1217 = vmatpush1.msra.mxu0 %v1181
    %1218 = vmatprep.subr.mxu0 0.0
    %1219 = vmatpush2.msra.mxu0 0.0
    %1220 = vmatprep.subr.mxu0 0.0
    %1221 = vmatpush2.msra.mxu0 0.0
    %1222 = vmatprep.subr.mxu0 0.0
    %1223 = vmatpush2.msra.mxu0 0.0
    %1224 = vmatprep.subr.mxu0 0.0
    %1225 = vmatpush2.msra.mxu0 0.0
    %1226 = vmatprep.subr.mxu0 0.0
    %1227 = vmatpush2.msra.mxu0 0.0
    %1228 = vmatprep.subr.mxu0 0.0
    %1229 = vmatpush2.msra.mxu0 0.0
    %1230 = vmatprep.subr.mxu0 0.0
    %1231 = vmatpush2.msra.mxu0 0.0
    %1232 = vmatprep.subr.mxu0 0.0
    %1233 = vmatpush2.msra.mxu0 0.0
    %1234 = vmatprep.subr.mxu0 0.0
    %1235 = vmatpush2.msra.mxu0 0.0
    %1236 = vmatprep.subr.mxu0 0.0
    %1237 = vmatpush2.msra.mxu0 0.0
    %1238 = vmatprep.subr.mxu0 0.0
    %1239 = vmatpush2.msra.mxu0 0.0
    %1240 = vmatprep.subr.mxu0 0.0
    %1241 = vmatpush2.msra.mxu0 0.0
    %1242 = vmatprep.subr.mxu0 0.0
    %1243 = vmatpush2.msra.mxu0 0.0
    %1244 = vmatprep.subr.mxu0 0.0
    %1245 = vmatpush2.msra.mxu0 0.0
    %1246 = vmatprep.subr.mxu0 0.0
    %1247 = vmatpush2.msra.mxu0 0.0
    %1248 = vmatprep.subr.mxu0 0.0
    %1249 = vmatpush2.msra.mxu0 0.0
    %1250 = vmatprep.mubr.f32.mxu0 0.0
    %1251 = vmatmul.mubr.f32.gmra.mxu0 %v1184
    %v1252 = vpop.f32.mrf.mxu0
    %v1253 = vadd.f32 0.0, %v1252
    %v1254 = vpop.f32.mrf.mxu0
    %1255 = vdwg.mxu0
    %1256 = vrot.lane.b32.xlu0 %v166, 64
    %v1257 = vpop.permute.xlu0 %1256
    %v1260 = vsel %vm173, %v871, 0
    %1262 = vmatprep.subr.mxu0 0.0
    %1263 = vmatpush1.msra.mxu0 0.0
    %1264 = vmatprep.subr.mxu0 0.0
    %1265 = vmatpush1.msra.mxu0 0.0
    %1266 = vmatprep.subr.mxu0 0.0
    %1267 = vmatpush1.msra.mxu0 0.0
    %1268 = vmatprep.subr.mxu0 0.0
    %1269 = vmatpush1.msra.mxu0 0.0
    %1270 = vmatprep.subr.mxu0 0.0
    %1271 = vmatpush1.msra.mxu0 0.0
    %1272 = vmatprep.subr.mxu0 0.0
    %1273 = vmatpush1.msra.mxu0 0.0
    %1274 = vmatprep.subr.mxu0 0.0
    %1275 = vmatpush1.msra.mxu0 0.0
    %1276 = vmatprep.subr.mxu0 0.0
    %1277 = vmatpush1.msra.mxu0 0.0
    %1278 = vmatprep.subr.mxu0 0.0
    %1279 = vmatpush1.msra.mxu0 0.0
    %1280 = vmatprep.subr.mxu0 0.0
    %1281 = vmatpush1.msra.mxu0 0.0
    %1282 = vmatprep.subr.mxu0 0.0
    %1283 = vmatpush1.msra.mxu0 0.0
    %1284 = vmatprep.subr.mxu0 0.0
    %1285 = vmatpush1.msra.mxu0 0.0
    %1286 = vmatprep.subr.mxu0 0.0
    %1287 = vmatpush1.msra.mxu0 0.0
    %1288 = vmatprep.subr.mxu0 0.0
    %1289 = vmatpush1.msra.mxu0 0.0
    %1290 = vmatprep.subr.mxu0 0.0
    %1291 = vmatpush1.msra.mxu0 0.0
    %1292 = vmatprep.subr.mxu0 0.0
    %1293 = vmatpush1.msra.mxu0 %v1257
    %1294 = vmatprep.subr.mxu0 0.0
    %1295 = vmatpush2.msra.mxu0 0.0
    %1296 = vmatprep.subr.mxu0 0.0
    %1297 = vmatpush2.msra.mxu0 0.0
    %1298 = vmatprep.subr.mxu0 0.0
    %1299 = vmatpush2.msra.mxu0 0.0
    %1300 = vmatprep.subr.mxu0 0.0
    %1301 = vmatpush2.msra.mxu0 0.0
    %1302 = vmatprep.subr.mxu0 0.0
    %1303 = vmatpush2.msra.mxu0 0.0
    %1304 = vmatprep.subr.mxu0 0.0
    %1305 = vmatpush2.msra.mxu0 0.0
    %1306 = vmatprep.subr.mxu0 0.0
    %1307 = vmatpush2.msra.mxu0 0.0
    %1308 = vmatprep.subr.mxu0 0.0
    %1309 = vmatpush2.msra.mxu0 0.0
    %1310 = vmatprep.subr.mxu0 0.0
    %1311 = vmatpush2.msra.mxu0 0.0
    %1312 = vmatprep.subr.mxu0 0.0
    %1313 = vmatpush2.msra.mxu0 0.0
    %1314 = vmatprep.subr.mxu0 0.0
    %1315 = vmatpush2.msra.mxu0 0.0
    %1316 = vmatprep.subr.mxu0 0.0
    %1317 = vmatpush2.msra.mxu0 0.0
    %1318 = vmatprep.subr.mxu0 0.0
    %1319 = vmatpush2.msra.mxu0 0.0
    %1320 = vmatprep.subr.mxu0 0.0
    %1321 = vmatpush2.msra.mxu0 0.0
    %1322 = vmatprep.subr.mxu0 0.0
    %1323 = vmatpush2.msra.mxu0 0.0
    %1324 = vmatprep.subr.mxu0 0.0
    %1325 = vmatpush2.msra.mxu0 0.0
    %1326 = vmatprep.mubr.f32.mxu0 0.0
    %1327 = vmatmul.mubr.f32.gmra.mxu0 %v1260
    %v1328 = vpop.f32.mrf.mxu0
    %v1329 = vadd.f32 0.0, %v1328
    %v1330 = vpop.f32.mrf.mxu0
    %1331 = vdwg.mxu0
    %1332 = vrot.lane.b32.xlu0 %v168, 64
    %v1333 = vpop.permute.xlu0 %1332
    %v1336 = vsel %vm173, %v873, 0
    %1338 = vmatprep.subr.mxu0 0.0
    %1339 = vmatpush1.msra.mxu0 0.0
    %1340 = vmatprep.subr.mxu0 0.0
    %1341 = vmatpush1.msra.mxu0 0.0
    %1342 = vmatprep.subr.mxu0 0.0
    %1343 = vmatpush1.msra.mxu0 0.0
    %1344 = vmatprep.subr.mxu0 0.0
    %1345 = vmatpush1.msra.mxu0 0.0
    %1346 = vmatprep.subr.mxu0 0.0
    %1347 = vmatpush1.msra.mxu0 0.0
    %1348 = vmatprep.subr.mxu0 0.0
    %1349 = vmatpush1.msra.mxu0 0.0
    %1350 = vmatprep.subr.mxu0 0.0
    %1351 = vmatpush1.msra.mxu0 0.0
    %1352 = vmatprep.subr.mxu0 0.0
    %1353 = vmatpush1.msra.mxu0 0.0
    %1354 = vmatprep.subr.mxu0 0.0
    %1355 = vmatpush1.msra.mxu0 0.0
    %1356 = vmatprep.subr.mxu0 0.0
    %1357 = vmatpush1.msra.mxu0 0.0
    %1358 = vmatprep.subr.mxu0 0.0
    %1359 = vmatpush1.msra.mxu0 0.0
    %1360 = vmatprep.subr.mxu0 0.0
    %1361 = vmatpush1.msra.mxu0 0.0
    %1362 = vmatprep.subr.mxu0 0.0
    %1363 = vmatpush1.msra.mxu0 0.0
    %1364 = vmatprep.subr.mxu0 0.0
    %1365 = vmatpush1.msra.mxu0 0.0
    %1366 = vmatprep.subr.mxu0 0.0
    %1367 = vmatpush1.msra.mxu0 0.0
    %1368 = vmatprep.subr.mxu0 0.0
    %1369 = vmatpush1.msra.mxu0 %v1333
    %1370 = vmatprep.subr.mxu0 0.0
    %1371 = vmatpush2.msra.mxu0 0.0
    %1372 = vmatprep.subr.mxu0 0.0
    %1373 = vmatpush2.msra.mxu0 0.0
    %1374 = vmatprep.subr.mxu0 0.0
    %1375 = vmatpush2.msra.mxu0 0.0
    %1376 = vmatprep.subr.mxu0 0.0
    %1377 = vmatpush2.msra.mxu0 0.0
    %1378 = vmatprep.subr.mxu0 0.0
    %1379 = vmatpush2.msra.mxu0 0.0
    %1380 = vmatprep.subr.mxu0 0.0
    %1381 = vmatpush2.msra.mxu0 0.0
    %1382 = vmatprep.subr.mxu0 0.0
    %1383 = vmatpush2.msra.mxu0 0.0
    %1384 = vmatprep.subr.mxu0 0.0
    %1385 = vmatpush2.msra.mxu0 0.0
    %1386 = vmatprep.subr.mxu0 0.0
    %1387 = vmatpush2.msra.mxu0 0.0
    %1388 = vmatprep.subr.mxu0 0.0
    %1389 = vmatpush2.msra.mxu0 0.0
    %1390 = vmatprep.subr.mxu0 0.0
    %1391 = vmatpush2.msra.mxu0 0.0
    %1392 = vmatprep.subr.mxu0 0.0
    %1393 = vmatpush2.msra.mxu0 0.0
    %1394 = vmatprep.subr.mxu0 0.0
    %1395 = vmatpush2.msra.mxu0 0.0
    %1396 = vmatprep.subr.mxu0 0.0
    %1397 = vmatpush2.msra.mxu0 0.0
    %1398 = vmatprep.subr.mxu0 0.0
    %1399 = vmatpush2.msra.mxu0 0.0
    %1400 = vmatprep.subr.mxu0 0.0
    %1401 = vmatpush2.msra.mxu0 0.0
    %1402 = vmatprep.mubr.f32.mxu0 0.0
    %1403 = vmatmul.mubr.f32.gmra.mxu0 %v1336
    %v1404 = vpop.f32.mrf.mxu0
    %v1405 = vadd.f32 0.0, %v1404
    %v1406 = vpop.f32.mrf.mxu0
    %1407 = vdwg.mxu0
    %1408 = vrot.lane.b32.xlu0 %v170, 64
    %v1409 = vpop.permute.xlu0 %1408
    %v1412 = vsel %vm173, %v875, 0
    %1414 = vmatprep.subr.mxu0 0.0
    %1415 = vmatpush1.msra.mxu0 0.0
    %1416 = vmatprep.subr.mxu0 0.0
    %1417 = vmatpush1.msra.mxu0 0.0
    %1418 = vmatprep.subr.mxu0 0.0
    %1419 = vmatpush1.msra.mxu0 0.0
    %1420 = vmatprep.subr.mxu0 0.0
    %1421 = vmatpush1.msra.mxu0 0.0
    %1422 = vmatprep.subr.mxu0 0.0
    %1423 = vmatpush1.msra.mxu0 0.0
    %1424 = vmatprep.subr.mxu0 0.0
    %1425 = vmatpush1.msra.mxu0 0.0
    %1426 = vmatprep.subr.mxu0 0.0
    %1427 = vmatpush1.msra.mxu0 0.0
    %1428 = vmatprep.subr.mxu0 0.0
    %1429 = vmatpush1.msra.mxu0 0.0
    %1430 = vmatprep.subr.mxu0 0.0
    %1431 = vmatpush1.msra.mxu0 0.0
    %1432 = vmatprep.subr.mxu0 0.0
    %1433 = vmatpush1.msra.mxu0 0.0
    %1434 = vmatprep.subr.mxu0 0.0
    %1435 = vmatpush1.msra.mxu0 0.0
    %1436 = vmatprep.subr.mxu0 0.0
    %1437 = vmatpush1.msra.mxu0 0.0
    %1438 = vmatprep.subr.mxu0 0.0
    %1439 = vmatpush1.msra.mxu0 0.0
    %1440 = vmatprep.subr.mxu0 0.0
    %1441 = vmatpush1.msra.mxu0 0.0
    %1442 = vmatprep.subr.mxu0 0.0
    %1443 = vmatpush1.msra.mxu0 0.0
    %1444 = vmatprep.subr.mxu0 0.0
    %1445 = vmatpush1.msra.mxu0 %v1409
    %1446 = vmatprep.subr.mxu0 0.0
    %1447 = vmatpush2.msra.mxu0 0.0
    %1448 = vmatprep.subr.mxu0 0.0
    %1449 = vmatpush2.msra.mxu0 0.0
    %1450 = vmatprep.subr.mxu0 0.0
    %1451 = vmatpush2.msra.mxu0 0.0
    %1452 = vmatprep.subr.mxu0 0.0
    %1453 = vmatpush2.msra.mxu0 0.0
    %1454 = vmatprep.subr.mxu0 0.0
    %1455 = vmatpush2.msra.mxu0 0.0
    %1456 = vmatprep.subr.mxu0 0.0
    %1457 = vmatpush2.msra.mxu0 0.0
    %1458 = vmatprep.subr.mxu0 0.0
    %1459 = vmatpush2.msra.mxu0 0.0
    %1460 = vmatprep.subr.mxu0 0.0
    %1461 = vmatpush2.msra.mxu0 0.0
    %1462 = vmatprep.subr.mxu0 0.0
    %1463 = vmatpush2.msra.mxu0 0.0
    %1464 = vmatprep.subr.mxu0 0.0
    %1465 = vmatpush2.msra.mxu0 0.0
    %1466 = vmatprep.subr.mxu0 0.0
    %1467 = vmatpush2.msra.mxu0 0.0
    %1468 = vmatprep.subr.mxu0 0.0
    %1469 = vmatpush2.msra.mxu0 0.0
    %1470 = vmatprep.subr.mxu0 0.0
    %1471 = vmatpush2.msra.mxu0 0.0
    %1472 = vmatprep.subr.mxu0 0.0
    %1473 = vmatpush2.msra.mxu0 0.0
    %1474 = vmatprep.subr.mxu0 0.0
    %1475 = vmatpush2.msra.mxu0 0.0
    %1476 = vmatprep.subr.mxu0 0.0
    %1477 = vmatpush2.msra.mxu0 0.0
    %1478 = vmatprep.mubr.f32.mxu0 0.0
    %1479 = vmatmul.mubr.f32.gmra.mxu0 %v1412
    %v1480 = vpop.f32.mrf.mxu0
    %v1481 = vadd.f32 0.0, %v1480
    %v1482 = vpop.f32.mrf.mxu0
    %1483 = vdwg.mxu0
    %1486 = vrot.lane.b32.xlu0 %v1101, 8
    %v1487 = vpop.permute.xlu0 %1486
    %1488 = vrot.lane.b32.xlu0 %v1177, 8
    %v1489 = vpop.permute.xlu0 %1488
    %1494 = vrot.lane.b32.xlu0 %v1253, 16
    %v1495 = vpop.permute.xlu0 %1494
    %1496 = vrot.lane.b32.xlu0 %v1329, 16
    %v1497 = vpop.permute.xlu0 %1496
    %1502 = vrot.lane.b32.xlu0 %v1405, 24
    %v1503 = vpop.permute.xlu0 %1502
    %1504 = vrot.lane.b32.xlu0 %v1481, 24
    %v1505 = vpop.permute.xlu0 %1504
    %v1508 = vsel %vm173, %v949, %v1487
    %v1509 = vsel %vm173, %v1025, %v1489
    %vm1510 = vcmask 130048
    %v1511 = vsel %vm1510, %v1508, %v1495
    %v1512 = vsel %vm1510, %v1509, %v1497
    %vm1513 = vcmask 195584
    %v1514 = vsel %vm1513, %v1511, %v1503
    %v1515 = vsel %vm1513, %v1512, %v1505
    %v1516 = vlaneseq
    %v1517 = vshrl.u32 %v1516, 7
    %v1518 = vsub.s32 0, %v1517
    %v1519 = vrot.slane %v27, %v1518
    %vm1520 = vcmask 261120
    %v1522 = vsel %vm1520, %v1514, 0
    %v1525 = vsel %vm1520, %v1515, 0
    %1527 = vmatprep.subr.mxu0 0.0
    %1528 = vmatpush1.msra.mxu0 0.0
    %1529 = vmatprep.subr.mxu0 0.0
    %1530 = vmatpush1.msra.mxu0 0.0
    %1531 = vmatprep.subr.mxu0 0.0
    %1532 = vmatpush1.msra.mxu0 0.0
    %1533 = vmatprep.subr.mxu0 0.0
    %1534 = vmatpush1.msra.mxu0 0.0
    %1535 = vmatprep.subr.mxu0 0.0
    %1536 = vmatpush1.msra.mxu0 0.0
    %1537 = vmatprep.subr.mxu0 0.0
    %1538 = vmatpush1.msra.mxu0 0.0
    %1539 = vmatprep.subr.mxu0 0.0
    %1540 = vmatpush1.msra.mxu0 0.0
    %1541 = vmatprep.subr.mxu0 0.0
    %1542 = vmatpush1.msra.mxu0 0.0
    %1543 = vmatprep.subr.mxu0 0.0
    %1544 = vmatpush1.msra.mxu0 0.0
    %1545 = vmatprep.subr.mxu0 0.0
    %1546 = vmatpush1.msra.mxu0 0.0
    %1547 = vmatprep.subr.mxu0 0.0
    %1548 = vmatpush1.msra.mxu0 0.0
    %1549 = vmatprep.subr.mxu0 0.0
    %1550 = vmatpush1.msra.mxu0 0.0
    %1551 = vmatprep.subr.mxu0 0.0
    %1552 = vmatpush1.msra.mxu0 %v22
    %1553 = vmatprep.subr.mxu0 0.0
    %1554 = vmatpush1.msra.mxu0 %v21
    %1555 = vmatprep.subr.mxu0 0.0
    %1556 = vmatpush1.msra.mxu0 %v20
    %1557 = vmatprep.subr.mxu0 0.0
    %1558 = vmatpush1.msra.mxu0 %v19
    %1559 = vmatprep.subr.mxu0 0.0
    %1560 = vmatpush2.msra.mxu0 0.0
    %1561 = vmatprep.subr.mxu0 0.0
    %1562 = vmatpush2.msra.mxu0 0.0
    %1563 = vmatprep.subr.mxu0 0.0
    %1564 = vmatpush2.msra.mxu0 0.0
    %1565 = vmatprep.subr.mxu0 0.0
    %1566 = vmatpush2.msra.mxu0 0.0
    %1567 = vmatprep.subr.mxu0 0.0
    %1568 = vmatpush2.msra.mxu0 0.0
    %1569 = vmatprep.subr.mxu0 0.0
    %1570 = vmatpush2.msra.mxu0 0.0
    %1571 = vmatprep.subr.mxu0 0.0
    %1572 = vmatpush2.msra.mxu0 0.0
    %1573 = vmatprep.subr.mxu0 0.0
    %1574 = vmatpush2.msra.mxu0 0.0
    %1575 = vmatprep.subr.mxu0 0.0
    %1576 = vmatpush2.msra.mxu0 0.0
    %1577 = vmatprep.subr.mxu0 0.0
    %1578 = vmatpush2.msra.mxu0 0.0
    %1579 = vmatprep.subr.mxu0 0.0
    %1580 = vmatpush2.msra.mxu0 0.0
    %1581 = vmatprep.subr.mxu0 0.0
    %1582 = vmatpush2.msra.mxu0 0.0
    %1583 = vmatprep.subr.mxu0 0.0
    %1584 = vmatpush2.msra.mxu0 0.0
    %1585 = vmatprep.subr.mxu0 0.0
    %1586 = vmatpush2.msra.mxu0 0.0
    %1587 = vmatprep.subr.mxu0 0.0
    %1588 = vmatpush2.msra.mxu0 0.0
    %1589 = vmatprep.subr.mxu0 0.0
    %1590 = vmatpush2.msra.mxu0 0.0
    %1591 = vmatprep.mubr.f32.mxu0 0.0
    %1592 = vmatmul.mubr.f32.gmra.mxu0 %v1522
    %v1593 = vpop.f32.mrf.mxu0
    %v1594 = vadd.f32 %v1519, %v1593
    %v1595 = vpop.f32.mrf.mxu0
    %1596 = vmatprep.mubr.f32.mxu0 0.0
    %1597 = vmatmul.mubr.f32.gmra.mxu0 %v1525
    %v1598 = vpop.f32.mrf.mxu0
    %v1599 = vadd.f32 %v1519, %v1598
    %v1600 = vpop.f32.mrf.mxu0
    %1601 = vdwg.mxu0
    %v1602 = vsel %vm1520, %v1594, 0.0
    %1603 = vadd.xlane.f32.xlu0 %v1602
    %v1604 = vpop.xlane.xlu0 %1603
    %v1605 = vsel %vm1520, %v1599, 0.0
    %1606 = vadd.xlane.f32.xlu0 %v1605
    %v1607 = vpop.xlane.xlu0 %1606
    %v1608 = vrcp.pop 32.0
    %v1609 = vmul.f32 %v1604, %v1608
    %v1610 = vmul.f32 %v1607, %v1608
    %v1611 = vsub.f32 %v1594, %v1609
    %v1612 = vsub.f32 %v1599, %v1610
    %v1613 = vmul.f32 %v1611, %v1611
    %v1614 = vmul.f32 %v1612, %v1612
    %v1615 = vsel %vm1520, %v1613, 0.0
    %1616 = vadd.xlane.f32.xlu0 %v1615
    %v1617 = vpop.xlane.xlu0 %1616
    %v1618 = vsel %vm1520, %v1614, 0.0
    %1619 = vadd.xlane.f32.xlu0 %v1618
    %v1620 = vpop.xlane.xlu0 %1619
    %v1621 = vmul.f32 %v1617, %v1608
    %v1622 = vmul.f32 %v1620, %v1608
    %v1623 = vadd.f32 %v1621, 1e-05
    %v1624 = vadd.f32 %v1622, 1e-05
    %v1625 = vrsqrt.pop %v1623
    %v1626 = vrsqrt.pop %v1624
    %v1627 = vmul.f32 %v1611, %v1625
    %v1628 = vmul.f32 %v1612, %v1626
    %v1629 = vlaneseq
    %v1630 = vshrl.u32 %v1629, 7
    %v1631 = vsub.s32 4, %v1630
    %v1632 = vrot.slane %v27, %v1631
    %v1633 = vmul.f32 %v1627, %v1632
    %v1634 = vmul.f32 %v1628, %v1632
    %v1635 = vlaneseq
    %v1636 = vshrl.u32 %v1635, 7
    %v1637 = vsub.s32 5, %v1636
    %v1638 = vrot.slane %v27, %v1637
    %v1639 = vadd.f32 %v1633, %v1638
    %v1640 = vadd.f32 %v1634, %v1638
    %v1641 = vlaneseq
    %v1642 = vshrl.u32 %v1641, 7
    %v1643 = vsub.s32 1, %v1642
    %v1644 = vrot.slane %v27, %v1643
    %v1646 = vsel %vm1520, %v1639, 0
    %v1649 = vsel %vm1520, %v1640, 0
    %1651 = vmatprep.subr.mxu0 0.0
    %1652 = vmatpush1.msra.mxu0 0.0
    %1653 = vmatprep.subr.mxu0 0.0
    %1654 = vmatpush1.msra.mxu0 0.0
    %1655 = vmatprep.subr.mxu0 0.0
    %1656 = vmatpush1.msra.mxu0 0.0
    %1657 = vmatprep.subr.mxu0 0.0
    %1658 = vmatpush1.msra.mxu0 0.0
    %1659 = vmatprep.subr.mxu0 0.0
    %1660 = vmatpush1.msra.mxu0 0.0
    %1661 = vmatprep.subr.mxu0 0.0
    %1662 = vmatpush1.msra.mxu0 0.0
    %1663 = vmatprep.subr.mxu0 0.0
    %1664 = vmatpush1.msra.mxu0 0.0
    %1665 = vmatprep.subr.mxu0 0.0
    %1666 = vmatpush1.msra.mxu0 0.0
    %1667 = vmatprep.subr.mxu0 0.0
    %1668 = vmatpush1.msra.mxu0 0.0
    %1669 = vmatprep.subr.mxu0 0.0
    %1670 = vmatpush1.msra.mxu0 0.0
    %1671 = vmatprep.subr.mxu0 0.0
    %1672 = vmatpush1.msra.mxu0 0.0
    %1673 = vmatprep.subr.mxu0 0.0
    %1674 = vmatpush1.msra.mxu0 0.0
    %1675 = vmatprep.subr.mxu0 0.0
    %1676 = vmatpush1.msra.mxu0 %v26
    %1677 = vmatprep.subr.mxu0 0.0
    %1678 = vmatpush1.msra.mxu0 %v25
    %1679 = vmatprep.subr.mxu0 0.0
    %1680 = vmatpush1.msra.mxu0 %v24
    %1681 = vmatprep.subr.mxu0 0.0
    %1682 = vmatpush1.msra.mxu0 %v23
    %1683 = vmatprep.subr.mxu0 0.0
    %1684 = vmatpush2.msra.mxu0 0.0
    %1685 = vmatprep.subr.mxu0 0.0
    %1686 = vmatpush2.msra.mxu0 0.0
    %1687 = vmatprep.subr.mxu0 0.0
    %1688 = vmatpush2.msra.mxu0 0.0
    %1689 = vmatprep.subr.mxu0 0.0
    %1690 = vmatpush2.msra.mxu0 0.0
    %1691 = vmatprep.subr.mxu0 0.0
    %1692 = vmatpush2.msra.mxu0 0.0
    %1693 = vmatprep.subr.mxu0 0.0
    %1694 = vmatpush2.msra.mxu0 0.0
    %1695 = vmatprep.subr.mxu0 0.0
    %1696 = vmatpush2.msra.mxu0 0.0
    %1697 = vmatprep.subr.mxu0 0.0
    %1698 = vmatpush2.msra.mxu0 0.0
    %1699 = vmatprep.subr.mxu0 0.0
    %1700 = vmatpush2.msra.mxu0 0.0
    %1701 = vmatprep.subr.mxu0 0.0
    %1702 = vmatpush2.msra.mxu0 0.0
    %1703 = vmatprep.subr.mxu0 0.0
    %1704 = vmatpush2.msra.mxu0 0.0
    %1705 = vmatprep.subr.mxu0 0.0
    %1706 = vmatpush2.msra.mxu0 0.0
    %1707 = vmatprep.subr.mxu0 0.0
    %1708 = vmatpush2.msra.mxu0 0.0
    %1709 = vmatprep.subr.mxu0 0.0
    %1710 = vmatpush2.msra.mxu0 0.0
    %1711 = vmatprep.subr.mxu0 0.0
    %1712 = vmatpush2.msra.mxu0 0.0
    %1713 = vmatprep.subr.mxu0 0.0
    %1714 = vmatpush2.msra.mxu0 0.0
    %1715 = vmatprep.mubr.f32.mxu0 0.0
    %1716 = vmatmul.mubr.f32.gmra.mxu0 %v1646
    %v1717 = vpop.f32.mrf.mxu0
    %v1718 = vadd.f32 %v1644, %v1717
    %v1719 = vpop.f32.mrf.mxu0
    %1720 = vmatprep.mubr.f32.mxu0 0.0
    %1721 = vmatmul.mubr.f32.gmra.mxu0 %v1649
    %v1722 = vpop.f32.mrf.mxu0
    %v1723 = vadd.f32 %v1644, %v1722
    %v1724 = vpop.f32.mrf.mxu0
    %1725 = vdwg.mxu0
    %v1726 = vmax.f32 %v1718, 0.0
    %v1727 = vmax.f32 %v1723, 0.0
    %v1728 = vadd.f32 %v1594, %v1726
    %v1729 = vadd.f32 %v1599, %v1727
    %s1730 = scalar_lea.vmem %s1, 40
    %v1731 = vld [vmem:[%s1730] sm:$0xff]
    %v1732 = vld [vmem:[%s1730 + $0x8] sm:$0xff]
    %v1733 = vld [vmem:[%s1730 + $0x10] sm:$0xff]
    %v1734 = vld [vmem:[%s1730 + $0x18] sm:$0xff]
    %v1735 = vld [vmem:[%s1730 + $0x20] sm:$0x1]
    %s1736 = scalar_lea.vmem %s2, 72
    %v1737 = vld [vmem:[%s1736] sm:$0xff]
    %v1738 = vld [vmem:[%s1736 + $0x8] sm:$0xff]
    %v1739 = vld [vmem:[%s1736 + $0x10] sm:$0xff]
    %v1740 = vld [vmem:[%s1736 + $0x18] sm:$0xff]
    %v1741 = vld [vmem:[%s1736 + $0x20] sm:$0xff]
    %v1742 = vld [vmem:[%s1736 + $0x28] sm:$0xff]
    %v1743 = vld [vmem:[%s1736 + $0x30] sm:$0xff]
    %v1744 = vld [vmem:[%s1736 + $0x38] sm:$0xff]
    %v1745 = vld [vmem:[%s1736 + $0x40] sm:$0x3f]
    %v1746 = vsel %vm1520, %v1728, 0.0
    %1747 = vadd.xlane.f32.xlu0 %v1746
    %v1748 = vpop.xlane.xlu0 %1747
    %v1749 = vsel %vm1520, %v1729, 0.0
    %1750 = vadd.xlane.f32.xlu0 %v1749
    %v1751 = vpop.xlane.xlu0 %1750
    %v1752 = vmul.f32 %v1748, %v1608
    %v1753 = vmul.f32 %v1751, %v1608
    %v1754 = vsub.f32 %v1728, %v1752
    %v1755 = vsub.f32 %v1729, %v1753
    %v1756 = vmul.f32 %v1754, %v1754
    %v1757 = vmul.f32 %v1755, %v1755
    %v1758 = vsel %vm1520, %v1756, 0.0
    %1759 = vadd.xlane.f32.xlu0 %v1758
    %v1760 = vpop.xlane.xlu0 %1759
    %v1761 = vsel %vm1520, %v1757, 0.0
    %1762 = vadd.xlane.f32.xlu0 %v1761
    %v1763 = vpop.xlane.xlu0 %1762
    %v1764 = vmul.f32 %v1760, %v1608
    %v1765 = vmul.f32 %v1763, %v1608
    %v1766 = vadd.f32 %v1764, 1e-05
    %v1767 = vadd.f32 %v1765, 1e-05
    %v1768 = vrsqrt.pop %v1766
    %v1769 = vrsqrt.pop %v1767
    %v1770 = vmul.f32 %v1754, %v1768
    %v1771 = vmul.f32 %v1755, %v1769
    %v1772 = vlaneseq
    %v1773 = vshrl.u32 %v1772, 7
    %v1774 = vsub.s32 2, %v1773
    %v1775 = vrot.slane %v1745, %v1774
    %v1776 = vmul.f32 %v1770, %v1775
    %v1777 = vmul.f32 %v1771, %v1775
    %v1778 = vlaneseq
    %v1779 = vshrl.u32 %v1778, 7
    %v1780 = vsub.s32 3, %v1779
    %v1781 = vrot.slane %v1745, %v1780
    %v1782 = vadd.f32 %v1776, %v1781
    %v1783 = vadd.f32 %v1777, %v1781
    %v1784 = vlaneseq
    %v1785 = vshrl.u32 %v1784, 7
    %v1786 = vsub.s32 0, %v1785
    %v1787 = vrot.slane %v1735, %v1786
    %v1789 = vsel %vm1520, %v1782, 0
    %v1792 = vsel %vm1520, %v1783, 0
    %1794 = vmatprep.subr.mxu0 0.0
    %1795 = vmatpush1.msra.mxu0 0.0
    %1796 = vmatprep.subr.mxu0 0.0
    %1797 = vmatpush1.msra.mxu0 0.0
    %1798 = vmatprep.subr.mxu0 0.0
    %1799 = vmatpush1.msra.mxu0 0.0
    %1800 = vmatprep.subr.mxu0 0.0
    %1801 = vmatpush1.msra.mxu0 0.0
    %1802 = vmatprep.subr.mxu0 0.0
    %1803 = vmatpush1.msra.mxu0 0.0
    %1804 = vmatprep.subr.mxu0 0.0
    %1805 = vmatpush1.msra.mxu0 0.0
    %1806 = vmatprep.subr.mxu0 0.0
    %1807 = vmatpush1.msra.mxu0 0.0
    %1808 = vmatprep.subr.mxu0 0.0
    %1809 = vmatpush1.msra.mxu0 0.0
    %1810 = vmatprep.subr.mxu0 0.0
    %1811 = vmatpush1.msra.mxu0 0.0
    %1812 = vmatprep.subr.mxu0 0.0
    %1813 = vmatpush1.msra.mxu0 0.0
    %1814 = vmatprep.subr.mxu0 0.0
    %1815 = vmatpush1.msra.mxu0 0.0
    %1816 = vmatprep.subr.mxu0 0.0
    %1817 = vmatpush1.msra.mxu0 0.0
    %1818 = vmatprep.subr.mxu0 0.0
    %1819 = vmatpush1.msra.mxu0 %v1734
    %1820 = vmatprep.subr.mxu0 0.0
    %1821 = vmatpush1.msra.mxu0 %v1733
    %1822 = vmatprep.subr.mxu0 0.0
    %1823 = vmatpush1.msra.mxu0 %v1732
    %1824 = vmatprep.subr.mxu0 0.0
    %1825 = vmatpush1.msra.mxu0 %v1731
    %1826 = vmatprep.subr.mxu0 0.0
    %1827 = vmatpush2.msra.mxu0 0.0
    %1828 = vmatprep.subr.mxu0 0.0
    %1829 = vmatpush2.msra.mxu0 0.0
    %1830 = vmatprep.subr.mxu0 0.0
    %1831 = vmatpush2.msra.mxu0 0.0
    %1832 = vmatprep.subr.mxu0 0.0
    %1833 = vmatpush2.msra.mxu0 0.0
    %1834 = vmatprep.subr.mxu0 0.0
    %1835 = vmatpush2.msra.mxu0 0.0
    %1836 = vmatprep.subr.mxu0 0.0
    %1837 = vmatpush2.msra.mxu0 0.0
    %1838 = vmatprep.subr.mxu0 0.0
    %1839 = vmatpush2.msra.mxu0 0.0
    %1840 = vmatprep.subr.mxu0 0.0
    %1841 = vmatpush2.msra.mxu0 0.0
    %1842 = vmatprep.subr.mxu0 0.0
    %1843 = vmatpush2.msra.mxu0 0.0
    %1844 = vmatprep.subr.mxu0 0.0
    %1845 = vmatpush2.msra.mxu0 0.0
    %1846 = vmatprep.subr.mxu0 0.0
    %1847 = vmatpush2.msra.mxu0 0.0
    %1848 = vmatprep.subr.mxu0 0.0
    %1849 = vmatpush2.msra.mxu0 0.0
    %1850 = vmatprep.subr.mxu0 0.0
    %1851 = vmatpush2.msra.mxu0 0.0
    %1852 = vmatprep.subr.mxu0 0.0
    %1853 = vmatpush2.msra.mxu0 0.0
    %1854 = vmatprep.subr.mxu0 0.0
    %1855 = vmatpush2.msra.mxu0 0.0
    %1856 = vmatprep.subr.mxu0 0.0
    %1857 = vmatpush2.msra.mxu0 0.0
    %1858 = vmatprep.mubr.f32.mxu0 0.0
    %1859 = vmatmul.mubr.f32.gmra.mxu0 %v1789
    %v1860 = vpop.f32.mrf.mxu0
    %v1861 = vadd.f32 %v1787, %v1860
    %v1862 = vpop.f32.mrf.mxu0
    %1863 = vmatprep.mubr.f32.mxu0 0.0
    %1864 = vmatmul.mubr.f32.gmra.mxu0 %v1792
    %v1865 = vpop.f32.mrf.mxu0
    %v1866 = vadd.f32 %v1787, %v1865
    %v1867 = vpop.f32.mrf.mxu0
    %1868 = vdwg.mxu0
    %1871 = vrot.lane.b32.xlu0 %v1861, 120
    %v1872 = vpop.permute.xlu0 %1871
    %1873 = vrot.lane.b32.xlu0 %v1866, 120
    %v1874 = vpop.permute.xlu0 %1873
    %1875 = vrot.lane.b32.xlu0 %v1861, 112
    %v1876 = vpop.permute.xlu0 %1875
    %1877 = vrot.lane.b32.xlu0 %v1866, 112
    %v1878 = vpop.permute.xlu0 %1877
    %1879 = vrot.lane.b32.xlu0 %v1861, 104
    %v1880 = vpop.permute.xlu0 %1879
    %1881 = vrot.lane.b32.xlu0 %v1866, 104
    %v1882 = vpop.permute.xlu0 %1881
    %1883 = vrot.lane.b32.xlu0 %v1861, 96
    %v1884 = vpop.permute.xlu0 %1883
    %v1885 = vsel %vm173, %v1861, 0
    %v1887 = vsel %vm173, %v1884, 0
    %1889 = vmatprep.subr.mxu0 0.0
    %1890 = vmatpush1.xpose.msra.mxu0 0.0
    %1891 = vmatprep.subr.mxu0 0.0
    %1892 = vmatpush1.xpose.msra.mxu0 0.0
    %1893 = vmatprep.subr.mxu0 0.0
    %1894 = vmatpush1.xpose.msra.mxu0 0.0
    %1895 = vmatprep.subr.mxu0 0.0
    %1896 = vmatpush1.xpose.msra.mxu0 0.0
    %1897 = vmatprep.subr.mxu0 0.0
    %1898 = vmatpush1.xpose.msra.mxu0 0.0
    %1899 = vmatprep.subr.mxu0 0.0
    %1900 = vmatpush1.xpose.msra.mxu0 0.0
    %1901 = vmatprep.subr.mxu0 0.0
    %1902 = vmatpush1.xpose.msra.mxu0 0.0
    %1903 = vmatprep.subr.mxu0 0.0
    %1904 = vmatpush1.xpose.msra.mxu0 0.0
    %1905 = vmatprep.subr.mxu0 0.0
    %1906 = vmatpush1.xpose.msra.mxu0 0.0
    %1907 = vmatprep.subr.mxu0 0.0
    %1908 = vmatpush1.xpose.msra.mxu0 0.0
    %1909 = vmatprep.subr.mxu0 0.0
    %1910 = vmatpush1.xpose.msra.mxu0 0.0
    %1911 = vmatprep.subr.mxu0 0.0
    %1912 = vmatpush1.xpose.msra.mxu0 0.0
    %1913 = vmatprep.subr.mxu0 0.0
    %1914 = vmatpush1.xpose.msra.mxu0 0.0
    %1915 = vmatprep.subr.mxu0 0.0
    %1916 = vmatpush1.xpose.msra.mxu0 0.0
    %1917 = vmatprep.subr.mxu0 0.0
    %1918 = vmatpush1.xpose.msra.mxu0 0.0
    %1919 = vmatprep.subr.mxu0 0.0
    %1920 = vmatpush1.xpose.msra.mxu0 %v1887
    %1921 = vmatprep.subr.mxu0 0.0
    %1922 = vmatpush2.xpose.msra.mxu0 0.0
    %1923 = vmatprep.subr.mxu0 0.0
    %1924 = vmatpush2.xpose.msra.mxu0 0.0
    %1925 = vmatprep.subr.mxu0 0.0
    %1926 = vmatpush2.xpose.msra.mxu0 0.0
    %1927 = vmatprep.subr.mxu0 0.0
    %1928 = vmatpush2.xpose.msra.mxu0 0.0
    %1929 = vmatprep.subr.mxu0 0.0
    %1930 = vmatpush2.xpose.msra.mxu0 0.0
    %1931 = vmatprep.subr.mxu0 0.0
    %1932 = vmatpush2.xpose.msra.mxu0 0.0
    %1933 = vmatprep.subr.mxu0 0.0
    %1934 = vmatpush2.xpose.msra.mxu0 0.0
    %1935 = vmatprep.subr.mxu0 0.0
    %1936 = vmatpush2.xpose.msra.mxu0 0.0
    %1937 = vmatprep.subr.mxu0 0.0
    %1938 = vmatpush2.xpose.msra.mxu0 0.0
    %1939 = vmatprep.subr.mxu0 0.0
    %1940 = vmatpush2.xpose.msra.mxu0 0.0
    %1941 = vmatprep.subr.mxu0 0.0
    %1942 = vmatpush2.xpose.msra.mxu0 0.0
    %1943 = vmatprep.subr.mxu0 0.0
    %1944 = vmatpush2.xpose.msra.mxu0 0.0
    %1945 = vmatprep.subr.mxu0 0.0
    %1946 = vmatpush2.xpose.msra.mxu0 0.0
    %1947 = vmatprep.subr.mxu0 0.0
    %1948 = vmatpush2.xpose.msra.mxu0 0.0
    %1949 = vmatprep.subr.mxu0 0.0
    %1950 = vmatpush2.xpose.msra.mxu0 0.0
    %1951 = vmatprep.subr.mxu0 0.0
    %1952 = vmatpush2.xpose.msra.mxu0 0.0
    %1953 = vmatprep.mubr.f32.mxu0 0.0
    %1954 = vmatmul.mubr.f32.gmra.mxu0 %v1885
    %v1955 = vpop.f32.mrf.mxu0
    %v1956 = vadd.f32 0.0, %v1955
    %v1957 = vpop.f32.mrf.mxu0
    %1958 = vdwg.mxu0
    %1959 = vrot.lane.b32.xlu0 %v1866, 96
    %v1960 = vpop.permute.xlu0 %1959
    %v1961 = vsel %vm173, %v1866, 0
    %v1963 = vsel %vm173, %v1960, 0
    %1965 = vmatprep.subr.mxu0 0.0
    %1966 = vmatpush1.xpose.msra.mxu0 0.0
    %1967 = vmatprep.subr.mxu0 0.0
    %1968 = vmatpush1.xpose.msra.mxu0 0.0
    %1969 = vmatprep.subr.mxu0 0.0
    %1970 = vmatpush1.xpose.msra.mxu0 0.0
    %1971 = vmatprep.subr.mxu0 0.0
    %1972 = vmatpush1.xpose.msra.mxu0 0.0
    %1973 = vmatprep.subr.mxu0 0.0
    %1974 = vmatpush1.xpose.msra.mxu0 0.0
    %1975 = vmatprep.subr.mxu0 0.0
    %1976 = vmatpush1.xpose.msra.mxu0 0.0
    %1977 = vmatprep.subr.mxu0 0.0
    %1978 = vmatpush1.xpose.msra.mxu0 0.0
    %1979 = vmatprep.subr.mxu0 0.0
    %1980 = vmatpush1.xpose.msra.mxu0 0.0
    %1981 = vmatprep.subr.mxu0 0.0
    %1982 = vmatpush1.xpose.msra.mxu0 0.0
    %1983 = vmatprep.subr.mxu0 0.0
    %1984 = vmatpush1.xpose.msra.mxu0 0.0
    %1985 = vmatprep.subr.mxu0 0.0
    %1986 = vmatpush1.xpose.msra.mxu0 0.0
    %1987 = vmatprep.subr.mxu0 0.0
    %1988 = vmatpush1.xpose.msra.mxu0 0.0
    %1989 = vmatprep.subr.mxu0 0.0
    %1990 = vmatpush1.xpose.msra.mxu0 0.0
    %1991 = vmatprep.subr.mxu0 0.0
    %1992 = vmatpush1.xpose.msra.mxu0 0.0
    %1993 = vmatprep.subr.mxu0 0.0
    %1994 = vmatpush1.xpose.msra.mxu0 0.0
    %1995 = vmatprep.subr.mxu0 0.0
    %1996 = vmatpush1.xpose.msra.mxu0 %v1963
    %1997 = vmatprep.subr.mxu0 0.0
    %1998 = vmatpush2.xpose.msra.mxu0 0.0
    %1999 = vmatprep.subr.mxu0 0.0
    %2000 = vmatpush2.xpose.msra.mxu0 0.0
    %2001 = vmatprep.subr.mxu0 0.0
    %2002 = vmatpush2.xpose.msra.mxu0 0.0
    %2003 = vmatprep.subr.mxu0 0.0
    %2004 = vmatpush2.xpose.msra.mxu0 0.0
    %2005 = vmatprep.subr.mxu0 0.0
    %2006 = vmatpush2.xpose.msra.mxu0 0.0
    %2007 = vmatprep.subr.mxu0 0.0
    %2008 = vmatpush2.xpose.msra.mxu0 0.0
    %2009 = vmatprep.subr.mxu0 0.0
    %2010 = vmatpush2.xpose.msra.mxu0 0.0
    %2011 = vmatprep.subr.mxu0 0.0
    %2012 = vmatpush2.xpose.msra.mxu0 0.0
    %2013 = vmatprep.subr.mxu0 0.0
    %2014 = vmatpush2.xpose.msra.mxu0 0.0
    %2015 = vmatprep.subr.mxu0 0.0
    %2016 = vmatpush2.xpose.msra.mxu0 0.0
    %2017 = vmatprep.subr.mxu0 0.0
    %2018 = vmatpush2.xpose.msra.mxu0 0.0
    %2019 = vmatprep.subr.mxu0 0.0
    %2020 = vmatpush2.xpose.msra.mxu0 0.0
    %2021 = vmatprep.subr.mxu0 0.0
    %2022 = vmatpush2.xpose.msra.mxu0 0.0
    %2023 = vmatprep.subr.mxu0 0.0
    %2024 = vmatpush2.xpose.msra.mxu0 0.0
    %2025 = vmatprep.subr.mxu0 0.0
    %2026 = vmatpush2.xpose.msra.mxu0 0.0
    %2027 = vmatprep.subr.mxu0 0.0
    %2028 = vmatpush2.xpose.msra.mxu0 0.0
    %2029 = vmatprep.mubr.f32.mxu0 0.0
    %2030 = vmatmul.mubr.f32.gmra.mxu0 %v1961
    %v2031 = vpop.f32.mrf.mxu0
    %v2032 = vadd.f32 0.0, %v2031
    %v2033 = vpop.f32.mrf.mxu0
    %2034 = vdwg.mxu0
    %2035 = vrot.lane.b32.xlu0 %v1872, 96
    %v2036 = vpop.permute.xlu0 %2035
    %v2037 = vsel %vm173, %v1872, 0
    %v2039 = vsel %vm173, %v2036, 0
    %2041 = vmatprep.subr.mxu0 0.0
    %2042 = vmatpush1.xpose.msra.mxu0 0.0
    %2043 = vmatprep.subr.mxu0 0.0
    %2044 = vmatpush1.xpose.msra.mxu0 0.0
    %2045 = vmatprep.subr.mxu0 0.0
    %2046 = vmatpush1.xpose.msra.mxu0 0.0
    %2047 = vmatprep.subr.mxu0 0.0
    %2048 = vmatpush1.xpose.msra.mxu0 0.0
    %2049 = vmatprep.subr.mxu0 0.0
    %2050 = vmatpush1.xpose.msra.mxu0 0.0
    %2051 = vmatprep.subr.mxu0 0.0
    %2052 = vmatpush1.xpose.msra.mxu0 0.0
    %2053 = vmatprep.subr.mxu0 0.0
    %2054 = vmatpush1.xpose.msra.mxu0 0.0
    %2055 = vmatprep.subr.mxu0 0.0
    %2056 = vmatpush1.xpose.msra.mxu0 0.0
    %2057 = vmatprep.subr.mxu0 0.0
    %2058 = vmatpush1.xpose.msra.mxu0 0.0
    %2059 = vmatprep.subr.mxu0 0.0
    %2060 = vmatpush1.xpose.msra.mxu0 0.0
    %2061 = vmatprep.subr.mxu0 0.0
    %2062 = vmatpush1.xpose.msra.mxu0 0.0
    %2063 = vmatprep.subr.mxu0 0.0
    %2064 = vmatpush1.xpose.msra.mxu0 0.0
    %2065 = vmatprep.subr.mxu0 0.0
    %2066 = vmatpush1.xpose.msra.mxu0 0.0
    %2067 = vmatprep.subr.mxu0 0.0
    %2068 = vmatpush1.xpose.msra.mxu0 0.0
    %2069 = vmatprep.subr.mxu0 0.0
    %2070 = vmatpush1.xpose.msra.mxu0 0.0
    %2071 = vmatprep.subr.mxu0 0.0
    %2072 = vmatpush1.xpose.msra.mxu0 %v2039
    %2073 = vmatprep.subr.mxu0 0.0
    %2074 = vmatpush2.xpose.msra.mxu0 0.0
    %2075 = vmatprep.subr.mxu0 0.0
    %2076 = vmatpush2.xpose.msra.mxu0 0.0
    %2077 = vmatprep.subr.mxu0 0.0
    %2078 = vmatpush2.xpose.msra.mxu0 0.0
    %2079 = vmatprep.subr.mxu0 0.0
    %2080 = vmatpush2.xpose.msra.mxu0 0.0
    %2081 = vmatprep.subr.mxu0 0.0
    %2082 = vmatpush2.xpose.msra.mxu0 0.0
    %2083 = vmatprep.subr.mxu0 0.0
    %2084 = vmatpush2.xpose.msra.mxu0 0.0
    %2085 = vmatprep.subr.mxu0 0.0
    %2086 = vmatpush2.xpose.msra.mxu0 0.0
    %2087 = vmatprep.subr.mxu0 0.0
    %2088 = vmatpush2.xpose.msra.mxu0 0.0
    %2089 = vmatprep.subr.mxu0 0.0
    %2090 = vmatpush2.xpose.msra.mxu0 0.0
    %2091 = vmatprep.subr.mxu0 0.0
    %2092 = vmatpush2.xpose.msra.mxu0 0.0
    %2093 = vmatprep.subr.mxu0 0.0
    %2094 = vmatpush2.xpose.msra.mxu0 0.0
    %2095 = vmatprep.subr.mxu0 0.0
    %2096 = vmatpush2.xpose.msra.mxu0 0.0
    %2097 = vmatprep.subr.mxu0 0.0
    %2098 = vmatpush2.xpose.msra.mxu0 0.0
    %2099 = vmatprep.subr.mxu0 0.0
    %2100 = vmatpush2.xpose.msra.mxu0 0.0
    %2101 = vmatprep.subr.mxu0 0.0
    %2102 = vmatpush2.xpose.msra.mxu0 0.0
    %2103 = vmatprep.subr.mxu0 0.0
    %2104 = vmatpush2.xpose.msra.mxu0 0.0
    %2105 = vmatprep.mubr.f32.mxu0 0.0
    %2106 = vmatmul.mubr.f32.gmra.mxu0 %v2037
    %v2107 = vpop.f32.mrf.mxu0
    %v2108 = vadd.f32 0.0, %v2107
    %v2109 = vpop.f32.mrf.mxu0
    %2110 = vdwg.mxu0
    %2111 = vrot.lane.b32.xlu0 %v1874, 96
    %v2112 = vpop.permute.xlu0 %2111
    %v2113 = vsel %vm173, %v1874, 0
    %v2115 = vsel %vm173, %v2112, 0
    %2117 = vmatprep.subr.mxu0 0.0
    %2118 = vmatpush1.xpose.msra.mxu0 0.0
    %2119 = vmatprep.subr.mxu0 0.0
    %2120 = vmatpush1.xpose.msra.mxu0 0.0
    %2121 = vmatprep.subr.mxu0 0.0
    %2122 = vmatpush1.xpose.msra.mxu0 0.0
    %2123 = vmatprep.subr.mxu0 0.0
    %2124 = vmatpush1.xpose.msra.mxu0 0.0
    %2125 = vmatprep.subr.mxu0 0.0
    %2126 = vmatpush1.xpose.msra.mxu0 0.0
    %2127 = vmatprep.subr.mxu0 0.0
    %2128 = vmatpush1.xpose.msra.mxu0 0.0
    %2129 = vmatprep.subr.mxu0 0.0
    %2130 = vmatpush1.xpose.msra.mxu0 0.0
    %2131 = vmatprep.subr.mxu0 0.0
    %2132 = vmatpush1.xpose.msra.mxu0 0.0
    %2133 = vmatprep.subr.mxu0 0.0
    %2134 = vmatpush1.xpose.msra.mxu0 0.0
    %2135 = vmatprep.subr.mxu0 0.0
    %2136 = vmatpush1.xpose.msra.mxu0 0.0
    %2137 = vmatprep.subr.mxu0 0.0
    %2138 = vmatpush1.xpose.msra.mxu0 0.0
    %2139 = vmatprep.subr.mxu0 0.0
    %2140 = vmatpush1.xpose.msra.mxu0 0.0
    %2141 = vmatprep.subr.mxu0 0.0
    %2142 = vmatpush1.xpose.msra.mxu0 0.0
    %2143 = vmatprep.subr.mxu0 0.0
    %2144 = vmatpush1.xpose.msra.mxu0 0.0
    %2145 = vmatprep.subr.mxu0 0.0
    %2146 = vmatpush1.xpose.msra.mxu0 0.0
    %2147 = vmatprep.subr.mxu0 0.0
    %2148 = vmatpush1.xpose.msra.mxu0 %v2115
    %2149 = vmatprep.subr.mxu0 0.0
    %2150 = vmatpush2.xpose.msra.mxu0 0.0
    %2151 = vmatprep.subr.mxu0 0.0
    %2152 = vmatpush2.xpose.msra.mxu0 0.0
    %2153 = vmatprep.subr.mxu0 0.0
    %2154 = vmatpush2.xpose.msra.mxu0 0.0
    %2155 = vmatprep.subr.mxu0 0.0
    %2156 = vmatpush2.xpose.msra.mxu0 0.0
    %2157 = vmatprep.subr.mxu0 0.0
    %2158 = vmatpush2.xpose.msra.mxu0 0.0
    %2159 = vmatprep.subr.mxu0 0.0
    %2160 = vmatpush2.xpose.msra.mxu0 0.0
    %2161 = vmatprep.subr.mxu0 0.0
    %2162 = vmatpush2.xpose.msra.mxu0 0.0
    %2163 = vmatprep.subr.mxu0 0.0
    %2164 = vmatpush2.xpose.msra.mxu0 0.0
    %2165 = vmatprep.subr.mxu0 0.0
    %2166 = vmatpush2.xpose.msra.mxu0 0.0
    %2167 = vmatprep.subr.mxu0 0.0
    %2168 = vmatpush2.xpose.msra.mxu0 0.0
    %2169 = vmatprep.subr.mxu0 0.0
    %2170 = vmatpush2.xpose.msra.mxu0 0.0
    %2171 = vmatprep.subr.mxu0 0.0
    %2172 = vmatpush2.xpose.msra.mxu0 0.0
    %2173 = vmatprep.subr.mxu0 0.0
    %2174 = vmatpush2.xpose.msra.mxu0 0.0
    %2175 = vmatprep.subr.mxu0 0.0
    %2176 = vmatpush2.xpose.msra.mxu0 0.0
    %2177 = vmatprep.subr.mxu0 0.0
    %2178 = vmatpush2.xpose.msra.mxu0 0.0
    %2179 = vmatprep.subr.mxu0 0.0
    %2180 = vmatpush2.xpose.msra.mxu0 0.0
    %2181 = vmatprep.mubr.f32.mxu0 0.0
    %2182 = vmatmul.mubr.f32.gmra.mxu0 %v2113
    %v2183 = vpop.f32.mrf.mxu0
    %v2184 = vadd.f32 0.0, %v2183
    %v2185 = vpop.f32.mrf.mxu0
    %2186 = vdwg.mxu0
    %2187 = vrot.lane.b32.xlu0 %v1876, 96
    %v2188 = vpop.permute.xlu0 %2187
    %v2189 = vsel %vm173, %v1876, 0
    %v2191 = vsel %vm173, %v2188, 0
    %2193 = vmatprep.subr.mxu0 0.0
    %2194 = vmatpush1.xpose.msra.mxu0 0.0
    %2195 = vmatprep.subr.mxu0 0.0
    %2196 = vmatpush1.xpose.msra.mxu0 0.0
    %2197 = vmatprep.subr.mxu0 0.0
    %2198 = vmatpush1.xpose.msra.mxu0 0.0
    %2199 = vmatprep.subr.mxu0 0.0
    %2200 = vmatpush1.xpose.msra.mxu0 0.0
    %2201 = vmatprep.subr.mxu0 0.0
    %2202 = vmatpush1.xpose.msra.mxu0 0.0
    %2203 = vmatprep.subr.mxu0 0.0
    %2204 = vmatpush1.xpose.msra.mxu0 0.0
    %2205 = vmatprep.subr.mxu0 0.0
    %2206 = vmatpush1.xpose.msra.mxu0 0.0
    %2207 = vmatprep.subr.mxu0 0.0
    %2208 = vmatpush1.xpose.msra.mxu0 0.0
    %2209 = vmatprep.subr.mxu0 0.0
    %2210 = vmatpush1.xpose.msra.mxu0 0.0
    %2211 = vmatprep.subr.mxu0 0.0
    %2212 = vmatpush1.xpose.msra.mxu0 0.0
    %2213 = vmatprep.subr.mxu0 0.0
    %2214 = vmatpush1.xpose.msra.mxu0 0.0
    %2215 = vmatprep.subr.mxu0 0.0
    %2216 = vmatpush1.xpose.msra.mxu0 0.0
    %2217 = vmatprep.subr.mxu0 0.0
    %2218 = vmatpush1.xpose.msra.mxu0 0.0
    %2219 = vmatprep.subr.mxu0 0.0
    %2220 = vmatpush1.xpose.msra.mxu0 0.0
    %2221 = vmatprep.subr.mxu0 0.0
    %2222 = vmatpush1.xpose.msra.mxu0 0.0
    %2223 = vmatprep.subr.mxu0 0.0
    %2224 = vmatpush1.xpose.msra.mxu0 %v2191
    %2225 = vmatprep.subr.mxu0 0.0
    %2226 = vmatpush2.xpose.msra.mxu0 0.0
    %2227 = vmatprep.subr.mxu0 0.0
    %2228 = vmatpush2.xpose.msra.mxu0 0.0
    %2229 = vmatprep.subr.mxu0 0.0
    %2230 = vmatpush2.xpose.msra.mxu0 0.0
    %2231 = vmatprep.subr.mxu0 0.0
    %2232 = vmatpush2.xpose.msra.mxu0 0.0
    %2233 = vmatprep.subr.mxu0 0.0
    %2234 = vmatpush2.xpose.msra.mxu0 0.0
    %2235 = vmatprep.subr.mxu0 0.0
    %2236 = vmatpush2.xpose.msra.mxu0 0.0
    %2237 = vmatprep.subr.mxu0 0.0
    %2238 = vmatpush2.xpose.msra.mxu0 0.0
    %2239 = vmatprep.subr.mxu0 0.0
    %2240 = vmatpush2.xpose.msra.mxu0 0.0
    %2241 = vmatprep.subr.mxu0 0.0
    %2242 = vmatpush2.xpose.msra.mxu0 0.0
    %2243 = vmatprep.subr.mxu0 0.0
    %2244 = vmatpush2.xpose.msra.mxu0 0.0
    %2245 = vmatprep.subr.mxu0 0.0
    %2246 = vmatpush2.xpose.msra.mxu0 0.0
    %2247 = vmatprep.subr.mxu0 0.0
    %2248 = vmatpush2.xpose.msra.mxu0 0.0
    %2249 = vmatprep.subr.mxu0 0.0
    %2250 = vmatpush2.xpose.msra.mxu0 0.0
    %2251 = vmatprep.subr.mxu0 0.0
    %2252 = vmatpush2.xpose.msra.mxu0 0.0
    %2253 = vmatprep.subr.mxu0 0.0
    %2254 = vmatpush2.xpose.msra.mxu0 0.0
    %2255 = vmatprep.subr.mxu0 0.0
    %2256 = vmatpush2.xpose.msra.mxu0 0.0
    %2257 = vmatprep.mubr.f32.mxu0 0.0
    %2258 = vmatmul.mubr.f32.gmra.mxu0 %v2189
    %v2259 = vpop.f32.mrf.mxu0
    %v2260 = vadd.f32 0.0, %v2259
    %v2261 = vpop.f32.mrf.mxu0
    %2262 = vdwg.mxu0
    %2263 = vrot.lane.b32.xlu0 %v1878, 96
    %v2264 = vpop.permute.xlu0 %2263
    %v2265 = vsel %vm173, %v1878, 0
    %v2267 = vsel %vm173, %v2264, 0
    %2269 = vmatprep.subr.mxu0 0.0
    %2270 = vmatpush1.xpose.msra.mxu0 0.0
    %2271 = vmatprep.subr.mxu0 0.0
    %2272 = vmatpush1.xpose.msra.mxu0 0.0
    %2273 = vmatprep.subr.mxu0 0.0
    %2274 = vmatpush1.xpose.msra.mxu0 0.0
    %2275 = vmatprep.subr.mxu0 0.0
    %2276 = vmatpush1.xpose.msra.mxu0 0.0
    %2277 = vmatprep.subr.mxu0 0.0
    %2278 = vmatpush1.xpose.msra.mxu0 0.0
    %2279 = vmatprep.subr.mxu0 0.0
    %2280 = vmatpush1.xpose.msra.mxu0 0.0
    %2281 = vmatprep.subr.mxu0 0.0
    %2282 = vmatpush1.xpose.msra.mxu0 0.0
    %2283 = vmatprep.subr.mxu0 0.0
    %2284 = vmatpush1.xpose.msra.mxu0 0.0
    %2285 = vmatprep.subr.mxu0 0.0
    %2286 = vmatpush1.xpose.msra.mxu0 0.0
    %2287 = vmatprep.subr.mxu0 0.0
    %2288 = vmatpush1.xpose.msra.mxu0 0.0
    %2289 = vmatprep.subr.mxu0 0.0
    %2290 = vmatpush1.xpose.msra.mxu0 0.0
    %2291 = vmatprep.subr.mxu0 0.0
    %2292 = vmatpush1.xpose.msra.mxu0 0.0
    %2293 = vmatprep.subr.mxu0 0.0
    %2294 = vmatpush1.xpose.msra.mxu0 0.0
    %2295 = vmatprep.subr.mxu0 0.0
    %2296 = vmatpush1.xpose.msra.mxu0 0.0
    %2297 = vmatprep.subr.mxu0 0.0
    %2298 = vmatpush1.xpose.msra.mxu0 0.0
    %2299 = vmatprep.subr.mxu0 0.0
    %2300 = vmatpush1.xpose.msra.mxu0 %v2267
    %2301 = vmatprep.subr.mxu0 0.0
    %2302 = vmatpush2.xpose.msra.mxu0 0.0
    %2303 = vmatprep.subr.mxu0 0.0
    %2304 = vmatpush2.xpose.msra.mxu0 0.0
    %2305 = vmatprep.subr.mxu0 0.0
    %2306 = vmatpush2.xpose.msra.mxu0 0.0
    %2307 = vmatprep.subr.mxu0 0.0
    %2308 = vmatpush2.xpose.msra.mxu0 0.0
    %2309 = vmatprep.subr.mxu0 0.0
    %2310 = vmatpush2.xpose.msra.mxu0 0.0
    %2311 = vmatprep.subr.mxu0 0.0
    %2312 = vmatpush2.xpose.msra.mxu0 0.0
    %2313 = vmatprep.subr.mxu0 0.0
    %2314 = vmatpush2.xpose.msra.mxu0 0.0
    %2315 = vmatprep.subr.mxu0 0.0
    %2316 = vmatpush2.xpose.msra.mxu0 0.0
    %2317 = vmatprep.subr.mxu0 0.0
    %2318 = vmatpush2.xpose.msra.mxu0 0.0
    %2319 = vmatprep.subr.mxu0 0.0
    %2320 = vmatpush2.xpose.msra.mxu0 0.0
    %2321 = vmatprep.subr.mxu0 0.0
    %2322 = vmatpush2.xpose.msra.mxu0 0.0
    %2323 = vmatprep.subr.mxu0 0.0
    %2324 = vmatpush2.xpose.msra.mxu0 0.0
    %2325 = vmatprep.subr.mxu0 0.0
    %2326 = vmatpush2.xpose.msra.mxu0 0.0
    %2327 = vmatprep.subr.mxu0 0.0
    %2328 = vmatpush2.xpose.msra.mxu0 0.0
    %2329 = vmatprep.subr.mxu0 0.0
    %2330 = vmatpush2.xpose.msra.mxu0 0.0
    %2331 = vmatprep.subr.mxu0 0.0
    %2332 = vmatpush2.xpose.msra.mxu0 0.0
    %2333 = vmatprep.mubr.f32.mxu0 0.0
    %2334 = vmatmul.mubr.f32.gmra.mxu0 %v2265
    %v2335 = vpop.f32.mrf.mxu0
    %v2336 = vadd.f32 0.0, %v2335
    %v2337 = vpop.f32.mrf.mxu0
    %2338 = vdwg.mxu0
    %2339 = vrot.lane.b32.xlu0 %v1880, 96
    %v2340 = vpop.permute.xlu0 %2339
    %v2341 = vsel %vm173, %v1880, 0
    %v2343 = vsel %vm173, %v2340, 0
    %2345 = vmatprep.subr.mxu0 0.0
    %2346 = vmatpush1.xpose.msra.mxu0 0.0
    %2347 = vmatprep.subr.mxu0 0.0
    %2348 = vmatpush1.xpose.msra.mxu0 0.0
    %2349 = vmatprep.subr.mxu0 0.0
    %2350 = vmatpush1.xpose.msra.mxu0 0.0
    %2351 = vmatprep.subr.mxu0 0.0
    %2352 = vmatpush1.xpose.msra.mxu0 0.0
    %2353 = vmatprep.subr.mxu0 0.0
    %2354 = vmatpush1.xpose.msra.mxu0 0.0
    %2355 = vmatprep.subr.mxu0 0.0
    %2356 = vmatpush1.xpose.msra.mxu0 0.0
    %2357 = vmatprep.subr.mxu0 0.0
    %2358 = vmatpush1.xpose.msra.mxu0 0.0
    %2359 = vmatprep.subr.mxu0 0.0
    %2360 = vmatpush1.xpose.msra.mxu0 0.0
    %2361 = vmatprep.subr.mxu0 0.0
    %2362 = vmatpush1.xpose.msra.mxu0 0.0
    %2363 = vmatprep.subr.mxu0 0.0
    %2364 = vmatpush1.xpose.msra.mxu0 0.0
    %2365 = vmatprep.subr.mxu0 0.0
    %2366 = vmatpush1.xpose.msra.mxu0 0.0
    %2367 = vmatprep.subr.mxu0 0.0
    %2368 = vmatpush1.xpose.msra.mxu0 0.0
    %2369 = vmatprep.subr.mxu0 0.0
    %2370 = vmatpush1.xpose.msra.mxu0 0.0
    %2371 = vmatprep.subr.mxu0 0.0
    %2372 = vmatpush1.xpose.msra.mxu0 0.0
    %2373 = vmatprep.subr.mxu0 0.0
    %2374 = vmatpush1.xpose.msra.mxu0 0.0
    %2375 = vmatprep.subr.mxu0 0.0
    %2376 = vmatpush1.xpose.msra.mxu0 %v2343
    %2377 = vmatprep.subr.mxu0 0.0
    %2378 = vmatpush2.xpose.msra.mxu0 0.0
    %2379 = vmatprep.subr.mxu0 0.0
    %2380 = vmatpush2.xpose.msra.mxu0 0.0
    %2381 = vmatprep.subr.mxu0 0.0
    %2382 = vmatpush2.xpose.msra.mxu0 0.0
    %2383 = vmatprep.subr.mxu0 0.0
    %2384 = vmatpush2.xpose.msra.mxu0 0.0
    %2385 = vmatprep.subr.mxu0 0.0
    %2386 = vmatpush2.xpose.msra.mxu0 0.0
    %2387 = vmatprep.subr.mxu0 0.0
    %2388 = vmatpush2.xpose.msra.mxu0 0.0
    %2389 = vmatprep.subr.mxu0 0.0
    %2390 = vmatpush2.xpose.msra.mxu0 0.0
    %2391 = vmatprep.subr.mxu0 0.0
    %2392 = vmatpush2.xpose.msra.mxu0 0.0
    %2393 = vmatprep.subr.mxu0 0.0
    %2394 = vmatpush2.xpose.msra.mxu0 0.0
    %2395 = vmatprep.subr.mxu0 0.0
    %2396 = vmatpush2.xpose.msra.mxu0 0.0
    %2397 = vmatprep.subr.mxu0 0.0
    %2398 = vmatpush2.xpose.msra.mxu0 0.0
    %2399 = vmatprep.subr.mxu0 0.0
    %2400 = vmatpush2.xpose.msra.mxu0 0.0
    %2401 = vmatprep.subr.mxu0 0.0
    %2402 = vmatpush2.xpose.msra.mxu0 0.0
    %2403 = vmatprep.subr.mxu0 0.0
    %2404 = vmatpush2.xpose.msra.mxu0 0.0
    %2405 = vmatprep.subr.mxu0 0.0
    %2406 = vmatpush2.xpose.msra.mxu0 0.0
    %2407 = vmatprep.subr.mxu0 0.0
    %2408 = vmatpush2.xpose.msra.mxu0 0.0
    %2409 = vmatprep.mubr.f32.mxu0 0.0
    %2410 = vmatmul.mubr.f32.gmra.mxu0 %v2341
    %v2411 = vpop.f32.mrf.mxu0
    %v2412 = vadd.f32 0.0, %v2411
    %v2413 = vpop.f32.mrf.mxu0
    %2414 = vdwg.mxu0
    %2415 = vrot.lane.b32.xlu0 %v1882, 96
    %v2416 = vpop.permute.xlu0 %2415
    %v2417 = vsel %vm173, %v1882, 0
    %v2419 = vsel %vm173, %v2416, 0
    %2421 = vmatprep.subr.mxu0 0.0
    %2422 = vmatpush1.xpose.msra.mxu0 0.0
    %2423 = vmatprep.subr.mxu0 0.0
    %2424 = vmatpush1.xpose.msra.mxu0 0.0
    %2425 = vmatprep.subr.mxu0 0.0
    %2426 = vmatpush1.xpose.msra.mxu0 0.0
    %2427 = vmatprep.subr.mxu0 0.0
    %2428 = vmatpush1.xpose.msra.mxu0 0.0
    %2429 = vmatprep.subr.mxu0 0.0
    %2430 = vmatpush1.xpose.msra.mxu0 0.0
    %2431 = vmatprep.subr.mxu0 0.0
    %2432 = vmatpush1.xpose.msra.mxu0 0.0
    %2433 = vmatprep.subr.mxu0 0.0
    %2434 = vmatpush1.xpose.msra.mxu0 0.0
    %2435 = vmatprep.subr.mxu0 0.0
    %2436 = vmatpush1.xpose.msra.mxu0 0.0
    %2437 = vmatprep.subr.mxu0 0.0
    %2438 = vmatpush1.xpose.msra.mxu0 0.0
    %2439 = vmatprep.subr.mxu0 0.0
    %2440 = vmatpush1.xpose.msra.mxu0 0.0
    %2441 = vmatprep.subr.mxu0 0.0
    %2442 = vmatpush1.xpose.msra.mxu0 0.0
    %2443 = vmatprep.subr.mxu0 0.0
    %2444 = vmatpush1.xpose.msra.mxu0 0.0
    %2445 = vmatprep.subr.mxu0 0.0
    %2446 = vmatpush1.xpose.msra.mxu0 0.0
    %2447 = vmatprep.subr.mxu0 0.0
    %2448 = vmatpush1.xpose.msra.mxu0 0.0
    %2449 = vmatprep.subr.mxu0 0.0
    %2450 = vmatpush1.xpose.msra.mxu0 0.0
    %2451 = vmatprep.subr.mxu0 0.0
    %2452 = vmatpush1.xpose.msra.mxu0 %v2419
    %2453 = vmatprep.subr.mxu0 0.0
    %2454 = vmatpush2.xpose.msra.mxu0 0.0
    %2455 = vmatprep.subr.mxu0 0.0
    %2456 = vmatpush2.xpose.msra.mxu0 0.0
    %2457 = vmatprep.subr.mxu0 0.0
    %2458 = vmatpush2.xpose.msra.mxu0 0.0
    %2459 = vmatprep.subr.mxu0 0.0
    %2460 = vmatpush2.xpose.msra.mxu0 0.0
    %2461 = vmatprep.subr.mxu0 0.0
    %2462 = vmatpush2.xpose.msra.mxu0 0.0
    %2463 = vmatprep.subr.mxu0 0.0
    %2464 = vmatpush2.xpose.msra.mxu0 0.0
    %2465 = vmatprep.subr.mxu0 0.0
    %2466 = vmatpush2.xpose.msra.mxu0 0.0
    %2467 = vmatprep.subr.mxu0 0.0
    %2468 = vmatpush2.xpose.msra.mxu0 0.0
    %2469 = vmatprep.subr.mxu0 0.0
    %2470 = vmatpush2.xpose.msra.mxu0 0.0
    %2471 = vmatprep.subr.mxu0 0.0
    %2472 = vmatpush2.xpose.msra.mxu0 0.0
    %2473 = vmatprep.subr.mxu0 0.0
    %2474 = vmatpush2.xpose.msra.mxu0 0.0
    %2475 = vmatprep.subr.mxu0 0.0
    %2476 = vmatpush2.xpose.msra.mxu0 0.0
    %2477 = vmatprep.subr.mxu0 0.0
    %2478 = vmatpush2.xpose.msra.mxu0 0.0
    %2479 = vmatprep.subr.mxu0 0.0
    %2480 = vmatpush2.xpose.msra.mxu0 0.0
    %2481 = vmatprep.subr.mxu0 0.0
    %2482 = vmatpush2.xpose.msra.mxu0 0.0
    %2483 = vmatprep.subr.mxu0 0.0
    %2484 = vmatpush2.xpose.msra.mxu0 0.0
    %2485 = vmatprep.mubr.f32.mxu0 0.0
    %2486 = vmatmul.mubr.f32.gmra.mxu0 %v2417
    %v2487 = vpop.f32.mrf.mxu0
    %v2488 = vadd.f32 0.0, %v2487
    %v2489 = vpop.f32.mrf.mxu0
    %2490 = vdwg.mxu0
    %v2491 = vmul.f32 %v1956, 0.35355338
    %v2492 = vmul.f32 %v2032, 0.35355338
    %v2493 = vmul.f32 %v2108, 0.35355338
    %v2494 = vmul.f32 %v2184, 0.35355338
    %v2495 = vmul.f32 %v2260, 0.35355338
    %v2496 = vmul.f32 %v2336, 0.35355338
    %v2497 = vmul.f32 %v2412, 0.35355338
    %v2498 = vmul.f32 %v2488, 0.35355338
    %v2499 = vsel %vm173, %v2491, -inf
    %2500 = vmax.xlane.f32.xlu0 %v2499
    %v2501 = vpop.xlane.xlu0 %2500
    %v2502 = vsel %vm173, %v2492, -inf
    %2503 = vmax.xlane.f32.xlu0 %v2502
    %v2504 = vpop.xlane.xlu0 %2503
    %v2505 = vsel %vm173, %v2493, -inf
    %2506 = vmax.xlane.f32.xlu0 %v2505
    %v2507 = vpop.xlane.xlu0 %2506
    %v2508 = vsel %vm173, %v2494, -inf
    %2509 = vmax.xlane.f32.xlu0 %v2508
    %v2510 = vpop.xlane.xlu0 %2509
    %v2511 = vsel %vm173, %v2495, -inf
    %2512 = vmax.xlane.f32.xlu0 %v2511
    %v2513 = vpop.xlane.xlu0 %2512
    %v2514 = vsel %vm173, %v2496, -inf
    %2515 = vmax.xlane.f32.xlu0 %v2514
    %v2516 = vpop.xlane.xlu0 %2515
    %v2517 = vsel %vm173, %v2497, -inf
    %2518 = vmax.xlane.f32.xlu0 %v2517
    %v2519 = vpop.xlane.xlu0 %2518
    %v2520 = vsel %vm173, %v2498, -inf
    %2521 = vmax.xlane.f32.xlu0 %v2520
    %v2522 = vpop.xlane.xlu0 %2521
    %v2523 = vsub.f32 %v2491, %v2501
    %v2524 = vsub.f32 %v2492, %v2504
    %v2525 = vsub.f32 %v2493, %v2507
    %v2526 = vsub.f32 %v2494, %v2510
    %v2527 = vsub.f32 %v2495, %v2513
    %v2528 = vsub.f32 %v2496, %v2516
    %v2529 = vsub.f32 %v2497, %v2519
    %v2530 = vsub.f32 %v2498, %v2522
    %v2531 = vmul.f32 %v2523, 1.442695
    %v2532 = vpow.pop %v2531
    %v2533 = vmul.f32 %v2524, 1.442695
    %v2534 = vpow.pop %v2533
    %v2535 = vmul.f32 %v2525, 1.442695
    %v2536 = vpow.pop %v2535
    %v2537 = vmul.f32 %v2526, 1.442695
    %v2538 = vpow.pop %v2537
    %v2539 = vmul.f32 %v2527, 1.442695
    %v2540 = vpow.pop %v2539
    %v2541 = vmul.f32 %v2528, 1.442695
    %v2542 = vpow.pop %v2541
    %v2543 = vmul.f32 %v2529, 1.442695
    %v2544 = vpow.pop %v2543
    %v2545 = vmul.f32 %v2530, 1.442695
    %v2546 = vpow.pop %v2545
    %v2547 = vsel %vm173, %v2532, 0.0
    %2548 = vadd.xlane.f32.xlu0 %v2547
    %v2549 = vpop.xlane.xlu0 %2548
    %v2550 = vsel %vm173, %v2534, 0.0
    %2551 = vadd.xlane.f32.xlu0 %v2550
    %v2552 = vpop.xlane.xlu0 %2551
    %v2553 = vsel %vm173, %v2536, 0.0
    %2554 = vadd.xlane.f32.xlu0 %v2553
    %v2555 = vpop.xlane.xlu0 %2554
    %v2556 = vsel %vm173, %v2538, 0.0
    %2557 = vadd.xlane.f32.xlu0 %v2556
    %v2558 = vpop.xlane.xlu0 %2557
    %v2559 = vsel %vm173, %v2540, 0.0
    %2560 = vadd.xlane.f32.xlu0 %v2559
    %v2561 = vpop.xlane.xlu0 %2560
    %v2562 = vsel %vm173, %v2542, 0.0
    %2563 = vadd.xlane.f32.xlu0 %v2562
    %v2564 = vpop.xlane.xlu0 %2563
    %v2565 = vsel %vm173, %v2544, 0.0
    %2566 = vadd.xlane.f32.xlu0 %v2565
    %v2567 = vpop.xlane.xlu0 %2566
    %v2568 = vsel %vm173, %v2546, 0.0
    %2569 = vadd.xlane.f32.xlu0 %v2568
    %v2570 = vpop.xlane.xlu0 %2569
    %v2571 = vrcp.pop %v2549
    %v2572 = vmul.f32 %v2532, %v2571
    %v2573 = vrcp.pop %v2552
    %v2574 = vmul.f32 %v2534, %v2573
    %v2575 = vrcp.pop %v2555
    %v2576 = vmul.f32 %v2536, %v2575
    %v2577 = vrcp.pop %v2558
    %v2578 = vmul.f32 %v2538, %v2577
    %v2579 = vrcp.pop %v2561
    %v2580 = vmul.f32 %v2540, %v2579
    %v2581 = vrcp.pop %v2564
    %v2582 = vmul.f32 %v2542, %v2581
    %v2583 = vrcp.pop %v2567
    %v2584 = vmul.f32 %v2544, %v2583
    %v2585 = vrcp.pop %v2570
    %v2586 = vmul.f32 %v2546, %v2585
    %2587 = vrot.lane.b32.xlu0 %v1861, 64
    %v2588 = vpop.permute.xlu0 %2587
    %v2591 = vsel %vm173, %v2572, 0
    %2593 = vmatprep.subr.mxu0 0.0
    %2594 = vmatpush1.msra.mxu0 0.0
    %2595 = vmatprep.subr.mxu0 0.0
    %2596 = vmatpush1.msra.mxu0 0.0
    %2597 = vmatprep.subr.mxu0 0.0
    %2598 = vmatpush1.msra.mxu0 0.0
    %2599 = vmatprep.subr.mxu0 0.0
    %2600 = vmatpush1.msra.mxu0 0.0
    %2601 = vmatprep.subr.mxu0 0.0
    %2602 = vmatpush1.msra.mxu0 0.0
    %2603 = vmatprep.subr.mxu0 0.0
    %2604 = vmatpush1.msra.mxu0 0.0
    %2605 = vmatprep.subr.mxu0 0.0
    %2606 = vmatpush1.msra.mxu0 0.0
    %2607 = vmatprep.subr.mxu0 0.0
    %2608 = vmatpush1.msra.mxu0 0.0
    %2609 = vmatprep.subr.mxu0 0.0
    %2610 = vmatpush1.msra.mxu0 0.0
    %2611 = vmatprep.subr.mxu0 0.0
    %2612 = vmatpush1.msra.mxu0 0.0
    %2613 = vmatprep.subr.mxu0 0.0
    %2614 = vmatpush1.msra.mxu0 0.0
    %2615 = vmatprep.subr.mxu0 0.0
    %2616 = vmatpush1.msra.mxu0 0.0
    %2617 = vmatprep.subr.mxu0 0.0
    %2618 = vmatpush1.msra.mxu0 0.0
    %2619 = vmatprep.subr.mxu0 0.0
    %2620 = vmatpush1.msra.mxu0 0.0
    %2621 = vmatprep.subr.mxu0 0.0
    %2622 = vmatpush1.msra.mxu0 0.0
    %2623 = vmatprep.subr.mxu0 0.0
    %2624 = vmatpush1.msra.mxu0 %v2588
    %2625 = vmatprep.subr.mxu0 0.0
    %2626 = vmatpush2.msra.mxu0 0.0
    %2627 = vmatprep.subr.mxu0 0.0
    %2628 = vmatpush2.msra.mxu0 0.0
    %2629 = vmatprep.subr.mxu0 0.0
    %2630 = vmatpush2.msra.mxu0 0.0
    %2631 = vmatprep.subr.mxu0 0.0
    %2632 = vmatpush2.msra.mxu0 0.0
    %2633 = vmatprep.subr.mxu0 0.0
    %2634 = vmatpush2.msra.mxu0 0.0
    %2635 = vmatprep.subr.mxu0 0.0
    %2636 = vmatpush2.msra.mxu0 0.0
    %2637 = vmatprep.subr.mxu0 0.0
    %2638 = vmatpush2.msra.mxu0 0.0
    %2639 = vmatprep.subr.mxu0 0.0
    %2640 = vmatpush2.msra.mxu0 0.0
    %2641 = vmatprep.subr.mxu0 0.0
    %2642 = vmatpush2.msra.mxu0 0.0
    %2643 = vmatprep.subr.mxu0 0.0
    %2644 = vmatpush2.msra.mxu0 0.0
    %2645 = vmatprep.subr.mxu0 0.0
    %2646 = vmatpush2.msra.mxu0 0.0
    %2647 = vmatprep.subr.mxu0 0.0
    %2648 = vmatpush2.msra.mxu0 0.0
    %2649 = vmatprep.subr.mxu0 0.0
    %2650 = vmatpush2.msra.mxu0 0.0
    %2651 = vmatprep.subr.mxu0 0.0
    %2652 = vmatpush2.msra.mxu0 0.0
    %2653 = vmatprep.subr.mxu0 0.0
    %2654 = vmatpush2.msra.mxu0 0.0
    %2655 = vmatprep.subr.mxu0 0.0
    %2656 = vmatpush2.msra.mxu0 0.0
    %2657 = vmatprep.mubr.f32.mxu0 0.0
    %2658 = vmatmul.mubr.f32.gmra.mxu0 %v2591
    %v2659 = vpop.f32.mrf.mxu0
    %v2660 = vadd.f32 0.0, %v2659
    %v2661 = vpop.f32.mrf.mxu0
    %2662 = vdwg.mxu0
    %2663 = vrot.lane.b32.xlu0 %v1866, 64
    %v2664 = vpop.permute.xlu0 %2663
    %v2667 = vsel %vm173, %v2574, 0
    %2669 = vmatprep.subr.mxu0 0.0
    %2670 = vmatpush1.msra.mxu0 0.0
    %2671 = vmatprep.subr.mxu0 0.0
    %2672 = vmatpush1.msra.mxu0 0.0
    %2673 = vmatprep.subr.mxu0 0.0
    %2674 = vmatpush1.msra.mxu0 0.0
    %2675 = vmatprep.subr.mxu0 0.0
    %2676 = vmatpush1.msra.mxu0 0.0
    %2677 = vmatprep.subr.mxu0 0.0
    %2678 = vmatpush1.msra.mxu0 0.0
    %2679 = vmatprep.subr.mxu0 0.0
    %2680 = vmatpush1.msra.mxu0 0.0
    %2681 = vmatprep.subr.mxu0 0.0
    %2682 = vmatpush1.msra.mxu0 0.0
    %2683 = vmatprep.subr.mxu0 0.0
    %2684 = vmatpush1.msra.mxu0 0.0
    %2685 = vmatprep.subr.mxu0 0.0
    %2686 = vmatpush1.msra.mxu0 0.0
    %2687 = vmatprep.subr.mxu0 0.0
    %2688 = vmatpush1.msra.mxu0 0.0
    %2689 = vmatprep.subr.mxu0 0.0
    %2690 = vmatpush1.msra.mxu0 0.0
    %2691 = vmatprep.subr.mxu0 0.0
    %2692 = vmatpush1.msra.mxu0 0.0
    %2693 = vmatprep.subr.mxu0 0.0
    %2694 = vmatpush1.msra.mxu0 0.0
    %2695 = vmatprep.subr.mxu0 0.0
    %2696 = vmatpush1.msra.mxu0 0.0
    %2697 = vmatprep.subr.mxu0 0.0
    %2698 = vmatpush1.msra.mxu0 0.0
    %2699 = vmatprep.subr.mxu0 0.0
    %2700 = vmatpush1.msra.mxu0 %v2664
    %2701 = vmatprep.subr.mxu0 0.0
    %2702 = vmatpush2.msra.mxu0 0.0
    %2703 = vmatprep.subr.mxu0 0.0
    %2704 = vmatpush2.msra.mxu0 0.0
    %2705 = vmatprep.subr.mxu0 0.0
    %2706 = vmatpush2.msra.mxu0 0.0
    %2707 = vmatprep.subr.mxu0 0.0
    %2708 = vmatpush2.msra.mxu0 0.0
    %2709 = vmatprep.subr.mxu0 0.0
    %2710 = vmatpush2.msra.mxu0 0.0
    %2711 = vmatprep.subr.mxu0 0.0
    %2712 = vmatpush2.msra.mxu0 0.0
    %2713 = vmatprep.subr.mxu0 0.0
    %2714 = vmatpush2.msra.mxu0 0.0
    %2715 = vmatprep.subr.mxu0 0.0
    %2716 = vmatpush2.msra.mxu0 0.0
    %2717 = vmatprep.subr.mxu0 0.0
    %2718 = vmatpush2.msra.mxu0 0.0
    %2719 = vmatprep.subr.mxu0 0.0
    %2720 = vmatpush2.msra.mxu0 0.0
    %2721 = vmatprep.subr.mxu0 0.0
    %2722 = vmatpush2.msra.mxu0 0.0
    %2723 = vmatprep.subr.mxu0 0.0
    %2724 = vmatpush2.msra.mxu0 0.0
    %2725 = vmatprep.subr.mxu0 0.0
    %2726 = vmatpush2.msra.mxu0 0.0
    %2727 = vmatprep.subr.mxu0 0.0
    %2728 = vmatpush2.msra.mxu0 0.0
    %2729 = vmatprep.subr.mxu0 0.0
    %2730 = vmatpush2.msra.mxu0 0.0
    %2731 = vmatprep.subr.mxu0 0.0
    %2732 = vmatpush2.msra.mxu0 0.0
    %2733 = vmatprep.mubr.f32.mxu0 0.0
    %2734 = vmatmul.mubr.f32.gmra.mxu0 %v2667
    %v2735 = vpop.f32.mrf.mxu0
    %v2736 = vadd.f32 0.0, %v2735
    %v2737 = vpop.f32.mrf.mxu0
    %2738 = vdwg.mxu0
    %2739 = vrot.lane.b32.xlu0 %v1872, 64
    %v2740 = vpop.permute.xlu0 %2739
    %v2743 = vsel %vm173, %v2576, 0
    %2745 = vmatprep.subr.mxu0 0.0
    %2746 = vmatpush1.msra.mxu0 0.0
    %2747 = vmatprep.subr.mxu0 0.0
    %2748 = vmatpush1.msra.mxu0 0.0
    %2749 = vmatprep.subr.mxu0 0.0
    %2750 = vmatpush1.msra.mxu0 0.0
    %2751 = vmatprep.subr.mxu0 0.0
    %2752 = vmatpush1.msra.mxu0 0.0
    %2753 = vmatprep.subr.mxu0 0.0
    %2754 = vmatpush1.msra.mxu0 0.0
    %2755 = vmatprep.subr.mxu0 0.0
    %2756 = vmatpush1.msra.mxu0 0.0
    %2757 = vmatprep.subr.mxu0 0.0
    %2758 = vmatpush1.msra.mxu0 0.0
    %2759 = vmatprep.subr.mxu0 0.0
    %2760 = vmatpush1.msra.mxu0 0.0
    %2761 = vmatprep.subr.mxu0 0.0
    %2762 = vmatpush1.msra.mxu0 0.0
    %2763 = vmatprep.subr.mxu0 0.0
    %2764 = vmatpush1.msra.mxu0 0.0
    %2765 = vmatprep.subr.mxu0 0.0
    %2766 = vmatpush1.msra.mxu0 0.0
    %2767 = vmatprep.subr.mxu0 0.0
    %2768 = vmatpush1.msra.mxu0 0.0
    %2769 = vmatprep.subr.mxu0 0.0
    %2770 = vmatpush1.msra.mxu0 0.0
    %2771 = vmatprep.subr.mxu0 0.0
    %2772 = vmatpush1.msra.mxu0 0.0
    %2773 = vmatprep.subr.mxu0 0.0
    %2774 = vmatpush1.msra.mxu0 0.0
    %2775 = vmatprep.subr.mxu0 0.0
    %2776 = vmatpush1.msra.mxu0 %v2740
    %2777 = vmatprep.subr.mxu0 0.0
    %2778 = vmatpush2.msra.mxu0 0.0
    %2779 = vmatprep.subr.mxu0 0.0
    %2780 = vmatpush2.msra.mxu0 0.0
    %2781 = vmatprep.subr.mxu0 0.0
    %2782 = vmatpush2.msra.mxu0 0.0
    %2783 = vmatprep.subr.mxu0 0.0
    %2784 = vmatpush2.msra.mxu0 0.0
    %2785 = vmatprep.subr.mxu0 0.0
    %2786 = vmatpush2.msra.mxu0 0.0
    %2787 = vmatprep.subr.mxu0 0.0
    %2788 = vmatpush2.msra.mxu0 0.0
    %2789 = vmatprep.subr.mxu0 0.0
    %2790 = vmatpush2.msra.mxu0 0.0
    %2791 = vmatprep.subr.mxu0 0.0
    %2792 = vmatpush2.msra.mxu0 0.0
    %2793 = vmatprep.subr.mxu0 0.0
    %2794 = vmatpush2.msra.mxu0 0.0
    %2795 = vmatprep.subr.mxu0 0.0
    %2796 = vmatpush2.msra.mxu0 0.0
    %2797 = vmatprep.subr.mxu0 0.0
    %2798 = vmatpush2.msra.mxu0 0.0
    %2799 = vmatprep.subr.mxu0 0.0
    %2800 = vmatpush2.msra.mxu0 0.0
    %2801 = vmatprep.subr.mxu0 0.0
    %2802 = vmatpush2.msra.mxu0 0.0
    %2803 = vmatprep.subr.mxu0 0.0
    %2804 = vmatpush2.msra.mxu0 0.0
    %2805 = vmatprep.subr.mxu0 0.0
    %2806 = vmatpush2.msra.mxu0 0.0
    %2807 = vmatprep.subr.mxu0 0.0
    %2808 = vmatpush2.msra.mxu0 0.0
    %2809 = vmatprep.mubr.f32.mxu0 0.0
    %2810 = vmatmul.mubr.f32.gmra.mxu0 %v2743
    %v2811 = vpop.f32.mrf.mxu0
    %v2812 = vadd.f32 0.0, %v2811
    %v2813 = vpop.f32.mrf.mxu0
    %2814 = vdwg.mxu0
    %2815 = vrot.lane.b32.xlu0 %v1874, 64
    %v2816 = vpop.permute.xlu0 %2815
    %v2819 = vsel %vm173, %v2578, 0
    %2821 = vmatprep.subr.mxu0 0.0
    %2822 = vmatpush1.msra.mxu0 0.0
    %2823 = vmatprep.subr.mxu0 0.0
    %2824 = vmatpush1.msra.mxu0 0.0
    %2825 = vmatprep.subr.mxu0 0.0
    %2826 = vmatpush1.msra.mxu0 0.0
    %2827 = vmatprep.subr.mxu0 0.0
    %2828 = vmatpush1.msra.mxu0 0.0
    %2829 = vmatprep.subr.mxu0 0.0
    %2830 = vmatpush1.msra.mxu0 0.0
    %2831 = vmatprep.subr.mxu0 0.0
    %2832 = vmatpush1.msra.mxu0 0.0
    %2833 = vmatprep.subr.mxu0 0.0
    %2834 = vmatpush1.msra.mxu0 0.0
    %2835 = vmatprep.subr.mxu0 0.0
    %2836 = vmatpush1.msra.mxu0 0.0
    %2837 = vmatprep.subr.mxu0 0.0
    %2838 = vmatpush1.msra.mxu0 0.0
    %2839 = vmatprep.subr.mxu0 0.0
    %2840 = vmatpush1.msra.mxu0 0.0
    %2841 = vmatprep.subr.mxu0 0.0
    %2842 = vmatpush1.msra.mxu0 0.0
    %2843 = vmatprep.subr.mxu0 0.0
    %2844 = vmatpush1.msra.mxu0 0.0
    %2845 = vmatprep.subr.mxu0 0.0
    %2846 = vmatpush1.msra.mxu0 0.0
    %2847 = vmatprep.subr.mxu0 0.0
    %2848 = vmatpush1.msra.mxu0 0.0
    %2849 = vmatprep.subr.mxu0 0.0
    %2850 = vmatpush1.msra.mxu0 0.0
    %2851 = vmatprep.subr.mxu0 0.0
    %2852 = vmatpush1.msra.mxu0 %v2816
    %2853 = vmatprep.subr.mxu0 0.0
    %2854 = vmatpush2.msra.mxu0 0.0
    %2855 = vmatprep.subr.mxu0 0.0
    %2856 = vmatpush2.msra.mxu0 0.0
    %2857 = vmatprep.subr.mxu0 0.0
    %2858 = vmatpush2.msra.mxu0 0.0
    %2859 = vmatprep.subr.mxu0 0.0
    %2860 = vmatpush2.msra.mxu0 0.0
    %2861 = vmatprep.subr.mxu0 0.0
    %2862 = vmatpush2.msra.mxu0 0.0
    %2863 = vmatprep.subr.mxu0 0.0
    %2864 = vmatpush2.msra.mxu0 0.0
    %2865 = vmatprep.subr.mxu0 0.0
    %2866 = vmatpush2.msra.mxu0 0.0
    %2867 = vmatprep.subr.mxu0 0.0
    %2868 = vmatpush2.msra.mxu0 0.0
    %2869 = vmatprep.subr.mxu0 0.0
    %2870 = vmatpush2.msra.mxu0 0.0
    %2871 = vmatprep.subr.mxu0 0.0
    %2872 = vmatpush2.msra.mxu0 0.0
    %2873 = vmatprep.subr.mxu0 0.0
    %2874 = vmatpush2.msra.mxu0 0.0
    %2875 = vmatprep.subr.mxu0 0.0
    %2876 = vmatpush2.msra.mxu0 0.0
    %2877 = vmatprep.subr.mxu0 0.0
    %2878 = vmatpush2.msra.mxu0 0.0
    %2879 = vmatprep.subr.mxu0 0.0
    %2880 = vmatpush2.msra.mxu0 0.0
    %2881 = vmatprep.subr.mxu0 0.0
    %2882 = vmatpush2.msra.mxu0 0.0
    %2883 = vmatprep.subr.mxu0 0.0
    %2884 = vmatpush2.msra.mxu0 0.0
    %2885 = vmatprep.mubr.f32.mxu0 0.0
    %2886 = vmatmul.mubr.f32.gmra.mxu0 %v2819
    %v2887 = vpop.f32.mrf.mxu0
    %v2888 = vadd.f32 0.0, %v2887
    %v2889 = vpop.f32.mrf.mxu0
    %2890 = vdwg.mxu0
    %2891 = vrot.lane.b32.xlu0 %v1876, 64
    %v2892 = vpop.permute.xlu0 %2891
    %v2895 = vsel %vm173, %v2580, 0
    %2897 = vmatprep.subr.mxu0 0.0
    %2898 = vmatpush1.msra.mxu0 0.0
    %2899 = vmatprep.subr.mxu0 0.0
    %2900 = vmatpush1.msra.mxu0 0.0
    %2901 = vmatprep.subr.mxu0 0.0
    %2902 = vmatpush1.msra.mxu0 0.0
    %2903 = vmatprep.subr.mxu0 0.0
    %2904 = vmatpush1.msra.mxu0 0.0
    %2905 = vmatprep.subr.mxu0 0.0
    %2906 = vmatpush1.msra.mxu0 0.0
    %2907 = vmatprep.subr.mxu0 0.0
    %2908 = vmatpush1.msra.mxu0 0.0
    %2909 = vmatprep.subr.mxu0 0.0
    %2910 = vmatpush1.msra.mxu0 0.0
    %2911 = vmatprep.subr.mxu0 0.0
    %2912 = vmatpush1.msra.mxu0 0.0
    %2913 = vmatprep.subr.mxu0 0.0
    %2914 = vmatpush1.msra.mxu0 0.0
    %2915 = vmatprep.subr.mxu0 0.0
    %2916 = vmatpush1.msra.mxu0 0.0
    %2917 = vmatprep.subr.mxu0 0.0
    %2918 = vmatpush1.msra.mxu0 0.0
    %2919 = vmatprep.subr.mxu0 0.0
    %2920 = vmatpush1.msra.mxu0 0.0
    %2921 = vmatprep.subr.mxu0 0.0
    %2922 = vmatpush1.msra.mxu0 0.0
    %2923 = vmatprep.subr.mxu0 0.0
    %2924 = vmatpush1.msra.mxu0 0.0
    %2925 = vmatprep.subr.mxu0 0.0
    %2926 = vmatpush1.msra.mxu0 0.0
    %2927 = vmatprep.subr.mxu0 0.0
    %2928 = vmatpush1.msra.mxu0 %v2892
    %2929 = vmatprep.subr.mxu0 0.0
    %2930 = vmatpush2.msra.mxu0 0.0
    %2931 = vmatprep.subr.mxu0 0.0
    %2932 = vmatpush2.msra.mxu0 0.0
    %2933 = vmatprep.subr.mxu0 0.0
    %2934 = vmatpush2.msra.mxu0 0.0
    %2935 = vmatprep.subr.mxu0 0.0
    %2936 = vmatpush2.msra.mxu0 0.0
    %2937 = vmatprep.subr.mxu0 0.0
    %2938 = vmatpush2.msra.mxu0 0.0
    %2939 = vmatprep.subr.mxu0 0.0
    %2940 = vmatpush2.msra.mxu0 0.0
    %2941 = vmatprep.subr.mxu0 0.0
    %2942 = vmatpush2.msra.mxu0 0.0
    %2943 = vmatprep.subr.mxu0 0.0
    %2944 = vmatpush2.msra.mxu0 0.0
    %2945 = vmatprep.subr.mxu0 0.0
    %2946 = vmatpush2.msra.mxu0 0.0
    %2947 = vmatprep.subr.mxu0 0.0
    %2948 = vmatpush2.msra.mxu0 0.0
    %2949 = vmatprep.subr.mxu0 0.0
    %2950 = vmatpush2.msra.mxu0 0.0
    %2951 = vmatprep.subr.mxu0 0.0
    %2952 = vmatpush2.msra.mxu0 0.0
    %2953 = vmatprep.subr.mxu0 0.0
    %2954 = vmatpush2.msra.mxu0 0.0
    %2955 = vmatprep.subr.mxu0 0.0
    %2956 = vmatpush2.msra.mxu0 0.0
    %2957 = vmatprep.subr.mxu0 0.0
    %2958 = vmatpush2.msra.mxu0 0.0
    %2959 = vmatprep.subr.mxu0 0.0
    %2960 = vmatpush2.msra.mxu0 0.0
    %2961 = vmatprep.mubr.f32.mxu0 0.0
    %2962 = vmatmul.mubr.f32.gmra.mxu0 %v2895
    %v2963 = vpop.f32.mrf.mxu0
    %v2964 = vadd.f32 0.0, %v2963
    %v2965 = vpop.f32.mrf.mxu0
    %2966 = vdwg.mxu0
    %2967 = vrot.lane.b32.xlu0 %v1878, 64
    %v2968 = vpop.permute.xlu0 %2967
    %v2971 = vsel %vm173, %v2582, 0
    %2973 = vmatprep.subr.mxu0 0.0
    %2974 = vmatpush1.msra.mxu0 0.0
    %2975 = vmatprep.subr.mxu0 0.0
    %2976 = vmatpush1.msra.mxu0 0.0
    %2977 = vmatprep.subr.mxu0 0.0
    %2978 = vmatpush1.msra.mxu0 0.0
    %2979 = vmatprep.subr.mxu0 0.0
    %2980 = vmatpush1.msra.mxu0 0.0
    %2981 = vmatprep.subr.mxu0 0.0
    %2982 = vmatpush1.msra.mxu0 0.0
    %2983 = vmatprep.subr.mxu0 0.0
    %2984 = vmatpush1.msra.mxu0 0.0
    %2985 = vmatprep.subr.mxu0 0.0
    %2986 = vmatpush1.msra.mxu0 0.0
    %2987 = vmatprep.subr.mxu0 0.0
    %2988 = vmatpush1.msra.mxu0 0.0
    %2989 = vmatprep.subr.mxu0 0.0
    %2990 = vmatpush1.msra.mxu0 0.0
    %2991 = vmatprep.subr.mxu0 0.0
    %2992 = vmatpush1.msra.mxu0 0.0
    %2993 = vmatprep.subr.mxu0 0.0
    %2994 = vmatpush1.msra.mxu0 0.0
    %2995 = vmatprep.subr.mxu0 0.0
    %2996 = vmatpush1.msra.mxu0 0.0
    %2997 = vmatprep.subr.mxu0 0.0
    %2998 = vmatpush1.msra.mxu0 0.0
    %2999 = vmatprep.subr.mxu0 0.0
    %3000 = vmatpush1.msra.mxu0 0.0
    %3001 = vmatprep.subr.mxu0 0.0
    %3002 = vmatpush1.msra.mxu0 0.0
    %3003 = vmatprep.subr.mxu0 0.0
    %3004 = vmatpush1.msra.mxu0 %v2968
    %3005 = vmatprep.subr.mxu0 0.0
    %3006 = vmatpush2.msra.mxu0 0.0
    %3007 = vmatprep.subr.mxu0 0.0
    %3008 = vmatpush2.msra.mxu0 0.0
    %3009 = vmatprep.subr.mxu0 0.0
    %3010 = vmatpush2.msra.mxu0 0.0
    %3011 = vmatprep.subr.mxu0 0.0
    %3012 = vmatpush2.msra.mxu0 0.0
    %3013 = vmatprep.subr.mxu0 0.0
    %3014 = vmatpush2.msra.mxu0 0.0
    %3015 = vmatprep.subr.mxu0 0.0
    %3016 = vmatpush2.msra.mxu0 0.0
    %3017 = vmatprep.subr.mxu0 0.0
    %3018 = vmatpush2.msra.mxu0 0.0
    %3019 = vmatprep.subr.mxu0 0.0
    %3020 = vmatpush2.msra.mxu0 0.0
    %3021 = vmatprep.subr.mxu0 0.0
    %3022 = vmatpush2.msra.mxu0 0.0
    %3023 = vmatprep.subr.mxu0 0.0
    %3024 = vmatpush2.msra.mxu0 0.0
    %3025 = vmatprep.subr.mxu0 0.0
    %3026 = vmatpush2.msra.mxu0 0.0
    %3027 = vmatprep.subr.mxu0 0.0
    %3028 = vmatpush2.msra.mxu0 0.0
    %3029 = vmatprep.subr.mxu0 0.0
    %3030 = vmatpush2.msra.mxu0 0.0
    %3031 = vmatprep.subr.mxu0 0.0
    %3032 = vmatpush2.msra.mxu0 0.0
    %3033 = vmatprep.subr.mxu0 0.0
    %3034 = vmatpush2.msra.mxu0 0.0
    %3035 = vmatprep.subr.mxu0 0.0
    %3036 = vmatpush2.msra.mxu0 0.0
    %3037 = vmatprep.mubr.f32.mxu0 0.0
    %3038 = vmatmul.mubr.f32.gmra.mxu0 %v2971
    %v3039 = vpop.f32.mrf.mxu0
    %v3040 = vadd.f32 0.0, %v3039
    %v3041 = vpop.f32.mrf.mxu0
    %3042 = vdwg.mxu0
    %3043 = vrot.lane.b32.xlu0 %v1880, 64
    %v3044 = vpop.permute.xlu0 %3043
    %v3047 = vsel %vm173, %v2584, 0
    %3049 = vmatprep.subr.mxu0 0.0
    %3050 = vmatpush1.msra.mxu0 0.0
    %3051 = vmatprep.subr.mxu0 0.0
    %3052 = vmatpush1.msra.mxu0 0.0
    %3053 = vmatprep.subr.mxu0 0.0
    %3054 = vmatpush1.msra.mxu0 0.0
    %3055 = vmatprep.subr.mxu0 0.0
    %3056 = vmatpush1.msra.mxu0 0.0
    %3057 = vmatprep.subr.mxu0 0.0
    %3058 = vmatpush1.msra.mxu0 0.0
    %3059 = vmatprep.subr.mxu0 0.0
    %3060 = vmatpush1.msra.mxu0 0.0
    %3061 = vmatprep.subr.mxu0 0.0
    %3062 = vmatpush1.msra.mxu0 0.0
    %3063 = vmatprep.subr.mxu0 0.0
    %3064 = vmatpush1.msra.mxu0 0.0
    %3065 = vmatprep.subr.mxu0 0.0
    %3066 = vmatpush1.msra.mxu0 0.0
    %3067 = vmatprep.subr.mxu0 0.0
    %3068 = vmatpush1.msra.mxu0 0.0
    %3069 = vmatprep.subr.mxu0 0.0
    %3070 = vmatpush1.msra.mxu0 0.0
    %3071 = vmatprep.subr.mxu0 0.0
    %3072 = vmatpush1.msra.mxu0 0.0
    %3073 = vmatprep.subr.mxu0 0.0
    %3074 = vmatpush1.msra.mxu0 0.0
    %3075 = vmatprep.subr.mxu0 0.0
    %3076 = vmatpush1.msra.mxu0 0.0
    %3077 = vmatprep.subr.mxu0 0.0
    %3078 = vmatpush1.msra.mxu0 0.0
    %3079 = vmatprep.subr.mxu0 0.0
    %3080 = vmatpush1.msra.mxu0 %v3044
    %3081 = vmatprep.subr.mxu0 0.0
    %3082 = vmatpush2.msra.mxu0 0.0
    %3083 = vmatprep.subr.mxu0 0.0
    %3084 = vmatpush2.msra.mxu0 0.0
    %3085 = vmatprep.subr.mxu0 0.0
    %3086 = vmatpush2.msra.mxu0 0.0
    %3087 = vmatprep.subr.mxu0 0.0
    %3088 = vmatpush2.msra.mxu0 0.0
    %3089 = vmatprep.subr.mxu0 0.0
    %3090 = vmatpush2.msra.mxu0 0.0
    %3091 = vmatprep.subr.mxu0 0.0
    %3092 = vmatpush2.msra.mxu0 0.0
    %3093 = vmatprep.subr.mxu0 0.0
    %3094 = vmatpush2.msra.mxu0 0.0
    %3095 = vmatprep.subr.mxu0 0.0
    %3096 = vmatpush2.msra.mxu0 0.0
    %3097 = vmatprep.subr.mxu0 0.0
    %3098 = vmatpush2.msra.mxu0 0.0
    %3099 = vmatprep.subr.mxu0 0.0
    %3100 = vmatpush2.msra.mxu0 0.0
    %3101 = vmatprep.subr.mxu0 0.0
    %3102 = vmatpush2.msra.mxu0 0.0
    %3103 = vmatprep.subr.mxu0 0.0
    %3104 = vmatpush2.msra.mxu0 0.0
    %3105 = vmatprep.subr.mxu0 0.0
    %3106 = vmatpush2.msra.mxu0 0.0
    %3107 = vmatprep.subr.mxu0 0.0
    %3108 = vmatpush2.msra.mxu0 0.0
    %3109 = vmatprep.subr.mxu0 0.0
    %3110 = vmatpush2.msra.mxu0 0.0
    %3111 = vmatprep.subr.mxu0 0.0
    %3112 = vmatpush2.msra.mxu0 0.0
    %3113 = vmatprep.mubr.f32.mxu0 0.0
    %3114 = vmatmul.mubr.f32.gmra.mxu0 %v3047
    %v3115 = vpop.f32.mrf.mxu0
    %v3116 = vadd.f32 0.0, %v3115
    %v3117 = vpop.f32.mrf.mxu0
    %3118 = vdwg.mxu0
    %3119 = vrot.lane.b32.xlu0 %v1882, 64
    %v3120 = vpop.permute.xlu0 %3119
    %v3123 = vsel %vm173, %v2586, 0
    %3125 = vmatprep.subr.mxu0 0.0
    %3126 = vmatpush1.msra.mxu0 0.0
    %3127 = vmatprep.subr.mxu0 0.0
    %3128 = vmatpush1.msra.mxu0 0.0
    %3129 = vmatprep.subr.mxu0 0.0
    %3130 = vmatpush1.msra.mxu0 0.0
    %3131 = vmatprep.subr.mxu0 0.0
    %3132 = vmatpush1.msra.mxu0 0.0
    %3133 = vmatprep.subr.mxu0 0.0
    %3134 = vmatpush1.msra.mxu0 0.0
    %3135 = vmatprep.subr.mxu0 0.0
    %3136 = vmatpush1.msra.mxu0 0.0
    %3137 = vmatprep.subr.mxu0 0.0
    %3138 = vmatpush1.msra.mxu0 0.0
    %3139 = vmatprep.subr.mxu0 0.0
    %3140 = vmatpush1.msra.mxu0 0.0
    %3141 = vmatprep.subr.mxu0 0.0
    %3142 = vmatpush1.msra.mxu0 0.0
    %3143 = vmatprep.subr.mxu0 0.0
    %3144 = vmatpush1.msra.mxu0 0.0
    %3145 = vmatprep.subr.mxu0 0.0
    %3146 = vmatpush1.msra.mxu0 0.0
    %3147 = vmatprep.subr.mxu0 0.0
    %3148 = vmatpush1.msra.mxu0 0.0
    %3149 = vmatprep.subr.mxu0 0.0
    %3150 = vmatpush1.msra.mxu0 0.0
    %3151 = vmatprep.subr.mxu0 0.0
    %3152 = vmatpush1.msra.mxu0 0.0
    %3153 = vmatprep.subr.mxu0 0.0
    %3154 = vmatpush1.msra.mxu0 0.0
    %3155 = vmatprep.subr.mxu0 0.0
    %3156 = vmatpush1.msra.mxu0 %v3120
    %3157 = vmatprep.subr.mxu0 0.0
    %3158 = vmatpush2.msra.mxu0 0.0
    %3159 = vmatprep.subr.mxu0 0.0
    %3160 = vmatpush2.msra.mxu0 0.0
    %3161 = vmatprep.subr.mxu0 0.0
    %3162 = vmatpush2.msra.mxu0 0.0
    %3163 = vmatprep.subr.mxu0 0.0
    %3164 = vmatpush2.msra.mxu0 0.0
    %3165 = vmatprep.subr.mxu0 0.0
    %3166 = vmatpush2.msra.mxu0 0.0
    %3167 = vmatprep.subr.mxu0 0.0
    %3168 = vmatpush2.msra.mxu0 0.0
    %3169 = vmatprep.subr.mxu0 0.0
    %3170 = vmatpush2.msra.mxu0 0.0
    %3171 = vmatprep.subr.mxu0 0.0
    %3172 = vmatpush2.msra.mxu0 0.0
    %3173 = vmatprep.subr.mxu0 0.0
    %3174 = vmatpush2.msra.mxu0 0.0
    %3175 = vmatprep.subr.mxu0 0.0
    %3176 = vmatpush2.msra.mxu0 0.0
    %3177 = vmatprep.subr.mxu0 0.0
    %3178 = vmatpush2.msra.mxu0 0.0
    %3179 = vmatprep.subr.mxu0 0.0
    %3180 = vmatpush2.msra.mxu0 0.0
    %3181 = vmatprep.subr.mxu0 0.0
    %3182 = vmatpush2.msra.mxu0 0.0
    %3183 = vmatprep.subr.mxu0 0.0
    %3184 = vmatpush2.msra.mxu0 0.0
    %3185 = vmatprep.subr.mxu0 0.0
    %3186 = vmatpush2.msra.mxu0 0.0
    %3187 = vmatprep.subr.mxu0 0.0
    %3188 = vmatpush2.msra.mxu0 0.0
    %3189 = vmatprep.mubr.f32.mxu0 0.0
    %3190 = vmatmul.mubr.f32.gmra.mxu0 %v3123
    %v3191 = vpop.f32.mrf.mxu0
    %v3192 = vadd.f32 0.0, %v3191
    %v3193 = vpop.f32.mrf.mxu0
    %3194 = vdwg.mxu0
    %3197 = vrot.lane.b32.xlu0 %v2812, 8
    %v3198 = vpop.permute.xlu0 %3197
    %3199 = vrot.lane.b32.xlu0 %v2888, 8
    %v3200 = vpop.permute.xlu0 %3199
    %3205 = vrot.lane.b32.xlu0 %v2964, 16
    %v3206 = vpop.permute.xlu0 %3205
    %3207 = vrot.lane.b32.xlu0 %v3040, 16
    %v3208 = vpop.permute.xlu0 %3207
    %3213 = vrot.lane.b32.xlu0 %v3116, 24
    %v3214 = vpop.permute.xlu0 %3213
    %3215 = vrot.lane.b32.xlu0 %v3192, 24
    %v3216 = vpop.permute.xlu0 %3215
    %v3219 = vsel %vm173, %v2660, %v3198
    %v3220 = vsel %vm173, %v2736, %v3200
    %v3221 = vsel %vm1510, %v3219, %v3206
    %v3222 = vsel %vm1510, %v3220, %v3208
    %v3223 = vsel %vm1513, %v3221, %v3214
    %v3224 = vsel %vm1513, %v3222, %v3216
    %v3225 = vlaneseq
    %v3226 = vshrl.u32 %v3225, 7
    %v3227 = vsub.s32 0, %v3226
    %v3228 = vrot.slane %v1745, %v3227
    %v3230 = vsel %vm1520, %v3223, 0
    %v3233 = vsel %vm1520, %v3224, 0
    %3235 = vmatprep.subr.mxu0 0.0
    %3236 = vmatpush1.msra.mxu0 0.0
    %3237 = vmatprep.subr.mxu0 0.0
    %3238 = vmatpush1.msra.mxu0 0.0
    %3239 = vmatprep.subr.mxu0 0.0
    %3240 = vmatpush1.msra.mxu0 0.0
    %3241 = vmatprep.subr.mxu0 0.0
    %3242 = vmatpush1.msra.mxu0 0.0
    %3243 = vmatprep.subr.mxu0 0.0
    %3244 = vmatpush1.msra.mxu0 0.0
    %3245 = vmatprep.subr.mxu0 0.0
    %3246 = vmatpush1.msra.mxu0 0.0
    %3247 = vmatprep.subr.mxu0 0.0
    %3248 = vmatpush1.msra.mxu0 0.0
    %3249 = vmatprep.subr.mxu0 0.0
    %3250 = vmatpush1.msra.mxu0 0.0
    %3251 = vmatprep.subr.mxu0 0.0
    %3252 = vmatpush1.msra.mxu0 0.0
    %3253 = vmatprep.subr.mxu0 0.0
    %3254 = vmatpush1.msra.mxu0 0.0
    %3255 = vmatprep.subr.mxu0 0.0
    %3256 = vmatpush1.msra.mxu0 0.0
    %3257 = vmatprep.subr.mxu0 0.0
    %3258 = vmatpush1.msra.mxu0 0.0
    %3259 = vmatprep.subr.mxu0 0.0
    %3260 = vmatpush1.msra.mxu0 %v1740
    %3261 = vmatprep.subr.mxu0 0.0
    %3262 = vmatpush1.msra.mxu0 %v1739
    %3263 = vmatprep.subr.mxu0 0.0
    %3264 = vmatpush1.msra.mxu0 %v1738
    %3265 = vmatprep.subr.mxu0 0.0
    %3266 = vmatpush1.msra.mxu0 %v1737
    %3267 = vmatprep.subr.mxu0 0.0
    %3268 = vmatpush2.msra.mxu0 0.0
    %3269 = vmatprep.subr.mxu0 0.0
    %3270 = vmatpush2.msra.mxu0 0.0
    %3271 = vmatprep.subr.mxu0 0.0
    %3272 = vmatpush2.msra.mxu0 0.0
    %3273 = vmatprep.subr.mxu0 0.0
    %3274 = vmatpush2.msra.mxu0 0.0
    %3275 = vmatprep.subr.mxu0 0.0
    %3276 = vmatpush2.msra.mxu0 0.0
    %3277 = vmatprep.subr.mxu0 0.0
    %3278 = vmatpush2.msra.mxu0 0.0
    %3279 = vmatprep.subr.mxu0 0.0
    %3280 = vmatpush2.msra.mxu0 0.0
    %3281 = vmatprep.subr.mxu0 0.0
    %3282 = vmatpush2.msra.mxu0 0.0
    %3283 = vmatprep.subr.mxu0 0.0
    %3284 = vmatpush2.msra.mxu0 0.0
    %3285 = vmatprep.subr.mxu0 0.0
    %3286 = vmatpush2.msra.mxu0 0.0
    %3287 = vmatprep.subr.mxu0 0.0
    %3288 = vmatpush2.msra.mxu0 0.0
    %3289 = vmatprep.subr.mxu0 0.0
    %3290 = vmatpush2.msra.mxu0 0.0
    %3291 = vmatprep.subr.mxu0 0.0
    %3292 = vmatpush2.msra.mxu0 0.0
    %3293 = vmatprep.subr.mxu0 0.0
    %3294 = vmatpush2.msra.mxu0 0.0
    %3295 = vmatprep.subr.mxu0 0.0
    %3296 = vmatpush2.msra.mxu0 0.0
    %3297 = vmatprep.subr.mxu0 0.0
    %3298 = vmatpush2.msra.mxu0 0.0
    %3299 = vmatprep.mubr.f32.mxu0 0.0
    %3300 = vmatmul.mubr.f32.gmra.mxu0 %v3230
    %v3301 = vpop.f32.mrf.mxu0
    %v3302 = vadd.f32 %v3228, %v3301
    %v3303 = vpop.f32.mrf.mxu0
    %3304 = vmatprep.mubr.f32.mxu0 0.0
    %3305 = vmatmul.mubr.f32.gmra.mxu0 %v3233
    %v3306 = vpop.f32.mrf.mxu0
    %v3307 = vadd.f32 %v3228, %v3306
    %v3308 = vpop.f32.mrf.mxu0
    %3309 = vdwg.mxu0
    %v3310 = vadd.f32 %v1728, %v3302
    %v3311 = vadd.f32 %v1729, %v3307
    %v3312 = vsel %vm1520, %v3310, 0.0
    %3313 = vadd.xlane.f32.xlu0 %v3312
    %v3314 = vpop.xlane.xlu0 %3313
    %v3315 = vsel %vm1520, %v3311, 0.0
    %3316 = vadd.xlane.f32.xlu0 %v3315
    %v3317 = vpop.xlane.xlu0 %3316
    %v3318 = vmul.f32 %v3314, %v1608
    %v3319 = vmul.f32 %v3317, %v1608
    %v3320 = vsub.f32 %v3310, %v3318
    %v3321 = vsub.f32 %v3311, %v3319
    %v3322 = vmul.f32 %v3320, %v3320
    %v3323 = vmul.f32 %v3321, %v3321
    %v3324 = vsel %vm1520, %v3322, 0.0
    %3325 = vadd.xlane.f32.xlu0 %v3324
    %v3326 = vpop.xlane.xlu0 %3325
    %v3327 = vsel %vm1520, %v3323, 0.0
    %3328 = vadd.xlane.f32.xlu0 %v3327
    %v3329 = vpop.xlane.xlu0 %3328
    %v3330 = vmul.f32 %v3326, %v1608
    %v3331 = vmul.f32 %v3329, %v1608
    %v3332 = vadd.f32 %v3330, 1e-05
    %v3333 = vadd.f32 %v3331, 1e-05
    %v3334 = vrsqrt.pop %v3332
    %v3335 = vrsqrt.pop %v3333
    %v3336 = vmul.f32 %v3320, %v3334
    %v3337 = vmul.f32 %v3321, %v3335
    %v3338 = vlaneseq
    %v3339 = vshrl.u32 %v3338, 7
    %v3340 = vsub.s32 4, %v3339
    %v3341 = vrot.slane %v1745, %v3340
    %v3342 = vmul.f32 %v3336, %v3341
    %v3343 = vmul.f32 %v3337, %v3341
    %v3344 = vlaneseq
    %v3345 = vshrl.u32 %v3344, 7
    %v3346 = vsub.s32 5, %v3345
    %v3347 = vrot.slane %v1745, %v3346
    %v3348 = vadd.f32 %v3342, %v3347
    %v3349 = vadd.f32 %v3343, %v3347
    %v3350 = vlaneseq
    %v3351 = vshrl.u32 %v3350, 7
    %v3352 = vsub.s32 1, %v3351
    %v3353 = vrot.slane %v1745, %v3352
    %v3355 = vsel %vm1520, %v3348, 0
    %v3358 = vsel %vm1520, %v3349, 0
    %3360 = vmatprep.subr.mxu0 0.0
    %3361 = vmatpush1.msra.mxu0 0.0
    %3362 = vmatprep.subr.mxu0 0.0
    %3363 = vmatpush1.msra.mxu0 0.0
    %3364 = vmatprep.subr.mxu0 0.0
    %3365 = vmatpush1.msra.mxu0 0.0
    %3366 = vmatprep.subr.mxu0 0.0
    %3367 = vmatpush1.msra.mxu0 0.0
    %3368 = vmatprep.subr.mxu0 0.0
    %3369 = vmatpush1.msra.mxu0 0.0
    %3370 = vmatprep.subr.mxu0 0.0
    %3371 = vmatpush1.msra.mxu0 0.0
    %3372 = vmatprep.subr.mxu0 0.0
    %3373 = vmatpush1.msra.mxu0 0.0
    %3374 = vmatprep.subr.mxu0 0.0
    %3375 = vmatpush1.msra.mxu0 0.0
    %3376 = vmatprep.subr.mxu0 0.0
    %3377 = vmatpush1.msra.mxu0 0.0
    %3378 = vmatprep.subr.mxu0 0.0
    %3379 = vmatpush1.msra.mxu0 0.0
    %3380 = vmatprep.subr.mxu0 0.0
    %3381 = vmatpush1.msra.mxu0 0.0
    %3382 = vmatprep.subr.mxu0 0.0
    %3383 = vmatpush1.msra.mxu0 0.0
    %3384 = vmatprep.subr.mxu0 0.0
    %3385 = vmatpush1.msra.mxu0 %v1744
    %3386 = vmatprep.subr.mxu0 0.0
    %3387 = vmatpush1.msra.mxu0 %v1743
    %3388 = vmatprep.subr.mxu0 0.0
    %3389 = vmatpush1.msra.mxu0 %v1742
    %3390 = vmatprep.subr.mxu0 0.0
    %3391 = vmatpush1.msra.mxu0 %v1741
    %3392 = vmatprep.subr.mxu0 0.0
    %3393 = vmatpush2.msra.mxu0 0.0
    %3394 = vmatprep.subr.mxu0 0.0
    %3395 = vmatpush2.msra.mxu0 0.0
    %3396 = vmatprep.subr.mxu0 0.0
    %3397 = vmatpush2.msra.mxu0 0.0
    %3398 = vmatprep.subr.mxu0 0.0
    %3399 = vmatpush2.msra.mxu0 0.0
    %3400 = vmatprep.subr.mxu0 0.0
    %3401 = vmatpush2.msra.mxu0 0.0
    %3402 = vmatprep.subr.mxu0 0.0
    %3403 = vmatpush2.msra.mxu0 0.0
    %3404 = vmatprep.subr.mxu0 0.0
    %3405 = vmatpush2.msra.mxu0 0.0
    %3406 = vmatprep.subr.mxu0 0.0
    %3407 = vmatpush2.msra.mxu0 0.0
    %3408 = vmatprep.subr.mxu0 0.0
    %3409 = vmatpush2.msra.mxu0 0.0
    %3410 = vmatprep.subr.mxu0 0.0
    %3411 = vmatpush2.msra.mxu0 0.0
    %3412 = vmatprep.subr.mxu0 0.0
    %3413 = vmatpush2.msra.mxu0 0.0
    %3414 = vmatprep.subr.mxu0 0.0
    %3415 = vmatpush2.msra.mxu0 0.0
    %3416 = vmatprep.subr.mxu0 0.0
    %3417 = vmatpush2.msra.mxu0 0.0
    %3418 = vmatprep.subr.mxu0 0.0
    %3419 = vmatpush2.msra.mxu0 0.0
    %3420 = vmatprep.subr.mxu0 0.0
    %3421 = vmatpush2.msra.mxu0 0.0
    %3422 = vmatprep.subr.mxu0 0.0
    %3423 = vmatpush2.msra.mxu0 0.0
    %3424 = vmatprep.mubr.f32.mxu0 0.0
    %3425 = vmatmul.mubr.f32.gmra.mxu0 %v3355
    %v3426 = vpop.f32.mrf.mxu0
    %v3427 = vadd.f32 %v3353, %v3426
    %v3428 = vpop.f32.mrf.mxu0
    %3429 = vmatprep.mubr.f32.mxu0 0.0
    %3430 = vmatmul.mubr.f32.gmra.mxu0 %v3358
    %v3431 = vpop.f32.mrf.mxu0
    %v3432 = vadd.f32 %v3353, %v3431
    %v3433 = vpop.f32.mrf.mxu0
    %3434 = vdwg.mxu0
    %v3435 = vmax.f32 %v3427, 0.0
    %v3436 = vmax.f32 %v3432, 0.0
    %v3437 = vadd.f32 %v3310, %v3435
    %v3438 = vadd.f32 %v3311, %v3436
    %s3439 = scalar_lea.vmem %s1, 80
    %v3440 = vld [vmem:[%s3439] sm:$0xff]
    %v3441 = vld [vmem:[%s3439 + $0x8] sm:$0xff]
    %v3442 = vld [vmem:[%s3439 + $0x10] sm:$0xff]
    %v3443 = vld [vmem:[%s3439 + $0x18] sm:$0xff]
    %v3444 = vld [vmem:[%s3439 + $0x20] sm:$0x1]
    %s3445 = scalar_lea.vmem %s2, 144
    %v3446 = vld [vmem:[%s3445] sm:$0xff]
    %v3447 = vld [vmem:[%s3445 + $0x8] sm:$0xff]
    %v3448 = vld [vmem:[%s3445 + $0x10] sm:$0xff]
    %v3449 = vld [vmem:[%s3445 + $0x18] sm:$0xff]
    %v3450 = vld [vmem:[%s3445 + $0x20] sm:$0xff]
    %v3451 = vld [vmem:[%s3445 + $0x28] sm:$0xff]
    %v3452 = vld [vmem:[%s3445 + $0x30] sm:$0xff]
    %v3453 = vld [vmem:[%s3445 + $0x38] sm:$0xff]
    %v3454 = vld [vmem:[%s3445 + $0x40] sm:$0x3f]
    %v3455 = vsel %vm1520, %v3437, 0.0
    %3456 = vadd.xlane.f32.xlu0 %v3455
    %v3457 = vpop.xlane.xlu0 %3456
    %v3458 = vsel %vm1520, %v3438, 0.0
    %3459 = vadd.xlane.f32.xlu0 %v3458
    %v3460 = vpop.xlane.xlu0 %3459
    %v3461 = vmul.f32 %v3457, %v1608
    %v3462 = vmul.f32 %v3460, %v1608
    %v3463 = vsub.f32 %v3437, %v3461
    %v3464 = vsub.f32 %v3438, %v3462
    %v3465 = vmul.f32 %v3463, %v3463
    %v3466 = vmul.f32 %v3464, %v3464
    %v3467 = vsel %vm1520, %v3465, 0.0
    %3468 = vadd.xlane.f32.xlu0 %v3467
    %v3469 = vpop.xlane.xlu0 %3468
    %v3470 = vsel %vm1520, %v3466, 0.0
    %3471 = vadd.xlane.f32.xlu0 %v3470
    %v3472 = vpop.xlane.xlu0 %3471
    %v3473 = vmul.f32 %v3469, %v1608
    %v3474 = vmul.f32 %v3472, %v1608
    %v3475 = vadd.f32 %v3473, 1e-05
    %v3476 = vadd.f32 %v3474, 1e-05
    %v3477 = vrsqrt.pop %v3475
    %v3478 = vrsqrt.pop %v3476
    %v3479 = vmul.f32 %v3463, %v3477
    %v3480 = vmul.f32 %v3464, %v3478
    %v3481 = vlaneseq
    %v3482 = vshrl.u32 %v3481, 7
    %v3483 = vsub.s32 2, %v3482
    %v3484 = vrot.slane %v3454, %v3483
    %v3485 = vmul.f32 %v3479, %v3484
    %v3486 = vmul.f32 %v3480, %v3484
    %v3487 = vlaneseq
    %v3488 = vshrl.u32 %v3487, 7
    %v3489 = vsub.s32 3, %v3488
    %v3490 = vrot.slane %v3454, %v3489
    %v3491 = vadd.f32 %v3485, %v3490
    %v3492 = vadd.f32 %v3486, %v3490
    %v3493 = vlaneseq
    %v3494 = vshrl.u32 %v3493, 7
    %v3495 = vsub.s32 0, %v3494
    %v3496 = vrot.slane %v3444, %v3495
    %v3498 = vsel %vm1520, %v3491, 0
    %v3501 = vsel %vm1520, %v3492, 0
    %3503 = vmatprep.subr.mxu0 0.0
    %3504 = vmatpush1.msra.mxu0 0.0
    %3505 = vmatprep.subr.mxu0 0.0
    %3506 = vmatpush1.msra.mxu0 0.0
    %3507 = vmatprep.subr.mxu0 0.0
    %3508 = vmatpush1.msra.mxu0 0.0
    %3509 = vmatprep.subr.mxu0 0.0
    %3510 = vmatpush1.msra.mxu0 0.0
    %3511 = vmatprep.subr.mxu0 0.0
    %3512 = vmatpush1.msra.mxu0 0.0
    %3513 = vmatprep.subr.mxu0 0.0
    %3514 = vmatpush1.msra.mxu0 0.0
    %3515 = vmatprep.subr.mxu0 0.0
    %3516 = vmatpush1.msra.mxu0 0.0
    %3517 = vmatprep.subr.mxu0 0.0
    %3518 = vmatpush1.msra.mxu0 0.0
    %3519 = vmatprep.subr.mxu0 0.0
    %3520 = vmatpush1.msra.mxu0 0.0
    %3521 = vmatprep.subr.mxu0 0.0
    %3522 = vmatpush1.msra.mxu0 0.0
    %3523 = vmatprep.subr.mxu0 0.0
    %3524 = vmatpush1.msra.mxu0 0.0
    %3525 = vmatprep.subr.mxu0 0.0
    %3526 = vmatpush1.msra.mxu0 0.0
    %3527 = vmatprep.subr.mxu0 0.0
    %3528 = vmatpush1.msra.mxu0 %v3443
    %3529 = vmatprep.subr.mxu0 0.0
    %3530 = vmatpush1.msra.mxu0 %v3442
    %3531 = vmatprep.subr.mxu0 0.0
    %3532 = vmatpush1.msra.mxu0 %v3441
    %3533 = vmatprep.subr.mxu0 0.0
    %3534 = vmatpush1.msra.mxu0 %v3440
    %3535 = vmatprep.subr.mxu0 0.0
    %3536 = vmatpush2.msra.mxu0 0.0
    %3537 = vmatprep.subr.mxu0 0.0
    %3538 = vmatpush2.msra.mxu0 0.0
    %3539 = vmatprep.subr.mxu0 0.0
    %3540 = vmatpush2.msra.mxu0 0.0
    %3541 = vmatprep.subr.mxu0 0.0
    %3542 = vmatpush2.msra.mxu0 0.0
    %3543 = vmatprep.subr.mxu0 0.0
    %3544 = vmatpush2.msra.mxu0 0.0
    %3545 = vmatprep.subr.mxu0 0.0
    %3546 = vmatpush2.msra.mxu0 0.0
    %3547 = vmatprep.subr.mxu0 0.0
    %3548 = vmatpush2.msra.mxu0 0.0
    %3549 = vmatprep.subr.mxu0 0.0
    %3550 = vmatpush2.msra.mxu0 0.0
    %3551 = vmatprep.subr.mxu0 0.0
    %3552 = vmatpush2.msra.mxu0 0.0
    %3553 = vmatprep.subr.mxu0 0.0
    %3554 = vmatpush2.msra.mxu0 0.0
    %3555 = vmatprep.subr.mxu0 0.0
    %3556 = vmatpush2.msra.mxu0 0.0
    %3557 = vmatprep.subr.mxu0 0.0
    %3558 = vmatpush2.msra.mxu0 0.0
    %3559 = vmatprep.subr.mxu0 0.0
    %3560 = vmatpush2.msra.mxu0 0.0
    %3561 = vmatprep.subr.mxu0 0.0
    %3562 = vmatpush2.msra.mxu0 0.0
    %3563 = vmatprep.subr.mxu0 0.0
    %3564 = vmatpush2.msra.mxu0 0.0
    %3565 = vmatprep.subr.mxu0 0.0
    %3566 = vmatpush2.msra.mxu0 0.0
    %3567 = vmatprep.mubr.f32.mxu0 0.0
    %3568 = vmatmul.mubr.f32.gmra.mxu0 %v3498
    %v3569 = vpop.f32.mrf.mxu0
    %v3570 = vadd.f32 %v3496, %v3569
    %v3571 = vpop.f32.mrf.mxu0
    %3572 = vmatprep.mubr.f32.mxu0 0.0
    %3573 = vmatmul.mubr.f32.gmra.mxu0 %v3501
    %v3574 = vpop.f32.mrf.mxu0
    %v3575 = vadd.f32 %v3496, %v3574
    %v3576 = vpop.f32.mrf.mxu0
    %3577 = vdwg.mxu0
    %3580 = vrot.lane.b32.xlu0 %v3570, 120
    %v3581 = vpop.permute.xlu0 %3580
    %3582 = vrot.lane.b32.xlu0 %v3575, 120
    %v3583 = vpop.permute.xlu0 %3582
    %3584 = vrot.lane.b32.xlu0 %v3570, 112
    %v3585 = vpop.permute.xlu0 %3584
    %3586 = vrot.lane.b32.xlu0 %v3575, 112
    %v3587 = vpop.permute.xlu0 %3586
    %3588 = vrot.lane.b32.xlu0 %v3570, 104
    %v3589 = vpop.permute.xlu0 %3588
    %3590 = vrot.lane.b32.xlu0 %v3575, 104
    %v3591 = vpop.permute.xlu0 %3590
    %3592 = vrot.lane.b32.xlu0 %v3570, 96
    %v3593 = vpop.permute.xlu0 %3592
    %v3594 = vsel %vm173, %v3570, 0
    %v3596 = vsel %vm173, %v3593, 0
    %3598 = vmatprep.subr.mxu0 0.0
    %3599 = vmatpush1.xpose.msra.mxu0 0.0
    %3600 = vmatprep.subr.mxu0 0.0
    %3601 = vmatpush1.xpose.msra.mxu0 0.0
    %3602 = vmatprep.subr.mxu0 0.0
    %3603 = vmatpush1.xpose.msra.mxu0 0.0
    %3604 = vmatprep.subr.mxu0 0.0
    %3605 = vmatpush1.xpose.msra.mxu0 0.0
    %3606 = vmatprep.subr.mxu0 0.0
    %3607 = vmatpush1.xpose.msra.mxu0 0.0
    %3608 = vmatprep.subr.mxu0 0.0
    %3609 = vmatpush1.xpose.msra.mxu0 0.0
    %3610 = vmatprep.subr.mxu0 0.0
    %3611 = vmatpush1.xpose.msra.mxu0 0.0
    %3612 = vmatprep.subr.mxu0 0.0
    %3613 = vmatpush1.xpose.msra.mxu0 0.0
    %3614 = vmatprep.subr.mxu0 0.0
    %3615 = vmatpush1.xpose.msra.mxu0 0.0
    %3616 = vmatprep.subr.mxu0 0.0
    %3617 = vmatpush1.xpose.msra.mxu0 0.0
    %3618 = vmatprep.subr.mxu0 0.0
    %3619 = vmatpush1.xpose.msra.mxu0 0.0
    %3620 = vmatprep.subr.mxu0 0.0
    %3621 = vmatpush1.xpose.msra.mxu0 0.0
    %3622 = vmatprep.subr.mxu0 0.0
    %3623 = vmatpush1.xpose.msra.mxu0 0.0
    %3624 = vmatprep.subr.mxu0 0.0
    %3625 = vmatpush1.xpose.msra.mxu0 0.0
    %3626 = vmatprep.subr.mxu0 0.0
    %3627 = vmatpush1.xpose.msra.mxu0 0.0
    %3628 = vmatprep.subr.mxu0 0.0
    %3629 = vmatpush1.xpose.msra.mxu0 %v3596
    %3630 = vmatprep.subr.mxu0 0.0
    %3631 = vmatpush2.xpose.msra.mxu0 0.0
    %3632 = vmatprep.subr.mxu0 0.0
    %3633 = vmatpush2.xpose.msra.mxu0 0.0
    %3634 = vmatprep.subr.mxu0 0.0
    %3635 = vmatpush2.xpose.msra.mxu0 0.0
    %3636 = vmatprep.subr.mxu0 0.0
    %3637 = vmatpush2.xpose.msra.mxu0 0.0
    %3638 = vmatprep.subr.mxu0 0.0
    %3639 = vmatpush2.xpose.msra.mxu0 0.0
    %3640 = vmatprep.subr.mxu0 0.0
    %3641 = vmatpush2.xpose.msra.mxu0 0.0
    %3642 = vmatprep.subr.mxu0 0.0
    %3643 = vmatpush2.xpose.msra.mxu0 0.0
    %3644 = vmatprep.subr.mxu0 0.0
    %3645 = vmatpush2.xpose.msra.mxu0 0.0
    %3646 = vmatprep.subr.mxu0 0.0
    %3647 = vmatpush2.xpose.msra.mxu0 0.0
    %3648 = vmatprep.subr.mxu0 0.0
    %3649 = vmatpush2.xpose.msra.mxu0 0.0
    %3650 = vmatprep.subr.mxu0 0.0
    %3651 = vmatpush2.xpose.msra.mxu0 0.0
    %3652 = vmatprep.subr.mxu0 0.0
    %3653 = vmatpush2.xpose.msra.mxu0 0.0
    %3654 = vmatprep.subr.mxu0 0.0
    %3655 = vmatpush2.xpose.msra.mxu0 0.0
    %3656 = vmatprep.subr.mxu0 0.0
    %3657 = vmatpush2.xpose.msra.mxu0 0.0
    %3658 = vmatprep.subr.mxu0 0.0
    %3659 = vmatpush2.xpose.msra.mxu0 0.0
    %3660 = vmatprep.subr.mxu0 0.0
    %3661 = vmatpush2.xpose.msra.mxu0 0.0
    %3662 = vmatprep.mubr.f32.mxu0 0.0
    %3663 = vmatmul.mubr.f32.gmra.mxu0 %v3594
    %v3664 = vpop.f32.mrf.mxu0
    %v3665 = vadd.f32 0.0, %v3664
    %v3666 = vpop.f32.mrf.mxu0
    %3667 = vdwg.mxu0
    %3668 = vrot.lane.b32.xlu0 %v3575, 96
    %v3669 = vpop.permute.xlu0 %3668
    %v3670 = vsel %vm173, %v3575, 0
    %v3672 = vsel %vm173, %v3669, 0
    %3674 = vmatprep.subr.mxu0 0.0
    %3675 = vmatpush1.xpose.msra.mxu0 0.0
    %3676 = vmatprep.subr.mxu0 0.0
    %3677 = vmatpush1.xpose.msra.mxu0 0.0
    %3678 = vmatprep.subr.mxu0 0.0
    %3679 = vmatpush1.xpose.msra.mxu0 0.0
    %3680 = vmatprep.subr.mxu0 0.0
    %3681 = vmatpush1.xpose.msra.mxu0 0.0
    %3682 = vmatprep.subr.mxu0 0.0
    %3683 = vmatpush1.xpose.msra.mxu0 0.0
    %3684 = vmatprep.subr.mxu0 0.0
    %3685 = vmatpush1.xpose.msra.mxu0 0.0
    %3686 = vmatprep.subr.mxu0 0.0
    %3687 = vmatpush1.xpose.msra.mxu0 0.0
    %3688 = vmatprep.subr.mxu0 0.0
    %3689 = vmatpush1.xpose.msra.mxu0 0.0
    %3690 = vmatprep.subr.mxu0 0.0
    %3691 = vmatpush1.xpose.msra.mxu0 0.0
    %3692 = vmatprep.subr.mxu0 0.0
    %3693 = vmatpush1.xpose.msra.mxu0 0.0
    %3694 = vmatprep.subr.mxu0 0.0
    %3695 = vmatpush1.xpose.msra.mxu0 0.0
    %3696 = vmatprep.subr.mxu0 0.0
    %3697 = vmatpush1.xpose.msra.mxu0 0.0
    %3698 = vmatprep.subr.mxu0 0.0
    %3699 = vmatpush1.xpose.msra.mxu0 0.0
    %3700 = vmatprep.subr.mxu0 0.0
    %3701 = vmatpush1.xpose.msra.mxu0 0.0
    %3702 = vmatprep.subr.mxu0 0.0
    %3703 = vmatpush1.xpose.msra.mxu0 0.0
    %3704 = vmatprep.subr.mxu0 0.0
    %3705 = vmatpush1.xpose.msra.mxu0 %v3672
    %3706 = vmatprep.subr.mxu0 0.0
    %3707 = vmatpush2.xpose.msra.mxu0 0.0
    %3708 = vmatprep.subr.mxu0 0.0
    %3709 = vmatpush2.xpose.msra.mxu0 0.0
    %3710 = vmatprep.subr.mxu0 0.0
    %3711 = vmatpush2.xpose.msra.mxu0 0.0
    %3712 = vmatprep.subr.mxu0 0.0
    %3713 = vmatpush2.xpose.msra.mxu0 0.0
    %3714 = vmatprep.subr.mxu0 0.0
    %3715 = vmatpush2.xpose.msra.mxu0 0.0
    %3716 = vmatprep.subr.mxu0 0.0
    %3717 = vmatpush2.xpose.msra.mxu0 0.0
    %3718 = vmatprep.subr.mxu0 0.0
    %3719 = vmatpush2.xpose.msra.mxu0 0.0
    %3720 = vmatprep.subr.mxu0 0.0
    %3721 = vmatpush2.xpose.msra.mxu0 0.0
    %3722 = vmatprep.subr.mxu0 0.0
    %3723 = vmatpush2.xpose.msra.mxu0 0.0
    %3724 = vmatprep.subr.mxu0 0.0
    %3725 = vmatpush2.xpose.msra.mxu0 0.0
    %3726 = vmatprep.subr.mxu0 0.0
    %3727 = vmatpush2.xpose.msra.mxu0 0.0
    %3728 = vmatprep.subr.mxu0 0.0
    %3729 = vmatpush2.xpose.msra.mxu0 0.0
    %3730 = vmatprep.subr.mxu0 0.0
    %3731 = vmatpush2.xpose.msra.mxu0 0.0
    %3732 = vmatprep.subr.mxu0 0.0
    %3733 = vmatpush2.xpose.msra.mxu0 0.0
    %3734 = vmatprep.subr.mxu0 0.0
    %3735 = vmatpush2.xpose.msra.mxu0 0.0
    %3736 = vmatprep.subr.mxu0 0.0
    %3737 = vmatpush2.xpose.msra.mxu0 0.0
    %3738 = vmatprep.mubr.f32.mxu0 0.0
    %3739 = vmatmul.mubr.f32.gmra.mxu0 %v3670
    %v3740 = vpop.f32.mrf.mxu0
    %v3741 = vadd.f32 0.0, %v3740
    %v3742 = vpop.f32.mrf.mxu0
    %3743 = vdwg.mxu0
    %3744 = vrot.lane.b32.xlu0 %v3581, 96
    %v3745 = vpop.permute.xlu0 %3744
    %v3746 = vsel %vm173, %v3581, 0
    %v3748 = vsel %vm173, %v3745, 0
    %3750 = vmatprep.subr.mxu0 0.0
    %3751 = vmatpush1.xpose.msra.mxu0 0.0
    %3752 = vmatprep.subr.mxu0 0.0
    %3753 = vmatpush1.xpose.msra.mxu0 0.0
    %3754 = vmatprep.subr.mxu0 0.0
    %3755 = vmatpush1.xpose.msra.mxu0 0.0
    %3756 = vmatprep.subr.mxu0 0.0
    %3757 = vmatpush1.xpose.msra.mxu0 0.0
    %3758 = vmatprep.subr.mxu0 0.0
    %3759 = vmatpush1.xpose.msra.mxu0 0.0
    %3760 = vmatprep.subr.mxu0 0.0
    %3761 = vmatpush1.xpose.msra.mxu0 0.0
    %3762 = vmatprep.subr.mxu0 0.0
    %3763 = vmatpush1.xpose.msra.mxu0 0.0
    %3764 = vmatprep.subr.mxu0 0.0
    %3765 = vmatpush1.xpose.msra.mxu0 0.0
    %3766 = vmatprep.subr.mxu0 0.0
    %3767 = vmatpush1.xpose.msra.mxu0 0.0
    %3768 = vmatprep.subr.mxu0 0.0
    %3769 = vmatpush1.xpose.msra.mxu0 0.0
    %3770 = vmatprep.subr.mxu0 0.0
    %3771 = vmatpush1.xpose.msra.mxu0 0.0
    %3772 = vmatprep.subr.mxu0 0.0
    %3773 = vmatpush1.xpose.msra.mxu0 0.0
    %3774 = vmatprep.subr.mxu0 0.0
    %3775 = vmatpush1.xpose.msra.mxu0 0.0
    %3776 = vmatprep.subr.mxu0 0.0
    %3777 = vmatpush1.xpose.msra.mxu0 0.0
    %3778 = vmatprep.subr.mxu0 0.0
    %3779 = vmatpush1.xpose.msra.mxu0 0.0
    %3780 = vmatprep.subr.mxu0 0.0
    %3781 = vmatpush1.xpose.msra.mxu0 %v3748
    %3782 = vmatprep.subr.mxu0 0.0
    %3783 = vmatpush2.xpose.msra.mxu0 0.0
    %3784 = vmatprep.subr.mxu0 0.0
    %3785 = vmatpush2.xpose.msra.mxu0 0.0
    %3786 = vmatprep.subr.mxu0 0.0
    %3787 = vmatpush2.xpose.msra.mxu0 0.0
    %3788 = vmatprep.subr.mxu0 0.0
    %3789 = vmatpush2.xpose.msra.mxu0 0.0
    %3790 = vmatprep.subr.mxu0 0.0
    %3791 = vmatpush2.xpose.msra.mxu0 0.0
    %3792 = vmatprep.subr.mxu0 0.0
    %3793 = vmatpush2.xpose.msra.mxu0 0.0
    %3794 = vmatprep.subr.mxu0 0.0
    %3795 = vmatpush2.xpose.msra.mxu0 0.0
    %3796 = vmatprep.subr.mxu0 0.0
    %3797 = vmatpush2.xpose.msra.mxu0 0.0
    %3798 = vmatprep.subr.mxu0 0.0
    %3799 = vmatpush2.xpose.msra.mxu0 0.0
    %3800 = vmatprep.subr.mxu0 0.0
    %3801 = vmatpush2.xpose.msra.mxu0 0.0
    %3802 = vmatprep.subr.mxu0 0.0
    %3803 = vmatpush2.xpose.msra.mxu0 0.0
    %3804 = vmatprep.subr.mxu0 0.0
    %3805 = vmatpush2.xpose.msra.mxu0 0.0
    %3806 = vmatprep.subr.mxu0 0.0
    %3807 = vmatpush2.xpose.msra.mxu0 0.0
    %3808 = vmatprep.subr.mxu0 0.0
    %3809 = vmatpush2.xpose.msra.mxu0 0.0
    %3810 = vmatprep.subr.mxu0 0.0
    %3811 = vmatpush2.xpose.msra.mxu0 0.0
    %3812 = vmatprep.subr.mxu0 0.0
    %3813 = vmatpush2.xpose.msra.mxu0 0.0
    %3814 = vmatprep.mubr.f32.mxu0 0.0
    %3815 = vmatmul.mubr.f32.gmra.mxu0 %v3746
    %v3816 = vpop.f32.mrf.mxu0
    %v3817 = vadd.f32 0.0, %v3816
    %v3818 = vpop.f32.mrf.mxu0
    %3819 = vdwg.mxu0
    %3820 = vrot.lane.b32.xlu0 %v3583, 96
    %v3821 = vpop.permute.xlu0 %3820
    %v3822 = vsel %vm173, %v3583, 0
    %v3824 = vsel %vm173, %v3821, 0
    %3826 = vmatprep.subr.mxu0 0.0
    %3827 = vmatpush1.xpose.msra.mxu0 0.0
    %3828 = vmatprep.subr.mxu0 0.0
    %3829 = vmatpush1.xpose.msra.mxu0 0.0
    %3830 = vmatprep.subr.mxu0 0.0
    %3831 = vmatpush1.xpose.msra.mxu0 0.0
    %3832 = vmatprep.subr.mxu0 0.0
    %3833 = vmatpush1.xpose.msra.mxu0 0.0
    %3834 = vmatprep.subr.mxu0 0.0
    %3835 = vmatpush1.xpose.msra.mxu0 0.0
    %3836 = vmatprep.subr.mxu0 0.0
    %3837 = vmatpush1.xpose.msra.mxu0 0.0
    %3838 = vmatprep.subr.mxu0 0.0
    %3839 = vmatpush1.xpose.msra.mxu0 0.0
    %3840 = vmatprep.subr.mxu0 0.0
    %3841 = vmatpush1.xpose.msra.mxu0 0.0
    %3842 = vmatprep.subr.mxu0 0.0
    %3843 = vmatpush1.xpose.msra.mxu0 0.0
    %3844 = vmatprep.subr.mxu0 0.0
    %3845 = vmatpush1.xpose.msra.mxu0 0.0
    %3846 = vmatprep.subr.mxu0 0.0
    %3847 = vmatpush1.xpose.msra.mxu0 0.0
    %3848 = vmatprep.subr.mxu0 0.0
    %3849 = vmatpush1.xpose.msra.mxu0 0.0
    %3850 = vmatprep.subr.mxu0 0.0
    %3851 = vmatpush1.xpose.msra.mxu0 0.0
    %3852 = vmatprep.subr.mxu0 0.0
    %3853 = vmatpush1.xpose.msra.mxu0 0.0
    %3854 = vmatprep.subr.mxu0 0.0
    %3855 = vmatpush1.xpose.msra.mxu0 0.0
    %3856 = vmatprep.subr.mxu0 0.0
    %3857 = vmatpush1.xpose.msra.mxu0 %v3824
    %3858 = vmatprep.subr.mxu0 0.0
    %3859 = vmatpush2.xpose.msra.mxu0 0.0
    %3860 = vmatprep.subr.mxu0 0.0
    %3861 = vmatpush2.xpose.msra.mxu0 0.0
    %3862 = vmatprep.subr.mxu0 0.0
    %3863 = vmatpush2.xpose.msra.mxu0 0.0
    %3864 = vmatprep.subr.mxu0 0.0
    %3865 = vmatpush2.xpose.msra.mxu0 0.0
    %3866 = vmatprep.subr.mxu0 0.0
    %3867 = vmatpush2.xpose.msra.mxu0 0.0
    %3868 = vmatprep.subr.mxu0 0.0
    %3869 = vmatpush2.xpose.msra.mxu0 0.0
    %3870 = vmatprep.subr.mxu0 0.0
    %3871 = vmatpush2.xpose.msra.mxu0 0.0
    %3872 = vmatprep.subr.mxu0 0.0
    %3873 = vmatpush2.xpose.msra.mxu0 0.0
    %3874 = vmatprep.subr.mxu0 0.0
    %3875 = vmatpush2.xpose.msra.mxu0 0.0
    %3876 = vmatprep.subr.mxu0 0.0
    %3877 = vmatpush2.xpose.msra.mxu0 0.0
    %3878 = vmatprep.subr.mxu0 0.0
    %3879 = vmatpush2.xpose.msra.mxu0 0.0
    %3880 = vmatprep.subr.mxu0 0.0
    %3881 = vmatpush2.xpose.msra.mxu0 0.0
    %3882 = vmatprep.subr.mxu0 0.0
    %3883 = vmatpush2.xpose.msra.mxu0 0.0
    %3884 = vmatprep.subr.mxu0 0.0
    %3885 = vmatpush2.xpose.msra.mxu0 0.0
    %3886 = vmatprep.subr.mxu0 0.0
    %3887 = vmatpush2.xpose.msra.mxu0 0.0
    %3888 = vmatprep.subr.mxu0 0.0
    %3889 = vmatpush2.xpose.msra.mxu0 0.0
    %3890 = vmatprep.mubr.f32.mxu0 0.0
    %3891 = vmatmul.mubr.f32.gmra.mxu0 %v3822
    %v3892 = vpop.f32.mrf.mxu0
    %v3893 = vadd.f32 0.0, %v3892
    %v3894 = vpop.f32.mrf.mxu0
    %3895 = vdwg.mxu0
    %3896 = vrot.lane.b32.xlu0 %v3585, 96
    %v3897 = vpop.permute.xlu0 %3896
    %v3898 = vsel %vm173, %v3585, 0
    %v3900 = vsel %vm173, %v3897, 0
    %3902 = vmatprep.subr.mxu0 0.0
    %3903 = vmatpush1.xpose.msra.mxu0 0.0
    %3904 = vmatprep.subr.mxu0 0.0
    %3905 = vmatpush1.xpose.msra.mxu0 0.0
    %3906 = vmatprep.subr.mxu0 0.0
    %3907 = vmatpush1.xpose.msra.mxu0 0.0
    %3908 = vmatprep.subr.mxu0 0.0
    %3909 = vmatpush1.xpose.msra.mxu0 0.0
    %3910 = vmatprep.subr.mxu0 0.0
    %3911 = vmatpush1.xpose.msra.mxu0 0.0
    %3912 = vmatprep.subr.mxu0 0.0
    %3913 = vmatpush1.xpose.msra.mxu0 0.0
    %3914 = vmatprep.subr.mxu0 0.0
    %3915 = vmatpush1.xpose.msra.mxu0 0.0
    %3916 = vmatprep.subr.mxu0 0.0
    %3917 = vmatpush1.xpose.msra.mxu0 0.0
    %3918 = vmatprep.subr.mxu0 0.0
    %3919 = vmatpush1.xpose.msra.mxu0 0.0
    %3920 = vmatprep.subr.mxu0 0.0
    %3921 = vmatpush1.xpose.msra.mxu0 0.0
    %3922 = vmatprep.subr.mxu0 0.0
    %3923 = vmatpush1.xpose.msra.mxu0 0.0
    %3924 = vmatprep.subr.mxu0 0.0
    %3925 = vmatpush1.xpose.msra.mxu0 0.0
    %3926 = vmatprep.subr.mxu0 0.0
    %3927 = vmatpush1.xpose.msra.mxu0 0.0
    %3928 = vmatprep.subr.mxu0 0.0
    %3929 = vmatpush1.xpose.msra.mxu0 0.0
    %3930 = vmatprep.subr.mxu0 0.0
    %3931 = vmatpush1.xpose.msra.mxu0 0.0
    %3932 = vmatprep.subr.mxu0 0.0
    %3933 = vmatpush1.xpose.msra.mxu0 %v3900
    %3934 = vmatprep.subr.mxu0 0.0
    %3935 = vmatpush2.xpose.msra.mxu0 0.0
    %3936 = vmatprep.subr.mxu0 0.0
    %3937 = vmatpush2.xpose.msra.mxu0 0.0
    %3938 = vmatprep.subr.mxu0 0.0
    %3939 = vmatpush2.xpose.msra.mxu0 0.0
    %3940 = vmatprep.subr.mxu0 0.0
    %3941 = vmatpush2.xpose.msra.mxu0 0.0
    %3942 = vmatprep.subr.mxu0 0.0
    %3943 = vmatpush2.xpose.msra.mxu0 0.0
    %3944 = vmatprep.subr.mxu0 0.0
    %3945 = vmatpush2.xpose.msra.mxu0 0.0
    %3946 = vmatprep.subr.mxu0 0.0
    %3947 = vmatpush2.xpose.msra.mxu0 0.0
    %3948 = vmatprep.subr.mxu0 0.0
    %3949 = vmatpush2.xpose.msra.mxu0 0.0
    %3950 = vmatprep.subr.mxu0 0.0
    %3951 = vmatpush2.xpose.msra.mxu0 0.0
    %3952 = vmatprep.subr.mxu0 0.0
    %3953 = vmatpush2.xpose.msra.mxu0 0.0
    %3954 = vmatprep.subr.mxu0 0.0
    %3955 = vmatpush2.xpose.msra.mxu0 0.0
    %3956 = vmatprep.subr.mxu0 0.0
    %3957 = vmatpush2.xpose.msra.mxu0 0.0
    %3958 = vmatprep.subr.mxu0 0.0
    %3959 = vmatpush2.xpose.msra.mxu0 0.0
    %3960 = vmatprep.subr.mxu0 0.0
    %3961 = vmatpush2.xpose.msra.mxu0 0.0
    %3962 = vmatprep.subr.mxu0 0.0
    %3963 = vmatpush2.xpose.msra.mxu0 0.0
    %3964 = vmatprep.subr.mxu0 0.0
    %3965 = vmatpush2.xpose.msra.mxu0 0.0
    %3966 = vmatprep.mubr.f32.mxu0 0.0
    %3967 = vmatmul.mubr.f32.gmra.mxu0 %v3898
    %v3968 = vpop.f32.mrf.mxu0
    %v3969 = vadd.f32 0.0, %v3968
    %v3970 = vpop.f32.mrf.mxu0
    %3971 = vdwg.mxu0
    %3972 = vrot.lane.b32.xlu0 %v3587, 96
    %v3973 = vpop.permute.xlu0 %3972
    %v3974 = vsel %vm173, %v3587, 0
    %v3976 = vsel %vm173, %v3973, 0
    %3978 = vmatprep.subr.mxu0 0.0
    %3979 = vmatpush1.xpose.msra.mxu0 0.0
    %3980 = vmatprep.subr.mxu0 0.0
    %3981 = vmatpush1.xpose.msra.mxu0 0.0
    %3982 = vmatprep.subr.mxu0 0.0
    %3983 = vmatpush1.xpose.msra.mxu0 0.0
    %3984 = vmatprep.subr.mxu0 0.0
    %3985 = vmatpush1.xpose.msra.mxu0 0.0
    %3986 = vmatprep.subr.mxu0 0.0
    %3987 = vmatpush1.xpose.msra.mxu0 0.0
    %3988 = vmatprep.subr.mxu0 0.0
    %3989 = vmatpush1.xpose.msra.mxu0 0.0
    %3990 = vmatprep.subr.mxu0 0.0
    %3991 = vmatpush1.xpose.msra.mxu0 0.0
    %3992 = vmatprep.subr.mxu0 0.0
    %3993 = vmatpush1.xpose.msra.mxu0 0.0
    %3994 = vmatprep.subr.mxu0 0.0
    %3995 = vmatpush1.xpose.msra.mxu0 0.0
    %3996 = vmatprep.subr.mxu0 0.0
    %3997 = vmatpush1.xpose.msra.mxu0 0.0
    %3998 = vmatprep.subr.mxu0 0.0
    %3999 = vmatpush1.xpose.msra.mxu0 0.0
    %4000 = vmatprep.subr.mxu0 0.0
    %4001 = vmatpush1.xpose.msra.mxu0 0.0
    %4002 = vmatprep.subr.mxu0 0.0
    %4003 = vmatpush1.xpose.msra.mxu0 0.0
    %4004 = vmatprep.subr.mxu0 0.0
    %4005 = vmatpush1.xpose.msra.mxu0 0.0
    %4006 = vmatprep.subr.mxu0 0.0
    %4007 = vmatpush1.xpose.msra.mxu0 0.0
    %4008 = vmatprep.subr.mxu0 0.0
    %4009 = vmatpush1.xpose.msra.mxu0 %v3976
    %4010 = vmatprep.subr.mxu0 0.0
    %4011 = vmatpush2.xpose.msra.mxu0 0.0
    %4012 = vmatprep.subr.mxu0 0.0
    %4013 = vmatpush2.xpose.msra.mxu0 0.0
    %4014 = vmatprep.subr.mxu0 0.0
    %4015 = vmatpush2.xpose.msra.mxu0 0.0
    %4016 = vmatprep.subr.mxu0 0.0
    %4017 = vmatpush2.xpose.msra.mxu0 0.0
    %4018 = vmatprep.subr.mxu0 0.0
    %4019 = vmatpush2.xpose.msra.mxu0 0.0
    %4020 = vmatprep.subr.mxu0 0.0
    %4021 = vmatpush2.xpose.msra.mxu0 0.0
    %4022 = vmatprep.subr.mxu0 0.0
    %4023 = vmatpush2.xpose.msra.mxu0 0.0
    %4024 = vmatprep.subr.mxu0 0.0
    %4025 = vmatpush2.xpose.msra.mxu0 0.0
    %4026 = vmatprep.subr.mxu0 0.0
    %4027 = vmatpush2.xpose.msra.mxu0 0.0
    %4028 = vmatprep.subr.mxu0 0.0
    %4029 = vmatpush2.xpose.msra.mxu0 0.0
    %4030 = vmatprep.subr.mxu0 0.0
    %4031 = vmatpush2.xpose.msra.mxu0 0.0
    %4032 = vmatprep.subr.mxu0 0.0
    %4033 = vmatpush2.xpose.msra.mxu0 0.0
    %4034 = vmatprep.subr.mxu0 0.0
    %4035 = vmatpush2.xpose.msra.mxu0 0.0
    %4036 = vmatprep.subr.mxu0 0.0
    %4037 = vmatpush2.xpose.msra.mxu0 0.0
    %4038 = vmatprep.subr.mxu0 0.0
    %4039 = vmatpush2.xpose.msra.mxu0 0.0
    %4040 = vmatprep.subr.mxu0 0.0
    %4041 = vmatpush2.xpose.msra.mxu0 0.0
    %4042 = vmatprep.mubr.f32.mxu0 0.0
    %4043 = vmatmul.mubr.f32.gmra.mxu0 %v3974
    %v4044 = vpop.f32.mrf.mxu0
    %v4045 = vadd.f32 0.0, %v4044
    %v4046 = vpop.f32.mrf.mxu0
    %4047 = vdwg.mxu0
    %4048 = vrot.lane.b32.xlu0 %v3589, 96
    %v4049 = vpop.permute.xlu0 %4048
    %v4050 = vsel %vm173, %v3589, 0
    %v4052 = vsel %vm173, %v4049, 0
    %4054 = vmatprep.subr.mxu0 0.0
    %4055 = vmatpush1.xpose.msra.mxu0 0.0
    %4056 = vmatprep.subr.mxu0 0.0
    %4057 = vmatpush1.xpose.msra.mxu0 0.0
    %4058 = vmatprep.subr.mxu0 0.0
    %4059 = vmatpush1.xpose.msra.mxu0 0.0
    %4060 = vmatprep.subr.mxu0 0.0
    %4061 = vmatpush1.xpose.msra.mxu0 0.0
    %4062 = vmatprep.subr.mxu0 0.0
    %4063 = vmatpush1.xpose.msra.mxu0 0.0
    %4064 = vmatprep.subr.mxu0 0.0
    %4065 = vmatpush1.xpose.msra.mxu0 0.0
    %4066 = vmatprep.subr.mxu0 0.0
    %4067 = vmatpush1.xpose.msra.mxu0 0.0
    %4068 = vmatprep.subr.mxu0 0.0
    %4069 = vmatpush1.xpose.msra.mxu0 0.0
    %4070 = vmatprep.subr.mxu0 0.0
    %4071 = vmatpush1.xpose.msra.mxu0 0.0
    %4072 = vmatprep.subr.mxu0 0.0
    %4073 = vmatpush1.xpose.msra.mxu0 0.0
    %4074 = vmatprep.subr.mxu0 0.0
    %4075 = vmatpush1.xpose.msra.mxu0 0.0
    %4076 = vmatprep.subr.mxu0 0.0
    %4077 = vmatpush1.xpose.msra.mxu0 0.0
    %4078 = vmatprep.subr.mxu0 0.0
    %4079 = vmatpush1.xpose.msra.mxu0 0.0
    %4080 = vmatprep.subr.mxu0 0.0
    %4081 = vmatpush1.xpose.msra.mxu0 0.0
    %4082 = vmatprep.subr.mxu0 0.0
    %4083 = vmatpush1.xpose.msra.mxu0 0.0
    %4084 = vmatprep.subr.mxu0 0.0
    %4085 = vmatpush1.xpose.msra.mxu0 %v4052
    %4086 = vmatprep.subr.mxu0 0.0
    %4087 = vmatpush2.xpose.msra.mxu0 0.0
    %4088 = vmatprep.subr.mxu0 0.0
    %4089 = vmatpush2.xpose.msra.mxu0 0.0
    %4090 = vmatprep.subr.mxu0 0.0
    %4091 = vmatpush2.xpose.msra.mxu0 0.0
    %4092 = vmatprep.subr.mxu0 0.0
    %4093 = vmatpush2.xpose.msra.mxu0 0.0
    %4094 = vmatprep.subr.mxu0 0.0
    %4095 = vmatpush2.xpose.msra.mxu0 0.0
    %4096 = vmatprep.subr.mxu0 0.0
    %4097 = vmatpush2.xpose.msra.mxu0 0.0
    %4098 = vmatprep.subr.mxu0 0.0
    %4099 = vmatpush2.xpose.msra.mxu0 0.0
    %4100 = vmatprep.subr.mxu0 0.0
    %4101 = vmatpush2.xpose.msra.mxu0 0.0
    %4102 = vmatprep.subr.mxu0 0.0
    %4103 = vmatpush2.xpose.msra.mxu0 0.0
    %4104 = vmatprep.subr.mxu0 0.0
    %4105 = vmatpush2.xpose.msra.mxu0 0.0
    %4106 = vmatprep.subr.mxu0 0.0
    %4107 = vmatpush2.xpose.msra.mxu0 0.0
    %4108 = vmatprep.subr.mxu0 0.0
    %4109 = vmatpush2.xpose.msra.mxu0 0.0
    %4110 = vmatprep.subr.mxu0 0.0
    %4111 = vmatpush2.xpose.msra.mxu0 0.0
    %4112 = vmatprep.subr.mxu0 0.0
    %4113 = vmatpush2.xpose.msra.mxu0 0.0
    %4114 = vmatprep.subr.mxu0 0.0
    %4115 = vmatpush2.xpose.msra.mxu0 0.0
    %4116 = vmatprep.subr.mxu0 0.0
    %4117 = vmatpush2.xpose.msra.mxu0 0.0
    %4118 = vmatprep.mubr.f32.mxu0 0.0
    %4119 = vmatmul.mubr.f32.gmra.mxu0 %v4050
    %v4120 = vpop.f32.mrf.mxu0
    %v4121 = vadd.f32 0.0, %v4120
    %v4122 = vpop.f32.mrf.mxu0
    %4123 = vdwg.mxu0
    %4124 = vrot.lane.b32.xlu0 %v3591, 96
    %v4125 = vpop.permute.xlu0 %4124
    %v4126 = vsel %vm173, %v3591, 0
    %v4128 = vsel %vm173, %v4125, 0
    %4130 = vmatprep.subr.mxu0 0.0
    %4131 = vmatpush1.xpose.msra.mxu0 0.0
    %4132 = vmatprep.subr.mxu0 0.0
    %4133 = vmatpush1.xpose.msra.mxu0 0.0
    %4134 = vmatprep.subr.mxu0 0.0
    %4135 = vmatpush1.xpose.msra.mxu0 0.0
    %4136 = vmatprep.subr.mxu0 0.0
    %4137 = vmatpush1.xpose.msra.mxu0 0.0
    %4138 = vmatprep.subr.mxu0 0.0
    %4139 = vmatpush1.xpose.msra.mxu0 0.0
    %4140 = vmatprep.subr.mxu0 0.0
    %4141 = vmatpush1.xpose.msra.mxu0 0.0
    %4142 = vmatprep.subr.mxu0 0.0
    %4143 = vmatpush1.xpose.msra.mxu0 0.0
    %4144 = vmatprep.subr.mxu0 0.0
    %4145 = vmatpush1.xpose.msra.mxu0 0.0
    %4146 = vmatprep.subr.mxu0 0.0
    %4147 = vmatpush1.xpose.msra.mxu0 0.0
    %4148 = vmatprep.subr.mxu0 0.0
    %4149 = vmatpush1.xpose.msra.mxu0 0.0
    %4150 = vmatprep.subr.mxu0 0.0
    %4151 = vmatpush1.xpose.msra.mxu0 0.0
    %4152 = vmatprep.subr.mxu0 0.0
    %4153 = vmatpush1.xpose.msra.mxu0 0.0
    %4154 = vmatprep.subr.mxu0 0.0
    %4155 = vmatpush1.xpose.msra.mxu0 0.0
    %4156 = vmatprep.subr.mxu0 0.0
    %4157 = vmatpush1.xpose.msra.mxu0 0.0
    %4158 = vmatprep.subr.mxu0 0.0
    %4159 = vmatpush1.xpose.msra.mxu0 0.0
    %4160 = vmatprep.subr.mxu0 0.0
    %4161 = vmatpush1.xpose.msra.mxu0 %v4128
    %4162 = vmatprep.subr.mxu0 0.0
    %4163 = vmatpush2.xpose.msra.mxu0 0.0
    %4164 = vmatprep.subr.mxu0 0.0
    %4165 = vmatpush2.xpose.msra.mxu0 0.0
    %4166 = vmatprep.subr.mxu0 0.0
    %4167 = vmatpush2.xpose.msra.mxu0 0.0
    %4168 = vmatprep.subr.mxu0 0.0
    %4169 = vmatpush2.xpose.msra.mxu0 0.0
    %4170 = vmatprep.subr.mxu0 0.0
    %4171 = vmatpush2.xpose.msra.mxu0 0.0
    %4172 = vmatprep.subr.mxu0 0.0
    %4173 = vmatpush2.xpose.msra.mxu0 0.0
    %4174 = vmatprep.subr.mxu0 0.0
    %4175 = vmatpush2.xpose.msra.mxu0 0.0
    %4176 = vmatprep.subr.mxu0 0.0
    %4177 = vmatpush2.xpose.msra.mxu0 0.0
    %4178 = vmatprep.subr.mxu0 0.0
    %4179 = vmatpush2.xpose.msra.mxu0 0.0
    %4180 = vmatprep.subr.mxu0 0.0
    %4181 = vmatpush2.xpose.msra.mxu0 0.0
    %4182 = vmatprep.subr.mxu0 0.0
    %4183 = vmatpush2.xpose.msra.mxu0 0.0
    %4184 = vmatprep.subr.mxu0 0.0
    %4185 = vmatpush2.xpose.msra.mxu0 0.0
    %4186 = vmatprep.subr.mxu0 0.0
    %4187 = vmatpush2.xpose.msra.mxu0 0.0
    %4188 = vmatprep.subr.mxu0 0.0
    %4189 = vmatpush2.xpose.msra.mxu0 0.0
    %4190 = vmatprep.subr.mxu0 0.0
    %4191 = vmatpush2.xpose.msra.mxu0 0.0
    %4192 = vmatprep.subr.mxu0 0.0
    %4193 = vmatpush2.xpose.msra.mxu0 0.0
    %4194 = vmatprep.mubr.f32.mxu0 0.0
    %4195 = vmatmul.mubr.f32.gmra.mxu0 %v4126
    %v4196 = vpop.f32.mrf.mxu0
    %v4197 = vadd.f32 0.0, %v4196
    %v4198 = vpop.f32.mrf.mxu0
    %4199 = vdwg.mxu0
    %v4200 = vmul.f32 %v3665, 0.35355338
    %v4201 = vmul.f32 %v3741, 0.35355338
    %v4202 = vmul.f32 %v3817, 0.35355338
    %v4203 = vmul.f32 %v3893, 0.35355338
    %v4204 = vmul.f32 %v3969, 0.35355338
    %v4205 = vmul.f32 %v4045, 0.35355338
    %v4206 = vmul.f32 %v4121, 0.35355338
    %v4207 = vmul.f32 %v4197, 0.35355338
    %v4208 = vsel %vm173, %v4200, -inf
    %4209 = vmax.xlane.f32.xlu0 %v4208
    %v4210 = vpop.xlane.xlu0 %4209
    %v4211 = vsel %vm173, %v4201, -inf
    %4212 = vmax.xlane.f32.xlu0 %v4211
    %v4213 = vpop.xlane.xlu0 %4212
    %v4214 = vsel %vm173, %v4202, -inf
    %4215 = vmax.xlane.f32.xlu0 %v4214
    %v4216 = vpop.xlane.xlu0 %4215
    %v4217 = vsel %vm173, %v4203, -inf
    %4218 = vmax.xlane.f32.xlu0 %v4217
    %v4219 = vpop.xlane.xlu0 %4218
    %v4220 = vsel %vm173, %v4204, -inf
    %4221 = vmax.xlane.f32.xlu0 %v4220
    %v4222 = vpop.xlane.xlu0 %4221
    %v4223 = vsel %vm173, %v4205, -inf
    %4224 = vmax.xlane.f32.xlu0 %v4223
    %v4225 = vpop.xlane.xlu0 %4224
    %v4226 = vsel %vm173, %v4206, -inf
    %4227 = vmax.xlane.f32.xlu0 %v4226
    %v4228 = vpop.xlane.xlu0 %4227
    %v4229 = vsel %vm173, %v4207, -inf
    %4230 = vmax.xlane.f32.xlu0 %v4229
    %v4231 = vpop.xlane.xlu0 %4230
    %v4232 = vsub.f32 %v4200, %v4210
    %v4233 = vsub.f32 %v4201, %v4213
    %v4234 = vsub.f32 %v4202, %v4216
    %v4235 = vsub.f32 %v4203, %v4219
    %v4236 = vsub.f32 %v4204, %v4222
    %v4237 = vsub.f32 %v4205, %v4225
    %v4238 = vsub.f32 %v4206, %v4228
    %v4239 = vsub.f32 %v4207, %v4231
    %v4240 = vmul.f32 %v4232, 1.442695
    %v4241 = vpow.pop %v4240
    %v4242 = vmul.f32 %v4233, 1.442695
    %v4243 = vpow.pop %v4242
    %v4244 = vmul.f32 %v4234, 1.442695
    %v4245 = vpow.pop %v4244
    %v4246 = vmul.f32 %v4235, 1.442695
    %v4247 = vpow.pop %v4246
    %v4248 = vmul.f32 %v4236, 1.442695
    %v4249 = vpow.pop %v4248
    %v4250 = vmul.f32 %v4237, 1.442695
    %v4251 = vpow.pop %v4250
    %v4252 = vmul.f32 %v4238, 1.442695
    %v4253 = vpow.pop %v4252
    %v4254 = vmul.f32 %v4239, 1.442695
    %v4255 = vpow.pop %v4254
    %v4256 = vsel %vm173, %v4241, 0.0
    %4257 = vadd.xlane.f32.xlu0 %v4256
    %v4258 = vpop.xlane.xlu0 %4257
    %v4259 = vsel %vm173, %v4243, 0.0
    %4260 = vadd.xlane.f32.xlu0 %v4259
    %v4261 = vpop.xlane.xlu0 %4260
    %v4262 = vsel %vm173, %v4245, 0.0
    %4263 = vadd.xlane.f32.xlu0 %v4262
    %v4264 = vpop.xlane.xlu0 %4263
    %v4265 = vsel %vm173, %v4247, 0.0
    %4266 = vadd.xlane.f32.xlu0 %v4265
    %v4267 = vpop.xlane.xlu0 %4266
    %v4268 = vsel %vm173, %v4249, 0.0
    %4269 = vadd.xlane.f32.xlu0 %v4268
    %v4270 = vpop.xlane.xlu0 %4269
    %v4271 = vsel %vm173, %v4251, 0.0
    %4272 = vadd.xlane.f32.xlu0 %v4271
    %v4273 = vpop.xlane.xlu0 %4272
    %v4274 = vsel %vm173, %v4253, 0.0
    %4275 = vadd.xlane.f32.xlu0 %v4274
    %v4276 = vpop.xlane.xlu0 %4275
    %v4277 = vsel %vm173, %v4255, 0.0
    %4278 = vadd.xlane.f32.xlu0 %v4277
    %v4279 = vpop.xlane.xlu0 %4278
    %v4280 = vrcp.pop %v4258
    %v4281 = vmul.f32 %v4241, %v4280
    %v4282 = vrcp.pop %v4261
    %v4283 = vmul.f32 %v4243, %v4282
    %v4284 = vrcp.pop %v4264
    %v4285 = vmul.f32 %v4245, %v4284
    %v4286 = vrcp.pop %v4267
    %v4287 = vmul.f32 %v4247, %v4286
    %v4288 = vrcp.pop %v4270
    %v4289 = vmul.f32 %v4249, %v4288
    %v4290 = vrcp.pop %v4273
    %v4291 = vmul.f32 %v4251, %v4290
    %v4292 = vrcp.pop %v4276
    %v4293 = vmul.f32 %v4253, %v4292
    %v4294 = vrcp.pop %v4279
    %v4295 = vmul.f32 %v4255, %v4294
    %4296 = vrot.lane.b32.xlu0 %v3570, 64
    %v4297 = vpop.permute.xlu0 %4296
    %v4300 = vsel %vm173, %v4281, 0
    %4302 = vmatprep.subr.mxu0 0.0
    %4303 = vmatpush1.msra.mxu0 0.0
    %4304 = vmatprep.subr.mxu0 0.0
    %4305 = vmatpush1.msra.mxu0 0.0
    %4306 = vmatprep.subr.mxu0 0.0
    %4307 = vmatpush1.msra.mxu0 0.0
    %4308 = vmatprep.subr.mxu0 0.0
    %4309 = vmatpush1.msra.mxu0 0.0
    %4310 = vmatprep.subr.mxu0 0.0
    %4311 = vmatpush1.msra.mxu0 0.0
    %4312 = vmatprep.subr.mxu0 0.0
    %4313 = vmatpush1.msra.mxu0 0.0
    %4314 = vmatprep.subr.mxu0 0.0
    %4315 = vmatpush1.msra.mxu0 0.0
    %4316 = vmatprep.subr.mxu0 0.0
    %4317 = vmatpush1.msra.mxu0 0.0
    %4318 = vmatprep.subr.mxu0 0.0
    %4319 = vmatpush1.msra.mxu0 0.0
    %4320 = vmatprep.subr.mxu0 0.0
    %4321 = vmatpush1.msra.mxu0 0.0
    %4322 = vmatprep.subr.mxu0 0.0
    %4323 = vmatpush1.msra.mxu0 0.0
    %4324 = vmatprep.subr.mxu0 0.0
    %4325 = vmatpush1.msra.mxu0 0.0
    %4326 = vmatprep.subr.mxu0 0.0
    %4327 = vmatpush1.msra.mxu0 0.0
    %4328 = vmatprep.subr.mxu0 0.0
    %4329 = vmatpush1.msra.mxu0 0.0
    %4330 = vmatprep.subr.mxu0 0.0
    %4331 = vmatpush1.msra.mxu0 0.0
    %4332 = vmatprep.subr.mxu0 0.0
    %4333 = vmatpush1.msra.mxu0 %v4297
    %4334 = vmatprep.subr.mxu0 0.0
    %4335 = vmatpush2.msra.mxu0 0.0
    %4336 = vmatprep.subr.mxu0 0.0
    %4337 = vmatpush2.msra.mxu0 0.0
    %4338 = vmatprep.subr.mxu0 0.0
    %4339 = vmatpush2.msra.mxu0 0.0
    %4340 = vmatprep.subr.mxu0 0.0
    %4341 = vmatpush2.msra.mxu0 0.0
    %4342 = vmatprep.subr.mxu0 0.0
    %4343 = vmatpush2.msra.mxu0 0.0
    %4344 = vmatprep.subr.mxu0 0.0
    %4345 = vmatpush2.msra.mxu0 0.0
    %4346 = vmatprep.subr.mxu0 0.0
    %4347 = vmatpush2.msra.mxu0 0.0
    %4348 = vmatprep.subr.mxu0 0.0
    %4349 = vmatpush2.msra.mxu0 0.0
    %4350 = vmatprep.subr.mxu0 0.0
    %4351 = vmatpush2.msra.mxu0 0.0
    %4352 = vmatprep.subr.mxu0 0.0
    %4353 = vmatpush2.msra.mxu0 0.0
    %4354 = vmatprep.subr.mxu0 0.0
    %4355 = vmatpush2.msra.mxu0 0.0
    %4356 = vmatprep.subr.mxu0 0.0
    %4357 = vmatpush2.msra.mxu0 0.0
    %4358 = vmatprep.subr.mxu0 0.0
    %4359 = vmatpush2.msra.mxu0 0.0
    %4360 = vmatprep.subr.mxu0 0.0
    %4361 = vmatpush2.msra.mxu0 0.0
    %4362 = vmatprep.subr.mxu0 0.0
    %4363 = vmatpush2.msra.mxu0 0.0
    %4364 = vmatprep.subr.mxu0 0.0
    %4365 = vmatpush2.msra.mxu0 0.0
    %4366 = vmatprep.mubr.f32.mxu0 0.0
    %4367 = vmatmul.mubr.f32.gmra.mxu0 %v4300
    %v4368 = vpop.f32.mrf.mxu0
    %v4369 = vadd.f32 0.0, %v4368
    %v4370 = vpop.f32.mrf.mxu0
    %4371 = vdwg.mxu0
    %4372 = vrot.lane.b32.xlu0 %v3575, 64
    %v4373 = vpop.permute.xlu0 %4372
    %v4376 = vsel %vm173, %v4283, 0
    %4378 = vmatprep.subr.mxu0 0.0
    %4379 = vmatpush1.msra.mxu0 0.0
    %4380 = vmatprep.subr.mxu0 0.0
    %4381 = vmatpush1.msra.mxu0 0.0
    %4382 = vmatprep.subr.mxu0 0.0
    %4383 = vmatpush1.msra.mxu0 0.0
    %4384 = vmatprep.subr.mxu0 0.0
    %4385 = vmatpush1.msra.mxu0 0.0
    %4386 = vmatprep.subr.mxu0 0.0
    %4387 = vmatpush1.msra.mxu0 0.0
    %4388 = vmatprep.subr.mxu0 0.0
    %4389 = vmatpush1.msra.mxu0 0.0
    %4390 = vmatprep.subr.mxu0 0.0
    %4391 = vmatpush1.msra.mxu0 0.0
    %4392 = vmatprep.subr.mxu0 0.0
    %4393 = vmatpush1.msra.mxu0 0.0
    %4394 = vmatprep.subr.mxu0 0.0
    %4395 = vmatpush1.msra.mxu0 0.0
    %4396 = vmatprep.subr.mxu0 0.0
    %4397 = vmatpush1.msra.mxu0 0.0
    %4398 = vmatprep.subr.mxu0 0.0
    %4399 = vmatpush1.msra.mxu0 0.0
    %4400 = vmatprep.subr.mxu0 0.0
    %4401 = vmatpush1.msra.mxu0 0.0
    %4402 = vmatprep.subr.mxu0 0.0
    %4403 = vmatpush1.msra.mxu0 0.0
    %4404 = vmatprep.subr.mxu0 0.0
    %4405 = vmatpush1.msra.mxu0 0.0
    %4406 = vmatprep.subr.mxu0 0.0
    %4407 = vmatpush1.msra.mxu0 0.0
    %4408 = vmatprep.subr.mxu0 0.0
    %4409 = vmatpush1.msra.mxu0 %v4373
    %4410 = vmatprep.subr.mxu0 0.0
    %4411 = vmatpush2.msra.mxu0 0.0
    %4412 = vmatprep.subr.mxu0 0.0
    %4413 = vmatpush2.msra.mxu0 0.0
    %4414 = vmatprep.subr.mxu0 0.0
    %4415 = vmatpush2.msra.mxu0 0.0
    %4416 = vmatprep.subr.mxu0 0.0
    %4417 = vmatpush2.msra.mxu0 0.0
    %4418 = vmatprep.subr.mxu0 0.0
    %4419 = vmatpush2.msra.mxu0 0.0
    %4420 = vmatprep.subr.mxu0 0.0
    %4421 = vmatpush2.msra.mxu0 0.0
    %4422 = vmatprep.subr.mxu0 0.0
    %4423 = vmatpush2.msra.mxu0 0.0
    %4424 = vmatprep.subr.mxu0 0.0
    %4425 = vmatpush2.msra.mxu0 0.0
    %4426 = vmatprep.subr.mxu0 0.0
    %4427 = vmatpush2.msra.mxu0 0.0
    %4428 = vmatprep.subr.mxu0 0.0
    %4429 = vmatpush2.msra.mxu0 0.0
    %4430 = vmatprep.subr.mxu0 0.0
    %4431 = vmatpush2.msra.mxu0 0.0
    %4432 = vmatprep.subr.mxu0 0.0
    %4433 = vmatpush2.msra.mxu0 0.0
    %4434 = vmatprep.subr.mxu0 0.0
    %4435 = vmatpush2.msra.mxu0 0.0
    %4436 = vmatprep.subr.mxu0 0.0
    %4437 = vmatpush2.msra.mxu0 0.0
    %4438 = vmatprep.subr.mxu0 0.0
    %4439 = vmatpush2.msra.mxu0 0.0
    %4440 = vmatprep.subr.mxu0 0.0
    %4441 = vmatpush2.msra.mxu0 0.0
    %4442 = vmatprep.mubr.f32.mxu0 0.0
    %4443 = vmatmul.mubr.f32.gmra.mxu0 %v4376
    %v4444 = vpop.f32.mrf.mxu0
    %v4445 = vadd.f32 0.0, %v4444
    %v4446 = vpop.f32.mrf.mxu0
    %4447 = vdwg.mxu0
    %4448 = vrot.lane.b32.xlu0 %v3581, 64
    %v4449 = vpop.permute.xlu0 %4448
    %v4452 = vsel %vm173, %v4285, 0
    %4454 = vmatprep.subr.mxu0 0.0
    %4455 = vmatpush1.msra.mxu0 0.0
    %4456 = vmatprep.subr.mxu0 0.0
    %4457 = vmatpush1.msra.mxu0 0.0
    %4458 = vmatprep.subr.mxu0 0.0
    %4459 = vmatpush1.msra.mxu0 0.0
    %4460 = vmatprep.subr.mxu0 0.0
    %4461 = vmatpush1.msra.mxu0 0.0
    %4462 = vmatprep.subr.mxu0 0.0
    %4463 = vmatpush1.msra.mxu0 0.0
    %4464 = vmatprep.subr.mxu0 0.0
    %4465 = vmatpush1.msra.mxu0 0.0
    %4466 = vmatprep.subr.mxu0 0.0
    %4467 = vmatpush1.msra.mxu0 0.0
    %4468 = vmatprep.subr.mxu0 0.0
    %4469 = vmatpush1.msra.mxu0 0.0
    %4470 = vmatprep.subr.mxu0 0.0
    %4471 = vmatpush1.msra.mxu0 0.0
    %4472 = vmatprep.subr.mxu0 0.0
    %4473 = vmatpush1.msra.mxu0 0.0
    %4474 = vmatprep.subr.mxu0 0.0
    %4475 = vmatpush1.msra.mxu0 0.0
    %4476 = vmatprep.subr.mxu0 0.0
    %4477 = vmatpush1.msra.mxu0 0.0
    %4478 = vmatprep.subr.mxu0 0.0
    %4479 = vmatpush1.msra.mxu0 0.0
    %4480 = vmatprep.subr.mxu0 0.0
    %4481 = vmatpush1.msra.mxu0 0.0
    %4482 = vmatprep.subr.mxu0 0.0
    %4483 = vmatpush1.msra.mxu0 0.0
    %4484 = vmatprep.subr.mxu0 0.0
    %4485 = vmatpush1.msra.mxu0 %v4449
    %4486 = vmatprep.subr.mxu0 0.0
    %4487 = vmatpush2.msra.mxu0 0.0
    %4488 = vmatprep.subr.mxu0 0.0
    %4489 = vmatpush2.msra.mxu0 0.0
    %4490 = vmatprep.subr.mxu0 0.0
    %4491 = vmatpush2.msra.mxu0 0.0
    %4492 = vmatprep.subr.mxu0 0.0
    %4493 = vmatpush2.msra.mxu0 0.0
    %4494 = vmatprep.subr.mxu0 0.0
    %4495 = vmatpush2.msra.mxu0 0.0
    %4496 = vmatprep.subr.mxu0 0.0
    %4497 = vmatpush2.msra.mxu0 0.0
    %4498 = vmatprep.subr.mxu0 0.0
    %4499 = vmatpush2.msra.mxu0 0.0
    %4500 = vmatprep.subr.mxu0 0.0
    %4501 = vmatpush2.msra.mxu0 0.0
    %4502 = vmatprep.subr.mxu0 0.0
    %4503 = vmatpush2.msra.mxu0 0.0
    %4504 = vmatprep.subr.mxu0 0.0
    %4505 = vmatpush2.msra.mxu0 0.0
    %4506 = vmatprep.subr.mxu0 0.0
    %4507 = vmatpush2.msra.mxu0 0.0
    %4508 = vmatprep.subr.mxu0 0.0
    %4509 = vmatpush2.msra.mxu0 0.0
    %4510 = vmatprep.subr.mxu0 0.0
    %4511 = vmatpush2.msra.mxu0 0.0
    %4512 = vmatprep.subr.mxu0 0.0
    %4513 = vmatpush2.msra.mxu0 0.0
    %4514 = vmatprep.subr.mxu0 0.0
    %4515 = vmatpush2.msra.mxu0 0.0
    %4516 = vmatprep.subr.mxu0 0.0
    %4517 = vmatpush2.msra.mxu0 0.0
    %4518 = vmatprep.mubr.f32.mxu0 0.0
    %4519 = vmatmul.mubr.f32.gmra.mxu0 %v4452
    %v4520 = vpop.f32.mrf.mxu0
    %v4521 = vadd.f32 0.0, %v4520
    %v4522 = vpop.f32.mrf.mxu0
    %4523 = vdwg.mxu0
    %4524 = vrot.lane.b32.xlu0 %v3583, 64
    %v4525 = vpop.permute.xlu0 %4524
    %v4528 = vsel %vm173, %v4287, 0
    %4530 = vmatprep.subr.mxu0 0.0
    %4531 = vmatpush1.msra.mxu0 0.0
    %4532 = vmatprep.subr.mxu0 0.0
    %4533 = vmatpush1.msra.mxu0 0.0
    %4534 = vmatprep.subr.mxu0 0.0
    %4535 = vmatpush1.msra.mxu0 0.0
    %4536 = vmatprep.subr.mxu0 0.0
    %4537 = vmatpush1.msra.mxu0 0.0
    %4538 = vmatprep.subr.mxu0 0.0
    %4539 = vmatpush1.msra.mxu0 0.0
    %4540 = vmatprep.subr.mxu0 0.0
    %4541 = vmatpush1.msra.mxu0 0.0
    %4542 = vmatprep.subr.mxu0 0.0
    %4543 = vmatpush1.msra.mxu0 0.0
    %4544 = vmatprep.subr.mxu0 0.0
    %4545 = vmatpush1.msra.mxu0 0.0
    %4546 = vmatprep.subr.mxu0 0.0
    %4547 = vmatpush1.msra.mxu0 0.0
    %4548 = vmatprep.subr.mxu0 0.0
    %4549 = vmatpush1.msra.mxu0 0.0
    %4550 = vmatprep.subr.mxu0 0.0
    %4551 = vmatpush1.msra.mxu0 0.0
    %4552 = vmatprep.subr.mxu0 0.0
    %4553 = vmatpush1.msra.mxu0 0.0
    %4554 = vmatprep.subr.mxu0 0.0
    %4555 = vmatpush1.msra.mxu0 0.0
    %4556 = vmatprep.subr.mxu0 0.0
    %4557 = vmatpush1.msra.mxu0 0.0
    %4558 = vmatprep.subr.mxu0 0.0
    %4559 = vmatpush1.msra.mxu0 0.0
    %4560 = vmatprep.subr.mxu0 0.0
    %4561 = vmatpush1.msra.mxu0 %v4525
    %4562 = vmatprep.subr.mxu0 0.0
    %4563 = vmatpush2.msra.mxu0 0.0
    %4564 = vmatprep.subr.mxu0 0.0
    %4565 = vmatpush2.msra.mxu0 0.0
    %4566 = vmatprep.subr.mxu0 0.0
    %4567 = vmatpush2.msra.mxu0 0.0
    %4568 = vmatprep.subr.mxu0 0.0
    %4569 = vmatpush2.msra.mxu0 0.0
    %4570 = vmatprep.subr.mxu0 0.0
    %4571 = vmatpush2.msra.mxu0 0.0
    %4572 = vmatprep.subr.mxu0 0.0
    %4573 = vmatpush2.msra.mxu0 0.0
    %4574 = vmatprep.subr.mxu0 0.0
    %4575 = vmatpush2.msra.mxu0 0.0
    %4576 = vmatprep.subr.mxu0 0.0
    %4577 = vmatpush2.msra.mxu0 0.0
    %4578 = vmatprep.subr.mxu0 0.0
    %4579 = vmatpush2.msra.mxu0 0.0
    %4580 = vmatprep.subr.mxu0 0.0
    %4581 = vmatpush2.msra.mxu0 0.0
    %4582 = vmatprep.subr.mxu0 0.0
    %4583 = vmatpush2.msra.mxu0 0.0
    %4584 = vmatprep.subr.mxu0 0.0
    %4585 = vmatpush2.msra.mxu0 0.0
    %4586 = vmatprep.subr.mxu0 0.0
    %4587 = vmatpush2.msra.mxu0 0.0
    %4588 = vmatprep.subr.mxu0 0.0
    %4589 = vmatpush2.msra.mxu0 0.0
    %4590 = vmatprep.subr.mxu0 0.0
    %4591 = vmatpush2.msra.mxu0 0.0
    %4592 = vmatprep.subr.mxu0 0.0
    %4593 = vmatpush2.msra.mxu0 0.0
    %4594 = vmatprep.mubr.f32.mxu0 0.0
    %4595 = vmatmul.mubr.f32.gmra.mxu0 %v4528
    %v4596 = vpop.f32.mrf.mxu0
    %v4597 = vadd.f32 0.0, %v4596
    %v4598 = vpop.f32.mrf.mxu0
    %4599 = vdwg.mxu0
    %4600 = vrot.lane.b32.xlu0 %v3585, 64
    %v4601 = vpop.permute.xlu0 %4600
    %v4604 = vsel %vm173, %v4289, 0
    %4606 = vmatprep.subr.mxu0 0.0
    %4607 = vmatpush1.msra.mxu0 0.0
    %4608 = vmatprep.subr.mxu0 0.0
    %4609 = vmatpush1.msra.mxu0 0.0
    %4610 = vmatprep.subr.mxu0 0.0
    %4611 = vmatpush1.msra.mxu0 0.0
    %4612 = vmatprep.subr.mxu0 0.0
    %4613 = vmatpush1.msra.mxu0 0.0
    %4614 = vmatprep.subr.mxu0 0.0
    %4615 = vmatpush1.msra.mxu0 0.0
    %4616 = vmatprep.subr.mxu0 0.0
    %4617 = vmatpush1.msra.mxu0 0.0
    %4618 = vmatprep.subr.mxu0 0.0
    %4619 = vmatpush1.msra.mxu0 0.0
    %4620 = vmatprep.subr.mxu0 0.0
    %4621 = vmatpush1.msra.mxu0 0.0
    %4622 = vmatprep.subr.mxu0 0.0
    %4623 = vmatpush1.msra.mxu0 0.0
    %4624 = vmatprep.subr.mxu0 0.0
    %4625 = vmatpush1.msra.mxu0 0.0
    %4626 = vmatprep.subr.mxu0 0.0
    %4627 = vmatpush1.msra.mxu0 0.0
    %4628 = vmatprep.subr.mxu0 0.0
    %4629 = vmatpush1.msra.mxu0 0.0
    %4630 = vmatprep.subr.mxu0 0.0
    %4631 = vmatpush1.msra.mxu0 0.0
    %4632 = vmatprep.subr.mxu0 0.0
    %4633 = vmatpush1.msra.mxu0 0.0
    %4634 = vmatprep.subr.mxu0 0.0
    %4635 = vmatpush1.msra.mxu0 0.0
    %4636 = vmatprep.subr.mxu0 0.0
    %4637 = vmatpush1.msra.mxu0 %v4601
    %4638 = vmatprep.subr.mxu0 0.0
    %4639 = vmatpush2.msra.mxu0 0.0
    %4640 = vmatprep.subr.mxu0 0.0
    %4641 = vmatpush2.msra.mxu0 0.0
    %4642 = vmatprep.subr.mxu0 0.0
    %4643 = vmatpush2.msra.mxu0 0.0
    %4644 = vmatprep.subr.mxu0 0.0
    %4645 = vmatpush2.msra.mxu0 0.0
    %4646 = vmatprep.subr.mxu0 0.0
    %4647 = vmatpush2.msra.mxu0 0.0
    %4648 = vmatprep.subr.mxu0 0.0
    %4649 = vmatpush2.msra.mxu0 0.0
    %4650 = vmatprep.subr.mxu0 0.0
    %4651 = vmatpush2.msra.mxu0 0.0
    %4652 = vmatprep.subr.mxu0 0.0
    %4653 = vmatpush2.msra.mxu0 0.0
    %4654 = vmatprep.subr.mxu0 0.0
    %4655 = vmatpush2.msra.mxu0 0.0
    %4656 = vmatprep.subr.mxu0 0.0
    %4657 = vmatpush2.msra.mxu0 0.0
    %4658 = vmatprep.subr.mxu0 0.0
    %4659 = vmatpush2.msra.mxu0 0.0
    %4660 = vmatprep.subr.mxu0 0.0
    %4661 = vmatpush2.msra.mxu0 0.0
    %4662 = vmatprep.subr.mxu0 0.0
    %4663 = vmatpush2.msra.mxu0 0.0
    %4664 = vmatprep.subr.mxu0 0.0
    %4665 = vmatpush2.msra.mxu0 0.0
    %4666 = vmatprep.subr.mxu0 0.0
    %4667 = vmatpush2.msra.mxu0 0.0
    %4668 = vmatprep.subr.mxu0 0.0
    %4669 = vmatpush2.msra.mxu0 0.0
    %4670 = vmatprep.mubr.f32.mxu0 0.0
    %4671 = vmatmul.mubr.f32.gmra.mxu0 %v4604
    %v4672 = vpop.f32.mrf.mxu0
    %v4673 = vadd.f32 0.0, %v4672
    %v4674 = vpop.f32.mrf.mxu0
    %4675 = vdwg.mxu0
    %4676 = vrot.lane.b32.xlu0 %v3587, 64
    %v4677 = vpop.permute.xlu0 %4676
    %v4680 = vsel %vm173, %v4291, 0
    %4682 = vmatprep.subr.mxu0 0.0
    %4683 = vmatpush1.msra.mxu0 0.0
    %4684 = vmatprep.subr.mxu0 0.0
    %4685 = vmatpush1.msra.mxu0 0.0
    %4686 = vmatprep.subr.mxu0 0.0
    %4687 = vmatpush1.msra.mxu0 0.0
    %4688 = vmatprep.subr.mxu0 0.0
    %4689 = vmatpush1.msra.mxu0 0.0
    %4690 = vmatprep.subr.mxu0 0.0
    %4691 = vmatpush1.msra.mxu0 0.0
    %4692 = vmatprep.subr.mxu0 0.0
    %4693 = vmatpush1.msra.mxu0 0.0
    %4694 = vmatprep.subr.mxu0 0.0
    %4695 = vmatpush1.msra.mxu0 0.0
    %4696 = vmatprep.subr.mxu0 0.0
    %4697 = vmatpush1.msra.mxu0 0.0
    %4698 = vmatprep.subr.mxu0 0.0
    %4699 = vmatpush1.msra.mxu0 0.0
    %4700 = vmatprep.subr.mxu0 0.0
    %4701 = vmatpush1.msra.mxu0 0.0
    %4702 = vmatprep.subr.mxu0 0.0
    %4703 = vmatpush1.msra.mxu0 0.0
    %4704 = vmatprep.subr.mxu0 0.0
    %4705 = vmatpush1.msra.mxu0 0.0
    %4706 = vmatprep.subr.mxu0 0.0
    %4707 = vmatpush1.msra.mxu0 0.0
    %4708 = vmatprep.subr.mxu0 0.0
    %4709 = vmatpush1.msra.mxu0 0.0
    %4710 = vmatprep.subr.mxu0 0.0
    %4711 = vmatpush1.msra.mxu0 0.0
    %4712 = vmatprep.subr.mxu0 0.0
    %4713 = vmatpush1.msra.mxu0 %v4677
    %4714 = vmatprep.subr.mxu0 0.0
    %4715 = vmatpush2.msra.mxu0 0.0
    %4716 = vmatprep.subr.mxu0 0.0
    %4717 = vmatpush2.msra.mxu0 0.0
    %4718 = vmatprep.subr.mxu0 0.0
    %4719 = vmatpush2.msra.mxu0 0.0
    %4720 = vmatprep.subr.mxu0 0.0
    %4721 = vmatpush2.msra.mxu0 0.0
    %4722 = vmatprep.subr.mxu0 0.0
    %4723 = vmatpush2.msra.mxu0 0.0
    %4724 = vmatprep.subr.mxu0 0.0
    %4725 = vmatpush2.msra.mxu0 0.0
    %4726 = vmatprep.subr.mxu0 0.0
    %4727 = vmatpush2.msra.mxu0 0.0
    %4728 = vmatprep.subr.mxu0 0.0
    %4729 = vmatpush2.msra.mxu0 0.0
    %4730 = vmatprep.subr.mxu0 0.0
    %4731 = vmatpush2.msra.mxu0 0.0
    %4732 = vmatprep.subr.mxu0 0.0
    %4733 = vmatpush2.msra.mxu0 0.0
    %4734 = vmatprep.subr.mxu0 0.0
    %4735 = vmatpush2.msra.mxu0 0.0
    %4736 = vmatprep.subr.mxu0 0.0
    %4737 = vmatpush2.msra.mxu0 0.0
    %4738 = vmatprep.subr.mxu0 0.0
    %4739 = vmatpush2.msra.mxu0 0.0
    %4740 = vmatprep.subr.mxu0 0.0
    %4741 = vmatpush2.msra.mxu0 0.0
    %4742 = vmatprep.subr.mxu0 0.0
    %4743 = vmatpush2.msra.mxu0 0.0
    %4744 = vmatprep.subr.mxu0 0.0
    %4745 = vmatpush2.msra.mxu0 0.0
    %4746 = vmatprep.mubr.f32.mxu0 0.0
    %4747 = vmatmul.mubr.f32.gmra.mxu0 %v4680
    %v4748 = vpop.f32.mrf.mxu0
    %v4749 = vadd.f32 0.0, %v4748
    %v4750 = vpop.f32.mrf.mxu0
    %4751 = vdwg.mxu0
    %4752 = vrot.lane.b32.xlu0 %v3589, 64
    %v4753 = vpop.permute.xlu0 %4752
    %v4756 = vsel %vm173, %v4293, 0
    %4758 = vmatprep.subr.mxu0 0.0
    %4759 = vmatpush1.msra.mxu0 0.0
    %4760 = vmatprep.subr.mxu0 0.0
    %4761 = vmatpush1.msra.mxu0 0.0
    %4762 = vmatprep.subr.mxu0 0.0
    %4763 = vmatpush1.msra.mxu0 0.0
    %4764 = vmatprep.subr.mxu0 0.0
    %4765 = vmatpush1.msra.mxu0 0.0
    %4766 = vmatprep.subr.mxu0 0.0
    %4767 = vmatpush1.msra.mxu0 0.0
    %4768 = vmatprep.subr.mxu0 0.0
    %4769 = vmatpush1.msra.mxu0 0.0
    %4770 = vmatprep.subr.mxu0 0.0
    %4771 = vmatpush1.msra.mxu0 0.0
    %4772 = vmatprep.subr.mxu0 0.0
    %4773 = vmatpush1.msra.mxu0 0.0
    %4774 = vmatprep.subr.mxu0 0.0
    %4775 = vmatpush1.msra.mxu0 0.0
    %4776 = vmatprep.subr.mxu0 0.0
    %4777 = vmatpush1.msra.mxu0 0.0
    %4778 = vmatprep.subr.mxu0 0.0
    %4779 = vmatpush1.msra.mxu0 0.0
    %4780 = vmatprep.subr.mxu0 0.0
    %4781 = vmatpush1.msra.mxu0 0.0
    %4782 = vmatprep.subr.mxu0 0.0
    %4783 = vmatpush1.msra.mxu0 0.0
    %4784 = vmatprep.subr.mxu0 0.0
    %4785 = vmatpush1.msra.mxu0 0.0
    %4786 = vmatprep.subr.mxu0 0.0
    %4787 = vmatpush1.msra.mxu0 0.0
    %4788 = vmatprep.subr.mxu0 0.0
    %4789 = vmatpush1.msra.mxu0 %v4753
    %4790 = vmatprep.subr.mxu0 0.0
    %4791 = vmatpush2.msra.mxu0 0.0
    %4792 = vmatprep.subr.mxu0 0.0
    %4793 = vmatpush2.msra.mxu0 0.0
    %4794 = vmatprep.subr.mxu0 0.0
    %4795 = vmatpush2.msra.mxu0 0.0
    %4796 = vmatprep.subr.mxu0 0.0
    %4797 = vmatpush2.msra.mxu0 0.0
    %4798 = vmatprep.subr.mxu0 0.0
    %4799 = vmatpush2.msra.mxu0 0.0
    %4800 = vmatprep.subr.mxu0 0.0
    %4801 = vmatpush2.msra.mxu0 0.0
    %4802 = vmatprep.subr.mxu0 0.0
    %4803 = vmatpush2.msra.mxu0 0.0
    %4804 = vmatprep.subr.mxu0 0.0
    %4805 = vmatpush2.msra.mxu0 0.0
    %4806 = vmatprep.subr.mxu0 0.0
    %4807 = vmatpush2.msra.mxu0 0.0
    %4808 = vmatprep.subr.mxu0 0.0
    %4809 = vmatpush2.msra.mxu0 0.0
    %4810 = vmatprep.subr.mxu0 0.0
    %4811 = vmatpush2.msra.mxu0 0.0
    %4812 = vmatprep.subr.mxu0 0.0
    %4813 = vmatpush2.msra.mxu0 0.0
    %4814 = vmatprep.subr.mxu0 0.0
    %4815 = vmatpush2.msra.mxu0 0.0
    %4816 = vmatprep.subr.mxu0 0.0
    %4817 = vmatpush2.msra.mxu0 0.0
    %4818 = vmatprep.subr.mxu0 0.0
    %4819 = vmatpush2.msra.mxu0 0.0
    %4820 = vmatprep.subr.mxu0 0.0
    %4821 = vmatpush2.msra.mxu0 0.0
    %4822 = vmatprep.mubr.f32.mxu0 0.0
    %4823 = vmatmul.mubr.f32.gmra.mxu0 %v4756
    %v4824 = vpop.f32.mrf.mxu0
    %v4825 = vadd.f32 0.0, %v4824
    %v4826 = vpop.f32.mrf.mxu0
    %4827 = vdwg.mxu0
    %4828 = vrot.lane.b32.xlu0 %v3591, 64
    %v4829 = vpop.permute.xlu0 %4828
    %v4832 = vsel %vm173, %v4295, 0
    %4834 = vmatprep.subr.mxu0 0.0
    %4835 = vmatpush1.msra.mxu0 0.0
    %4836 = vmatprep.subr.mxu0 0.0
    %4837 = vmatpush1.msra.mxu0 0.0
    %4838 = vmatprep.subr.mxu0 0.0
    %4839 = vmatpush1.msra.mxu0 0.0
    %4840 = vmatprep.subr.mxu0 0.0
    %4841 = vmatpush1.msra.mxu0 0.0
    %4842 = vmatprep.subr.mxu0 0.0
    %4843 = vmatpush1.msra.mxu0 0.0
    %4844 = vmatprep.subr.mxu0 0.0
    %4845 = vmatpush1.msra.mxu0 0.0
    %4846 = vmatprep.subr.mxu0 0.0
    %4847 = vmatpush1.msra.mxu0 0.0
    %4848 = vmatprep.subr.mxu0 0.0
    %4849 = vmatpush1.msra.mxu0 0.0
    %4850 = vmatprep.subr.mxu0 0.0
    %4851 = vmatpush1.msra.mxu0 0.0
    %4852 = vmatprep.subr.mxu0 0.0
    %4853 = vmatpush1.msra.mxu0 0.0
    %4854 = vmatprep.subr.mxu0 0.0
    %4855 = vmatpush1.msra.mxu0 0.0
    %4856 = vmatprep.subr.mxu0 0.0
    %4857 = vmatpush1.msra.mxu0 0.0
    %4858 = vmatprep.subr.mxu0 0.0
    %4859 = vmatpush1.msra.mxu0 0.0
    %4860 = vmatprep.subr.mxu0 0.0
    %4861 = vmatpush1.msra.mxu0 0.0
    %4862 = vmatprep.subr.mxu0 0.0
    %4863 = vmatpush1.msra.mxu0 0.0
    %4864 = vmatprep.subr.mxu0 0.0
    %4865 = vmatpush1.msra.mxu0 %v4829
    %4866 = vmatprep.subr.mxu0 0.0
    %4867 = vmatpush2.msra.mxu0 0.0
    %4868 = vmatprep.subr.mxu0 0.0
    %4869 = vmatpush2.msra.mxu0 0.0
    %4870 = vmatprep.subr.mxu0 0.0
    %4871 = vmatpush2.msra.mxu0 0.0
    %4872 = vmatprep.subr.mxu0 0.0
    %4873 = vmatpush2.msra.mxu0 0.0
    %4874 = vmatprep.subr.mxu0 0.0
    %4875 = vmatpush2.msra.mxu0 0.0
    %4876 = vmatprep.subr.mxu0 0.0
    %4877 = vmatpush2.msra.mxu0 0.0
    %4878 = vmatprep.subr.mxu0 0.0
    %4879 = vmatpush2.msra.mxu0 0.0
    %4880 = vmatprep.subr.mxu0 0.0
    %4881 = vmatpush2.msra.mxu0 0.0
    %4882 = vmatprep.subr.mxu0 0.0
    %4883 = vmatpush2.msra.mxu0 0.0
    %4884 = vmatprep.subr.mxu0 0.0
    %4885 = vmatpush2.msra.mxu0 0.0
    %4886 = vmatprep.subr.mxu0 0.0
    %4887 = vmatpush2.msra.mxu0 0.0
    %4888 = vmatprep.subr.mxu0 0.0
    %4889 = vmatpush2.msra.mxu0 0.0
    %4890 = vmatprep.subr.mxu0 0.0
    %4891 = vmatpush2.msra.mxu0 0.0
    %4892 = vmatprep.subr.mxu0 0.0
    %4893 = vmatpush2.msra.mxu0 0.0
    %4894 = vmatprep.subr.mxu0 0.0
    %4895 = vmatpush2.msra.mxu0 0.0
    %4896 = vmatprep.subr.mxu0 0.0
    %4897 = vmatpush2.msra.mxu0 0.0
    %4898 = vmatprep.mubr.f32.mxu0 0.0
    %4899 = vmatmul.mubr.f32.gmra.mxu0 %v4832
    %v4900 = vpop.f32.mrf.mxu0
    %v4901 = vadd.f32 0.0, %v4900
    %v4902 = vpop.f32.mrf.mxu0
    %4903 = vdwg.mxu0
    %4906 = vrot.lane.b32.xlu0 %v4521, 8
    %v4907 = vpop.permute.xlu0 %4906
    %4908 = vrot.lane.b32.xlu0 %v4597, 8
    %v4909 = vpop.permute.xlu0 %4908
    %4914 = vrot.lane.b32.xlu0 %v4673, 16
    %v4915 = vpop.permute.xlu0 %4914
    %4916 = vrot.lane.b32.xlu0 %v4749, 16
    %v4917 = vpop.permute.xlu0 %4916
    %4922 = vrot.lane.b32.xlu0 %v4825, 24
    %v4923 = vpop.permute.xlu0 %4922
    %4924 = vrot.lane.b32.xlu0 %v4901, 24
    %v4925 = vpop.permute.xlu0 %4924
    %v4928 = vsel %vm173, %v4369, %v4907
    %v4929 = vsel %vm173, %v4445, %v4909
    %v4930 = vsel %vm1510, %v4928, %v4915
    %v4931 = vsel %vm1510, %v4929, %v4917
    %v4932 = vsel %vm1513, %v4930, %v4923
    %v4933 = vsel %vm1513, %v4931, %v4925
    %v4934 = vlaneseq
    %v4935 = vshrl.u32 %v4934, 7
    %v4936 = vsub.s32 0, %v4935
    %v4937 = vrot.slane %v3454, %v4936
    %v4939 = vsel %vm1520, %v4932, 0
    %v4942 = vsel %vm1520, %v4933, 0
    %4944 = vmatprep.subr.mxu0 0.0
    %4945 = vmatpush1.msra.mxu0 0.0
    %4946 = vmatprep.subr.mxu0 0.0
    %4947 = vmatpush1.msra.mxu0 0.0
    %4948 = vmatprep.subr.mxu0 0.0
    %4949 = vmatpush1.msra.mxu0 0.0
    %4950 = vmatprep.subr.mxu0 0.0
    %4951 = vmatpush1.msra.mxu0 0.0
    %4952 = vmatprep.subr.mxu0 0.0
    %4953 = vmatpush1.msra.mxu0 0.0
    %4954 = vmatprep.subr.mxu0 0.0
    %4955 = vmatpush1.msra.mxu0 0.0
    %4956 = vmatprep.subr.mxu0 0.0
    %4957 = vmatpush1.msra.mxu0 0.0
    %4958 = vmatprep.subr.mxu0 0.0
    %4959 = vmatpush1.msra.mxu0 0.0
    %4960 = vmatprep.subr.mxu0 0.0
    %4961 = vmatpush1.msra.mxu0 0.0
    %4962 = vmatprep.subr.mxu0 0.0
    %4963 = vmatpush1.msra.mxu0 0.0
    %4964 = vmatprep.subr.mxu0 0.0
    %4965 = vmatpush1.msra.mxu0 0.0
    %4966 = vmatprep.subr.mxu0 0.0
    %4967 = vmatpush1.msra.mxu0 0.0
    %4968 = vmatprep.subr.mxu0 0.0
    %4969 = vmatpush1.msra.mxu0 %v3449
    %4970 = vmatprep.subr.mxu0 0.0
    %4971 = vmatpush1.msra.mxu0 %v3448
    %4972 = vmatprep.subr.mxu0 0.0
    %4973 = vmatpush1.msra.mxu0 %v3447
    %4974 = vmatprep.subr.mxu0 0.0
    %4975 = vmatpush1.msra.mxu0 %v3446
    %4976 = vmatprep.subr.mxu0 0.0
    %4977 = vmatpush2.msra.mxu0 0.0
    %4978 = vmatprep.subr.mxu0 0.0
    %4979 = vmatpush2.msra.mxu0 0.0
    %4980 = vmatprep.subr.mxu0 0.0
    %4981 = vmatpush2.msra.mxu0 0.0
    %4982 = vmatprep.subr.mxu0 0.0
    %4983 = vmatpush2.msra.mxu0 0.0
    %4984 = vmatprep.subr.mxu0 0.0
    %4985 = vmatpush2.msra.mxu0 0.0
    %4986 = vmatprep.subr.mxu0 0.0
    %4987 = vmatpush2.msra.mxu0 0.0
    %4988 = vmatprep.subr.mxu0 0.0
    %4989 = vmatpush2.msra.mxu0 0.0
    %4990 = vmatprep.subr.mxu0 0.0
    %4991 = vmatpush2.msra.mxu0 0.0
    %4992 = vmatprep.subr.mxu0 0.0
    %4993 = vmatpush2.msra.mxu0 0.0
    %4994 = vmatprep.subr.mxu0 0.0
    %4995 = vmatpush2.msra.mxu0 0.0
    %4996 = vmatprep.subr.mxu0 0.0
    %4997 = vmatpush2.msra.mxu0 0.0
    %4998 = vmatprep.subr.mxu0 0.0
    %4999 = vmatpush2.msra.mxu0 0.0
    %5000 = vmatprep.subr.mxu0 0.0
    %5001 = vmatpush2.msra.mxu0 0.0
    %5002 = vmatprep.subr.mxu0 0.0
    %5003 = vmatpush2.msra.mxu0 0.0
    %5004 = vmatprep.subr.mxu0 0.0
    %5005 = vmatpush2.msra.mxu0 0.0
    %5006 = vmatprep.subr.mxu0 0.0
    %5007 = vmatpush2.msra.mxu0 0.0
    %5008 = vmatprep.mubr.f32.mxu0 0.0
    %5009 = vmatmul.mubr.f32.gmra.mxu0 %v4939
    %v5010 = vpop.f32.mrf.mxu0
    %v5011 = vadd.f32 %v4937, %v5010
    %v5012 = vpop.f32.mrf.mxu0
    %5013 = vmatprep.mubr.f32.mxu0 0.0
    %5014 = vmatmul.mubr.f32.gmra.mxu0 %v4942
    %v5015 = vpop.f32.mrf.mxu0
    %v5016 = vadd.f32 %v4937, %v5015
    %v5017 = vpop.f32.mrf.mxu0
    %5018 = vdwg.mxu0
    %v5019 = vadd.f32 %v3437, %v5011
    %v5020 = vadd.f32 %v3438, %v5016
    %v5021 = vsel %vm1520, %v5019, 0.0
    %5022 = vadd.xlane.f32.xlu0 %v5021
    %v5023 = vpop.xlane.xlu0 %5022
    %v5024 = vsel %vm1520, %v5020, 0.0
    %5025 = vadd.xlane.f32.xlu0 %v5024
    %v5026 = vpop.xlane.xlu0 %5025
    %v5027 = vmul.f32 %v5023, %v1608
    %v5028 = vmul.f32 %v5026, %v1608
    %v5029 = vsub.f32 %v5019, %v5027
    %v5030 = vsub.f32 %v5020, %v5028
    %v5031 = vmul.f32 %v5029, %v5029
    %v5032 = vmul.f32 %v5030, %v5030
    %v5033 = vsel %vm1520, %v5031, 0.0
    %5034 = vadd.xlane.f32.xlu0 %v5033
    %v5035 = vpop.xlane.xlu0 %5034
    %v5036 = vsel %vm1520, %v5032, 0.0
    %5037 = vadd.xlane.f32.xlu0 %v5036
    %v5038 = vpop.xlane.xlu0 %5037
    %v5039 = vmul.f32 %v5035, %v1608
    %v5040 = vmul.f32 %v5038, %v1608
    %v5041 = vadd.f32 %v5039, 1e-05
    %v5042 = vadd.f32 %v5040, 1e-05
    %v5043 = vrsqrt.pop %v5041
    %v5044 = vrsqrt.pop %v5042
    %v5045 = vmul.f32 %v5029, %v5043
    %v5046 = vmul.f32 %v5030, %v5044
    %v5047 = vlaneseq
    %v5048 = vshrl.u32 %v5047, 7
    %v5049 = vsub.s32 4, %v5048
    %v5050 = vrot.slane %v3454, %v5049
    %v5051 = vmul.f32 %v5045, %v5050
    %v5052 = vmul.f32 %v5046, %v5050
    %v5053 = vlaneseq
    %v5054 = vshrl.u32 %v5053, 7
    %v5055 = vsub.s32 5, %v5054
    %v5056 = vrot.slane %v3454, %v5055
    %v5057 = vadd.f32 %v5051, %v5056
    %v5058 = vadd.f32 %v5052, %v5056
    %v5059 = vlaneseq
    %v5060 = vshrl.u32 %v5059, 7
    %v5061 = vsub.s32 1, %v5060
    %v5062 = vrot.slane %v3454, %v5061
    %v5064 = vsel %vm1520, %v5057, 0
    %v5067 = vsel %vm1520, %v5058, 0
    %5069 = vmatprep.subr.mxu0 0.0
    %5070 = vmatpush1.msra.mxu0 0.0
    %5071 = vmatprep.subr.mxu0 0.0
    %5072 = vmatpush1.msra.mxu0 0.0
    %5073 = vmatprep.subr.mxu0 0.0
    %5074 = vmatpush1.msra.mxu0 0.0
    %5075 = vmatprep.subr.mxu0 0.0
    %5076 = vmatpush1.msra.mxu0 0.0
    %5077 = vmatprep.subr.mxu0 0.0
    %5078 = vmatpush1.msra.mxu0 0.0
    %5079 = vmatprep.subr.mxu0 0.0
    %5080 = vmatpush1.msra.mxu0 0.0
    %5081 = vmatprep.subr.mxu0 0.0
    %5082 = vmatpush1.msra.mxu0 0.0
    %5083 = vmatprep.subr.mxu0 0.0
    %5084 = vmatpush1.msra.mxu0 0.0
    %5085 = vmatprep.subr.mxu0 0.0
    %5086 = vmatpush1.msra.mxu0 0.0
    %5087 = vmatprep.subr.mxu0 0.0
    %5088 = vmatpush1.msra.mxu0 0.0
    %5089 = vmatprep.subr.mxu0 0.0
    %5090 = vmatpush1.msra.mxu0 0.0
    %5091 = vmatprep.subr.mxu0 0.0
    %5092 = vmatpush1.msra.mxu0 0.0
    %5093 = vmatprep.subr.mxu0 0.0
    %5094 = vmatpush1.msra.mxu0 %v3453
    %5095 = vmatprep.subr.mxu0 0.0
    %5096 = vmatpush1.msra.mxu0 %v3452
    %5097 = vmatprep.subr.mxu0 0.0
    %5098 = vmatpush1.msra.mxu0 %v3451
    %5099 = vmatprep.subr.mxu0 0.0
    %5100 = vmatpush1.msra.mxu0 %v3450
    %5101 = vmatprep.subr.mxu0 0.0
    %5102 = vmatpush2.msra.mxu0 0.0
    %5103 = vmatprep.subr.mxu0 0.0
    %5104 = vmatpush2.msra.mxu0 0.0
    %5105 = vmatprep.subr.mxu0 0.0
    %5106 = vmatpush2.msra.mxu0 0.0
    %5107 = vmatprep.subr.mxu0 0.0
    %5108 = vmatpush2.msra.mxu0 0.0
    %5109 = vmatprep.subr.mxu0 0.0
    %5110 = vmatpush2.msra.mxu0 0.0
    %5111 = vmatprep.subr.mxu0 0.0
    %5112 = vmatpush2.msra.mxu0 0.0
    %5113 = vmatprep.subr.mxu0 0.0
    %5114 = vmatpush2.msra.mxu0 0.0
    %5115 = vmatprep.subr.mxu0 0.0
    %5116 = vmatpush2.msra.mxu0 0.0
    %5117 = vmatprep.subr.mxu0 0.0
    %5118 = vmatpush2.msra.mxu0 0.0
    %5119 = vmatprep.subr.mxu0 0.0
    %5120 = vmatpush2.msra.mxu0 0.0
    %5121 = vmatprep.subr.mxu0 0.0
    %5122 = vmatpush2.msra.mxu0 0.0
    %5123 = vmatprep.subr.mxu0 0.0
    %5124 = vmatpush2.msra.mxu0 0.0
    %5125 = vmatprep.subr.mxu0 0.0
    %5126 = vmatpush2.msra.mxu0 0.0
    %5127 = vmatprep.subr.mxu0 0.0
    %5128 = vmatpush2.msra.mxu0 0.0
    %5129 = vmatprep.subr.mxu0 0.0
    %5130 = vmatpush2.msra.mxu0 0.0
    %5131 = vmatprep.subr.mxu0 0.0
    %5132 = vmatpush2.msra.mxu0 0.0
    %5133 = vmatprep.mubr.f32.mxu0 0.0
    %5134 = vmatmul.mubr.f32.gmra.mxu0 %v5064
    %v5135 = vpop.f32.mrf.mxu0
    %v5136 = vadd.f32 %v5062, %v5135
    %v5137 = vpop.f32.mrf.mxu0
    %5138 = vmatprep.mubr.f32.mxu0 0.0
    %5139 = vmatmul.mubr.f32.gmra.mxu0 %v5067
    %v5140 = vpop.f32.mrf.mxu0
    %v5141 = vadd.f32 %v5062, %v5140
    %v5142 = vpop.f32.mrf.mxu0
    %5143 = vdwg.mxu0
    %v5144 = vmax.f32 %v5136, 0.0
    %v5145 = vmax.f32 %v5141, 0.0
    %v5146 = vadd.f32 %v5019, %v5144
    %v5147 = vadd.f32 %v5020, %v5145
    %s5148 = scalar_lea.vmem %s1, 120
    %v5149 = vld [vmem:[%s5148] sm:$0xff]
    %v5150 = vld [vmem:[%s5148 + $0x8] sm:$0xff]
    %v5151 = vld [vmem:[%s5148 + $0x10] sm:$0xff]
    %v5152 = vld [vmem:[%s5148 + $0x18] sm:$0xff]
    %v5153 = vld [vmem:[%s5148 + $0x20] sm:$0x1]
    %s5154 = scalar_lea.vmem %s2, 216
    %v5155 = vld [vmem:[%s5154] sm:$0xff]
    %v5156 = vld [vmem:[%s5154 + $0x8] sm:$0xff]
    %v5157 = vld [vmem:[%s5154 + $0x10] sm:$0xff]
    %v5158 = vld [vmem:[%s5154 + $0x18] sm:$0xff]
    %v5159 = vld [vmem:[%s5154 + $0x20] sm:$0xff]
    %v5160 = vld [vmem:[%s5154 + $0x28] sm:$0xff]
    %v5161 = vld [vmem:[%s5154 + $0x30] sm:$0xff]
    %v5162 = vld [vmem:[%s5154 + $0x38] sm:$0xff]
    %v5163 = vld [vmem:[%s5154 + $0x40] sm:$0x3f]
    %v5164 = vsel %vm1520, %v5146, 0.0
    %5165 = vadd.xlane.f32.xlu0 %v5164
    %v5166 = vpop.xlane.xlu0 %5165
    %v5167 = vsel %vm1520, %v5147, 0.0
    %5168 = vadd.xlane.f32.xlu0 %v5167
    %v5169 = vpop.xlane.xlu0 %5168
    %v5170 = vmul.f32 %v5166, %v1608
    %v5171 = vmul.f32 %v5169, %v1608
    %v5172 = vsub.f32 %v5146, %v5170
    %v5173 = vsub.f32 %v5147, %v5171
    %v5174 = vmul.f32 %v5172, %v5172
    %v5175 = vmul.f32 %v5173, %v5173
    %v5176 = vsel %vm1520, %v5174, 0.0
    %5177 = vadd.xlane.f32.xlu0 %v5176
    %v5178 = vpop.xlane.xlu0 %5177
    %v5179 = vsel %vm1520, %v5175, 0.0
    %5180 = vadd.xlane.f32.xlu0 %v5179
    %v5181 = vpop.xlane.xlu0 %5180
    %v5182 = vmul.f32 %v5178, %v1608
    %v5183 = vmul.f32 %v5181, %v1608
    %v5184 = vadd.f32 %v5182, 1e-05
    %v5185 = vadd.f32 %v5183, 1e-05
    %v5186 = vrsqrt.pop %v5184
    %v5187 = vrsqrt.pop %v5185
    %v5188 = vmul.f32 %v5172, %v5186
    %v5189 = vmul.f32 %v5173, %v5187
    %v5190 = vlaneseq
    %v5191 = vshrl.u32 %v5190, 7
    %v5192 = vsub.s32 2, %v5191
    %v5193 = vrot.slane %v5163, %v5192
    %v5194 = vmul.f32 %v5188, %v5193
    %v5195 = vmul.f32 %v5189, %v5193
    %v5196 = vlaneseq
    %v5197 = vshrl.u32 %v5196, 7
    %v5198 = vsub.s32 3, %v5197
    %v5199 = vrot.slane %v5163, %v5198
    %v5200 = vadd.f32 %v5194, %v5199
    %v5201 = vadd.f32 %v5195, %v5199
    %v5202 = vlaneseq
    %v5203 = vshrl.u32 %v5202, 7
    %v5204 = vsub.s32 0, %v5203
    %v5205 = vrot.slane %v5153, %v5204
    %v5207 = vsel %vm1520, %v5200, 0
    %v5210 = vsel %vm1520, %v5201, 0
    %5212 = vmatprep.subr.mxu0 0.0
    %5213 = vmatpush1.msra.mxu0 0.0
    %5214 = vmatprep.subr.mxu0 0.0
    %5215 = vmatpush1.msra.mxu0 0.0
    %5216 = vmatprep.subr.mxu0 0.0
    %5217 = vmatpush1.msra.mxu0 0.0
    %5218 = vmatprep.subr.mxu0 0.0
    %5219 = vmatpush1.msra.mxu0 0.0
    %5220 = vmatprep.subr.mxu0 0.0
    %5221 = vmatpush1.msra.mxu0 0.0
    %5222 = vmatprep.subr.mxu0 0.0
    %5223 = vmatpush1.msra.mxu0 0.0
    %5224 = vmatprep.subr.mxu0 0.0
    %5225 = vmatpush1.msra.mxu0 0.0
    %5226 = vmatprep.subr.mxu0 0.0
    %5227 = vmatpush1.msra.mxu0 0.0
    %5228 = vmatprep.subr.mxu0 0.0
    %5229 = vmatpush1.msra.mxu0 0.0
    %5230 = vmatprep.subr.mxu0 0.0
    %5231 = vmatpush1.msra.mxu0 0.0
    %5232 = vmatprep.subr.mxu0 0.0
    %5233 = vmatpush1.msra.mxu0 0.0
    %5234 = vmatprep.subr.mxu0 0.0
    %5235 = vmatpush1.msra.mxu0 0.0
    %5236 = vmatprep.subr.mxu0 0.0
    %5237 = vmatpush1.msra.mxu0 %v5152
    %5238 = vmatprep.subr.mxu0 0.0
    %5239 = vmatpush1.msra.mxu0 %v5151
    %5240 = vmatprep.subr.mxu0 0.0
    %5241 = vmatpush1.msra.mxu0 %v5150
    %5242 = vmatprep.subr.mxu0 0.0
    %5243 = vmatpush1.msra.mxu0 %v5149
    %5244 = vmatprep.subr.mxu0 0.0
    %5245 = vmatpush2.msra.mxu0 0.0
    %5246 = vmatprep.subr.mxu0 0.0
    %5247 = vmatpush2.msra.mxu0 0.0
    %5248 = vmatprep.subr.mxu0 0.0
    %5249 = vmatpush2.msra.mxu0 0.0
    %5250 = vmatprep.subr.mxu0 0.0
    %5251 = vmatpush2.msra.mxu0 0.0
    %5252 = vmatprep.subr.mxu0 0.0
    %5253 = vmatpush2.msra.mxu0 0.0
    %5254 = vmatprep.subr.mxu0 0.0
    %5255 = vmatpush2.msra.mxu0 0.0
    %5256 = vmatprep.subr.mxu0 0.0
    %5257 = vmatpush2.msra.mxu0 0.0
    %5258 = vmatprep.subr.mxu0 0.0
    %5259 = vmatpush2.msra.mxu0 0.0
    %5260 = vmatprep.subr.mxu0 0.0
    %5261 = vmatpush2.msra.mxu0 0.0
    %5262 = vmatprep.subr.mxu0 0.0
    %5263 = vmatpush2.msra.mxu0 0.0
    %5264 = vmatprep.subr.mxu0 0.0
    %5265 = vmatpush2.msra.mxu0 0.0
    %5266 = vmatprep.subr.mxu0 0.0
    %5267 = vmatpush2.msra.mxu0 0.0
    %5268 = vmatprep.subr.mxu0 0.0
    %5269 = vmatpush2.msra.mxu0 0.0
    %5270 = vmatprep.subr.mxu0 0.0
    %5271 = vmatpush2.msra.mxu0 0.0
    %5272 = vmatprep.subr.mxu0 0.0
    %5273 = vmatpush2.msra.mxu0 0.0
    %5274 = vmatprep.subr.mxu0 0.0
    %5275 = vmatpush2.msra.mxu0 0.0
    %5276 = vmatprep.mubr.f32.mxu0 0.0
    %5277 = vmatmul.mubr.f32.gmra.mxu0 %v5207
    %v5278 = vpop.f32.mrf.mxu0
    %v5279 = vadd.f32 %v5205, %v5278
    %v5280 = vpop.f32.mrf.mxu0
    %5281 = vmatprep.mubr.f32.mxu0 0.0
    %5282 = vmatmul.mubr.f32.gmra.mxu0 %v5210
    %v5283 = vpop.f32.mrf.mxu0
    %v5284 = vadd.f32 %v5205, %v5283
    %v5285 = vpop.f32.mrf.mxu0
    %5286 = vdwg.mxu0
    %5289 = vrot.lane.b32.xlu0 %v5279, 120
    %v5290 = vpop.permute.xlu0 %5289
    %5291 = vrot.lane.b32.xlu0 %v5284, 120
    %v5292 = vpop.permute.xlu0 %5291
    %5293 = vrot.lane.b32.xlu0 %v5279, 112
    %v5294 = vpop.permute.xlu0 %5293
    %5295 = vrot.lane.b32.xlu0 %v5284, 112
    %v5296 = vpop.permute.xlu0 %5295
    %5297 = vrot.lane.b32.xlu0 %v5279, 104
    %v5298 = vpop.permute.xlu0 %5297
    %5299 = vrot.lane.b32.xlu0 %v5284, 104
    %v5300 = vpop.permute.xlu0 %5299
    %5301 = vrot.lane.b32.xlu0 %v5279, 96
    %v5302 = vpop.permute.xlu0 %5301
    %v5303 = vsel %vm173, %v5279, 0
    %v5305 = vsel %vm173, %v5302, 0
    %5307 = vmatprep.subr.mxu0 0.0
    %5308 = vmatpush1.xpose.msra.mxu0 0.0
    %5309 = vmatprep.subr.mxu0 0.0
    %5310 = vmatpush1.xpose.msra.mxu0 0.0
    %5311 = vmatprep.subr.mxu0 0.0
    %5312 = vmatpush1.xpose.msra.mxu0 0.0
    %5313 = vmatprep.subr.mxu0 0.0
    %5314 = vmatpush1.xpose.msra.mxu0 0.0
    %5315 = vmatprep.subr.mxu0 0.0
    %5316 = vmatpush1.xpose.msra.mxu0 0.0
    %5317 = vmatprep.subr.mxu0 0.0
    %5318 = vmatpush1.xpose.msra.mxu0 0.0
    %5319 = vmatprep.subr.mxu0 0.0
    %5320 = vmatpush1.xpose.msra.mxu0 0.0
    %5321 = vmatprep.subr.mxu0 0.0
    %5322 = vmatpush1.xpose.msra.mxu0 0.0
    %5323 = vmatprep.subr.mxu0 0.0
    %5324 = vmatpush1.xpose.msra.mxu0 0.0
    %5325 = vmatprep.subr.mxu0 0.0
    %5326 = vmatpush1.xpose.msra.mxu0 0.0
    %5327 = vmatprep.subr.mxu0 0.0
    %5328 = vmatpush1.xpose.msra.mxu0 0.0
    %5329 = vmatprep.subr.mxu0 0.0
    %5330 = vmatpush1.xpose.msra.mxu0 0.0
    %5331 = vmatprep.subr.mxu0 0.0
    %5332 = vmatpush1.xpose.msra.mxu0 0.0
    %5333 = vmatprep.subr.mxu0 0.0
    %5334 = vmatpush1.xpose.msra.mxu0 0.0
    %5335 = vmatprep.subr.mxu0 0.0
    %5336 = vmatpush1.xpose.msra.mxu0 0.0
    %5337 = vmatprep.subr.mxu0 0.0
    %5338 = vmatpush1.xpose.msra.mxu0 %v5305
    %5339 = vmatprep.subr.mxu0 0.0
    %5340 = vmatpush2.xpose.msra.mxu0 0.0
    %5341 = vmatprep.subr.mxu0 0.0
    %5342 = vmatpush2.xpose.msra.mxu0 0.0
    %5343 = vmatprep.subr.mxu0 0.0
    %5344 = vmatpush2.xpose.msra.mxu0 0.0
    %5345 = vmatprep.subr.mxu0 0.0
    %5346 = vmatpush2.xpose.msra.mxu0 0.0
    %5347 = vmatprep.subr.mxu0 0.0
    %5348 = vmatpush2.xpose.msra.mxu0 0.0
    %5349 = vmatprep.subr.mxu0 0.0
    %5350 = vmatpush2.xpose.msra.mxu0 0.0
    %5351 = vmatprep.subr.mxu0 0.0
    %5352 = vmatpush2.xpose.msra.mxu0 0.0
    %5353 = vmatprep.subr.mxu0 0.0
    %5354 = vmatpush2.xpose.msra.mxu0 0.0
    %5355 = vmatprep.subr.mxu0 0.0
    %5356 = vmatpush2.xpose.msra.mxu0 0.0
    %5357 = vmatprep.subr.mxu0 0.0
    %5358 = vmatpush2.xpose.msra.mxu0 0.0
    %5359 = vmatprep.subr.mxu0 0.0
    %5360 = vmatpush2.xpose.msra.mxu0 0.0
    %5361 = vmatprep.subr.mxu0 0.0
    %5362 = vmatpush2.xpose.msra.mxu0 0.0
    %5363 = vmatprep.subr.mxu0 0.0
    %5364 = vmatpush2.xpose.msra.mxu0 0.0
    %5365 = vmatprep.subr.mxu0 0.0
    %5366 = vmatpush2.xpose.msra.mxu0 0.0
    %5367 = vmatprep.subr.mxu0 0.0
    %5368 = vmatpush2.xpose.msra.mxu0 0.0
    %5369 = vmatprep.subr.mxu0 0.0
    %5370 = vmatpush2.xpose.msra.mxu0 0.0
    %5371 = vmatprep.mubr.f32.mxu0 0.0
    %5372 = vmatmul.mubr.f32.gmra.mxu0 %v5303
    %v5373 = vpop.f32.mrf.mxu0
    %v5374 = vadd.f32 0.0, %v5373
    %v5375 = vpop.f32.mrf.mxu0
    %5376 = vdwg.mxu0
    %5377 = vrot.lane.b32.xlu0 %v5284, 96
    %v5378 = vpop.permute.xlu0 %5377
    %v5379 = vsel %vm173, %v5284, 0
    %v5381 = vsel %vm173, %v5378, 0
    %5383 = vmatprep.subr.mxu0 0.0
    %5384 = vmatpush1.xpose.msra.mxu0 0.0
    %5385 = vmatprep.subr.mxu0 0.0
    %5386 = vmatpush1.xpose.msra.mxu0 0.0
    %5387 = vmatprep.subr.mxu0 0.0
    %5388 = vmatpush1.xpose.msra.mxu0 0.0
    %5389 = vmatprep.subr.mxu0 0.0
    %5390 = vmatpush1.xpose.msra.mxu0 0.0
    %5391 = vmatprep.subr.mxu0 0.0
    %5392 = vmatpush1.xpose.msra.mxu0 0.0
    %5393 = vmatprep.subr.mxu0 0.0
    %5394 = vmatpush1.xpose.msra.mxu0 0.0
    %5395 = vmatprep.subr.mxu0 0.0
    %5396 = vmatpush1.xpose.msra.mxu0 0.0
    %5397 = vmatprep.subr.mxu0 0.0
    %5398 = vmatpush1.xpose.msra.mxu0 0.0
    %5399 = vmatprep.subr.mxu0 0.0
    %5400 = vmatpush1.xpose.msra.mxu0 0.0
    %5401 = vmatprep.subr.mxu0 0.0
    %5402 = vmatpush1.xpose.msra.mxu0 0.0
    %5403 = vmatprep.subr.mxu0 0.0
    %5404 = vmatpush1.xpose.msra.mxu0 0.0
    %5405 = vmatprep.subr.mxu0 0.0
    %5406 = vmatpush1.xpose.msra.mxu0 0.0
    %5407 = vmatprep.subr.mxu0 0.0
    %5408 = vmatpush1.xpose.msra.mxu0 0.0
    %5409 = vmatprep.subr.mxu0 0.0
    %5410 = vmatpush1.xpose.msra.mxu0 0.0
    %5411 = vmatprep.subr.mxu0 0.0
    %5412 = vmatpush1.xpose.msra.mxu0 0.0
    %5413 = vmatprep.subr.mxu0 0.0
    %5414 = vmatpush1.xpose.msra.mxu0 %v5381
    %5415 = vmatprep.subr.mxu0 0.0
    %5416 = vmatpush2.xpose.msra.mxu0 0.0
    %5417 = vmatprep.subr.mxu0 0.0
    %5418 = vmatpush2.xpose.msra.mxu0 0.0
    %5419 = vmatprep.subr.mxu0 0.0
    %5420 = vmatpush2.xpose.msra.mxu0 0.0
    %5421 = vmatprep.subr.mxu0 0.0
    %5422 = vmatpush2.xpose.msra.mxu0 0.0
    %5423 = vmatprep.subr.mxu0 0.0
    %5424 = vmatpush2.xpose.msra.mxu0 0.0
    %5425 = vmatprep.subr.mxu0 0.0
    %5426 = vmatpush2.xpose.msra.mxu0 0.0
    %5427 = vmatprep.subr.mxu0 0.0
    %5428 = vmatpush2.xpose.msra.mxu0 0.0
    %5429 = vmatprep.subr.mxu0 0.0
    %5430 = vmatpush2.xpose.msra.mxu0 0.0
    %5431 = vmatprep.subr.mxu0 0.0
    %5432 = vmatpush2.xpose.msra.mxu0 0.0
    %5433 = vmatprep.subr.mxu0 0.0
    %5434 = vmatpush2.xpose.msra.mxu0 0.0
    %5435 = vmatprep.subr.mxu0 0.0
    %5436 = vmatpush2.xpose.msra.mxu0 0.0
    %5437 = vmatprep.subr.mxu0 0.0
    %5438 = vmatpush2.xpose.msra.mxu0 0.0
    %5439 = vmatprep.subr.mxu0 0.0
    %5440 = vmatpush2.xpose.msra.mxu0 0.0
    %5441 = vmatprep.subr.mxu0 0.0
    %5442 = vmatpush2.xpose.msra.mxu0 0.0
    %5443 = vmatprep.subr.mxu0 0.0
    %5444 = vmatpush2.xpose.msra.mxu0 0.0
    %5445 = vmatprep.subr.mxu0 0.0
    %5446 = vmatpush2.xpose.msra.mxu0 0.0
    %5447 = vmatprep.mubr.f32.mxu0 0.0
    %5448 = vmatmul.mubr.f32.gmra.mxu0 %v5379
    %v5449 = vpop.f32.mrf.mxu0
    %v5450 = vadd.f32 0.0, %v5449
    %v5451 = vpop.f32.mrf.mxu0
    %5452 = vdwg.mxu0
    %5453 = vrot.lane.b32.xlu0 %v5290, 96
    %v5454 = vpop.permute.xlu0 %5453
    %v5455 = vsel %vm173, %v5290, 0
    %v5457 = vsel %vm173, %v5454, 0
    %5459 = vmatprep.subr.mxu0 0.0
    %5460 = vmatpush1.xpose.msra.mxu0 0.0
    %5461 = vmatprep.subr.mxu0 0.0
    %5462 = vmatpush1.xpose.msra.mxu0 0.0
    %5463 = vmatprep.subr.mxu0 0.0
    %5464 = vmatpush1.xpose.msra.mxu0 0.0
    %5465 = vmatprep.subr.mxu0 0.0
    %5466 = vmatpush1.xpose.msra.mxu0 0.0
    %5467 = vmatprep.subr.mxu0 0.0
    %5468 = vmatpush1.xpose.msra.mxu0 0.0
    %5469 = vmatprep.subr.mxu0 0.0
    %5470 = vmatpush1.xpose.msra.mxu0 0.0
    %5471 = vmatprep.subr.mxu0 0.0
    %5472 = vmatpush1.xpose.msra.mxu0 0.0
    %5473 = vmatprep.subr.mxu0 0.0
    %5474 = vmatpush1.xpose.msra.mxu0 0.0
    %5475 = vmatprep.subr.mxu0 0.0
    %5476 = vmatpush1.xpose.msra.mxu0 0.0
    %5477 = vmatprep.subr.mxu0 0.0
    %5478 = vmatpush1.xpose.msra.mxu0 0.0
    %5479 = vmatprep.subr.mxu0 0.0
    %5480 = vmatpush1.xpose.msra.mxu0 0.0
    %5481 = vmatprep.subr.mxu0 0.0
    %5482 = vmatpush1.xpose.msra.mxu0 0.0
    %5483 = vmatprep.subr.mxu0 0.0
    %5484 = vmatpush1.xpose.msra.mxu0 0.0
    %5485 = vmatprep.subr.mxu0 0.0
    %5486 = vmatpush1.xpose.msra.mxu0 0.0
    %5487 = vmatprep.subr.mxu0 0.0
    %5488 = vmatpush1.xpose.msra.mxu0 0.0
    %5489 = vmatprep.subr.mxu0 0.0
    %5490 = vmatpush1.xpose.msra.mxu0 %v5457
    %5491 = vmatprep.subr.mxu0 0.0
    %5492 = vmatpush2.xpose.msra.mxu0 0.0
    %5493 = vmatprep.subr.mxu0 0.0
    %5494 = vmatpush2.xpose.msra.mxu0 0.0
    %5495 = vmatprep.subr.mxu0 0.0
    %5496 = vmatpush2.xpose.msra.mxu0 0.0
    %5497 = vmatprep.subr.mxu0 0.0
    %5498 = vmatpush2.xpose.msra.mxu0 0.0
    %5499 = vmatprep.subr.mxu0 0.0
    %5500 = vmatpush2.xpose.msra.mxu0 0.0
    %5501 = vmatprep.subr.mxu0 0.0
    %5502 = vmatpush2.xpose.msra.mxu0 0.0
    %5503 = vmatprep.subr.mxu0 0.0
    %5504 = vmatpush2.xpose.msra.mxu0 0.0
    %5505 = vmatprep.subr.mxu0 0.0
    %5506 = vmatpush2.xpose.msra.mxu0 0.0
    %5507 = vmatprep.subr.mxu0 0.0
    %5508 = vmatpush2.xpose.msra.mxu0 0.0
    %5509 = vmatprep.subr.mxu0 0.0
    %5510 = vmatpush2.xpose.msra.mxu0 0.0
    %5511 = vmatprep.subr.mxu0 0.0
    %5512 = vmatpush2.xpose.msra.mxu0 0.0
    %5513 = vmatprep.subr.mxu0 0.0
    %5514 = vmatpush2.xpose.msra.mxu0 0.0
    %5515 = vmatprep.subr.mxu0 0.0
    %5516 = vmatpush2.xpose.msra.mxu0 0.0
    %5517 = vmatprep.subr.mxu0 0.0
    %5518 = vmatpush2.xpose.msra.mxu0 0.0
    %5519 = vmatprep.subr.mxu0 0.0
    %5520 = vmatpush2.xpose.msra.mxu0 0.0
    %5521 = vmatprep.subr.mxu0 0.0
    %5522 = vmatpush2.xpose.msra.mxu0 0.0
    %5523 = vmatprep.mubr.f32.mxu0 0.0
    %5524 = vmatmul.mubr.f32.gmra.mxu0 %v5455
    %v5525 = vpop.f32.mrf.mxu0
    %v5526 = vadd.f32 0.0, %v5525
    %v5527 = vpop.f32.mrf.mxu0
    %5528 = vdwg.mxu0
    %5529 = vrot.lane.b32.xlu0 %v5292, 96
    %v5530 = vpop.permute.xlu0 %5529
    %v5531 = vsel %vm173, %v5292, 0
    %v5533 = vsel %vm173, %v5530, 0
    %5535 = vmatprep.subr.mxu0 0.0
    %5536 = vmatpush1.xpose.msra.mxu0 0.0
    %5537 = vmatprep.subr.mxu0 0.0
    %5538 = vmatpush1.xpose.msra.mxu0 0.0
    %5539 = vmatprep.subr.mxu0 0.0
    %5540 = vmatpush1.xpose.msra.mxu0 0.0
    %5541 = vmatprep.subr.mxu0 0.0
    %5542 = vmatpush1.xpose.msra.mxu0 0.0
    %5543 = vmatprep.subr.mxu0 0.0
    %5544 = vmatpush1.xpose.msra.mxu0 0.0
    %5545 = vmatprep.subr.mxu0 0.0
    %5546 = vmatpush1.xpose.msra.mxu0 0.0
    %5547 = vmatprep.subr.mxu0 0.0
    %5548 = vmatpush1.xpose.msra.mxu0 0.0
    %5549 = vmatprep.subr.mxu0 0.0
    %5550 = vmatpush1.xpose.msra.mxu0 0.0
    %5551 = vmatprep.subr.mxu0 0.0
    %5552 = vmatpush1.xpose.msra.mxu0 0.0
    %5553 = vmatprep.subr.mxu0 0.0
    %5554 = vmatpush1.xpose.msra.mxu0 0.0
    %5555 = vmatprep.subr.mxu0 0.0
    %5556 = vmatpush1.xpose.msra.mxu0 0.0
    %5557 = vmatprep.subr.mxu0 0.0
    %5558 = vmatpush1.xpose.msra.mxu0 0.0
    %5559 = vmatprep.subr.mxu0 0.0
    %5560 = vmatpush1.xpose.msra.mxu0 0.0
    %5561 = vmatprep.subr.mxu0 0.0
    %5562 = vmatpush1.xpose.msra.mxu0 0.0
    %5563 = vmatprep.subr.mxu0 0.0
    %5564 = vmatpush1.xpose.msra.mxu0 0.0
    %5565 = vmatprep.subr.mxu0 0.0
    %5566 = vmatpush1.xpose.msra.mxu0 %v5533
    %5567 = vmatprep.subr.mxu0 0.0
    %5568 = vmatpush2.xpose.msra.mxu0 0.0
    %5569 = vmatprep.subr.mxu0 0.0
    %5570 = vmatpush2.xpose.msra.mxu0 0.0
    %5571 = vmatprep.subr.mxu0 0.0
    %5572 = vmatpush2.xpose.msra.mxu0 0.0
    %5573 = vmatprep.subr.mxu0 0.0
    %5574 = vmatpush2.xpose.msra.mxu0 0.0
    %5575 = vmatprep.subr.mxu0 0.0
    %5576 = vmatpush2.xpose.msra.mxu0 0.0
    %5577 = vmatprep.subr.mxu0 0.0
    %5578 = vmatpush2.xpose.msra.mxu0 0.0
    %5579 = vmatprep.subr.mxu0 0.0
    %5580 = vmatpush2.xpose.msra.mxu0 0.0
    %5581 = vmatprep.subr.mxu0 0.0
    %5582 = vmatpush2.xpose.msra.mxu0 0.0
    %5583 = vmatprep.subr.mxu0 0.0
    %5584 = vmatpush2.xpose.msra.mxu0 0.0
    %5585 = vmatprep.subr.mxu0 0.0
    %5586 = vmatpush2.xpose.msra.mxu0 0.0
    %5587 = vmatprep.subr.mxu0 0.0
    %5588 = vmatpush2.xpose.msra.mxu0 0.0
    %5589 = vmatprep.subr.mxu0 0.0
    %5590 = vmatpush2.xpose.msra.mxu0 0.0
    %5591 = vmatprep.subr.mxu0 0.0
    %5592 = vmatpush2.xpose.msra.mxu0 0.0
    %5593 = vmatprep.subr.mxu0 0.0
    %5594 = vmatpush2.xpose.msra.mxu0 0.0
    %5595 = vmatprep.subr.mxu0 0.0
    %5596 = vmatpush2.xpose.msra.mxu0 0.0
    %5597 = vmatprep.subr.mxu0 0.0
    %5598 = vmatpush2.xpose.msra.mxu0 0.0
    %5599 = vmatprep.mubr.f32.mxu0 0.0
    %5600 = vmatmul.mubr.f32.gmra.mxu0 %v5531
    %v5601 = vpop.f32.mrf.mxu0
    %v5602 = vadd.f32 0.0, %v5601
    %v5603 = vpop.f32.mrf.mxu0
    %5604 = vdwg.mxu0
    %5605 = vrot.lane.b32.xlu0 %v5294, 96
    %v5606 = vpop.permute.xlu0 %5605
    %v5607 = vsel %vm173, %v5294, 0
    %v5609 = vsel %vm173, %v5606, 0
    %5611 = vmatprep.subr.mxu0 0.0
    %5612 = vmatpush1.xpose.msra.mxu0 0.0
    %5613 = vmatprep.subr.mxu0 0.0
    %5614 = vmatpush1.xpose.msra.mxu0 0.0
    %5615 = vmatprep.subr.mxu0 0.0
    %5616 = vmatpush1.xpose.msra.mxu0 0.0
    %5617 = vmatprep.subr.mxu0 0.0
    %5618 = vmatpush1.xpose.msra.mxu0 0.0
    %5619 = vmatprep.subr.mxu0 0.0
    %5620 = vmatpush1.xpose.msra.mxu0 0.0
    %5621 = vmatprep.subr.mxu0 0.0
    %5622 = vmatpush1.xpose.msra.mxu0 0.0
    %5623 = vmatprep.subr.mxu0 0.0
    %5624 = vmatpush1.xpose.msra.mxu0 0.0
    %5625 = vmatprep.subr.mxu0 0.0
    %5626 = vmatpush1.xpose.msra.mxu0 0.0
    %5627 = vmatprep.subr.mxu0 0.0
    %5628 = vmatpush1.xpose.msra.mxu0 0.0
    %5629 = vmatprep.subr.mxu0 0.0
    %5630 = vmatpush1.xpose.msra.mxu0 0.0
    %5631 = vmatprep.subr.mxu0 0.0
    %5632 = vmatpush1.xpose.msra.mxu0 0.0
    %5633 = vmatprep.subr.mxu0 0.0
    %5634 = vmatpush1.xpose.msra.mxu0 0.0
    %5635 = vmatprep.subr.mxu0 0.0
    %5636 = vmatpush1.xpose.msra.mxu0 0.0
    %5637 = vmatprep.subr.mxu0 0.0
    %5638 = vmatpush1.xpose.msra.mxu0 0.0
    %5639 = vmatprep.subr.mxu0 0.0
    %5640 = vmatpush1.xpose.msra.mxu0 0.0
    %5641 = vmatprep.subr.mxu0 0.0
    %5642 = vmatpush1.xpose.msra.mxu0 %v5609
    %5643 = vmatprep.subr.mxu0 0.0
    %5644 = vmatpush2.xpose.msra.mxu0 0.0
    %5645 = vmatprep.subr.mxu0 0.0
    %5646 = vmatpush2.xpose.msra.mxu0 0.0
    %5647 = vmatprep.subr.mxu0 0.0
    %5648 = vmatpush2.xpose.msra.mxu0 0.0
    %5649 = vmatprep.subr.mxu0 0.0
    %5650 = vmatpush2.xpose.msra.mxu0 0.0
    %5651 = vmatprep.subr.mxu0 0.0
    %5652 = vmatpush2.xpose.msra.mxu0 0.0
    %5653 = vmatprep.subr.mxu0 0.0
    %5654 = vmatpush2.xpose.msra.mxu0 0.0
    %5655 = vmatprep.subr.mxu0 0.0
    %5656 = vmatpush2.xpose.msra.mxu0 0.0
    %5657 = vmatprep.subr.mxu0 0.0
    %5658 = vmatpush2.xpose.msra.mxu0 0.0
    %5659 = vmatprep.subr.mxu0 0.0
    %5660 = vmatpush2.xpose.msra.mxu0 0.0
    %5661 = vmatprep.subr.mxu0 0.0
    %5662 = vmatpush2.xpose.msra.mxu0 0.0
    %5663 = vmatprep.subr.mxu0 0.0
    %5664 = vmatpush2.xpose.msra.mxu0 0.0
    %5665 = vmatprep.subr.mxu0 0.0
    %5666 = vmatpush2.xpose.msra.mxu0 0.0
    %5667 = vmatprep.subr.mxu0 0.0
    %5668 = vmatpush2.xpose.msra.mxu0 0.0
    %5669 = vmatprep.subr.mxu0 0.0
    %5670 = vmatpush2.xpose.msra.mxu0 0.0
    %5671 = vmatprep.subr.mxu0 0.0
    %5672 = vmatpush2.xpose.msra.mxu0 0.0
    %5673 = vmatprep.subr.mxu0 0.0
    %5674 = vmatpush2.xpose.msra.mxu0 0.0
    %5675 = vmatprep.mubr.f32.mxu0 0.0
    %5676 = vmatmul.mubr.f32.gmra.mxu0 %v5607
    %v5677 = vpop.f32.mrf.mxu0
    %v5678 = vadd.f32 0.0, %v5677
    %v5679 = vpop.f32.mrf.mxu0
    %5680 = vdwg.mxu0
    %5681 = vrot.lane.b32.xlu0 %v5296, 96
    %v5682 = vpop.permute.xlu0 %5681
    %v5683 = vsel %vm173, %v5296, 0
    %v5685 = vsel %vm173, %v5682, 0
    %5687 = vmatprep.subr.mxu0 0.0
    %5688 = vmatpush1.xpose.msra.mxu0 0.0
    %5689 = vmatprep.subr.mxu0 0.0
    %5690 = vmatpush1.xpose.msra.mxu0 0.0
    %5691 = vmatprep.subr.mxu0 0.0
    %5692 = vmatpush1.xpose.msra.mxu0 0.0
    %5693 = vmatprep.subr.mxu0 0.0
    %5694 = vmatpush1.xpose.msra.mxu0 0.0
    %5695 = vmatprep.subr.mxu0 0.0
    %5696 = vmatpush1.xpose.msra.mxu0 0.0
    %5697 = vmatprep.subr.mxu0 0.0
    %5698 = vmatpush1.xpose.msra.mxu0 0.0
    %5699 = vmatprep.subr.mxu0 0.0
    %5700 = vmatpush1.xpose.msra.mxu0 0.0
    %5701 = vmatprep.subr.mxu0 0.0
    %5702 = vmatpush1.xpose.msra.mxu0 0.0
    %5703 = vmatprep.subr.mxu0 0.0
    %5704 = vmatpush1.xpose.msra.mxu0 0.0
    %5705 = vmatprep.subr.mxu0 0.0
    %5706 = vmatpush1.xpose.msra.mxu0 0.0
    %5707 = vmatprep.subr.mxu0 0.0
    %5708 = vmatpush1.xpose.msra.mxu0 0.0
    %5709 = vmatprep.subr.mxu0 0.0
    %5710 = vmatpush1.xpose.msra.mxu0 0.0
    %5711 = vmatprep.subr.mxu0 0.0
    %5712 = vmatpush1.xpose.msra.mxu0 0.0
    %5713 = vmatprep.subr.mxu0 0.0
    %5714 = vmatpush1.xpose.msra.mxu0 0.0
    %5715 = vmatprep.subr.mxu0 0.0
    %5716 = vmatpush1.xpose.msra.mxu0 0.0
    %5717 = vmatprep.subr.mxu0 0.0
    %5718 = vmatpush1.xpose.msra.mxu0 %v5685
    %5719 = vmatprep.subr.mxu0 0.0
    %5720 = vmatpush2.xpose.msra.mxu0 0.0
    %5721 = vmatprep.subr.mxu0 0.0
    %5722 = vmatpush2.xpose.msra.mxu0 0.0
    %5723 = vmatprep.subr.mxu0 0.0
    %5724 = vmatpush2.xpose.msra.mxu0 0.0
    %5725 = vmatprep.subr.mxu0 0.0
    %5726 = vmatpush2.xpose.msra.mxu0 0.0
    %5727 = vmatprep.subr.mxu0 0.0
    %5728 = vmatpush2.xpose.msra.mxu0 0.0
    %5729 = vmatprep.subr.mxu0 0.0
    %5730 = vmatpush2.xpose.msra.mxu0 0.0
    %5731 = vmatprep.subr.mxu0 0.0
    %5732 = vmatpush2.xpose.msra.mxu0 0.0
    %5733 = vmatprep.subr.mxu0 0.0
    %5734 = vmatpush2.xpose.msra.mxu0 0.0
    %5735 = vmatprep.subr.mxu0 0.0
    %5736 = vmatpush2.xpose.msra.mxu0 0.0
    %5737 = vmatprep.subr.mxu0 0.0
    %5738 = vmatpush2.xpose.msra.mxu0 0.0
    %5739 = vmatprep.subr.mxu0 0.0
    %5740 = vmatpush2.xpose.msra.mxu0 0.0
    %5741 = vmatprep.subr.mxu0 0.0
    %5742 = vmatpush2.xpose.msra.mxu0 0.0
    %5743 = vmatprep.subr.mxu0 0.0
    %5744 = vmatpush2.xpose.msra.mxu0 0.0
    %5745 = vmatprep.subr.mxu0 0.0
    %5746 = vmatpush2.xpose.msra.mxu0 0.0
    %5747 = vmatprep.subr.mxu0 0.0
    %5748 = vmatpush2.xpose.msra.mxu0 0.0
    %5749 = vmatprep.subr.mxu0 0.0
    %5750 = vmatpush2.xpose.msra.mxu0 0.0
    %5751 = vmatprep.mubr.f32.mxu0 0.0
    %5752 = vmatmul.mubr.f32.gmra.mxu0 %v5683
    %v5753 = vpop.f32.mrf.mxu0
    %v5754 = vadd.f32 0.0, %v5753
    %v5755 = vpop.f32.mrf.mxu0
    %5756 = vdwg.mxu0
    %5757 = vrot.lane.b32.xlu0 %v5298, 96
    %v5758 = vpop.permute.xlu0 %5757
    %v5759 = vsel %vm173, %v5298, 0
    %v5761 = vsel %vm173, %v5758, 0
    %5763 = vmatprep.subr.mxu0 0.0
    %5764 = vmatpush1.xpose.msra.mxu0 0.0
    %5765 = vmatprep.subr.mxu0 0.0
    %5766 = vmatpush1.xpose.msra.mxu0 0.0
    %5767 = vmatprep.subr.mxu0 0.0
    %5768 = vmatpush1.xpose.msra.mxu0 0.0
    %5769 = vmatprep.subr.mxu0 0.0
    %5770 = vmatpush1.xpose.msra.mxu0 0.0
    %5771 = vmatprep.subr.mxu0 0.0
    %5772 = vmatpush1.xpose.msra.mxu0 0.0
    %5773 = vmatprep.subr.mxu0 0.0
    %5774 = vmatpush1.xpose.msra.mxu0 0.0
    %5775 = vmatprep.subr.mxu0 0.0
    %5776 = vmatpush1.xpose.msra.mxu0 0.0
    %5777 = vmatprep.subr.mxu0 0.0
    %5778 = vmatpush1.xpose.msra.mxu0 0.0
    %5779 = vmatprep.subr.mxu0 0.0
    %5780 = vmatpush1.xpose.msra.mxu0 0.0
    %5781 = vmatprep.subr.mxu0 0.0
    %5782 = vmatpush1.xpose.msra.mxu0 0.0
    %5783 = vmatprep.subr.mxu0 0.0
    %5784 = vmatpush1.xpose.msra.mxu0 0.0
    %5785 = vmatprep.subr.mxu0 0.0
    %5786 = vmatpush1.xpose.msra.mxu0 0.0
    %5787 = vmatprep.subr.mxu0 0.0
    %5788 = vmatpush1.xpose.msra.mxu0 0.0
    %5789 = vmatprep.subr.mxu0 0.0
    %5790 = vmatpush1.xpose.msra.mxu0 0.0
    %5791 = vmatprep.subr.mxu0 0.0
    %5792 = vmatpush1.xpose.msra.mxu0 0.0
    %5793 = vmatprep.subr.mxu0 0.0
    %5794 = vmatpush1.xpose.msra.mxu0 %v5761
    %5795 = vmatprep.subr.mxu0 0.0
    %5796 = vmatpush2.xpose.msra.mxu0 0.0
    %5797 = vmatprep.subr.mxu0 0.0
    %5798 = vmatpush2.xpose.msra.mxu0 0.0
    %5799 = vmatprep.subr.mxu0 0.0
    %5800 = vmatpush2.xpose.msra.mxu0 0.0
    %5801 = vmatprep.subr.mxu0 0.0
    %5802 = vmatpush2.xpose.msra.mxu0 0.0
    %5803 = vmatprep.subr.mxu0 0.0
    %5804 = vmatpush2.xpose.msra.mxu0 0.0
    %5805 = vmatprep.subr.mxu0 0.0
    %5806 = vmatpush2.xpose.msra.mxu0 0.0
    %5807 = vmatprep.subr.mxu0 0.0
    %5808 = vmatpush2.xpose.msra.mxu0 0.0
    %5809 = vmatprep.subr.mxu0 0.0
    %5810 = vmatpush2.xpose.msra.mxu0 0.0
    %5811 = vmatprep.subr.mxu0 0.0
    %5812 = vmatpush2.xpose.msra.mxu0 0.0
    %5813 = vmatprep.subr.mxu0 0.0
    %5814 = vmatpush2.xpose.msra.mxu0 0.0
    %5815 = vmatprep.subr.mxu0 0.0
    %5816 = vmatpush2.xpose.msra.mxu0 0.0
    %5817 = vmatprep.subr.mxu0 0.0
    %5818 = vmatpush2.xpose.msra.mxu0 0.0
    %5819 = vmatprep.subr.mxu0 0.0
    %5820 = vmatpush2.xpose.msra.mxu0 0.0
    %5821 = vmatprep.subr.mxu0 0.0
    %5822 = vmatpush2.xpose.msra.mxu0 0.0
    %5823 = vmatprep.subr.mxu0 0.0
    %5824 = vmatpush2.xpose.msra.mxu0 0.0
    %5825 = vmatprep.subr.mxu0 0.0
    %5826 = vmatpush2.xpose.msra.mxu0 0.0
    %5827 = vmatprep.mubr.f32.mxu0 0.0
    %5828 = vmatmul.mubr.f32.gmra.mxu0 %v5759
    %v5829 = vpop.f32.mrf.mxu0
    %v5830 = vadd.f32 0.0, %v5829
    %v5831 = vpop.f32.mrf.mxu0
    %5832 = vdwg.mxu0
    %5833 = vrot.lane.b32.xlu0 %v5300, 96
    %v5834 = vpop.permute.xlu0 %5833
    %v5835 = vsel %vm173, %v5300, 0
    %v5837 = vsel %vm173, %v5834, 0
    %5839 = vmatprep.subr.mxu0 0.0
    %5840 = vmatpush1.xpose.msra.mxu0 0.0
    %5841 = vmatprep.subr.mxu0 0.0
    %5842 = vmatpush1.xpose.msra.mxu0 0.0
    %5843 = vmatprep.subr.mxu0 0.0
    %5844 = vmatpush1.xpose.msra.mxu0 0.0
    %5845 = vmatprep.subr.mxu0 0.0
    %5846 = vmatpush1.xpose.msra.mxu0 0.0
    %5847 = vmatprep.subr.mxu0 0.0
    %5848 = vmatpush1.xpose.msra.mxu0 0.0
    %5849 = vmatprep.subr.mxu0 0.0
    %5850 = vmatpush1.xpose.msra.mxu0 0.0
    %5851 = vmatprep.subr.mxu0 0.0
    %5852 = vmatpush1.xpose.msra.mxu0 0.0
    %5853 = vmatprep.subr.mxu0 0.0
    %5854 = vmatpush1.xpose.msra.mxu0 0.0
    %5855 = vmatprep.subr.mxu0 0.0
    %5856 = vmatpush1.xpose.msra.mxu0 0.0
    %5857 = vmatprep.subr.mxu0 0.0
    %5858 = vmatpush1.xpose.msra.mxu0 0.0
    %5859 = vmatprep.subr.mxu0 0.0
    %5860 = vmatpush1.xpose.msra.mxu0 0.0
    %5861 = vmatprep.subr.mxu0 0.0
    %5862 = vmatpush1.xpose.msra.mxu0 0.0
    %5863 = vmatprep.subr.mxu0 0.0
    %5864 = vmatpush1.xpose.msra.mxu0 0.0
    %5865 = vmatprep.subr.mxu0 0.0
    %5866 = vmatpush1.xpose.msra.mxu0 0.0
    %5867 = vmatprep.subr.mxu0 0.0
    %5868 = vmatpush1.xpose.msra.mxu0 0.0
    %5869 = vmatprep.subr.mxu0 0.0
    %5870 = vmatpush1.xpose.msra.mxu0 %v5837
    %5871 = vmatprep.subr.mxu0 0.0
    %5872 = vmatpush2.xpose.msra.mxu0 0.0
    %5873 = vmatprep.subr.mxu0 0.0
    %5874 = vmatpush2.xpose.msra.mxu0 0.0
    %5875 = vmatprep.subr.mxu0 0.0
    %5876 = vmatpush2.xpose.msra.mxu0 0.0
    %5877 = vmatprep.subr.mxu0 0.0
    %5878 = vmatpush2.xpose.msra.mxu0 0.0
    %5879 = vmatprep.subr.mxu0 0.0
    %5880 = vmatpush2.xpose.msra.mxu0 0.0
    %5881 = vmatprep.subr.mxu0 0.0
    %5882 = vmatpush2.xpose.msra.mxu0 0.0
    %5883 = vmatprep.subr.mxu0 0.0
    %5884 = vmatpush2.xpose.msra.mxu0 0.0
    %5885 = vmatprep.subr.mxu0 0.0
    %5886 = vmatpush2.xpose.msra.mxu0 0.0
    %5887 = vmatprep.subr.mxu0 0.0
    %5888 = vmatpush2.xpose.msra.mxu0 0.0
    %5889 = vmatprep.subr.mxu0 0.0
    %5890 = vmatpush2.xpose.msra.mxu0 0.0
    %5891 = vmatprep.subr.mxu0 0.0
    %5892 = vmatpush2.xpose.msra.mxu0 0.0
    %5893 = vmatprep.subr.mxu0 0.0
    %5894 = vmatpush2.xpose.msra.mxu0 0.0
    %5895 = vmatprep.subr.mxu0 0.0
    %5896 = vmatpush2.xpose.msra.mxu0 0.0
    %5897 = vmatprep.subr.mxu0 0.0
    %5898 = vmatpush2.xpose.msra.mxu0 0.0
    %5899 = vmatprep.subr.mxu0 0.0
    %5900 = vmatpush2.xpose.msra.mxu0 0.0
    %5901 = vmatprep.subr.mxu0 0.0
    %5902 = vmatpush2.xpose.msra.mxu0 0.0
    %5903 = vmatprep.mubr.f32.mxu0 0.0
    %5904 = vmatmul.mubr.f32.gmra.mxu0 %v5835
    %v5905 = vpop.f32.mrf.mxu0
    %v5906 = vadd.f32 0.0, %v5905
    %v5907 = vpop.f32.mrf.mxu0
    %5908 = vdwg.mxu0
    %v5909 = vmul.f32 %v5374, 0.35355338
    %v5910 = vmul.f32 %v5450, 0.35355338
    %v5911 = vmul.f32 %v5526, 0.35355338
    %v5912 = vmul.f32 %v5602, 0.35355338
    %v5913 = vmul.f32 %v5678, 0.35355338
    %v5914 = vmul.f32 %v5754, 0.35355338
    %v5915 = vmul.f32 %v5830, 0.35355338
    %v5916 = vmul.f32 %v5906, 0.35355338
    %v5917 = vsel %vm173, %v5909, -inf
    %5918 = vmax.xlane.f32.xlu0 %v5917
    %v5919 = vpop.xlane.xlu0 %5918
    %v5920 = vsel %vm173, %v5910, -inf
    %5921 = vmax.xlane.f32.xlu0 %v5920
    %v5922 = vpop.xlane.xlu0 %5921
    %v5923 = vsel %vm173, %v5911, -inf
    %5924 = vmax.xlane.f32.xlu0 %v5923
    %v5925 = vpop.xlane.xlu0 %5924
    %v5926 = vsel %vm173, %v5912, -inf
    %5927 = vmax.xlane.f32.xlu0 %v5926
    %v5928 = vpop.xlane.xlu0 %5927
    %v5929 = vsel %vm173, %v5913, -inf
    %5930 = vmax.xlane.f32.xlu0 %v5929
    %v5931 = vpop.xlane.xlu0 %5930
    %v5932 = vsel %vm173, %v5914, -inf
    %5933 = vmax.xlane.f32.xlu0 %v5932
    %v5934 = vpop.xlane.xlu0 %5933
    %v5935 = vsel %vm173, %v5915, -inf
    %5936 = vmax.xlane.f32.xlu0 %v5935
    %v5937 = vpop.xlane.xlu0 %5936
    %v5938 = vsel %vm173, %v5916, -inf
    %5939 = vmax.xlane.f32.xlu0 %v5938
    %v5940 = vpop.xlane.xlu0 %5939
    %v5941 = vsub.f32 %v5909, %v5919
    %v5942 = vsub.f32 %v5910, %v5922
    %v5943 = vsub.f32 %v5911, %v5925
    %v5944 = vsub.f32 %v5912, %v5928
    %v5945 = vsub.f32 %v5913, %v5931
    %v5946 = vsub.f32 %v5914, %v5934
    %v5947 = vsub.f32 %v5915, %v5937
    %v5948 = vsub.f32 %v5916, %v5940
    %v5949 = vmul.f32 %v5941, 1.442695
    %v5950 = vpow.pop %v5949
    %v5951 = vmul.f32 %v5942, 1.442695
    %v5952 = vpow.pop %v5951
    %v5953 = vmul.f32 %v5943, 1.442695
    %v5954 = vpow.pop %v5953
    %v5955 = vmul.f32 %v5944, 1.442695
    %v5956 = vpow.pop %v5955
    %v5957 = vmul.f32 %v5945, 1.442695
    %v5958 = vpow.pop %v5957
    %v5959 = vmul.f32 %v5946, 1.442695
    %v5960 = vpow.pop %v5959
    %v5961 = vmul.f32 %v5947, 1.442695
    %v5962 = vpow.pop %v5961
    %v5963 = vmul.f32 %v5948, 1.442695
    %v5964 = vpow.pop %v5963
    %v5965 = vsel %vm173, %v5950, 0.0
    %5966 = vadd.xlane.f32.xlu0 %v5965
    %v5967 = vpop.xlane.xlu0 %5966
    %v5968 = vsel %vm173, %v5952, 0.0
    %5969 = vadd.xlane.f32.xlu0 %v5968
    %v5970 = vpop.xlane.xlu0 %5969
    %v5971 = vsel %vm173, %v5954, 0.0
    %5972 = vadd.xlane.f32.xlu0 %v5971
    %v5973 = vpop.xlane.xlu0 %5972
    %v5974 = vsel %vm173, %v5956, 0.0
    %5975 = vadd.xlane.f32.xlu0 %v5974
    %v5976 = vpop.xlane.xlu0 %5975
    %v5977 = vsel %vm173, %v5958, 0.0
    %5978 = vadd.xlane.f32.xlu0 %v5977
    %v5979 = vpop.xlane.xlu0 %5978
    %v5980 = vsel %vm173, %v5960, 0.0
    %5981 = vadd.xlane.f32.xlu0 %v5980
    %v5982 = vpop.xlane.xlu0 %5981
    %v5983 = vsel %vm173, %v5962, 0.0
    %5984 = vadd.xlane.f32.xlu0 %v5983
    %v5985 = vpop.xlane.xlu0 %5984
    %v5986 = vsel %vm173, %v5964, 0.0
    %5987 = vadd.xlane.f32.xlu0 %v5986
    %v5988 = vpop.xlane.xlu0 %5987
    %v5989 = vrcp.pop %v5967
    %v5990 = vmul.f32 %v5950, %v5989
    %v5991 = vrcp.pop %v5970
    %v5992 = vmul.f32 %v5952, %v5991
    %v5993 = vrcp.pop %v5973
    %v5994 = vmul.f32 %v5954, %v5993
    %v5995 = vrcp.pop %v5976
    %v5996 = vmul.f32 %v5956, %v5995
    %v5997 = vrcp.pop %v5979
    %v5998 = vmul.f32 %v5958, %v5997
    %v5999 = vrcp.pop %v5982
    %v6000 = vmul.f32 %v5960, %v5999
    %v6001 = vrcp.pop %v5985
    %v6002 = vmul.f32 %v5962, %v6001
    %v6003 = vrcp.pop %v5988
    %v6004 = vmul.f32 %v5964, %v6003
    %6005 = vrot.lane.b32.xlu0 %v5279, 64
    %v6006 = vpop.permute.xlu0 %6005
    %v6009 = vsel %vm173, %v5990, 0
    %6011 = vmatprep.subr.mxu0 0.0
    %6012 = vmatpush1.msra.mxu0 0.0
    %6013 = vmatprep.subr.mxu0 0.0
    %6014 = vmatpush1.msra.mxu0 0.0
    %6015 = vmatprep.subr.mxu0 0.0
    %6016 = vmatpush1.msra.mxu0 0.0
    %6017 = vmatprep.subr.mxu0 0.0
    %6018 = vmatpush1.msra.mxu0 0.0
    %6019 = vmatprep.subr.mxu0 0.0
    %6020 = vmatpush1.msra.mxu0 0.0
    %6021 = vmatprep.subr.mxu0 0.0
    %6022 = vmatpush1.msra.mxu0 0.0
    %6023 = vmatprep.subr.mxu0 0.0
    %6024 = vmatpush1.msra.mxu0 0.0
    %6025 = vmatprep.subr.mxu0 0.0
    %6026 = vmatpush1.msra.mxu0 0.0
    %6027 = vmatprep.subr.mxu0 0.0
    %6028 = vmatpush1.msra.mxu0 0.0
    %6029 = vmatprep.subr.mxu0 0.0
    %6030 = vmatpush1.msra.mxu0 0.0
    %6031 = vmatprep.subr.mxu0 0.0
    %6032 = vmatpush1.msra.mxu0 0.0
    %6033 = vmatprep.subr.mxu0 0.0
    %6034 = vmatpush1.msra.mxu0 0.0
    %6035 = vmatprep.subr.mxu0 0.0
    %6036 = vmatpush1.msra.mxu0 0.0
    %6037 = vmatprep.subr.mxu0 0.0
    %6038 = vmatpush1.msra.mxu0 0.0
    %6039 = vmatprep.subr.mxu0 0.0
    %6040 = vmatpush1.msra.mxu0 0.0
    %6041 = vmatprep.subr.mxu0 0.0
    %6042 = vmatpush1.msra.mxu0 %v6006
    %6043 = vmatprep.subr.mxu0 0.0
    %6044 = vmatpush2.msra.mxu0 0.0
    %6045 = vmatprep.subr.mxu0 0.0
    %6046 = vmatpush2.msra.mxu0 0.0
    %6047 = vmatprep.subr.mxu0 0.0
    %6048 = vmatpush2.msra.mxu0 0.0
    %6049 = vmatprep.subr.mxu0 0.0
    %6050 = vmatpush2.msra.mxu0 0.0
    %6051 = vmatprep.subr.mxu0 0.0
    %6052 = vmatpush2.msra.mxu0 0.0
    %6053 = vmatprep.subr.mxu0 0.0
    %6054 = vmatpush2.msra.mxu0 0.0
    %6055 = vmatprep.subr.mxu0 0.0
    %6056 = vmatpush2.msra.mxu0 0.0
    %6057 = vmatprep.subr.mxu0 0.0
    %6058 = vmatpush2.msra.mxu0 0.0
    %6059 = vmatprep.subr.mxu0 0.0
    %6060 = vmatpush2.msra.mxu0 0.0
    %6061 = vmatprep.subr.mxu0 0.0
    %6062 = vmatpush2.msra.mxu0 0.0
    %6063 = vmatprep.subr.mxu0 0.0
    %6064 = vmatpush2.msra.mxu0 0.0
    %6065 = vmatprep.subr.mxu0 0.0
    %6066 = vmatpush2.msra.mxu0 0.0
    %6067 = vmatprep.subr.mxu0 0.0
    %6068 = vmatpush2.msra.mxu0 0.0
    %6069 = vmatprep.subr.mxu0 0.0
    %6070 = vmatpush2.msra.mxu0 0.0
    %6071 = vmatprep.subr.mxu0 0.0
    %6072 = vmatpush2.msra.mxu0 0.0
    %6073 = vmatprep.subr.mxu0 0.0
    %6074 = vmatpush2.msra.mxu0 0.0
    %6075 = vmatprep.mubr.f32.mxu0 0.0
    %6076 = vmatmul.mubr.f32.gmra.mxu0 %v6009
    %v6077 = vpop.f32.mrf.mxu0
    %v6078 = vadd.f32 0.0, %v6077
    %v6079 = vpop.f32.mrf.mxu0
    %6080 = vdwg.mxu0
    %6081 = vrot.lane.b32.xlu0 %v5284, 64
    %v6082 = vpop.permute.xlu0 %6081
    %v6085 = vsel %vm173, %v5992, 0
    %6087 = vmatprep.subr.mxu0 0.0
    %6088 = vmatpush1.msra.mxu0 0.0
    %6089 = vmatprep.subr.mxu0 0.0
    %6090 = vmatpush1.msra.mxu0 0.0
    %6091 = vmatprep.subr.mxu0 0.0
    %6092 = vmatpush1.msra.mxu0 0.0
    %6093 = vmatprep.subr.mxu0 0.0
    %6094 = vmatpush1.msra.mxu0 0.0
    %6095 = vmatprep.subr.mxu0 0.0
    %6096 = vmatpush1.msra.mxu0 0.0
    %6097 = vmatprep.subr.mxu0 0.0
    %6098 = vmatpush1.msra.mxu0 0.0
    %6099 = vmatprep.subr.mxu0 0.0
    %6100 = vmatpush1.msra.mxu0 0.0
    %6101 = vmatprep.subr.mxu0 0.0
    %6102 = vmatpush1.msra.mxu0 0.0
    %6103 = vmatprep.subr.mxu0 0.0
    %6104 = vmatpush1.msra.mxu0 0.0
    %6105 = vmatprep.subr.mxu0 0.0
    %6106 = vmatpush1.msra.mxu0 0.0
    %6107 = vmatprep.subr.mxu0 0.0
    %6108 = vmatpush1.msra.mxu0 0.0
    %6109 = vmatprep.subr.mxu0 0.0
    %6110 = vmatpush1.msra.mxu0 0.0
    %6111 = vmatprep.subr.mxu0 0.0
    %6112 = vmatpush1.msra.mxu0 0.0
    %6113 = vmatprep.subr.mxu0 0.0
    %6114 = vmatpush1.msra.mxu0 0.0
    %6115 = vmatprep.subr.mxu0 0.0
    %6116 = vmatpush1.msra.mxu0 0.0
    %6117 = vmatprep.subr.mxu0 0.0
    %6118 = vmatpush1.msra.mxu0 %v6082
    %6119 = vmatprep.subr.mxu0 0.0
    %6120 = vmatpush2.msra.mxu0 0.0
    %6121 = vmatprep.subr.mxu0 0.0
    %6122 = vmatpush2.msra.mxu0 0.0
    %6123 = vmatprep.subr.mxu0 0.0
    %6124 = vmatpush2.msra.mxu0 0.0
    %6125 = vmatprep.subr.mxu0 0.0
    %6126 = vmatpush2.msra.mxu0 0.0
    %6127 = vmatprep.subr.mxu0 0.0
    %6128 = vmatpush2.msra.mxu0 0.0
    %6129 = vmatprep.subr.mxu0 0.0
    %6130 = vmatpush2.msra.mxu0 0.0
    %6131 = vmatprep.subr.mxu0 0.0
    %6132 = vmatpush2.msra.mxu0 0.0
    %6133 = vmatprep.subr.mxu0 0.0
    %6134 = vmatpush2.msra.mxu0 0.0
    %6135 = vmatprep.subr.mxu0 0.0
    %6136 = vmatpush2.msra.mxu0 0.0
    %6137 = vmatprep.subr.mxu0 0.0
    %6138 = vmatpush2.msra.mxu0 0.0
    %6139 = vmatprep.subr.mxu0 0.0
    %6140 = vmatpush2.msra.mxu0 0.0
    %6141 = vmatprep.subr.mxu0 0.0
    %6142 = vmatpush2.msra.mxu0 0.0
    %6143 = vmatprep.subr.mxu0 0.0
    %6144 = vmatpush2.msra.mxu0 0.0
    %6145 = vmatprep.subr.mxu0 0.0
    %6146 = vmatpush2.msra.mxu0 0.0
    %6147 = vmatprep.subr.mxu0 0.0
    %6148 = vmatpush2.msra.mxu0 0.0
    %6149 = vmatprep.subr.mxu0 0.0
    %6150 = vmatpush2.msra.mxu0 0.0
    %6151 = vmatprep.mubr.f32.mxu0 0.0
    %6152 = vmatmul.mubr.f32.gmra.mxu0 %v6085
    %v6153 = vpop.f32.mrf.mxu0
    %v6154 = vadd.f32 0.0, %v6153
    %v6155 = vpop.f32.mrf.mxu0
    %6156 = vdwg.mxu0
    %6157 = vrot.lane.b32.xlu0 %v5290, 64
    %v6158 = vpop.permute.xlu0 %6157
    %v6161 = vsel %vm173, %v5994, 0
    %6163 = vmatprep.subr.mxu0 0.0
    %6164 = vmatpush1.msra.mxu0 0.0
    %6165 = vmatprep.subr.mxu0 0.0
    %6166 = vmatpush1.msra.mxu0 0.0
    %6167 = vmatprep.subr.mxu0 0.0
    %6168 = vmatpush1.msra.mxu0 0.0
    %6169 = vmatprep.subr.mxu0 0.0
    %6170 = vmatpush1.msra.mxu0 0.0
    %6171 = vmatprep.subr.mxu0 0.0
    %6172 = vmatpush1.msra.mxu0 0.0
    %6173 = vmatprep.subr.mxu0 0.0
    %6174 = vmatpush1.msra.mxu0 0.0
    %6175 = vmatprep.subr.mxu0 0.0
    %6176 = vmatpush1.msra.mxu0 0.0
    %6177 = vmatprep.subr.mxu0 0.0
    %6178 = vmatpush1.msra.mxu0 0.0
    %6179 = vmatprep.subr.mxu0 0.0
    %6180 = vmatpush1.msra.mxu0 0.0
    %6181 = vmatprep.subr.mxu0 0.0
    %6182 = vmatpush1.msra.mxu0 0.0
    %6183 = vmatprep.subr.mxu0 0.0
    %6184 = vmatpush1.msra.mxu0 0.0
    %6185 = vmatprep.subr.mxu0 0.0
    %6186 = vmatpush1.msra.mxu0 0.0
    %6187 = vmatprep.subr.mxu0 0.0
    %6188 = vmatpush1.msra.mxu0 0.0
    %6189 = vmatprep.subr.mxu0 0.0
    %6190 = vmatpush1.msra.mxu0 0.0
    %6191 = vmatprep.subr.mxu0 0.0
    %6192 = vmatpush1.msra.mxu0 0.0
    %6193 = vmatprep.subr.mxu0 0.0
    %6194 = vmatpush1.msra.mxu0 %v6158
    %6195 = vmatprep.subr.mxu0 0.0
    %6196 = vmatpush2.msra.mxu0 0.0
    %6197 = vmatprep.subr.mxu0 0.0
    %6198 = vmatpush2.msra.mxu0 0.0
    %6199 = vmatprep.subr.mxu0 0.0
    %6200 = vmatpush2.msra.mxu0 0.0
    %6201 = vmatprep.subr.mxu0 0.0
    %6202 = vmatpush2.msra.mxu0 0.0
    %6203 = vmatprep.subr.mxu0 0.0
    %6204 = vmatpush2.msra.mxu0 0.0
    %6205 = vmatprep.subr.mxu0 0.0
    %6206 = vmatpush2.msra.mxu0 0.0
    %6207 = vmatprep.subr.mxu0 0.0
    %6208 = vmatpush2.msra.mxu0 0.0
    %6209 = vmatprep.subr.mxu0 0.0
    %6210 = vmatpush2.msra.mxu0 0.0
    %6211 = vmatprep.subr.mxu0 0.0
    %6212 = vmatpush2.msra.mxu0 0.0
    %6213 = vmatprep.subr.mxu0 0.0
    %6214 = vmatpush2.msra.mxu0 0.0
    %6215 = vmatprep.subr.mxu0 0.0
    %6216 = vmatpush2.msra.mxu0 0.0
    %6217 = vmatprep.subr.mxu0 0.0
    %6218 = vmatpush2.msra.mxu0 0.0
    %6219 = vmatprep.subr.mxu0 0.0
    %6220 = vmatpush2.msra.mxu0 0.0
    %6221 = vmatprep.subr.mxu0 0.0
    %6222 = vmatpush2.msra.mxu0 0.0
    %6223 = vmatprep.subr.mxu0 0.0
    %6224 = vmatpush2.msra.mxu0 0.0
    %6225 = vmatprep.subr.mxu0 0.0
    %6226 = vmatpush2.msra.mxu0 0.0
    %6227 = vmatprep.mubr.f32.mxu0 0.0
    %6228 = vmatmul.mubr.f32.gmra.mxu0 %v6161
    %v6229 = vpop.f32.mrf.mxu0
    %v6230 = vadd.f32 0.0, %v6229
    %v6231 = vpop.f32.mrf.mxu0
    %6232 = vdwg.mxu0
    %6233 = vrot.lane.b32.xlu0 %v5292, 64
    %v6234 = vpop.permute.xlu0 %6233
    %v6237 = vsel %vm173, %v5996, 0
    %6239 = vmatprep.subr.mxu0 0.0
    %6240 = vmatpush1.msra.mxu0 0.0
    %6241 = vmatprep.subr.mxu0 0.0
    %6242 = vmatpush1.msra.mxu0 0.0
    %6243 = vmatprep.subr.mxu0 0.0
    %6244 = vmatpush1.msra.mxu0 0.0
    %6245 = vmatprep.subr.mxu0 0.0
    %6246 = vmatpush1.msra.mxu0 0.0
    %6247 = vmatprep.subr.mxu0 0.0
    %6248 = vmatpush1.msra.mxu0 0.0
    %6249 = vmatprep.subr.mxu0 0.0
    %6250 = vmatpush1.msra.mxu0 0.0
    %6251 = vmatprep.subr.mxu0 0.0
    %6252 = vmatpush1.msra.mxu0 0.0
    %6253 = vmatprep.subr.mxu0 0.0
    %6254 = vmatpush1.msra.mxu0 0.0
    %6255 = vmatprep.subr.mxu0 0.0
    %6256 = vmatpush1.msra.mxu0 0.0
    %6257 = vmatprep.subr.mxu0 0.0
    %6258 = vmatpush1.msra.mxu0 0.0
    %6259 = vmatprep.subr.mxu0 0.0
    %6260 = vmatpush1.msra.mxu0 0.0
    %6261 = vmatprep.subr.mxu0 0.0
    %6262 = vmatpush1.msra.mxu0 0.0
    %6263 = vmatprep.subr.mxu0 0.0
    %6264 = vmatpush1.msra.mxu0 0.0
    %6265 = vmatprep.subr.mxu0 0.0
    %6266 = vmatpush1.msra.mxu0 0.0
    %6267 = vmatprep.subr.mxu0 0.0
    %6268 = vmatpush1.msra.mxu0 0.0
    %6269 = vmatprep.subr.mxu0 0.0
    %6270 = vmatpush1.msra.mxu0 %v6234
    %6271 = vmatprep.subr.mxu0 0.0
    %6272 = vmatpush2.msra.mxu0 0.0
    %6273 = vmatprep.subr.mxu0 0.0
    %6274 = vmatpush2.msra.mxu0 0.0
    %6275 = vmatprep.subr.mxu0 0.0
    %6276 = vmatpush2.msra.mxu0 0.0
    %6277 = vmatprep.subr.mxu0 0.0
    %6278 = vmatpush2.msra.mxu0 0.0
    %6279 = vmatprep.subr.mxu0 0.0
    %6280 = vmatpush2.msra.mxu0 0.0
    %6281 = vmatprep.subr.mxu0 0.0
    %6282 = vmatpush2.msra.mxu0 0.0
    %6283 = vmatprep.subr.mxu0 0.0
    %6284 = vmatpush2.msra.mxu0 0.0
    %6285 = vmatprep.subr.mxu0 0.0
    %6286 = vmatpush2.msra.mxu0 0.0
    %6287 = vmatprep.subr.mxu0 0.0
    %6288 = vmatpush2.msra.mxu0 0.0
    %6289 = vmatprep.subr.mxu0 0.0
    %6290 = vmatpush2.msra.mxu0 0.0
    %6291 = vmatprep.subr.mxu0 0.0
    %6292 = vmatpush2.msra.mxu0 0.0
    %6293 = vmatprep.subr.mxu0 0.0
    %6294 = vmatpush2.msra.mxu0 0.0
    %6295 = vmatprep.subr.mxu0 0.0
    %6296 = vmatpush2.msra.mxu0 0.0
    %6297 = vmatprep.subr.mxu0 0.0
    %6298 = vmatpush2.msra.mxu0 0.0
    %6299 = vmatprep.subr.mxu0 0.0
    %6300 = vmatpush2.msra.mxu0 0.0
    %6301 = vmatprep.subr.mxu0 0.0
    %6302 = vmatpush2.msra.mxu0 0.0
    %6303 = vmatprep.mubr.f32.mxu0 0.0
    %6304 = vmatmul.mubr.f32.gmra.mxu0 %v6237
    %v6305 = vpop.f32.mrf.mxu0
    %v6306 = vadd.f32 0.0, %v6305
    %v6307 = vpop.f32.mrf.mxu0
    %6308 = vdwg.mxu0
    %6309 = vrot.lane.b32.xlu0 %v5294, 64
    %v6310 = vpop.permute.xlu0 %6309
    %v6313 = vsel %vm173, %v5998, 0
    %6315 = vmatprep.subr.mxu0 0.0
    %6316 = vmatpush1.msra.mxu0 0.0
    %6317 = vmatprep.subr.mxu0 0.0
    %6318 = vmatpush1.msra.mxu0 0.0
    %6319 = vmatprep.subr.mxu0 0.0
    %6320 = vmatpush1.msra.mxu0 0.0
    %6321 = vmatprep.subr.mxu0 0.0
    %6322 = vmatpush1.msra.mxu0 0.0
    %6323 = vmatprep.subr.mxu0 0.0
    %6324 = vmatpush1.msra.mxu0 0.0
    %6325 = vmatprep.subr.mxu0 0.0
    %6326 = vmatpush1.msra.mxu0 0.0
    %6327 = vmatprep.subr.mxu0 0.0
    %6328 = vmatpush1.msra.mxu0 0.0
    %6329 = vmatprep.subr.mxu0 0.0
    %6330 = vmatpush1.msra.mxu0 0.0
    %6331 = vmatprep.subr.mxu0 0.0
    %6332 = vmatpush1.msra.mxu0 0.0
    %6333 = vmatprep.subr.mxu0 0.0
    %6334 = vmatpush1.msra.mxu0 0.0
    %6335 = vmatprep.subr.mxu0 0.0
    %6336 = vmatpush1.msra.mxu0 0.0
    %6337 = vmatprep.subr.mxu0 0.0
    %6338 = vmatpush1.msra.mxu0 0.0
    %6339 = vmatprep.subr.mxu0 0.0
    %6340 = vmatpush1.msra.mxu0 0.0
    %6341 = vmatprep.subr.mxu0 0.0
    %6342 = vmatpush1.msra.mxu0 0.0
    %6343 = vmatprep.subr.mxu0 0.0
    %6344 = vmatpush1.msra.mxu0 0.0
    %6345 = vmatprep.subr.mxu0 0.0
    %6346 = vmatpush1.msra.mxu0 %v6310
    %6347 = vmatprep.subr.mxu0 0.0
    %6348 = vmatpush2.msra.mxu0 0.0
    %6349 = vmatprep.subr.mxu0 0.0
    %6350 = vmatpush2.msra.mxu0 0.0
    %6351 = vmatprep.subr.mxu0 0.0
    %6352 = vmatpush2.msra.mxu0 0.0
    %6353 = vmatprep.subr.mxu0 0.0
    %6354 = vmatpush2.msra.mxu0 0.0
    %6355 = vmatprep.subr.mxu0 0.0
    %6356 = vmatpush2.msra.mxu0 0.0
    %6357 = vmatprep.subr.mxu0 0.0
    %6358 = vmatpush2.msra.mxu0 0.0
    %6359 = vmatprep.subr.mxu0 0.0
    %6360 = vmatpush2.msra.mxu0 0.0
    %6361 = vmatprep.subr.mxu0 0.0
    %6362 = vmatpush2.msra.mxu0 0.0
    %6363 = vmatprep.subr.mxu0 0.0
    %6364 = vmatpush2.msra.mxu0 0.0
    %6365 = vmatprep.subr.mxu0 0.0
    %6366 = vmatpush2.msra.mxu0 0.0
    %6367 = vmatprep.subr.mxu0 0.0
    %6368 = vmatpush2.msra.mxu0 0.0
    %6369 = vmatprep.subr.mxu0 0.0
    %6370 = vmatpush2.msra.mxu0 0.0
    %6371 = vmatprep.subr.mxu0 0.0
    %6372 = vmatpush2.msra.mxu0 0.0
    %6373 = vmatprep.subr.mxu0 0.0
    %6374 = vmatpush2.msra.mxu0 0.0
    %6375 = vmatprep.subr.mxu0 0.0
    %6376 = vmatpush2.msra.mxu0 0.0
    %6377 = vmatprep.subr.mxu0 0.0
    %6378 = vmatpush2.msra.mxu0 0.0
    %6379 = vmatprep.mubr.f32.mxu0 0.0
    %6380 = vmatmul.mubr.f32.gmra.mxu0 %v6313
    %v6381 = vpop.f32.mrf.mxu0
    %v6382 = vadd.f32 0.0, %v6381
    %v6383 = vpop.f32.mrf.mxu0
    %6384 = vdwg.mxu0
    %6385 = vrot.lane.b32.xlu0 %v5296, 64
    %v6386 = vpop.permute.xlu0 %6385
    %v6389 = vsel %vm173, %v6000, 0
    %6391 = vmatprep.subr.mxu0 0.0
    %6392 = vmatpush1.msra.mxu0 0.0
    %6393 = vmatprep.subr.mxu0 0.0
    %6394 = vmatpush1.msra.mxu0 0.0
    %6395 = vmatprep.subr.mxu0 0.0
    %6396 = vmatpush1.msra.mxu0 0.0
    %6397 = vmatprep.subr.mxu0 0.0
    %6398 = vmatpush1.msra.mxu0 0.0
    %6399 = vmatprep.subr.mxu0 0.0
    %6400 = vmatpush1.msra.mxu0 0.0
    %6401 = vmatprep.subr.mxu0 0.0
    %6402 = vmatpush1.msra.mxu0 0.0
    %6403 = vmatprep.subr.mxu0 0.0
    %6404 = vmatpush1.msra.mxu0 0.0
    %6405 = vmatprep.subr.mxu0 0.0
    %6406 = vmatpush1.msra.mxu0 0.0
    %6407 = vmatprep.subr.mxu0 0.0
    %6408 = vmatpush1.msra.mxu0 0.0
    %6409 = vmatprep.subr.mxu0 0.0
    %6410 = vmatpush1.msra.mxu0 0.0
    %6411 = vmatprep.subr.mxu0 0.0
    %6412 = vmatpush1.msra.mxu0 0.0
    %6413 = vmatprep.subr.mxu0 0.0
    %6414 = vmatpush1.msra.mxu0 0.0
    %6415 = vmatprep.subr.mxu0 0.0
    %6416 = vmatpush1.msra.mxu0 0.0
    %6417 = vmatprep.subr.mxu0 0.0
    %6418 = vmatpush1.msra.mxu0 0.0
    %6419 = vmatprep.subr.mxu0 0.0
    %6420 = vmatpush1.msra.mxu0 0.0
    %6421 = vmatprep.subr.mxu0 0.0
    %6422 = vmatpush1.msra.mxu0 %v6386
    %6423 = vmatprep.subr.mxu0 0.0
    %6424 = vmatpush2.msra.mxu0 0.0
    %6425 = vmatprep.subr.mxu0 0.0
    %6426 = vmatpush2.msra.mxu0 0.0
    %6427 = vmatprep.subr.mxu0 0.0
    %6428 = vmatpush2.msra.mxu0 0.0
    %6429 = vmatprep.subr.mxu0 0.0
    %6430 = vmatpush2.msra.mxu0 0.0
    %6431 = vmatprep.subr.mxu0 0.0
    %6432 = vmatpush2.msra.mxu0 0.0
    %6433 = vmatprep.subr.mxu0 0.0
    %6434 = vmatpush2.msra.mxu0 0.0
    %6435 = vmatprep.subr.mxu0 0.0
    %6436 = vmatpush2.msra.mxu0 0.0
    %6437 = vmatprep.subr.mxu0 0.0
    %6438 = vmatpush2.msra.mxu0 0.0
    %6439 = vmatprep.subr.mxu0 0.0
    %6440 = vmatpush2.msra.mxu0 0.0
    %6441 = vmatprep.subr.mxu0 0.0
    %6442 = vmatpush2.msra.mxu0 0.0
    %6443 = vmatprep.subr.mxu0 0.0
    %6444 = vmatpush2.msra.mxu0 0.0
    %6445 = vmatprep.subr.mxu0 0.0
    %6446 = vmatpush2.msra.mxu0 0.0
    %6447 = vmatprep.subr.mxu0 0.0
    %6448 = vmatpush2.msra.mxu0 0.0
    %6449 = vmatprep.subr.mxu0 0.0
    %6450 = vmatpush2.msra.mxu0 0.0
    %6451 = vmatprep.subr.mxu0 0.0
    %6452 = vmatpush2.msra.mxu0 0.0
    %6453 = vmatprep.subr.mxu0 0.0
    %6454 = vmatpush2.msra.mxu0 0.0
    %6455 = vmatprep.mubr.f32.mxu0 0.0
    %6456 = vmatmul.mubr.f32.gmra.mxu0 %v6389
    %v6457 = vpop.f32.mrf.mxu0
    %v6458 = vadd.f32 0.0, %v6457
    %v6459 = vpop.f32.mrf.mxu0
    %6460 = vdwg.mxu0
    %6461 = vrot.lane.b32.xlu0 %v5298, 64
    %v6462 = vpop.permute.xlu0 %6461
    %v6465 = vsel %vm173, %v6002, 0
    %6467 = vmatprep.subr.mxu0 0.0
    %6468 = vmatpush1.msra.mxu0 0.0
    %6469 = vmatprep.subr.mxu0 0.0
    %6470 = vmatpush1.msra.mxu0 0.0
    %6471 = vmatprep.subr.mxu0 0.0
    %6472 = vmatpush1.msra.mxu0 0.0
    %6473 = vmatprep.subr.mxu0 0.0
    %6474 = vmatpush1.msra.mxu0 0.0
    %6475 = vmatprep.subr.mxu0 0.0
    %6476 = vmatpush1.msra.mxu0 0.0
    %6477 = vmatprep.subr.mxu0 0.0
    %6478 = vmatpush1.msra.mxu0 0.0
    %6479 = vmatprep.subr.mxu0 0.0
    %6480 = vmatpush1.msra.mxu0 0.0
    %6481 = vmatprep.subr.mxu0 0.0
    %6482 = vmatpush1.msra.mxu0 0.0
    %6483 = vmatprep.subr.mxu0 0.0
    %6484 = vmatpush1.msra.mxu0 0.0
    %6485 = vmatprep.subr.mxu0 0.0
    %6486 = vmatpush1.msra.mxu0 0.0
    %6487 = vmatprep.subr.mxu0 0.0
    %6488 = vmatpush1.msra.mxu0 0.0
    %6489 = vmatprep.subr.mxu0 0.0
    %6490 = vmatpush1.msra.mxu0 0.0
    %6491 = vmatprep.subr.mxu0 0.0
    %6492 = vmatpush1.msra.mxu0 0.0
    %6493 = vmatprep.subr.mxu0 0.0
    %6494 = vmatpush1.msra.mxu0 0.0
    %6495 = vmatprep.subr.mxu0 0.0
    %6496 = vmatpush1.msra.mxu0 0.0
    %6497 = vmatprep.subr.mxu0 0.0
    %6498 = vmatpush1.msra.mxu0 %v6462
    %6499 = vmatprep.subr.mxu0 0.0
    %6500 = vmatpush2.msra.mxu0 0.0
    %6501 = vmatprep.subr.mxu0 0.0
    %6502 = vmatpush2.msra.mxu0 0.0
    %6503 = vmatprep.subr.mxu0 0.0
    %6504 = vmatpush2.msra.mxu0 0.0
    %6505 = vmatprep.subr.mxu0 0.0
    %6506 = vmatpush2.msra.mxu0 0.0
    %6507 = vmatprep.subr.mxu0 0.0
    %6508 = vmatpush2.msra.mxu0 0.0
    %6509 = vmatprep.subr.mxu0 0.0
    %6510 = vmatpush2.msra.mxu0 0.0
    %6511 = vmatprep.subr.mxu0 0.0
    %6512 = vmatpush2.msra.mxu0 0.0
    %6513 = vmatprep.subr.mxu0 0.0
    %6514 = vmatpush2.msra.mxu0 0.0
    %6515 = vmatprep.subr.mxu0 0.0
    %6516 = vmatpush2.msra.mxu0 0.0
    %6517 = vmatprep.subr.mxu0 0.0
    %6518 = vmatpush2.msra.mxu0 0.0
    %6519 = vmatprep.subr.mxu0 0.0
    %6520 = vmatpush2.msra.mxu0 0.0
    %6521 = vmatprep.subr.mxu0 0.0
    %6522 = vmatpush2.msra.mxu0 0.0
    %6523 = vmatprep.subr.mxu0 0.0
    %6524 = vmatpush2.msra.mxu0 0.0
    %6525 = vmatprep.subr.mxu0 0.0
    %6526 = vmatpush2.msra.mxu0 0.0
    %6527 = vmatprep.subr.mxu0 0.0
    %6528 = vmatpush2.msra.mxu0 0.0
    %6529 = vmatprep.subr.mxu0 0.0
    %6530 = vmatpush2.msra.mxu0 0.0
    %6531 = vmatprep.mubr.f32.mxu0 0.0
    %6532 = vmatmul.mubr.f32.gmra.mxu0 %v6465
    %v6533 = vpop.f32.mrf.mxu0
    %v6534 = vadd.f32 0.0, %v6533
    %v6535 = vpop.f32.mrf.mxu0
    %6536 = vdwg.mxu0
    %6537 = vrot.lane.b32.xlu0 %v5300, 64
    %v6538 = vpop.permute.xlu0 %6537
    %v6541 = vsel %vm173, %v6004, 0
    %6543 = vmatprep.subr.mxu0 0.0
    %6544 = vmatpush1.msra.mxu0 0.0
    %6545 = vmatprep.subr.mxu0 0.0
    %6546 = vmatpush1.msra.mxu0 0.0
    %6547 = vmatprep.subr.mxu0 0.0
    %6548 = vmatpush1.msra.mxu0 0.0
    %6549 = vmatprep.subr.mxu0 0.0
    %6550 = vmatpush1.msra.mxu0 0.0
    %6551 = vmatprep.subr.mxu0 0.0
    %6552 = vmatpush1.msra.mxu0 0.0
    %6553 = vmatprep.subr.mxu0 0.0
    %6554 = vmatpush1.msra.mxu0 0.0
    %6555 = vmatprep.subr.mxu0 0.0
    %6556 = vmatpush1.msra.mxu0 0.0
    %6557 = vmatprep.subr.mxu0 0.0
    %6558 = vmatpush1.msra.mxu0 0.0
    %6559 = vmatprep.subr.mxu0 0.0
    %6560 = vmatpush1.msra.mxu0 0.0
    %6561 = vmatprep.subr.mxu0 0.0
    %6562 = vmatpush1.msra.mxu0 0.0
    %6563 = vmatprep.subr.mxu0 0.0
    %6564 = vmatpush1.msra.mxu0 0.0
    %6565 = vmatprep.subr.mxu0 0.0
    %6566 = vmatpush1.msra.mxu0 0.0
    %6567 = vmatprep.subr.mxu0 0.0
    %6568 = vmatpush1.msra.mxu0 0.0
    %6569 = vmatprep.subr.mxu0 0.0
    %6570 = vmatpush1.msra.mxu0 0.0
    %6571 = vmatprep.subr.mxu0 0.0
    %6572 = vmatpush1.msra.mxu0 0.0
    %6573 = vmatprep.subr.mxu0 0.0
    %6574 = vmatpush1.msra.mxu0 %v6538
    %6575 = vmatprep.subr.mxu0 0.0
    %6576 = vmatpush2.msra.mxu0 0.0
    %6577 = vmatprep.subr.mxu0 0.0
    %6578 = vmatpush2.msra.mxu0 0.0
    %6579 = vmatprep.subr.mxu0 0.0
    %6580 = vmatpush2.msra.mxu0 0.0
    %6581 = vmatprep.subr.mxu0 0.0
    %6582 = vmatpush2.msra.mxu0 0.0
    %6583 = vmatprep.subr.mxu0 0.0
    %6584 = vmatpush2.msra.mxu0 0.0
    %6585 = vmatprep.subr.mxu0 0.0
    %6586 = vmatpush2.msra.mxu0 0.0
    %6587 = vmatprep.subr.mxu0 0.0
    %6588 = vmatpush2.msra.mxu0 0.0
    %6589 = vmatprep.subr.mxu0 0.0
    %6590 = vmatpush2.msra.mxu0 0.0
    %6591 = vmatprep.subr.mxu0 0.0
    %6592 = vmatpush2.msra.mxu0 0.0
    %6593 = vmatprep.subr.mxu0 0.0
    %6594 = vmatpush2.msra.mxu0 0.0
    %6595 = vmatprep.subr.mxu0 0.0
    %6596 = vmatpush2.msra.mxu0 0.0
    %6597 = vmatprep.subr.mxu0 0.0
    %6598 = vmatpush2.msra.mxu0 0.0
    %6599 = vmatprep.subr.mxu0 0.0
    %6600 = vmatpush2.msra.mxu0 0.0
    %6601 = vmatprep.subr.mxu0 0.0
    %6602 = vmatpush2.msra.mxu0 0.0
    %6603 = vmatprep.subr.mxu0 0.0
    %6604 = vmatpush2.msra.mxu0 0.0
    %6605 = vmatprep.subr.mxu0 0.0
    %6606 = vmatpush2.msra.mxu0 0.0
    %6607 = vmatprep.mubr.f32.mxu0 0.0
    %6608 = vmatmul.mubr.f32.gmra.mxu0 %v6541
    %v6609 = vpop.f32.mrf.mxu0
    %v6610 = vadd.f32 0.0, %v6609
    %v6611 = vpop.f32.mrf.mxu0
    %6612 = vdwg.mxu0
    %6615 = vrot.lane.b32.xlu0 %v6230, 8
    %v6616 = vpop.permute.xlu0 %6615
    %6617 = vrot.lane.b32.xlu0 %v6306, 8
    %v6618 = vpop.permute.xlu0 %6617
    %6623 = vrot.lane.b32.xlu0 %v6382, 16
    %v6624 = vpop.permute.xlu0 %6623
    %6625 = vrot.lane.b32.xlu0 %v6458, 16
    %v6626 = vpop.permute.xlu0 %6625
    %6631 = vrot.lane.b32.xlu0 %v6534, 24
    %v6632 = vpop.permute.xlu0 %6631
    %6633 = vrot.lane.b32.xlu0 %v6610, 24
    %v6634 = vpop.permute.xlu0 %6633
    %v6637 = vsel %vm173, %v6078, %v6616
    %v6638 = vsel %vm173, %v6154, %v6618
    %v6639 = vsel %vm1510, %v6637, %v6624
    %v6640 = vsel %vm1510, %v6638, %v6626
    %v6641 = vsel %vm1513, %v6639, %v6632
    %v6642 = vsel %vm1513, %v6640, %v6634
    %v6643 = vlaneseq
    %v6644 = vshrl.u32 %v6643, 7
    %v6645 = vsub.s32 0, %v6644
    %v6646 = vrot.slane %v5163, %v6645
    %v6648 = vsel %vm1520, %v6641, 0
    %v6651 = vsel %vm1520, %v6642, 0
    %6653 = vmatprep.subr.mxu0 0.0
    %6654 = vmatpush1.msra.mxu0 0.0
    %6655 = vmatprep.subr.mxu0 0.0
    %6656 = vmatpush1.msra.mxu0 0.0
    %6657 = vmatprep.subr.mxu0 0.0
    %6658 = vmatpush1.msra.mxu0 0.0
    %6659 = vmatprep.subr.mxu0 0.0
    %6660 = vmatpush1.msra.mxu0 0.0
    %6661 = vmatprep.subr.mxu0 0.0
    %6662 = vmatpush1.msra.mxu0 0.0
    %6663 = vmatprep.subr.mxu0 0.0
    %6664 = vmatpush1.msra.mxu0 0.0
    %6665 = vmatprep.subr.mxu0 0.0
    %6666 = vmatpush1.msra.mxu0 0.0
    %6667 = vmatprep.subr.mxu0 0.0
    %6668 = vmatpush1.msra.mxu0 0.0
    %6669 = vmatprep.subr.mxu0 0.0
    %6670 = vmatpush1.msra.mxu0 0.0
    %6671 = vmatprep.subr.mxu0 0.0
    %6672 = vmatpush1.msra.mxu0 0.0
    %6673 = vmatprep.subr.mxu0 0.0
    %6674 = vmatpush1.msra.mxu0 0.0
    %6675 = vmatprep.subr.mxu0 0.0
    %6676 = vmatpush1.msra.mxu0 0.0
    %6677 = vmatprep.subr.mxu0 0.0
    %6678 = vmatpush1.msra.mxu0 %v5158
    %6679 = vmatprep.subr.mxu0 0.0
    %6680 = vmatpush1.msra.mxu0 %v5157
    %6681 = vmatprep.subr.mxu0 0.0
    %6682 = vmatpush1.msra.mxu0 %v5156
    %6683 = vmatprep.subr.mxu0 0.0
    %6684 = vmatpush1.msra.mxu0 %v5155
    %6685 = vmatprep.subr.mxu0 0.0
    %6686 = vmatpush2.msra.mxu0 0.0
    %6687 = vmatprep.subr.mxu0 0.0
    %6688 = vmatpush2.msra.mxu0 0.0
    %6689 = vmatprep.subr.mxu0 0.0
    %6690 = vmatpush2.msra.mxu0 0.0
    %6691 = vmatprep.subr.mxu0 0.0
    %6692 = vmatpush2.msra.mxu0 0.0
    %6693 = vmatprep.subr.mxu0 0.0
    %6694 = vmatpush2.msra.mxu0 0.0
    %6695 = vmatprep.subr.mxu0 0.0
    %6696 = vmatpush2.msra.mxu0 0.0
    %6697 = vmatprep.subr.mxu0 0.0
    %6698 = vmatpush2.msra.mxu0 0.0
    %6699 = vmatprep.subr.mxu0 0.0
    %6700 = vmatpush2.msra.mxu0 0.0
    %6701 = vmatprep.subr.mxu0 0.0
    %6702 = vmatpush2.msra.mxu0 0.0
    %6703 = vmatprep.subr.mxu0 0.0
    %6704 = vmatpush2.msra.mxu0 0.0
    %6705 = vmatprep.subr.mxu0 0.0
    %6706 = vmatpush2.msra.mxu0 0.0
    %6707 = vmatprep.subr.mxu0 0.0
    %6708 = vmatpush2.msra.mxu0 0.0
    %6709 = vmatprep.subr.mxu0 0.0
    %6710 = vmatpush2.msra.mxu0 0.0
    %6711 = vmatprep.subr.mxu0 0.0
    %6712 = vmatpush2.msra.mxu0 0.0
    %6713 = vmatprep.subr.mxu0 0.0
    %6714 = vmatpush2.msra.mxu0 0.0
    %6715 = vmatprep.subr.mxu0 0.0
    %6716 = vmatpush2.msra.mxu0 0.0
    %6717 = vmatprep.mubr.f32.mxu0 0.0
    %6718 = vmatmul.mubr.f32.gmra.mxu0 %v6648
    %v6719 = vpop.f32.mrf.mxu0
    %v6720 = vadd.f32 %v6646, %v6719
    %v6721 = vpop.f32.mrf.mxu0
    %6722 = vmatprep.mubr.f32.mxu0 0.0
    %6723 = vmatmul.mubr.f32.gmra.mxu0 %v6651
    %v6724 = vpop.f32.mrf.mxu0
    %v6725 = vadd.f32 %v6646, %v6724
    %v6726 = vpop.f32.mrf.mxu0
    %6727 = vdwg.mxu0
    %v6728 = vadd.f32 %v5146, %v6720
    %v6729 = vadd.f32 %v5147, %v6725
    %v6730 = vsel %vm1520, %v6728, 0.0
    %6731 = vadd.xlane.f32.xlu0 %v6730
    %v6732 = vpop.xlane.xlu0 %6731
    %v6733 = vsel %vm1520, %v6729, 0.0
    %6734 = vadd.xlane.f32.xlu0 %v6733
    %v6735 = vpop.xlane.xlu0 %6734
    %v6736 = vmul.f32 %v6732, %v1608
    %v6737 = vmul.f32 %v6735, %v1608
    %v6738 = vsub.f32 %v6728, %v6736
    %v6739 = vsub.f32 %v6729, %v6737
    %v6740 = vmul.f32 %v6738, %v6738
    %v6741 = vmul.f32 %v6739, %v6739
    %v6742 = vsel %vm1520, %v6740, 0.0
    %6743 = vadd.xlane.f32.xlu0 %v6742
    %v6744 = vpop.xlane.xlu0 %6743
    %v6745 = vsel %vm1520, %v6741, 0.0
    %6746 = vadd.xlane.f32.xlu0 %v6745
    %v6747 = vpop.xlane.xlu0 %6746
    %v6748 = vmul.f32 %v6744, %v1608
    %v6749 = vmul.f32 %v6747, %v1608
    %v6750 = vadd.f32 %v6748, 1e-05
    %v6751 = vadd.f32 %v6749, 1e-05
    %v6752 = vrsqrt.pop %v6750
    %v6753 = vrsqrt.pop %v6751
    %v6754 = vmul.f32 %v6738, %v6752
    %v6755 = vmul.f32 %v6739, %v6753
    %v6756 = vlaneseq
    %v6757 = vshrl.u32 %v6756, 7
    %v6758 = vsub.s32 4, %v6757
    %v6759 = vrot.slane %v5163, %v6758
    %v6760 = vmul.f32 %v6754, %v6759
    %v6761 = vmul.f32 %v6755, %v6759
    %v6762 = vlaneseq
    %v6763 = vshrl.u32 %v6762, 7
    %v6764 = vsub.s32 5, %v6763
    %v6765 = vrot.slane %v5163, %v6764
    %v6766 = vadd.f32 %v6760, %v6765
    %v6767 = vadd.f32 %v6761, %v6765
    %v6768 = vlaneseq
    %v6769 = vshrl.u32 %v6768, 7
    %v6770 = vsub.s32 1, %v6769
    %v6771 = vrot.slane %v5163, %v6770
    %v6773 = vsel %vm1520, %v6766, 0
    %v6776 = vsel %vm1520, %v6767, 0
    %6778 = vmatprep.subr.mxu0 0.0
    %6779 = vmatpush1.msra.mxu0 0.0
    %6780 = vmatprep.subr.mxu0 0.0
    %6781 = vmatpush1.msra.mxu0 0.0
    %6782 = vmatprep.subr.mxu0 0.0
    %6783 = vmatpush1.msra.mxu0 0.0
    %6784 = vmatprep.subr.mxu0 0.0
    %6785 = vmatpush1.msra.mxu0 0.0
    %6786 = vmatprep.subr.mxu0 0.0
    %6787 = vmatpush1.msra.mxu0 0.0
    %6788 = vmatprep.subr.mxu0 0.0
    %6789 = vmatpush1.msra.mxu0 0.0
    %6790 = vmatprep.subr.mxu0 0.0
    %6791 = vmatpush1.msra.mxu0 0.0
    %6792 = vmatprep.subr.mxu0 0.0
    %6793 = vmatpush1.msra.mxu0 0.0
    %6794 = vmatprep.subr.mxu0 0.0
    %6795 = vmatpush1.msra.mxu0 0.0
    %6796 = vmatprep.subr.mxu0 0.0
    %6797 = vmatpush1.msra.mxu0 0.0
    %6798 = vmatprep.subr.mxu0 0.0
    %6799 = vmatpush1.msra.mxu0 0.0
    %6800 = vmatprep.subr.mxu0 0.0
    %6801 = vmatpush1.msra.mxu0 0.0
    %6802 = vmatprep.subr.mxu0 0.0
    %6803 = vmatpush1.msra.mxu0 %v5162
    %6804 = vmatprep.subr.mxu0 0.0
    %6805 = vmatpush1.msra.mxu0 %v5161
    %6806 = vmatprep.subr.mxu0 0.0
    %6807 = vmatpush1.msra.mxu0 %v5160
    %6808 = vmatprep.subr.mxu0 0.0
    %6809 = vmatpush1.msra.mxu0 %v5159
    %6810 = vmatprep.subr.mxu0 0.0
    %6811 = vmatpush2.msra.mxu0 0.0
    %6812 = vmatprep.subr.mxu0 0.0
    %6813 = vmatpush2.msra.mxu0 0.0
    %6814 = vmatprep.subr.mxu0 0.0
    %6815 = vmatpush2.msra.mxu0 0.0
    %6816 = vmatprep.subr.mxu0 0.0
    %6817 = vmatpush2.msra.mxu0 0.0
    %6818 = vmatprep.subr.mxu0 0.0
    %6819 = vmatpush2.msra.mxu0 0.0
    %6820 = vmatprep.subr.mxu0 0.0
    %6821 = vmatpush2.msra.mxu0 0.0
    %6822 = vmatprep.subr.mxu0 0.0
    %6823 = vmatpush2.msra.mxu0 0.0
    %6824 = vmatprep.subr.mxu0 0.0
    %6825 = vmatpush2.msra.mxu0 0.0
    %6826 = vmatprep.subr.mxu0 0.0
    %6827 = vmatpush2.msra.mxu0 0.0
    %6828 = vmatprep.subr.mxu0 0.0
    %6829 = vmatpush2.msra.mxu0 0.0
    %6830 = vmatprep.subr.mxu0 0.0
    %6831 = vmatpush2.msra.mxu0 0.0
    %6832 = vmatprep.subr.mxu0 0.0
    %6833 = vmatpush2.msra.mxu0 0.0
    %6834 = vmatprep.subr.mxu0 0.0
    %6835 = vmatpush2.msra.mxu0 0.0
    %6836 = vmatprep.subr.mxu0 0.0
    %6837 = vmatpush2.msra.mxu0 0.0
    %6838 = vmatprep.subr.mxu0 0.0
    %6839 = vmatpush2.msra.mxu0 0.0
    %6840 = vmatprep.subr.mxu0 0.0
    %6841 = vmatpush2.msra.mxu0 0.0
    %6842 = vmatprep.mubr.f32.mxu0 0.0
    %6843 = vmatmul.mubr.f32.gmra.mxu0 %v6773
    %v6844 = vpop.f32.mrf.mxu0
    %v6845 = vadd.f32 %v6771, %v6844
    %v6846 = vpop.f32.mrf.mxu0
    %6847 = vmatprep.mubr.f32.mxu0 0.0
    %6848 = vmatmul.mubr.f32.gmra.mxu0 %v6776
    %v6849 = vpop.f32.mrf.mxu0
    %v6850 = vadd.f32 %v6771, %v6849
    %v6851 = vpop.f32.mrf.mxu0
    %6852 = vdwg.mxu0
    %v6853 = vmax.f32 %v6845, 0.0
    %v6854 = vmax.f32 %v6850, 0.0
    %v6855 = vadd.f32 %v6728, %v6853
    %v6856 = vadd.f32 %v6729, %v6854
    %6857 = vst.msk [vmem:[#allocation2] sm:$0xff] %vm1520, %v6855
    %6858 = vst.msk [vmem:[#allocation2 + $0x8] sm:$0xff] %vm1520, %v6856
    // Predicated region
    $region14: #{tpu_custom_call.1} parent=1 // pred_check
      _
    $region15: #{tpu_custom_call.1} parent=1 // pred_check_branch
      %6860 = sbr.rel (0) target = $region17
    $region16: #{tpu_custom_call.1} parent=1 // pred_region
      %s6862 = ssub.s32 256, 256
      %6863 = vsyncadd [#allocation3], %s6862
      %s6864 = sshll.u32 [#allocation2], 4
      %s6865 = int_to_ptr.vmem [resolvable:$true] %s6864
      %6870 = dma.vmem_to_hbm [thread:$0]  %s6865, 256, %s3, [#allocation3], 128, 128, 8
    $region17: #{tpu_custom_call.1} parent=1 // pred_fallthru
      _
    // Predicated region
    $region18: #{tpu_custom_call.1} parent=1 // pred_check
      _
    $region19: #{tpu_custom_call.1} parent=1 // pred_check_branch
      %6872 = sbr.rel (0) target = $region21
    $region20: #{tpu_custom_call.1} parent=1 // pred_region
      %6873 = dma.done [#allocation3], 256
    $region21: #{tpu_custom_call.1} parent=1 // pred_fallthru
      _
    %6874 = vsyncpa [#allocation3], 1

</llo_original>
